<compile_context>
chip_gen: v7x
topology: tpu7x:2x2x1
jax: 0.10.0
libtpu: 0.0.40
codegen_flags: <defaults>
</compile_context>

<pallas_src>
import functools

import jax
import jax.numpy as jnp
from jax.experimental import pallas as pl
from jax.experimental.pallas import tpu as pltpu


# ---------------------------------------------------------------------------
# Fully fused kernel:
#   encoder fc1->relu, fc2->relu, fc3->relu, running max over point row-tiles,
#   then (last row tile per batch) encoder fc4, decoder fc1->relu, decoder fc2.
# Grid: (batch, row_tiles).  d_w2 lives in HBM (pl.ANY) and is DMA'd once into
# a resident VMEM scratch, overlapping the encoder loop.
# ---------------------------------------------------------------------------
def _fused_ae_kernel(x_ref, w1_ref, b1_ref, w2_ref, b2_ref, w3_ref, b3_ref,
                     w4_ref, b4_ref, dw1_ref, db1_ref, db2_ref, dw2_hbm,
                     latent_ref, rec_ref,
                     max_acc, dw2_vmem, dw2_sem,
                     *, fc3_chunk, n_points, row_tile):
    b = pl.program_id(0)
    r = pl.program_id(1)

    # ---- kick off the big decoder-fc2 weight DMA once; hides behind encoder --
    @pl.when((b == 0) & (r == 0))
    def _():
        pltpu.make_async_copy(dw2_hbm, dw2_vmem, dw2_sem).start()

    # ---- fc1 (K = input_dim, tiny): VPU broadcast FMAs, skip the MXU ----
    x = x_ref[0]                                            # (row_tile, in_dim) f32
    w1 = w1_ref[...].astype(jnp.float32)                    # (in_dim, 64)
    acc = x[:, 0:1] * w1[0:1, :]
    for k in range(1, x.shape[1]):
        acc = acc + x[:, k:k + 1] * w1[k:k + 1, :]
    h1 = jnp.maximum(acc + b1_ref[...], 0.0).astype(jnp.bfloat16)   # (rt, 64)

    # ---- fc2 on MXU (bf16 x bf16 -> f32 accumulate) ----
    h2 = jnp.maximum(
        jnp.dot(h1, w2_ref[...], preferred_element_type=jnp.float32)
        + b2_ref[...], 0.0).astype(jnp.bfloat16)                    # (rt, 128)

    # ---- running max over points: init once per batch.
    #      0 is a valid identity ONLY because fc3 output is post-ReLU (>= 0).
    @pl.when(r == 0)
    def _():
        max_acc[...] = jnp.zeros_like(max_acc)

    # ---- tail-row mask (materialized only when row_tile does not divide N) ----
    if n_points % row_tile != 0:
        row_ids = r * row_tile + jax.lax.broadcasted_iota(
            jnp.int32, (row_tile, 1), 0)
        valid = row_ids < n_points
    else:
        valid = None

    # ---- fc3 (-> 1024) in column chunks; fold the max in per chunk so the
    #      (row_tile, 1024) f32 intermediate never fully materializes ----
    n_cols = w3_ref.shape[1]
    for c in range(0, n_cols, fc3_chunk):
        sl = pl.ds(c, fc3_chunk)
        h3c = jnp.maximum(
            jnp.dot(h2, w3_ref[:, sl], preferred_element_type=jnp.float32)
            + b3_ref[:, sl], 0.0)                                   # (rt, chunk)
        if valid is not None:
            h3c = jnp.where(valid, h3c, 0.0)   # handles OOB garbage incl. NaN
        max_acc[:, sl] = jnp.maximum(max_acc[:, sl],
                                     jnp.max(h3c, axis=0, keepdims=True))

    # ---- finalize on the last row tile: fc4, decoder fc1(+relu), decoder fc2 --
    @pl.when(r == pl.num_programs(1) - 1)
    def _():
        pooled = max_acc[...].astype(jnp.bfloat16)                  # (1, 1024)
        latent = (jnp.dot(pooled, w4_ref[...],
                          preferred_element_type=jnp.float32)
                  + b4_ref[...])                                    # (1, feat)
        latent_ref[0] = latent

        hdec = jnp.maximum(
            jnp.dot(latent.astype(jnp.bfloat16), dw1_ref[...],
                    preferred_element_type=jnp.float32)
            + db1_ref[...], 0.0)                                    # (1, 1024)

        # d_w2 must have landed before the final matmul; only the first batch
        # ever needs (and may legally perform) the wait.
        @pl.when(b == 0)
        def _():
            pltpu.make_async_copy(dw2_hbm, dw2_vmem, dw2_sem).wait()

        rec_ref[0] = (jnp.dot(hdec.astype(jnp.bfloat16), dw2_vmem[...],
                              preferred_element_type=jnp.float32)
                      + db2_ref[...])                               # (1, n_out)


def pointcloud_autoencoder(x, p, *, output_dim=3, row_tile_cap=1024,
                           fc3_chunk=256):
    assert row_tile_cap % 8 == 0
    B, N, D = x.shape
    feat = p["e_w4"].shape[1]
    n_out = p["d_w2"].shape[1]

    # Corner case only: fewer than 8 points -> duplicate-pad to 8 (duplicates
    # never change a max-pool).  No host padding for realistic N.
    if N < 8:
        pad = jnp.broadcast_to(x[:, :1, :], (B, 8 - N, D))
        x = jnp.concatenate([x, pad], axis=1)
        N = 8

    row_tile = min(row_tile_cap, (N // 8) * 8)     # multiple of 8, <= N
    rt_steps = pl.cdiv(N, row_tile)                # boundary tile masked in-kernel

    def full(a):
        return pl.BlockSpec(a.shape, lambda b, r: (0,) * a.ndim)

    kernel = functools.partial(_fused_ae_kernel, fc3_chunk=fc3_chunk,
                               n_points=N, row_tile=row_tile)

    latent, rec = pl.pallas_call(
        kernel,
        out_shape=(jax.ShapeDtypeStruct((B, 1, feat), jnp.float32),
                   jax.ShapeDtypeStruct((B, 1, n_out), jnp.float32)),
        grid_spec=pltpu.PrefetchScalarGridSpec(
            num_scalar_prefetch=0,
            grid=(B, rt_steps),
            in_specs=[
                pl.BlockSpec((1, row_tile, D), lambda b, r: (b, r, 0)),
                full(p["e_w1"]), full(p["e_b1"]),
                full(p["e_w2"]), full(p["e_b2"]),
                full(p["e_w3"]), full(p["e_b3"]),
                full(p["e_w4"]), full(p["e_b4"]),
                full(p["d_w1"]), full(p["d_b1"]),
                full(p["d_b2"]),
                pl.BlockSpec(memory_space=pl.ANY),   # d_w2 stays in HBM, manual DMA
            ],
            out_specs=[
                pl.BlockSpec((1, 1, feat), lambda b, r: (b, 0, 0)),
                pl.BlockSpec((1, 1, n_out), lambda b, r: (b, 0, 0)),
            ],
            scratch_shapes=[
                pltpu.VMEM((1, p["e_w3"].shape[1]), jnp.float32),   # running max
                pltpu.VMEM(p["d_w2"].shape, p["d_w2"].dtype),       # resident d_w2
                pltpu.SemaphoreType.DMA(()),
            ]),
        compiler_params=pltpu.CompilerParams(
            # Batch axis must be sequential so the single d_w2 DMA + residency
            # is valid on every generation (v5e/v6e single TC anyway).
            dimension_semantics=("arbitrary", "arbitrary"),
            vmem_limit_bytes=32 * 1024 * 1024),
    )(x, p["e_w1"], p["e_b1"], p["e_w2"], p["e_b2"], p["e_w3"], p["e_b3"],
      p["e_w4"], p["e_b4"], p["d_w1"], p["d_b1"], p["d_b2"], p["d_w2"])

    return latent.reshape(B, feat), rec.reshape(B, -1, output_dim)


# ---------------------------------------------------------------------------
# Parameter init (PyTorch-Linear-like uniform(-1/sqrt(in), 1/sqrt(in))).
# Weights are cast ONCE to bf16 (streamed as bf16, accumulated in f32);
# biases stay f32.  NOTE: bf16 weights => small drift vs a true f32 torch model.
# ---------------------------------------------------------------------------
def _init_linear(key, in_f, out_f):
    kw, kb = jax.random.split(key)
    bound = 1.0 / jnp.sqrt(jnp.float32(in_f))
    w = jax.random.uniform(kw, (in_f, out_f), jnp.float32, -bound, bound)
    b = jax.random.uniform(kb, (1, out_f), jnp.float32, -bound, bound)
    return w.astype(jnp.bfloat16), b


def init_params(key, input_dim=3, feature_dim=256, output_dim=3):
    keys = jax.random.split(key, 6)
    p = {}
    # Encoder: input_dim -> 64 -> 128 -> 1024 --(max over points)--> feature_dim
    p["e_w1"], p["e_b1"] = _init_linear(keys[0], input_dim, 64)
    p["e_w2"], p["e_b2"] = _init_linear(keys[1], 64, 128)
    p["e_w3"], p["e_b3"] = _init_linear(keys[2], 128, 1024)
    p["e_w4"], p["e_b4"] = _init_linear(keys[3], 1024, feature_dim)
    # Decoder: feature_dim -> 1024 -> 1024*output_dim (1024 hardcoded as in torch)
    p["d_w1"], p["d_b1"] = _init_linear(keys[4], feature_dim, 1024)
    p["d_w2"], p["d_b2"] = _init_linear(keys[5], 1024, 1024 * output_dim)
    return p


# ---------------------------------------------------------------------------
# Plain-JAX reference (same bf16-weight / f32-accumulate precision recipe)
# ---------------------------------------------------------------------------
def reference_forward(x, p, *, output_dim=3):
    B, N, _ = x.shape
    f32 = jnp.float32
    xf = x.reshape(B * N, -1)
    w1 = p["e_w1"].astype(f32)
    acc = xf[:, 0:1] * w1[0:1, :]
    for k in range(1, xf.shape[1]):
        acc = acc + xf[:, k:k + 1] * w1[k:k + 1, :]
    h = jnp.maximum(acc + p["e_b1"], 0.0)
    h = jnp.maximum(
        jnp.dot(h.astype(jnp.bfloat16), p["e_w2"],
                preferred_element_type=f32) + p["e_b2"], 0.0)
    h = jnp.maximum(
        jnp.dot(h.astype(jnp.bfloat16), p["e_w3"],
                preferred_element_type=f32) + p["e_b3"], 0.0)
    pooled = jnp.max(h.reshape(B, N, -1), axis=1)
    latent = jnp.dot(pooled.astype(jnp.bfloat16), p["e_w4"],
                     preferred_element_type=f32) + p["e_b4"]
    d = jnp.maximum(
        jnp.dot(latent.astype(jnp.bfloat16), p["d_w1"],
                preferred_element_type=f32) + p["d_b1"], 0.0)
    rec = (jnp.dot(d.astype(jnp.bfloat16), p["d_w2"],
                   preferred_element_type=f32) + p["d_b2"])
    return latent, rec.reshape(B, -1, output_dim)


if __name__ == "__main__":
    key = jax.random.PRNGKey(0)
    k_x, k_p, k_x2 = jax.random.split(key, 3)

    B, INPUT_DIM, FEATURE_DIM, OUTPUT_DIM = 2, 3, 256, 3
    params = init_params(k_p, input_dim=INPUT_DIM,
                         feature_dim=FEATURE_DIM, output_dim=OUTPUT_DIM)

    fwd = jax.jit(functools.partial(pointcloud_autoencoder,
                                    output_dim=OUTPUT_DIM))

    # Case 1: N fits in a single row tile exactly (no tail masking).
    x1 = jax.random.normal(k_x, (B, 64, INPUT_DIM), jnp.float32)
    lat1, rec1 = fwd(x1, params)
    jax.block_until_ready((lat1, rec1))
    assert lat1.shape == (B, FEATURE_DIM), lat1.shape
    assert rec1.shape == (B, 1024, OUTPUT_DIM), rec1.shape
    lr1, rr1 = reference_forward(x1, params, output_dim=OUTPUT_DIM)
    assert jnp.allclose(lat1, lr1, atol=2e-3, rtol=2e-3), \
        float(jnp.max(jnp.abs(lat1 - lr1)))
    assert jnp.allclose(rec1, rr1, atol=2e-3, rtol=2e-3), \
        float(jnp.max(jnp.abs(rec1 - rr1)))

    # Case 2: multiple row tiles with a boundary tile -> exercises the
    # in-kernel tail-row masking and the running-max accumulator.
    fwd2 = jax.jit(functools.partial(pointcloud_autoencoder,
                                     output_dim=OUTPUT_DIM, row_tile_cap=64))
    x2 = jax.random.normal(k_x2, (B, 96, INPUT_DIM), jnp.float32)
    lat2, rec2 = fwd2(x2, params)
    jax.block_until_ready((lat2, rec2))
    lr2, rr2 = reference_forward(x2, params, output_dim=OUTPUT_DIM)
    assert jnp.allclose(lat2, lr2, atol=2e-3, rtol=2e-3), \
        float(jnp.max(jnp.abs(lat2 - lr2)))
    assert jnp.allclose(rec2, rr2, atol=2e-3, rtol=2e-3), \
        float(jnp.max(jnp.abs(rec2 - rr2)))

    print("KERNEL_OK")
</pallas_src>

<mosaic_0001>
module attributes {stable_mosaic.version = 11 : i64} {
  func.func @_fused_ae_kernel(%arg0: i32, %arg1: i32, %arg2: memref<1x64x3xf32, #tpu.memory_space<vmem>>, %arg3: memref<3x64xbf16, #tpu.memory_space<vmem>>, %arg4: memref<1x64xf32, #tpu.memory_space<vmem>>, %arg5: memref<64x128xbf16, #tpu.memory_space<vmem>>, %arg6: memref<1x128xf32, #tpu.memory_space<vmem>>, %arg7: memref<128x1024xbf16, #tpu.memory_space<vmem>>, %arg8: memref<1x1024xf32, #tpu.memory_space<vmem>>, %arg9: memref<1024x256xbf16, #tpu.memory_space<vmem>>, %arg10: memref<1x256xf32, #tpu.memory_space<vmem>>, %arg11: memref<256x1024xbf16, #tpu.memory_space<vmem>>, %arg12: memref<1x1024xf32, #tpu.memory_space<vmem>>, %arg13: memref<1x3072xf32, #tpu.memory_space<vmem>>, %arg14: memref<1024x3072xbf16, #tpu.memory_space<any>>, %arg15: memref<1x1x256xf32, #tpu.memory_space<vmem>>, %arg16: memref<1x1x3072xf32, #tpu.memory_space<vmem>>, %arg17: memref<1x1024xf32, #tpu.memory_space<vmem>>, %arg18: memref<1024x3072xbf16, #tpu.memory_space<vmem>>, %arg19: memref<!tpu.dma_semaphore, #tpu.memory_space<semaphore_mem>>) attributes {dimension_semantics = [#tpu.dimension_semantics<arbitrary>, #tpu.dimension_semantics<arbitrary>], iteration_bounds = array<i64: 2, 1>, scalar_prefetch = 0 : i64, scratch_operands = 3 : i64, tpu.core_type = #tpu.core_type<tc>, window_params = [{transform_indices = @transform_0, window_bounds = array<i64: 1, 64, 3>}, {pipeline_mode = #tpu.pipeline_mode<synchronous>, transform_indices = @transform_1, window_bounds = array<i64: 3, 64>}, {pipeline_mode = #tpu.pipeline_mode<synchronous>, transform_indices = @transform_2, window_bounds = array<i64: 1, 64>}, {pipeline_mode = #tpu.pipeline_mode<synchronous>, transform_indices = @transform_3, window_bounds = array<i64: 64, 128>}, {pipeline_mode = #tpu.pipeline_mode<synchronous>, transform_indices = @transform_4, window_bounds = array<i64: 1, 128>}, {pipeline_mode = #tpu.pipeline_mode<synchronous>, transform_indices = @transform_5, window_bounds = array<i64: 128, 1024>}, {pipeline_mode = #tpu.pipeline_mode<synchronous>, transform_indices = @transform_6, window_bounds = array<i64: 1, 1024>}, {pipeline_mode = #tpu.pipeline_mode<synchronous>, transform_indices = @transform_7, window_bounds = array<i64: 1024, 256>}, {pipeline_mode = #tpu.pipeline_mode<synchronous>, transform_indices = @transform_8, window_bounds = array<i64: 1, 256>}, {pipeline_mode = #tpu.pipeline_mode<synchronous>, transform_indices = @transform_9, window_bounds = array<i64: 256, 1024>}, {pipeline_mode = #tpu.pipeline_mode<synchronous>, transform_indices = @transform_10, window_bounds = array<i64: 1, 1024>}, {pipeline_mode = #tpu.pipeline_mode<synchronous>, transform_indices = @transform_11, window_bounds = array<i64: 1, 3072>}, {}, {transform_indices = @transform_13, window_bounds = array<i64: 1, 1, 256>}, {transform_indices = @transform_14, window_bounds = array<i64: 1, 1, 3072>}]} {
    %c0_i32 = arith.constant 0 : i32
    %0 = arith.cmpi eq, %arg0, %c0_i32 : i32
    %c0_i32_0 = arith.constant 0 : i32
    %1 = arith.cmpi eq, %arg1, %c0_i32_0 : i32
    %2 = arith.andi %0, %1 : i1
    %3 = arith.extui %2 : i1 to i32
    %c0_i32_1 = arith.constant 0 : i32
    %4 = arith.cmpi ne, %3, %c0_i32_1 : i32
    scf.if %4 {
      tpu.enqueue_dma source(%arg14 : memref<1024x3072xbf16, #tpu.memory_space<any>>) target(%arg18 : memref<1024x3072xbf16, #tpu.memory_space<vmem>>) target_semaphore(%arg19 : memref<!tpu.dma_semaphore, #tpu.memory_space<semaphore_mem>>)
    } else {
    }
    %c0 = arith.constant 0 : index
    %c0_2 = arith.constant 0 : index
    %c0_3 = arith.constant 0 : index
    %5 = vector.load %arg2[%c0, %c0_2, %c0_3] : memref<1x64x3xf32, #tpu.memory_space<vmem>>, vector<1x64x3xf32>
    %6 = vector.shape_cast %5 : vector<1x64x3xf32> to vector<64x3xf32>
    %c0_4 = arith.constant 0 : index
    %c0_5 = arith.constant 0 : index
    %7 = vector.load %arg3[%c0_4, %c0_5] : memref<3x64xbf16, #tpu.memory_space<vmem>>, vector<3x64xbf16>
    %8 = arith.extf %7 : vector<3x64xbf16> to vector<3x64xf32>
    %9 = vector.extract_strided_slice %6 {offsets = [0, 0], sizes = [64, 1], strides = [1, 1]} : vector<64x3xf32> to vector<64x1xf32>
    %10 = vector.extract_strided_slice %8 {offsets = [0, 0], sizes = [1, 64], strides = [1, 1]} : vector<3x64xf32> to vector<1x64xf32>
    %11 = vector.broadcast %9 : vector<64x1xf32> to vector<64x64xf32>
    %12 = vector.broadcast %10 : vector<1x64xf32> to vector<64x64xf32>
    %13 = arith.mulf %11, %12 : vector<64x64xf32>
    %14 = vector.extract_strided_slice %6 {offsets = [0, 1], sizes = [64, 1], strides = [1, 1]} : vector<64x3xf32> to vector<64x1xf32>
    %15 = vector.extract_strided_slice %8 {offsets = [1, 0], sizes = [1, 64], strides = [1, 1]} : vector<3x64xf32> to vector<1x64xf32>
    %16 = vector.broadcast %14 : vector<64x1xf32> to vector<64x64xf32>
    %17 = vector.broadcast %15 : vector<1x64xf32> to vector<64x64xf32>
    %18 = arith.mulf %16, %17 : vector<64x64xf32>
    %19 = arith.addf %13, %18 : vector<64x64xf32>
    %20 = vector.extract_strided_slice %6 {offsets = [0, 2], sizes = [64, 1], strides = [1, 1]} : vector<64x3xf32> to vector<64x1xf32>
    %21 = vector.extract_strided_slice %8 {offsets = [2, 0], sizes = [1, 64], strides = [1, 1]} : vector<3x64xf32> to vector<1x64xf32>
    %22 = vector.broadcast %20 : vector<64x1xf32> to vector<64x64xf32>
    %23 = vector.broadcast %21 : vector<1x64xf32> to vector<64x64xf32>
    %24 = arith.mulf %22, %23 : vector<64x64xf32>
    %25 = arith.addf %19, %24 : vector<64x64xf32>
    %c0_6 = arith.constant 0 : index
    %c0_7 = arith.constant 0 : index
    %26 = vector.load %arg4[%c0_6, %c0_7] : memref<1x64xf32, #tpu.memory_space<vmem>>, vector<1x64xf32>
    %27 = vector.broadcast %26 : vector<1x64xf32> to vector<64x64xf32>
    %28 = arith.addf %25, %27 : vector<64x64xf32>
    %cst = arith.constant 0.000000e+00 : f32
    %29 = vector.broadcast %cst : f32 to vector<64x64xf32>
    %30 = arith.maximumf %28, %29 : vector<64x64xf32>
    %31 = arith.truncf %30 : vector<64x64xf32> to vector<64x64xbf16>
    %c0_8 = arith.constant 0 : index
    %c0_9 = arith.constant 0 : index
    %32 = vector.load %arg5[%c0_8, %c0_9] : memref<64x128xbf16, #tpu.memory_space<vmem>>, vector<64x128xbf16>
    %cst_10 = arith.constant dense<0.000000e+00> : vector<64x128xf32>
    %33 = tpu.matmul %31, %32, %cst_10 {dimension_numbers = #tpu.dot_dimension_numbers<[1], [0], [0], [1], [0, 0, 1, 1], [], []>} : vector<64x64xbf16>, vector<64x128xbf16>, vector<64x128xf32> -> vector<64x128xf32>
    %c0_11 = arith.constant 0 : index
    %c0_12 = arith.constant 0 : index
    %34 = vector.load %arg6[%c0_11, %c0_12] : memref<1x128xf32, #tpu.memory_space<vmem>>, vector<1x128xf32>
    %35 = vector.broadcast %34 : vector<1x128xf32> to vector<64x128xf32>
    %36 = arith.addf %33, %35 : vector<64x128xf32>
    %cst_13 = arith.constant 0.000000e+00 : f32
    %37 = vector.broadcast %cst_13 : f32 to vector<64x128xf32>
    %38 = arith.maximumf %36, %37 : vector<64x128xf32>
    %39 = arith.truncf %38 : vector<64x128xf32> to vector<64x128xbf16>
    %c0_i32_14 = arith.constant 0 : i32
    %40 = arith.cmpi eq, %arg1, %c0_i32_14 : i32
    %41 = arith.extui %40 : i1 to i32
    %c0_i32_15 = arith.constant 0 : i32
    %42 = arith.cmpi ne, %41, %c0_i32_15 : i32
    scf.if %42 {
      %cst_59 = arith.constant 0.000000e+00 : f32
      %94 = vector.broadcast %cst_59 : f32 to vector<1x1024xf32>
      %c0_60 = arith.constant 0 : index
      %c0_61 = arith.constant 0 : index
      %95 = vector.load %arg17[%c0_60, %c0_61] : memref<1x1024xf32, #tpu.memory_space<vmem>>, vector<1x1024xf32>
      tpu.vector_store %arg17[%c0_60, %c0_61], %94 {strides = array<i32>} : memref<1x1024xf32, #tpu.memory_space<vmem>>, vector<1x1024xf32>,
    } else {
    }
    %c0_16 = arith.constant 0 : index
    %c0_17 = arith.constant 0 : index
    %43 = vector.load %arg7[%c0_16, %c0_17] : memref<128x1024xbf16, #tpu.memory_space<vmem>>, vector<128x256xbf16>
    %cst_18 = arith.constant dense<0.000000e+00> : vector<64x256xf32>
    %44 = tpu.matmul %39, %43, %cst_18 {dimension_numbers = #tpu.dot_dimension_numbers<[1], [0], [0], [1], [0, 0, 1, 1], [], []>} : vector<64x128xbf16>, vector<128x256xbf16>, vector<64x256xf32> -> vector<64x256xf32>
    %c0_19 = arith.constant 0 : index
    %c0_20 = arith.constant 0 : index
    %45 = vector.load %arg8[%c0_19, %c0_20] : memref<1x1024xf32, #tpu.memory_space<vmem>>, vector<1x256xf32>
    %46 = vector.broadcast %45 : vector<1x256xf32> to vector<64x256xf32>
    %47 = arith.addf %44, %46 : vector<64x256xf32>
    %cst_21 = arith.constant 0.000000e+00 : f32
    %48 = vector.broadcast %cst_21 : f32 to vector<64x256xf32>
    %49 = arith.maximumf %47, %48 : vector<64x256xf32>
    %c0_22 = arith.constant 0 : index
    %c0_23 = arith.constant 0 : index
    %50 = vector.load %arg17[%c0_22, %c0_23] : memref<1x1024xf32, #tpu.memory_space<vmem>>, vector<1x256xf32>
    %cst_24 = arith.constant dense<0xFF800000> : vector<256xf32>
    %51 = vector.multi_reduction <maximumf>, %49, %cst_24 [0] : vector<64x256xf32> to vector<256xf32>
    %52 = vector.shape_cast %51 : vector<256xf32> to vector<1x256xf32>
    %53 = arith.maximumf %50, %52 : vector<1x256xf32>
    %c0_25 = arith.constant 0 : index
    %c0_26 = arith.constant 0 : index
    %54 = vector.load %arg17[%c0_25, %c0_26] : memref<1x1024xf32, #tpu.memory_space<vmem>>, vector<1x256xf32>
    tpu.vector_store %arg17[%c0_25, %c0_26], %53 {strides = array<i32>} : memref<1x1024xf32, #tpu.memory_space<vmem>>, vector<1x256xf32>,
    %c0_27 = arith.constant 0 : index
    %c256 = arith.constant 256 : index
    %55 = vector.load %arg7[%c0_27, %c256] : memref<128x1024xbf16, #tpu.memory_space<vmem>>, vector<128x256xbf16>
    %cst_28 = arith.constant dense<0.000000e+00> : vector<64x256xf32>
    %56 = tpu.matmul %39, %55, %cst_28 {dimension_numbers = #tpu.dot_dimension_numbers<[1], [0], [0], [1], [0, 0, 1, 1], [], []>} : vector<64x128xbf16>, vector<128x256xbf16>, vector<64x256xf32> -> vector<64x256xf32>
    %c0_29 = arith.constant 0 : index
    %c256_30 = arith.constant 256 : index
    %57 = vector.load %arg8[%c0_29, %c256_30] : memref<1x1024xf32, #tpu.memory_space<vmem>>, vector<1x256xf32>
    %58 = vector.broadcast %57 : vector<1x256xf32> to vector<64x256xf32>
    %59 = arith.addf %56, %58 : vector<64x256xf32>
    %cst_31 = arith.constant 0.000000e+00 : f32
    %60 = vector.broadcast %cst_31 : f32 to vector<64x256xf32>
    %61 = arith.maximumf %59, %60 : vector<64x256xf32>
    %c0_32 = arith.constant 0 : index
    %c256_33 = arith.constant 256 : index
    %62 = vector.load %arg17[%c0_32, %c256_33] : memref<1x1024xf32, #tpu.memory_space<vmem>>, vector<1x256xf32>
    %cst_34 = arith.constant dense<0xFF800000> : vector<256xf32>
    %63 = vector.multi_reduction <maximumf>, %61, %cst_34 [0] : vector<64x256xf32> to vector<256xf32>
    %64 = vector.shape_cast %63 : vector<256xf32> to vector<1x256xf32>
    %65 = arith.maximumf %62, %64 : vector<1x256xf32>
    %c0_35 = arith.constant 0 : index
    %c256_36 = arith.constant 256 : index
    %66 = vector.load %arg17[%c0_35, %c256_36] : memref<1x1024xf32, #tpu.memory_space<vmem>>, vector<1x256xf32>
    tpu.vector_store %arg17[%c0_35, %c256_36], %65 {strides = array<i32>} : memref<1x1024xf32, #tpu.memory_space<vmem>>, vector<1x256xf32>,
    %c0_37 = arith.constant 0 : index
    %c512 = arith.constant 512 : index
    %67 = vector.load %arg7[%c0_37, %c512] : memref<128x1024xbf16, #tpu.memory_space<vmem>>, vector<128x256xbf16>
    %cst_38 = arith.constant dense<0.000000e+00> : vector<64x256xf32>
    %68 = tpu.matmul %39, %67, %cst_38 {dimension_numbers = #tpu.dot_dimension_numbers<[1], [0], [0], [1], [0, 0, 1, 1], [], []>} : vector<64x128xbf16>, vector<128x256xbf16>, vector<64x256xf32> -> vector<64x256xf32>
    %c0_39 = arith.constant 0 : index
    %c512_40 = arith.constant 512 : index
    %69 = vector.load %arg8[%c0_39, %c512_40] : memref<1x1024xf32, #tpu.memory_space<vmem>>, vector<1x256xf32>
    %70 = vector.broadcast %69 : vector<1x256xf32> to vector<64x256xf32>
    %71 = arith.addf %68, %70 : vector<64x256xf32>
    %cst_41 = arith.constant 0.000000e+00 : f32
    %72 = vector.broadcast %cst_41 : f32 to vector<64x256xf32>
    %73 = arith.maximumf %71, %72 : vector<64x256xf32>
    %c0_42 = arith.constant 0 : index
    %c512_43 = arith.constant 512 : index
    %74 = vector.load %arg17[%c0_42, %c512_43] : memref<1x1024xf32, #tpu.memory_space<vmem>>, vector<1x256xf32>
    %cst_44 = arith.constant dense<0xFF800000> : vector<256xf32>
    %75 = vector.multi_reduction <maximumf>, %73, %cst_44 [0] : vector<64x256xf32> to vector<256xf32>
    %76 = vector.shape_cast %75 : vector<256xf32> to vector<1x256xf32>
    %77 = arith.maximumf %74, %76 : vector<1x256xf32>
    %c0_45 = arith.constant 0 : index
    %c512_46 = arith.constant 512 : index
    %78 = vector.load %arg17[%c0_45, %c512_46] : memref<1x1024xf32, #tpu.memory_space<vmem>>, vector<1x256xf32>
    tpu.vector_store %arg17[%c0_45, %c512_46], %77 {strides = array<i32>} : memref<1x1024xf32, #tpu.memory_space<vmem>>, vector<1x256xf32>,
    %c0_47 = arith.constant 0 : index
    %c768 = arith.constant 768 : index
    %79 = vector.load %arg7[%c0_47, %c768] : memref<128x1024xbf16, #tpu.memory_space<vmem>>, vector<128x256xbf16>
    %cst_48 = arith.constant dense<0.000000e+00> : vector<64x256xf32>
    %80 = tpu.matmul %39, %79, %cst_48 {dimension_numbers = #tpu.dot_dimension_numbers<[1], [0], [0], [1], [0, 0, 1, 1], [], []>} : vector<64x128xbf16>, vector<128x256xbf16>, vector<64x256xf32> -> vector<64x256xf32>
    %c0_49 = arith.constant 0 : index
    %c768_50 = arith.constant 768 : index
    %81 = vector.load %arg8[%c0_49, %c768_50] : memref<1x1024xf32, #tpu.memory_space<vmem>>, vector<1x256xf32>
    %82 = vector.broadcast %81 : vector<1x256xf32> to vector<64x256xf32>
    %83 = arith.addf %80, %82 : vector<64x256xf32>
    %cst_51 = arith.constant 0.000000e+00 : f32
    %84 = vector.broadcast %cst_51 : f32 to vector<64x256xf32>
    %85 = arith.maximumf %83, %84 : vector<64x256xf32>
    %c0_52 = arith.constant 0 : index
    %c768_53 = arith.constant 768 : index
    %86 = vector.load %arg17[%c0_52, %c768_53] : memref<1x1024xf32, #tpu.memory_space<vmem>>, vector<1x256xf32>
    %cst_54 = arith.constant dense<0xFF800000> : vector<256xf32>
    %87 = vector.multi_reduction <maximumf>, %85, %cst_54 [0] : vector<64x256xf32> to vector<256xf32>
    %88 = vector.shape_cast %87 : vector<256xf32> to vector<1x256xf32>
    %89 = arith.maximumf %86, %88 : vector<1x256xf32>
    %c0_55 = arith.constant 0 : index
    %c768_56 = arith.constant 768 : index
    %90 = vector.load %arg17[%c0_55, %c768_56] : memref<1x1024xf32, #tpu.memory_space<vmem>>, vector<1x256xf32>
    tpu.vector_store %arg17[%c0_55, %c768_56], %89 {strides = array<i32>} : memref<1x1024xf32, #tpu.memory_space<vmem>>, vector<1x256xf32>,
    %c0_i32_57 = arith.constant 0 : i32
    %91 = arith.cmpi eq, %arg1, %c0_i32_57 : i32
    %92 = arith.extui %91 : i1 to i32
    %c0_i32_58 = arith.constant 0 : i32
    %93 = arith.cmpi ne, %92, %c0_i32_58 : i32
    scf.if %93 {
      %c0_59 = arith.constant 0 : index
      %c0_60 = arith.constant 0 : index
      %94 = vector.load %arg17[%c0_59, %c0_60] : memref<1x1024xf32, #tpu.memory_space<vmem>>, vector<1x1024xf32>
      %95 = arith.truncf %94 : vector<1x1024xf32> to vector<1x1024xbf16>
      %c0_61 = arith.constant 0 : index
      %c0_62 = arith.constant 0 : index
      %96 = vector.load %arg9[%c0_61, %c0_62] : memref<1024x256xbf16, #tpu.memory_space<vmem>>, vector<1024x256xbf16>
      %cst_63 = arith.constant dense<0.000000e+00> : vector<1x256xf32>
      %97 = tpu.matmul %95, %96, %cst_63 {dimension_numbers = #tpu.dot_dimension_numbers<[1], [0], [0], [1], [0, 0, 1, 1], [], []>} : vector<1x1024xbf16>, vector<1024x256xbf16>, vector<1x256xf32> -> vector<1x256xf32>
      %c0_64 = arith.constant 0 : index
      %c0_65 = arith.constant 0 : index
      %98 = vector.load %arg10[%c0_64, %c0_65] : memref<1x256xf32, #tpu.memory_space<vmem>>, vector<1x256xf32>
      %99 = arith.addf %97, %98 : vector<1x256xf32>
      %c0_66 = arith.constant 0 : index
      %c0_67 = arith.constant 0 : index
      %c0_68 = arith.constant 0 : index
      %100 = vector.load %arg15[%c0_66, %c0_67, %c0_68] : memref<1x1x256xf32, #tpu.memory_space<vmem>>, vector<1x1x256xf32>
      %101 = vector.shape_cast %100 : vector<1x1x256xf32> to vector<1x256xf32>
      %102 = vector.shape_cast %99 : vector<1x256xf32> to vector<1x1x256xf32>
      tpu.vector_store %arg15[%c0_66, %c0_67, %c0_68], %102 {strides = array<i32>} : memref<1x1x256xf32, #tpu.memory_space<vmem>>, vector<1x1x256xf32>,
      %103 = arith.truncf %99 : vector<1x256xf32> to vector<1x256xbf16>
      %c0_69 = arith.constant 0 : index
      %c0_70 = arith.constant 0 : index
      %104 = vector.load %arg11[%c0_69, %c0_70] : memref<256x1024xbf16, #tpu.memory_space<vmem>>, vector<256x1024xbf16>
      %cst_71 = arith.constant dense<0.000000e+00> : vector<1x1024xf32>
      %105 = tpu.matmul %103, %104, %cst_71 {dimension_numbers = #tpu.dot_dimension_numbers<[1], [0], [0], [1], [0, 0, 1, 1], [], []>} : vector<1x256xbf16>, vector<256x1024xbf16>, vector<1x1024xf32> -> vector<1x1024xf32>
      %c0_72 = arith.constant 0 : index
      %c0_73 = arith.constant 0 : index
      %106 = vector.load %arg12[%c0_72, %c0_73] : memref<1x1024xf32, #tpu.memory_space<vmem>>, vector<1x1024xf32>
      %107 = arith.addf %105, %106 : vector<1x1024xf32>
      %cst_74 = arith.constant 0.000000e+00 : f32
      %108 = vector.broadcast %cst_74 : f32 to vector<1x1024xf32>
      %109 = arith.maximumf %107, %108 : vector<1x1024xf32>
      %c0_i32_75 = arith.constant 0 : i32
      %110 = arith.cmpi eq, %arg0, %c0_i32_75 : i32
      %111 = arith.extui %110 : i1 to i32
      %c0_i32_76 = arith.constant 0 : i32
      %112 = arith.cmpi ne, %111, %c0_i32_76 : i32
      scf.if %112 {
        tpu.wait_dma2 semaphore(%arg19 : memref<!tpu.dma_semaphore, #tpu.memory_space<semaphore_mem>>) src(%arg14 : memref<1024x3072xbf16, #tpu.memory_space<any>>) dst(%arg18 : memref<1024x3072xbf16, #tpu.memory_space<vmem>>)
      } else {
      }
      %113 = arith.truncf %109 : vector<1x1024xf32> to vector<1x1024xbf16>
      %c0_77 = arith.constant 0 : index
      %c0_78 = arith.constant 0 : index
      %114 = vector.load %arg18[%c0_77, %c0_78] : memref<1024x3072xbf16, #tpu.memory_space<vmem>>, vector<1024x3072xbf16>
      %cst_79 = arith.constant dense<0.000000e+00> : vector<1x3072xf32>
      %115 = tpu.matmul %113, %114, %cst_79 {dimension_numbers = #tpu.dot_dimension_numbers<[1], [0], [0], [1], [0, 0, 1, 1], [], []>} : vector<1x1024xbf16>, vector<1024x3072xbf16>, vector<1x3072xf32> -> vector<1x3072xf32>
      %c0_80 = arith.constant 0 : index
      %c0_81 = arith.constant 0 : index
      %116 = vector.load %arg13[%c0_80, %c0_81] : memref<1x3072xf32, #tpu.memory_space<vmem>>, vector<1x3072xf32>
      %117 = arith.addf %115, %116 : vector<1x3072xf32>
      %c0_82 = arith.constant 0 : index
      %c0_83 = arith.constant 0 : index
      %c0_84 = arith.constant 0 : index
      %118 = vector.load %arg16[%c0_82, %c0_83, %c0_84] : memref<1x1x3072xf32, #tpu.memory_space<vmem>>, vector<1x1x3072xf32>
      %119 = vector.shape_cast %118 : vector<1x1x3072xf32> to vector<1x3072xf32>
      %120 = vector.shape_cast %117 : vector<1x3072xf32> to vector<1x1x3072xf32>
      tpu.vector_store %arg16[%c0_82, %c0_83, %c0_84], %120 {strides = array<i32>} : memref<1x1x3072xf32, #tpu.memory_space<vmem>>, vector<1x1x3072xf32>,
    } else {
    }
    return
  }
  func.func @transform_0(%arg0: i32, %arg1: i32) -> (i32, i32, i32) {
    %c0_i32 = arith.constant 0 : i32
    %c0_i32_0 = arith.constant 0 : i32
    return %arg0, %arg1, %c0_i32 : i32, i32, i32
  }
  func.func @transform_1(%arg0: i32, %arg1: i32) -> (i32, i32) {
    %c0_i32 = arith.constant 0 : i32
    %c0_i32_0 = arith.constant 0 : i32
    %c0_i32_1 = arith.constant 0 : i32
    return %c0_i32, %c0_i32_0 : i32, i32
  }
  func.func @transform_2(%arg0: i32, %arg1: i32) -> (i32, i32) {
    %c0_i32 = arith.constant 0 : i32
    %c0_i32_0 = arith.constant 0 : i32
    %c0_i32_1 = arith.constant 0 : i32
    return %c0_i32, %c0_i32_0 : i32, i32
  }
  func.func @transform_3(%arg0: i32, %arg1: i32) -> (i32, i32) {
    %c0_i32 = arith.constant 0 : i32
    %c0_i32_0 = arith.constant 0 : i32
    %c0_i32_1 = arith.constant 0 : i32
    return %c0_i32, %c0_i32_0 : i32, i32
  }
  func.func @transform_4(%arg0: i32, %arg1: i32) -> (i32, i32) {
    %c0_i32 = arith.constant 0 : i32
    %c0_i32_0 = arith.constant 0 : i32
    %c0_i32_1 = arith.constant 0 : i32
    return %c0_i32, %c0_i32_0 : i32, i32
  }
  func.func @transform_5(%arg0: i32, %arg1: i32) -> (i32, i32) {
    %c0_i32 = arith.constant 0 : i32
    %c0_i32_0 = arith.constant 0 : i32
    %c0_i32_1 = arith.constant 0 : i32
    return %c0_i32, %c0_i32_0 : i32, i32
  }
  func.func @transform_6(%arg0: i32, %arg1: i32) -> (i32, i32) {
    %c0_i32 = arith.constant 0 : i32
    %c0_i32_0 = arith.constant 0 : i32
    %c0_i32_1 = arith.constant 0 : i32
    return %c0_i32, %c0_i32_0 : i32, i32
  }
  func.func @transform_7(%arg0: i32, %arg1: i32) -> (i32, i32) {
    %c0_i32 = arith.constant 0 : i32
    %c0_i32_0 = arith.constant 0 : i32
    %c0_i32_1 = arith.constant 0 : i32
    return %c0_i32, %c0_i32_0 : i32, i32
  }
  func.func @transform_8(%arg0: i32, %arg1: i32) -> (i32, i32) {
    %c0_i32 = arith.constant 0 : i32
    %c0_i32_0 = arith.constant 0 : i32
    %c0_i32_1 = arith.constant 0 : i32
    return %c0_i32, %c0_i32_0 : i32, i32
  }
  func.func @transform_9(%arg0: i32, %arg1: i32) -> (i32, i32) {
    %c0_i32 = arith.constant 0 : i32
    %c0_i32_0 = arith.constant 0 : i32
    %c0_i32_1 = arith.constant 0 : i32
    return %c0_i32, %c0_i32_0 : i32, i32
  }
  func.func @transform_10(%arg0: i32, %arg1: i32) -> (i32, i32) {
    %c0_i32 = arith.constant 0 : i32
    %c0_i32_0 = arith.constant 0 : i32
    %c0_i32_1 = arith.constant 0 : i32
    return %c0_i32, %c0_i32_0 : i32, i32
  }
  func.func @transform_11(%arg0: i32, %arg1: i32) -> (i32, i32) {
    %c0_i32 = arith.constant 0 : i32
    %c0_i32_0 = arith.constant 0 : i32
    %c0_i32_1 = arith.constant 0 : i32
    return %c0_i32, %c0_i32_0 : i32, i32
  }
  func.func @transform_13(%arg0: i32, %arg1: i32) -> (i32, i32, i32) {
    %c0_i32 = arith.constant 0 : i32
    %c0_i32_0 = arith.constant 0 : i32
    %c0_i32_1 = arith.constant 0 : i32
    return %arg0, %c0_i32, %c0_i32_0 : i32, i32, i32
  }
  func.func @transform_14(%arg0: i32, %arg1: i32) -> (i32, i32, i32) {
    %c0_i32 = arith.constant 0 : i32
    %c0_i32_0 = arith.constant 0 : i32
    %c0_i32_1 = arith.constant 0 : i32
    return %arg0, %c0_i32, %c0_i32_0 : i32, i32, i32
  }
}

</mosaic_0001>

<llo_original>
// kernel: pointcloud_autoencoder.1
$region0: #{pointcloud_autoencoder.1}
  #allocation0 [shape = 'u32[]', space=smem, size = 0x4, offset = 0x4, fixed_abs, tag = 'smem constant byte address 0x4 - core index']
  #allocation1 [shape = 'u32[144,128]{1,0:T(1,128)}', space=vmem, size = 0x12000, scoped, tag = 'internal scratch']
  #allocation2 [shape = 'f32[1,1024]{1,0:T(1,128)}', space=vmem, size = 0x1000, scoped, tag = 'scratch operand']
  #allocation3 [shape = 'bf16[1024,3072]{1,0:T(16,128)(2,1)}', space=vmem, size = 0x600000, scoped, tag = 'scratch operand']
  #allocation4 [shape = 's32[1]{0}', space=sflag, size = 0x4, scoped, tag = 'scratch operand']
  #allocation22 [shape = 's32[]', space=sflag, size = 0x4, offset = 0, fixed_abs, tag = 'sflag constant byte address 0x0 - dummy sync flag']
  %s0 = inlined_call_operand.vmem [shape: f32[2,64,3], index: 0, kind: input, shape index: {}]
  %s1 = inlined_call_operand.hbm [shape: bf16[3,64], index: 1, kind: input, shape index: {}]
  %s2 = inlined_call_operand.hbm [shape: f32[1,64], index: 2, kind: input, shape index: {}]
  %s3 = inlined_call_operand.hbm [shape: bf16[64,128], index: 3, kind: input, shape index: {}]
  %s4 = inlined_call_operand.hbm [shape: f32[1,128], index: 4, kind: input, shape index: {}]
  %s5 = inlined_call_operand.hbm [shape: bf16[128,1024], index: 5, kind: input, shape index: {}]
  %s6 = inlined_call_operand.hbm [shape: f32[1,1024], index: 6, kind: input, shape index: {}]
  %s7 = inlined_call_operand.hbm [shape: bf16[1024,256], index: 7, kind: input, shape index: {}]
  %s8 = inlined_call_operand.hbm [shape: f32[1,256], index: 8, kind: input, shape index: {}]
  %s9 = inlined_call_operand.hbm [shape: bf16[256,1024], index: 9, kind: input, shape index: {}]
  %s10 = inlined_call_operand.hbm [shape: f32[1,1024], index: 10, kind: input, shape index: {}]
  %s11 = inlined_call_operand.hbm [shape: f32[1,3072], index: 11, kind: input, shape index: {}]
  %s12 = inlined_call_operand.hbm [shape: bf16[1024,3072], index: 12, kind: input, shape index: {}]
  %s13 = inlined_call_operand.vmem [shape: f32[2,1,256], index: 13, kind: output, shape index: {0}]
  %s14 = inlined_call_operand.vmem [shape: f32[2,1,3072], index: 14, kind: output, shape index: {1}]
  %15 = xla_tuple %s13, %s14
  %s16 = sld [smem:[#allocation0]]
  $region149: #{pointcloud_autoencoder.1} parent=0
    _
  %s18 = ssub.s32 1, %s16
  %s19 = scalar_select 0, %s18, %s16
  $region1: #{pointcloud_autoencoder.1} parent=0
    #allocation5 [shape = 'u8[1024]{0}', space=vmem, size = 0x400, scoped, tag = 'input window, operand 1, single buffered']
    #allocation6 [shape = 's32[2]{0}', space=sflag, size = 0x8, scoped, tag = 'scoped memory for pointcloud_autoencoder.1']
    #allocation7 [shape = 'u8[512]{0}', space=vmem, size = 0x400, scoped, tag = 'input window, operand 2, single buffered']
    #allocation8 [shape = 's32[1]{0}', space=sflag, size = 0x4, scoped, tag = 'scoped memory for pointcloud_autoencoder.1']
    #allocation9 [shape = 'u8[16384]{0}', space=vmem, size = 0x4000, scoped, tag = 'input window, operand 3, single buffered']
    #allocation10 [shape = 'u8[512]{0}', space=vmem, size = 0x400, scoped, tag = 'input window, operand 4, single buffered']
    #allocation11 [shape = 's32[1]{0}', space=sflag, size = 0x4, scoped, tag = 'scoped memory for pointcloud_autoencoder.1']
    #allocation12 [shape = 'u8[262144]{0}', space=vmem, size = 0x40000, scoped, tag = 'input window, operand 5, single buffered']
    #allocation13 [shape = 'u8[4096]{0}', space=vmem, size = 0x1000, scoped, tag = 'input window, operand 6, single buffered']
    #allocation14 [shape = 's32[1]{0}', space=sflag, size = 0x4, scoped, tag = 'scoped memory for pointcloud_autoencoder.1']
    #allocation15 [shape = 'u8[524288]{0}', space=vmem, size = 0x80000, scoped, tag = 'input window, operand 7, single buffered']
    #allocation16 [shape = 'u8[1024]{0}', space=vmem, size = 0x400, scoped, tag = 'input window, operand 8, single buffered']
    #allocation17 [shape = 's32[1]{0}', space=sflag, size = 0x4, scoped, tag = 'scoped memory for pointcloud_autoencoder.1']
    #allocation18 [shape = 'u8[524288]{0}', space=vmem, size = 0x80000, scoped, tag = 'input window, operand 9, single buffered']
    #allocation19 [shape = 'u8[4096]{0}', space=vmem, size = 0x1000, scoped, tag = 'input window, operand 10, single buffered']
    #allocation20 [shape = 's32[1]{0}', space=sflag, size = 0x4, scoped, tag = 'scoped memory for pointcloud_autoencoder.1']
    #allocation21 [shape = 'u8[12288]{0}', space=vmem, size = 0x3000, scoped, tag = 'input window, operand 11, single buffered']
    %20 = vsyncpa [#allocation6], 0
    %21 = vsyncpa [#allocation8], 0
    %22 = vsyncpa [#allocation11], 0
    %23 = vsyncpa [#allocation14], 0
    %24 = vsyncpa [#allocation17], 0
    %25 = vsyncpa [#allocation20], 0
    loop: start=0, step=1, limit=4
    $region2: #{pointcloud_autoencoder.1} parent=1 // loop_pre_header
      _
    $region3: #{pointcloud_autoencoder.1} parent=1 // loop_header
      %s27 = sphi 0, %s31
      %p28 = scmp.ge.s32.totalorder %s27, 4
      %s34 = sphi 0, %s46
      %s35 = sphi 0, %s42
      %s36 = sphi 0, %s34
      %s37 = sphi 0, %s35
      %s38 = sphi 0, %s36
      %s39 = sphi 0, %s37
      %s51 = sphi 0, %s53
      %s54 = sphi 0, %s51
      %s55 = sphi 0, %s54
      %s71 = sphi 0, %s55
      %s75 = sphi 0, %s75
      %s77 = sphi 0, %s75
      %s78 = sphi 0, %s77
      %s92 = sphi 0, %s78
      %s96 = sphi 0, %s96
      %s98 = sphi 0, %s96
      %s99 = sphi 0, %s98
      %s113 = sphi 0, %s99
      %s117 = sphi 0, %s117
      %s119 = sphi 0, %s117
      %s120 = sphi 0, %s119
      %s134 = sphi 0, %s120
      %s138 = sphi 0, %s138
      %s140 = sphi 0, %s138
      %s141 = sphi 0, %s140
      %s155 = sphi 0, %s141
      %s159 = sphi 0, %s159
      %s161 = sphi 0, %s159
      %s162 = sphi 0, %s161
      %s176 = sphi 0, %s162
      %s180 = sphi 0, %s180
      %s182 = sphi 0, %s180
      %s183 = sphi 0, %s182
      %s197 = sphi 0, %s183
      %s201 = sphi 0, %s201
      %s203 = sphi 0, %s201
      %s204 = sphi 0, %s203
      %s218 = sphi 0, %s204
      %s222 = sphi 0, %s222
      %s224 = sphi 0, %s222
      %s225 = sphi 0, %s224
      %s239 = sphi 0, %s225
      %s243 = sphi 0, %s243
      %s245 = sphi 0, %s243
      %s246 = sphi 0, %s245
      %s260 = sphi 0, %s246
      %s264 = sphi 0, %s264
      %s266 = sphi 0, %s264
      %s267 = sphi 0, %s266
      %s281 = sphi 0, %s267
      %s285 = sphi 0, %s285
      %s287 = sphi 0, %s285
      %s288 = sphi 0, %s287
      %s302 = sphi 0, %s288
      %s308 = sphi 0, %s310
      %s311 = sphi 0, %s308
      %s312 = sphi 0, %s311
      %s328 = sphi 0, %s312
      %s334 = sphi 0, %s336
      %s337 = sphi 0, %s334
      %s338 = sphi 0, %s337
      %s354 = sphi 0, %s338
    $region4: #{pointcloud_autoencoder.1} parent=1 // loop_header_branch
      %30 = sbr.rel (%p28) target = $region8
    $region5: #{pointcloud_autoencoder.1} parent=1 // loop_body
      %s32 = ssub.s32 %s27, 1
      %s33 = ssub.s32 %s27, 2
      %s40 = sadd.s32 1, %s35
      %p41 = scmp.ge.s32.totalorder %s40, 1
      %s42 = scalar_select %p41, 0, %s40
      %s43 = sadd.s32 1, %s34
      %s44 = scalar_select %p41, %s43, %s34
      %p45 = scmp.ge.s32.totalorder %s44, 2
      %s46 = scalar_select %p45, 0, %s44
      %s47 = ssub.s32 %s34, %s46
      %s48 = ssub.s32 %s35, %s42
      %s49 = sor.u32 %s47, %s48
      %p50 = scmp.eq.s32.totalorder %s49, 0
      %s52 = sadd.s32 %s51, 1
      %s53 = scalar_select %p50, %s51, %s52
      %p56 = pneg %p50
      %p57 = scmp.eq.s32.totalorder %s27, 1
      %p58 = por %p56, %p57
      %p59 = scmp.ne.s32.totalorder %s51, %s54
      %p60 = scmp.eq.s32.totalorder %s27, 0
      %p61 = por %p59, %p60
      %p62 = scmp.ne.s32.totalorder %s51, %s54
      %p63 = scmp.eq.s32.totalorder %s32, 1
      %p64 = por %p62, %p63
      %p65 = scmp.ne.s32.totalorder %s54, %s55
      %p66 = scmp.eq.s32.totalorder %s32, 0
      %p67 = por %p65, %p66
      %p68 = scmp.ne.s32.totalorder %s54, %s55
      %p69 = scmp.eq.s32.totalorder %s33, 1
      %p70 = por %p68, %p69
      %p72 = scmp.ne.s32.totalorder %s55, %s71
      %p73 = scmp.eq.s32.totalorder %s33, 0
      %p74 = por %p72, %p73
      %s76 = sadd.s32 %s75, 1
      %p79 = scmp.eq.s32.totalorder %s27, 1
      %p80 = scmp.ne.s32.totalorder %s75, %s77
      %p81 = scmp.eq.s32.totalorder %s27, 0
      %p82 = por %p80, %p81
      %p83 = scmp.ne.s32.totalorder %s75, %s77
      %p84 = scmp.eq.s32.totalorder %s32, 1
      %p85 = por %p83, %p84
      %p86 = scmp.ne.s32.totalorder %s77, %s78
      %p87 = scmp.eq.s32.totalorder %s32, 0
      %p88 = por %p86, %p87
      %p89 = scmp.ne.s32.totalorder %s77, %s78
      %p90 = scmp.eq.s32.totalorder %s33, 1
      %p91 = por %p89, %p90
      %p93 = scmp.ne.s32.totalorder %s78, %s92
      %p94 = scmp.eq.s32.totalorder %s33, 0
      %p95 = por %p93, %p94
      %s97 = sadd.s32 %s96, 1
      %p100 = scmp.eq.s32.totalorder %s27, 1
      %p101 = scmp.ne.s32.totalorder %s96, %s98
      %p102 = scmp.eq.s32.totalorder %s27, 0
      %p103 = por %p101, %p102
      %p104 = scmp.ne.s32.totalorder %s96, %s98
      %p105 = scmp.eq.s32.totalorder %s32, 1
      %p106 = por %p104, %p105
      %p107 = scmp.ne.s32.totalorder %s98, %s99
      %p108 = scmp.eq.s32.totalorder %s32, 0
      %p109 = por %p107, %p108
      %p110 = scmp.ne.s32.totalorder %s98, %s99
      %p111 = scmp.eq.s32.totalorder %s33, 1
      %p112 = por %p110, %p111
      %p114 = scmp.ne.s32.totalorder %s99, %s113
      %p115 = scmp.eq.s32.totalorder %s33, 0
      %p116 = por %p114, %p115
      %s118 = sadd.s32 %s117, 1
      %p121 = scmp.eq.s32.totalorder %s27, 1
      %p122 = scmp.ne.s32.totalorder %s117, %s119
      %p123 = scmp.eq.s32.totalorder %s27, 0
      %p124 = por %p122, %p123
      %p125 = scmp.ne.s32.totalorder %s117, %s119
      %p126 = scmp.eq.s32.totalorder %s32, 1
      %p127 = por %p125, %p126
      %p128 = scmp.ne.s32.totalorder %s119, %s120
      %p129 = scmp.eq.s32.totalorder %s32, 0
      %p130 = por %p128, %p129
      %p131 = scmp.ne.s32.totalorder %s119, %s120
      %p132 = scmp.eq.s32.totalorder %s33, 1
      %p133 = por %p131, %p132
      %p135 = scmp.ne.s32.totalorder %s120, %s134
      %p136 = scmp.eq.s32.totalorder %s33, 0
      %p137 = por %p135, %p136
      %s139 = sadd.s32 %s138, 1
      %p142 = scmp.eq.s32.totalorder %s27, 1
      %p143 = scmp.ne.s32.totalorder %s138, %s140
      %p144 = scmp.eq.s32.totalorder %s27, 0
      %p145 = por %p143, %p144
      %p146 = scmp.ne.s32.totalorder %s138, %s140
      %p147 = scmp.eq.s32.totalorder %s32, 1
      %p148 = por %p146, %p147
      %p149 = scmp.ne.s32.totalorder %s140, %s141
      %p150 = scmp.eq.s32.totalorder %s32, 0
      %p151 = por %p149, %p150
      %p152 = scmp.ne.s32.totalorder %s140, %s141
      %p153 = scmp.eq.s32.totalorder %s33, 1
      %p154 = por %p152, %p153
      %p156 = scmp.ne.s32.totalorder %s141, %s155
      %p157 = scmp.eq.s32.totalorder %s33, 0
      %p158 = por %p156, %p157
      %s160 = sadd.s32 %s159, 1
      %p163 = scmp.eq.s32.totalorder %s27, 1
      %p164 = scmp.ne.s32.totalorder %s159, %s161
      %p165 = scmp.eq.s32.totalorder %s27, 0
      %p166 = por %p164, %p165
      %p167 = scmp.ne.s32.totalorder %s159, %s161
      %p168 = scmp.eq.s32.totalorder %s32, 1
      %p169 = por %p167, %p168
      %p170 = scmp.ne.s32.totalorder %s161, %s162
      %p171 = scmp.eq.s32.totalorder %s32, 0
      %p172 = por %p170, %p171
      %p173 = scmp.ne.s32.totalorder %s161, %s162
      %p174 = scmp.eq.s32.totalorder %s33, 1
      %p175 = por %p173, %p174
      %p177 = scmp.ne.s32.totalorder %s162, %s176
      %p178 = scmp.eq.s32.totalorder %s33, 0
      %p179 = por %p177, %p178
      %s181 = sadd.s32 %s180, 1
      %p184 = scmp.eq.s32.totalorder %s27, 1
      %p185 = scmp.ne.s32.totalorder %s180, %s182
      %p186 = scmp.eq.s32.totalorder %s27, 0
      %p187 = por %p185, %p186
      %p188 = scmp.ne.s32.totalorder %s180, %s182
      %p189 = scmp.eq.s32.totalorder %s32, 1
      %p190 = por %p188, %p189
      %p191 = scmp.ne.s32.totalorder %s182, %s183
      %p192 = scmp.eq.s32.totalorder %s32, 0
      %p193 = por %p191, %p192
      %p194 = scmp.ne.s32.totalorder %s182, %s183
      %p195 = scmp.eq.s32.totalorder %s33, 1
      %p196 = por %p194, %p195
      %p198 = scmp.ne.s32.totalorder %s183, %s197
      %p199 = scmp.eq.s32.totalorder %s33, 0
      %p200 = por %p198, %p199
      %s202 = sadd.s32 %s201, 1
      %p205 = scmp.eq.s32.totalorder %s27, 1
      %p206 = scmp.ne.s32.totalorder %s201, %s203
      %p207 = scmp.eq.s32.totalorder %s27, 0
      %p208 = por %p206, %p207
      %p209 = scmp.ne.s32.totalorder %s201, %s203
      %p210 = scmp.eq.s32.totalorder %s32, 1
      %p211 = por %p209, %p210
      %p212 = scmp.ne.s32.totalorder %s203, %s204
      %p213 = scmp.eq.s32.totalorder %s32, 0
      %p214 = por %p212, %p213
      %p215 = scmp.ne.s32.totalorder %s203, %s204
      %p216 = scmp.eq.s32.totalorder %s33, 1
      %p217 = por %p215, %p216
      %p219 = scmp.ne.s32.totalorder %s204, %s218
      %p220 = scmp.eq.s32.totalorder %s33, 0
      %p221 = por %p219, %p220
      %s223 = sadd.s32 %s222, 1
      %p226 = scmp.eq.s32.totalorder %s27, 1
      %p227 = scmp.ne.s32.totalorder %s222, %s224
      %p228 = scmp.eq.s32.totalorder %s27, 0
      %p229 = por %p227, %p228
      %p230 = scmp.ne.s32.totalorder %s222, %s224
      %p231 = scmp.eq.s32.totalorder %s32, 1
      %p232 = por %p230, %p231
      %p233 = scmp.ne.s32.totalorder %s224, %s225
      %p234 = scmp.eq.s32.totalorder %s32, 0
      %p235 = por %p233, %p234
      %p236 = scmp.ne.s32.totalorder %s224, %s225
      %p237 = scmp.eq.s32.totalorder %s33, 1
      %p238 = por %p236, %p237
      %p240 = scmp.ne.s32.totalorder %s225, %s239
      %p241 = scmp.eq.s32.totalorder %s33, 0
      %p242 = por %p240, %p241
      %s244 = sadd.s32 %s243, 1
      %p247 = scmp.eq.s32.totalorder %s27, 1
      %p248 = scmp.ne.s32.totalorder %s243, %s245
      %p249 = scmp.eq.s32.totalorder %s27, 0
      %p250 = por %p248, %p249
      %p251 = scmp.ne.s32.totalorder %s243, %s245
      %p252 = scmp.eq.s32.totalorder %s32, 1
      %p253 = por %p251, %p252
      %p254 = scmp.ne.s32.totalorder %s245, %s246
      %p255 = scmp.eq.s32.totalorder %s32, 0
      %p256 = por %p254, %p255
      %p257 = scmp.ne.s32.totalorder %s245, %s246
      %p258 = scmp.eq.s32.totalorder %s33, 1
      %p259 = por %p257, %p258
      %p261 = scmp.ne.s32.totalorder %s246, %s260
      %p262 = scmp.eq.s32.totalorder %s33, 0
      %p263 = por %p261, %p262
      %s265 = sadd.s32 %s264, 1
      %p268 = scmp.eq.s32.totalorder %s27, 1
      %p269 = scmp.ne.s32.totalorder %s264, %s266
      %p270 = scmp.eq.s32.totalorder %s27, 0
      %p271 = por %p269, %p270
      %p272 = scmp.ne.s32.totalorder %s264, %s266
      %p273 = scmp.eq.s32.totalorder %s32, 1
      %p274 = por %p272, %p273
      %p275 = scmp.ne.s32.totalorder %s266, %s267
      %p276 = scmp.eq.s32.totalorder %s32, 0
      %p277 = por %p275, %p276
      %p278 = scmp.ne.s32.totalorder %s266, %s267
      %p279 = scmp.eq.s32.totalorder %s33, 1
      %p280 = por %p278, %p279
      %p282 = scmp.ne.s32.totalorder %s267, %s281
      %p283 = scmp.eq.s32.totalorder %s33, 0
      %p284 = por %p282, %p283
      %s286 = sadd.s32 %s285, 1
      %p289 = scmp.eq.s32.totalorder %s27, 1
      %p290 = scmp.ne.s32.totalorder %s285, %s287
      %p291 = scmp.eq.s32.totalorder %s27, 0
      %p292 = por %p290, %p291
      %p293 = scmp.ne.s32.totalorder %s285, %s287
      %p294 = scmp.eq.s32.totalorder %s32, 1
      %p295 = por %p293, %p294
      %p296 = scmp.ne.s32.totalorder %s287, %s288
      %p297 = scmp.eq.s32.totalorder %s32, 0
      %p298 = por %p296, %p297
      %p299 = scmp.ne.s32.totalorder %s287, %s288
      %p300 = scmp.eq.s32.totalorder %s33, 1
      %p301 = por %p299, %p300
      %p303 = scmp.ne.s32.totalorder %s288, %s302
      %p304 = scmp.eq.s32.totalorder %s33, 0
      %p305 = por %p303, %p304
      %s306 = ssub.s32 %s34, %s46
      %p307 = scmp.eq.s32.totalorder %s306, 0
      %s309 = sadd.s32 %s308, 1
      %s310 = scalar_select %p307, %s308, %s309
      %p313 = pneg %p307
      %p314 = scmp.eq.s32.totalorder %s27, 1
      %p315 = por %p313, %p314
      %p316 = scmp.ne.s32.totalorder %s308, %s311
      %p317 = scmp.eq.s32.totalorder %s27, 0
      %p318 = por %p316, %p317
      %p319 = scmp.ne.s32.totalorder %s308, %s311
      %p320 = scmp.eq.s32.totalorder %s32, 1
      %p321 = por %p319, %p320
      %p322 = scmp.ne.s32.totalorder %s311, %s312
      %p323 = scmp.eq.s32.totalorder %s32, 0
      %p324 = por %p322, %p323
      %p325 = scmp.ne.s32.totalorder %s311, %s312
      %p326 = scmp.eq.s32.totalorder %s33, 1
      %p327 = por %p325, %p326
      %p329 = scmp.ne.s32.totalorder %s312, %s328
      %p330 = scmp.eq.s32.totalorder %s33, 0
      %p331 = por %p329, %p330
      %s332 = ssub.s32 %s34, %s46
      %p333 = scmp.eq.s32.totalorder %s332, 0
      %s335 = sadd.s32 %s334, 1
      %s336 = scalar_select %p333, %s334, %s335
      %p339 = pneg %p333
      %p340 = scmp.eq.s32.totalorder %s27, 1
      %p341 = por %p339, %p340
      %p342 = scmp.ne.s32.totalorder %s334, %s337
      %p343 = scmp.eq.s32.totalorder %s27, 0
      %p344 = por %p342, %p343
      %p345 = scmp.ne.s32.totalorder %s334, %s337
      %p346 = scmp.eq.s32.totalorder %s32, 1
      %p347 = por %p345, %p346
      %p348 = scmp.ne.s32.totalorder %s337, %s338
      %p349 = scmp.eq.s32.totalorder %s32, 0
      %p350 = por %p348, %p349
      %p351 = scmp.ne.s32.totalorder %s337, %s338
      %p352 = scmp.eq.s32.totalorder %s33, 1
      %p353 = por %p351, %p352
      %p355 = scmp.ne.s32.totalorder %s338, %s354
      %p356 = scmp.eq.s32.totalorder %s33, 0
      %p357 = por %p355, %p356
      %p358 = scmp.le.s32.totalorder 1, %s27
      %p359 = scmp.lt.s32.totalorder %s27, 3
      %p360 = pnand %p358, %p359
      %p361 = pneg %p360
      // Predicated region
      $region9: #{pointcloud_autoencoder.1} parent=5 // pred_check
        _
      $region10: #{pointcloud_autoencoder.1} parent=5 // pred_check_branch
        %363 = sbr.rel (%p360) target = $region12
      $region11: #{pointcloud_autoencoder.1} parent=5 // pred_region
        %s364 = ssub.s32 %s27, 1
        // Predicated region
        $region13: #{pointcloud_autoencoder.1} parent=11 // pred_check
          %p365 = pneg %p88
        $region14: #{pointcloud_autoencoder.1} parent=11 // pred_check_branch
          %367 = sbr.rel (%p365) target = $region16
        $region15: #{pointcloud_autoencoder.1} parent=11 // pred_region
          %s369 = ssub.s32 32, 32
          %370 = vsyncadd [#allocation6], %s369
          %s372 = sshll.u32 [#allocation5], 4
          %s373 = int_to_ptr.vmem [resolvable:$true] %s372
          %375 = dma.hbm_to_vmem [thread:$0]  %s1, 32, %s373, [#allocation6]
        $region16: #{pointcloud_autoencoder.1} parent=11 // pred_fallthru
          _
        // Predicated region
        $region17: #{pointcloud_autoencoder.1} parent=11 // pred_check
          %p376 = pneg %p109
        $region18: #{pointcloud_autoencoder.1} parent=11 // pred_check_branch
          %378 = sbr.rel (%p376) target = $region20
        $region19: #{pointcloud_autoencoder.1} parent=11 // pred_region
          %s380 = ssub.s32 16, 16
          %381 = vsyncadd [#allocation8], %s380
          %s383 = sshll.u32 [#allocation7], 4
          %s384 = int_to_ptr.vmem [resolvable:$true] %s383
          %386 = dma.hbm_to_vmem [thread:$0]  %s2, 16, %s384, [#allocation8]
        $region20: #{pointcloud_autoencoder.1} parent=11 // pred_fallthru
          _
        // Predicated region
        $region21: #{pointcloud_autoencoder.1} parent=11 // pred_check
          %p387 = pneg %p130
        $region22: #{pointcloud_autoencoder.1} parent=11 // pred_check_branch
          %389 = sbr.rel (%p387) target = $region24
        $region23: #{pointcloud_autoencoder.1} parent=11 // pred_region
          %s391 = ssub.s32 512, 512
          %392 = vsyncadd [#allocation8], %s391
          %s393 = sshll.u32 [#allocation9], 4
          %s394 = int_to_ptr.vmem [resolvable:$true] %s393
          %399 = dma.hbm_to_vmem [thread:$0]  %s3, 512, %s394, [#allocation8], 64, 64, 4
        $region24: #{pointcloud_autoencoder.1} parent=11 // pred_fallthru
          _
        // Predicated region
        $region25: #{pointcloud_autoencoder.1} parent=11 // pred_check
          %p400 = pneg %p151
        $region26: #{pointcloud_autoencoder.1} parent=11 // pred_check_branch
          %402 = sbr.rel (%p400) target = $region28
        $region27: #{pointcloud_autoencoder.1} parent=11 // pred_region
          %s404 = ssub.s32 16, 16
          %405 = vsyncadd [#allocation11], %s404
          %s407 = sshll.u32 [#allocation10], 4
          %s408 = int_to_ptr.vmem [resolvable:$true] %s407
          %410 = dma.hbm_to_vmem [thread:$0]  %s4, 16, %s408, [#allocation11]
        $region28: #{pointcloud_autoencoder.1} parent=11 // pred_fallthru
          _
        // Predicated region
        $region29: #{pointcloud_autoencoder.1} parent=11 // pred_check
          %p411 = pneg %p172
        $region30: #{pointcloud_autoencoder.1} parent=11 // pred_check_branch
          %413 = sbr.rel (%p411) target = $region32
        $region31: #{pointcloud_autoencoder.1} parent=11 // pred_region
          %s415 = ssub.s32 8192, 8192
          %416 = vsyncadd [#allocation11], %s415
          %s417 = sshll.u32 [#allocation12], 4
          %s418 = int_to_ptr.vmem [resolvable:$true] %s417
          %423 = dma.hbm_to_vmem [thread:$0]  %s5, 8192, %s418, [#allocation11], 512, 512, 32
        $region32: #{pointcloud_autoencoder.1} parent=11 // pred_fallthru
          _
        // Predicated region
        $region33: #{pointcloud_autoencoder.1} parent=11 // pred_check
          %p424 = pneg %p193
        $region34: #{pointcloud_autoencoder.1} parent=11 // pred_check_branch
          %426 = sbr.rel (%p424) target = $region36
        $region35: #{pointcloud_autoencoder.1} parent=11 // pred_region
          %s428 = ssub.s32 128, 128
          %429 = vsyncadd [#allocation14], %s428
          %s431 = sshll.u32 [#allocation13], 4
          %s432 = int_to_ptr.vmem [resolvable:$true] %s431
          %434 = dma.hbm_to_vmem [thread:$0]  %s6, 128, %s432, [#allocation14]
        $region36: #{pointcloud_autoencoder.1} parent=11 // pred_fallthru
          _
        // Predicated region
        $region37: #{pointcloud_autoencoder.1} parent=11 // pred_check
          %p435 = pneg %p214
        $region38: #{pointcloud_autoencoder.1} parent=11 // pred_check_branch
          %437 = sbr.rel (%p435) target = $region40
        $region39: #{pointcloud_autoencoder.1} parent=11 // pred_region
          %s439 = ssub.s32 16384, 16384
          %440 = vsyncadd [#allocation14], %s439
          %s441 = sshll.u32 [#allocation15], 4
          %s442 = int_to_ptr.vmem [resolvable:$true] %s441
          %447 = dma.hbm_to_vmem [thread:$0]  %s7, 16384, %s442, [#allocation14], 128, 128, 8
        $region40: #{pointcloud_autoencoder.1} parent=11 // pred_fallthru
          _
        // Predicated region
        $region41: #{pointcloud_autoencoder.1} parent=11 // pred_check
          %p448 = pneg %p235
        $region42: #{pointcloud_autoencoder.1} parent=11 // pred_check_branch
          %450 = sbr.rel (%p448) target = $region44
        $region43: #{pointcloud_autoencoder.1} parent=11 // pred_region
          %s452 = ssub.s32 32, 32
          %453 = vsyncadd [#allocation17], %s452
          %s455 = sshll.u32 [#allocation16], 4
          %s456 = int_to_ptr.vmem [resolvable:$true] %s455
          %458 = dma.hbm_to_vmem [thread:$0]  %s8, 32, %s456, [#allocation17]
        $region44: #{pointcloud_autoencoder.1} parent=11 // pred_fallthru
          _
        // Predicated region
        $region45: #{pointcloud_autoencoder.1} parent=11 // pred_check
          %p459 = pneg %p256
        $region46: #{pointcloud_autoencoder.1} parent=11 // pred_check_branch
          %461 = sbr.rel (%p459) target = $region48
        $region47: #{pointcloud_autoencoder.1} parent=11 // pred_region
          %s463 = ssub.s32 16384, 16384
          %464 = vsyncadd [#allocation17], %s463
          %s465 = sshll.u32 [#allocation18], 4
          %s466 = int_to_ptr.vmem [resolvable:$true] %s465
          %471 = dma.hbm_to_vmem [thread:$0]  %s9, 16384, %s466, [#allocation17], 512, 512, 32
        $region48: #{pointcloud_autoencoder.1} parent=11 // pred_fallthru
          _
        // Predicated region
        $region49: #{pointcloud_autoencoder.1} parent=11 // pred_check
          %p472 = pneg %p277
        $region50: #{pointcloud_autoencoder.1} parent=11 // pred_check_branch
          %474 = sbr.rel (%p472) target = $region52
        $region51: #{pointcloud_autoencoder.1} parent=11 // pred_region
          %s476 = ssub.s32 128, 128
          %477 = vsyncadd [#allocation20], %s476
          %s479 = sshll.u32 [#allocation19], 4
          %s480 = int_to_ptr.vmem [resolvable:$true] %s479
          %482 = dma.hbm_to_vmem [thread:$0]  %s10, 128, %s480, [#allocation20]
        $region52: #{pointcloud_autoencoder.1} parent=11 // pred_fallthru
          _
        // Predicated region
        $region53: #{pointcloud_autoencoder.1} parent=11 // pred_check
          %p483 = pneg %p298
        $region54: #{pointcloud_autoencoder.1} parent=11 // pred_check_branch
          %485 = sbr.rel (%p483) target = $region56
        $region55: #{pointcloud_autoencoder.1} parent=11 // pred_region
          %s487 = ssub.s32 384, 384
          %488 = vsyncadd [#allocation20], %s487
          %s490 = sshll.u32 [#allocation21], 4
          %s491 = int_to_ptr.vmem [resolvable:$true] %s490
          %493 = dma.hbm_to_vmem [thread:$0]  %s11, 384, %s491, [#allocation20]
        $region56: #{pointcloud_autoencoder.1} parent=11 // pred_fallthru
          _
      $region12: #{pointcloud_autoencoder.1} parent=5 // pred_fallthru
        _
      %p494 = scmp.lt.s32.totalorder %s27, 2
      // Predicated region
      $region57: #{pointcloud_autoencoder.1} parent=5 // pred_check
        %p495 = pneg %p494
      $region58: #{pointcloud_autoencoder.1} parent=5 // pred_check_branch
        %497 = sbr.rel (%p495) target = $region60
      $region59: #{pointcloud_autoencoder.1} parent=5 // pred_region
        // Predicated region
        $region61: #{pointcloud_autoencoder.1} parent=59 // pred_check
          %p498 = pneg %p61
        $region62: #{pointcloud_autoencoder.1} parent=59 // pred_check_branch
          %500 = sbr.rel (%p498) target = $region64
        $region63: #{pointcloud_autoencoder.1} parent=59 // pred_region
          %s501 = smul.u32 8, %s35
          %p502 = scmp.lt.s32.totalorder %s34, 1
          %s503 = scalar_select %p502, %s34, 1
          %p504 = scmp.lt.s32.totalorder %s501, 7
          %s505 = scalar_select %p504, %s501, 7
          %s506 = smul.addr %s503, 8
          %s507 = sadd.s32 %s505, %s506
          %s508 = smul.addr %s507, 8
          %s509 = scalar_lea.vmem %s0, %s508
          %s510 = smul.u32 8, %s35
        $region64: #{pointcloud_autoencoder.1} parent=59 // pred_fallthru
          _
      $region60: #{pointcloud_autoencoder.1} parent=5 // pred_fallthru
        _
      %p511 = scmp.le.s32.totalorder 1, %s27
      %p512 = scmp.lt.s32.totalorder %s27, 3
      %p513 = pnand %p511, %p512
      %p514 = pneg %p513
      // Predicated region
      $region65: #{pointcloud_autoencoder.1} parent=5 // pred_check
        _
      $region66: #{pointcloud_autoencoder.1} parent=5 // pred_check_branch
        %516 = sbr.rel (%p513) target = $region68
      $region67: #{pointcloud_autoencoder.1} parent=5 // pred_region
        %s517 = ssub.s32 %s27, 1
        // Predicated region
        $region69: #{pointcloud_autoencoder.1} parent=67 // pred_check
          %p518 = pneg %p88
        $region70: #{pointcloud_autoencoder.1} parent=67 // pred_check_branch
          %520 = sbr.rel (%p518) target = $region72
        $region71: #{pointcloud_autoencoder.1} parent=67 // pred_region
          %521 = dma.done [#allocation6], 32
        $region72: #{pointcloud_autoencoder.1} parent=67 // pred_fallthru
          _
        // Predicated region
        $region73: #{pointcloud_autoencoder.1} parent=67 // pred_check
          %p522 = pneg %p109
        $region74: #{pointcloud_autoencoder.1} parent=67 // pred_check_branch
          %524 = sbr.rel (%p522) target = $region76
        $region75: #{pointcloud_autoencoder.1} parent=67 // pred_region
          %525 = dma.done [#allocation8], 16
        $region76: #{pointcloud_autoencoder.1} parent=67 // pred_fallthru
          _
        // Predicated region
        $region77: #{pointcloud_autoencoder.1} parent=67 // pred_check
          %p526 = pneg %p130
        $region78: #{pointcloud_autoencoder.1} parent=67 // pred_check_branch
          %528 = sbr.rel (%p526) target = $region80
        $region79: #{pointcloud_autoencoder.1} parent=67 // pred_region
          %529 = dma.done [#allocation8], 512
        $region80: #{pointcloud_autoencoder.1} parent=67 // pred_fallthru
          _
        // Predicated region
        $region81: #{pointcloud_autoencoder.1} parent=67 // pred_check
          %p530 = pneg %p151
        $region82: #{pointcloud_autoencoder.1} parent=67 // pred_check_branch
          %532 = sbr.rel (%p530) target = $region84
        $region83: #{pointcloud_autoencoder.1} parent=67 // pred_region
          %533 = dma.done [#allocation11], 16
        $region84: #{pointcloud_autoencoder.1} parent=67 // pred_fallthru
          _
        // Predicated region
        $region85: #{pointcloud_autoencoder.1} parent=67 // pred_check
          %p534 = pneg %p172
        $region86: #{pointcloud_autoencoder.1} parent=67 // pred_check_branch
          %536 = sbr.rel (%p534) target = $region88
        $region87: #{pointcloud_autoencoder.1} parent=67 // pred_region
          %537 = dma.done [#allocation11], 8192
        $region88: #{pointcloud_autoencoder.1} parent=67 // pred_fallthru
          _
        // Predicated region
        $region89: #{pointcloud_autoencoder.1} parent=67 // pred_check
          %p538 = pneg %p193
        $region90: #{pointcloud_autoencoder.1} parent=67 // pred_check_branch
          %540 = sbr.rel (%p538) target = $region92
        $region91: #{pointcloud_autoencoder.1} parent=67 // pred_region
          %541 = dma.done [#allocation14], 128
        $region92: #{pointcloud_autoencoder.1} parent=67 // pred_fallthru
          _
        // Predicated region
        $region93: #{pointcloud_autoencoder.1} parent=67 // pred_check
          %p542 = pneg %p214
        $region94: #{pointcloud_autoencoder.1} parent=67 // pred_check_branch
          %544 = sbr.rel (%p542) target = $region96
        $region95: #{pointcloud_autoencoder.1} parent=67 // pred_region
          %545 = dma.done [#allocation14], 16384
        $region96: #{pointcloud_autoencoder.1} parent=67 // pred_fallthru
          _
        // Predicated region
        $region97: #{pointcloud_autoencoder.1} parent=67 // pred_check
          %p546 = pneg %p235
        $region98: #{pointcloud_autoencoder.1} parent=67 // pred_check_branch
          %548 = sbr.rel (%p546) target = $region100
        $region99: #{pointcloud_autoencoder.1} parent=67 // pred_region
          %549 = dma.done [#allocation17], 32
        $region100: #{pointcloud_autoencoder.1} parent=67 // pred_fallthru
          _
        // Predicated region
        $region101: #{pointcloud_autoencoder.1} parent=67 // pred_check
          %p550 = pneg %p256
        $region102: #{pointcloud_autoencoder.1} parent=67 // pred_check_branch
          %552 = sbr.rel (%p550) target = $region104
        $region103: #{pointcloud_autoencoder.1} parent=67 // pred_region
          %553 = dma.done [#allocation17], 16384
        $region104: #{pointcloud_autoencoder.1} parent=67 // pred_fallthru
          _
        // Predicated region
        $region105: #{pointcloud_autoencoder.1} parent=67 // pred_check
          %p554 = pneg %p277
        $region106: #{pointcloud_autoencoder.1} parent=67 // pred_check_branch
          %556 = sbr.rel (%p554) target = $region108
        $region107: #{pointcloud_autoencoder.1} parent=67 // pred_region
          %557 = dma.done [#allocation20], 128
        $region108: #{pointcloud_autoencoder.1} parent=67 // pred_fallthru
          _
        // Predicated region
        $region109: #{pointcloud_autoencoder.1} parent=67 // pred_check
          %p558 = pneg %p298
        $region110: #{pointcloud_autoencoder.1} parent=67 // pred_check_branch
          %560 = sbr.rel (%p558) target = $region112
        $region111: #{pointcloud_autoencoder.1} parent=67 // pred_region
          %561 = dma.done [#allocation20], 384
        $region112: #{pointcloud_autoencoder.1} parent=67 // pred_fallthru
          _
        %s562 = smul.u32 8, %s37
        %p563 = scmp.lt.s32.totalorder %s36, 1
        %s564 = scalar_select %p563, %s36, 1
        %p565 = scmp.lt.s32.totalorder %s562, 7
        %s566 = scalar_select %p565, %s562, 7
        %s567 = smul.addr %s564, 8
        %s568 = sadd.s32 %s566, %s567
        %s569 = smul.addr %s568, 8
        %s570 = scalar_lea.vmem %s0, %s569
        %p571 = pneg %p67
        %p572 = pneg %p64
        %p573 = pneg %p88
        %p574 = pneg %p85
        %p575 = pneg %p109
        %p576 = pneg %p106
        %p577 = pneg %p130
        %p578 = pneg %p127
        %p579 = pneg %p151
        %p580 = pneg %p148
        %p581 = pneg %p172
        %p582 = pneg %p169
        %p583 = pneg %p193
        %p584 = pneg %p190
        %p585 = pneg %p214
        %p586 = pneg %p211
        %p587 = pneg %p235
        %p588 = pneg %p232
        %p589 = pneg %p256
        %p590 = pneg %p253
        %p591 = pneg %p277
        %p592 = pneg %p274
        %p593 = pneg %p298
        %p594 = pneg %p295
        %p595 = pneg %p324
        %p596 = pneg %p321
        %p597 = scmp.lt.s32.totalorder %s36, 1
        %s598 = scalar_select %p597, %s36, 1
        %s599 = smul.addr %s598, 2
        %s600 = scalar_lea.vmem %s13, %s599
        %p601 = pneg %p350
        %p602 = pneg %p347
        %p603 = scmp.lt.s32.totalorder %s36, 1
        %s604 = scalar_select %p603, %s36, 1
        %s605 = smul.addr %s604, 24
        %s606 = scalar_lea.vmem %s14, %s605
        %s607 = smul.u32 8, %s37
        %p608 = scmp.lt.s32.totalorder %s36, 1
        %s609 = scalar_select %p608, %s36, 1
        %p610 = scmp.lt.s32.totalorder %s607, 7
        %s611 = scalar_select %p610, %s607, 7
        %s612 = smul.addr %s609, 8
        %s613 = sadd.s32 %s611, %s612
        %s614 = smul.addr %s613, 8
        %s615 = scalar_lea.vmem %s0, %s614
        %s616 = smul.u32 8, %s37
        %p617 = scmp.lt.s32.totalorder %s36, 1
        %s618 = scalar_select %p617, %s36, 1
        %s619 = smul.addr %s618, 2
        %s620 = scalar_lea.vmem %s13, %s619
        %p621 = scmp.lt.s32.totalorder %s36, 1
        %s622 = scalar_select %p621, %s36, 1
        %s623 = smul.addr %s622, 24
        %s624 = scalar_lea.vmem %s14, %s623
        %p626 = scmp.eq.s32.totalorder %s36, 0
        %p627 = scmp.eq.s32.totalorder %s37, 0
        %p628 = pnand %p626, %p627
        %p629 = pneg %p628
        // Predicated region
        $region113: #{pointcloud_autoencoder.1} parent=67 // pred_check
          _
        $region114: #{pointcloud_autoencoder.1} parent=67 // pred_check_branch
          %631 = sbr.rel (%p628) target = $region116
        $region115: #{pointcloud_autoencoder.1} parent=67 // pred_region
          #allocation23 [shape = 'u32[9]{0}', space=smem, size = 0x24, scoped, tag = 'DMA stride descriptor']
          %s633 = sshll.u32 1, 14
          %s634 = sxor.u32 4294967295, %s633
          %s636 = sld [smem:[#allocation0]]
          %s637 = sadd.s32 2, %s636
          %s639 = sshll.u32 7, 26
          %s640 = sxor.u32 4294967295, %s639
          %s641 = sand.u32 0, %s640
          %s642 = sshll.u32 %s637, 26
          %s643 = sor.u32 %s641, %s642
          %s644 = sshll.u32 [#allocation3], 4
          %s645 = int_to_ptr.vmem [resolvable:$true] %s644
          %648 = sst [smem:[#allocation23]] 3072
          %s649 = scalar_lea.smem [#allocation23], 1
          %650 = sst [smem:[%s649]] 3072
          %s651 = scalar_lea.smem [#allocation23], 2
          %652 = sst [smem:[%s651]] 24
          %s653 = scalar_lea.smem [#allocation23], 3
          %654 = sst [smem:[%s653]] 64
          %s655 = scalar_lea.smem [#allocation23], 4
          %656 = sst [smem:[%s655]] 128
          %s657 = scalar_lea.smem [#allocation23], 5
          %658 = sst [smem:[%s657]] 2
          %s659 = scalar_lea.smem [#allocation23], 6
          %660 = sst [smem:[%s659]] 1536
          %s661 = scalar_lea.smem [#allocation23], 7
          %662 = sst [smem:[%s661]] 64
          %s663 = scalar_lea.smem [#allocation23], 8
          %664 = sst [smem:[%s663]] 4
          %666 = dma.general %s12, 196608, %s645, [#allocation4], [#allocation22], [#allocation23], %s643, 0
        $region116: #{pointcloud_autoencoder.1} parent=67 // pred_fallthru
          _
        %v667 = vld [vmem:[%s615] sm:$0xff]
        %v668 = vld [vmem:[%s615 + $0x8] sm:$0xff]
        %v669 = vld [vmem:[%s615 + $0x10] sm:$0xff]
        %v670 = vld [vmem:[%s615 + $0x18] sm:$0xff]
        %v671 = vld [vmem:[%s615 + $0x20] sm:$0xff]
        %v672 = vld [vmem:[%s615 + $0x28] sm:$0xff]
        %v673 = vld [vmem:[%s615 + $0x30] sm:$0xff]
        %v674 = vld [vmem:[%s615 + $0x38] sm:$0xff]
        %v675 = vld [vmem:[#allocation5] sm:$0x3]
        %v676 = vunpack.c.l.bf16 %v675
        %678 = vset.pattern.permute.xlu0 0
        %679 = vperm.xlu0 %678, %v667
        %v680 = vpop.permute.xlu0 %679
        %683 = vset.pattern.permute.xlu0 0
        %684 = vperm.xlu0 %683, %v668
        %v685 = vpop.permute.xlu0 %684
        %688 = vset.pattern.permute.xlu0 0
        %689 = vperm.xlu0 %688, %v669
        %v690 = vpop.permute.xlu0 %689
        %693 = vset.pattern.permute.xlu0 0
        %694 = vperm.xlu0 %693, %v670
        %v695 = vpop.permute.xlu0 %694
        %698 = vset.pattern.permute.xlu0 0
        %699 = vperm.xlu0 %698, %v671
        %v700 = vpop.permute.xlu0 %699
        %703 = vset.pattern.permute.xlu0 0
        %704 = vperm.xlu0 %703, %v672
        %v705 = vpop.permute.xlu0 %704
        %708 = vset.pattern.permute.xlu0 0
        %709 = vperm.xlu0 %708, %v673
        %v710 = vpop.permute.xlu0 %709
        %713 = vset.pattern.permute.xlu0 0
        %714 = vperm.xlu0 %713, %v674
        %v715 = vpop.permute.xlu0 %714
        %v717 = vlaneseq
        %v718 = vshrl.u32 %v717, 7
        %v719 = vsub.s32 0, %v718
        %v720 = vrot.slane %v676, %v719
        %v721 = vmul.f32 %v680, %v720
        %v722 = vmul.f32 %v685, %v720
        %v723 = vmul.f32 %v690, %v720
        %v724 = vmul.f32 %v695, %v720
        %v725 = vmul.f32 %v700, %v720
        %v726 = vmul.f32 %v705, %v720
        %v727 = vmul.f32 %v710, %v720
        %v728 = vmul.f32 %v715, %v720
        %729 = vset.pattern.permute.xlu0 1
        %730 = vperm.xlu0 %729, %v667
        %v731 = vpop.permute.xlu0 %730
        %733 = vset.pattern.permute.xlu0 1
        %734 = vperm.xlu0 %733, %v668
        %v735 = vpop.permute.xlu0 %734
        %737 = vset.pattern.permute.xlu0 1
        %738 = vperm.xlu0 %737, %v669
        %v739 = vpop.permute.xlu0 %738
        %741 = vset.pattern.permute.xlu0 1
        %742 = vperm.xlu0 %741, %v670
        %v743 = vpop.permute.xlu0 %742
        %745 = vset.pattern.permute.xlu0 1
        %746 = vperm.xlu0 %745, %v671
        %v747 = vpop.permute.xlu0 %746
        %749 = vset.pattern.permute.xlu0 1
        %750 = vperm.xlu0 %749, %v672
        %v751 = vpop.permute.xlu0 %750
        %753 = vset.pattern.permute.xlu0 1
        %754 = vperm.xlu0 %753, %v673
        %v755 = vpop.permute.xlu0 %754
        %757 = vset.pattern.permute.xlu0 1
        %758 = vperm.xlu0 %757, %v674
        %v759 = vpop.permute.xlu0 %758
        %v761 = vlaneseq
        %v762 = vshrl.u32 %v761, 7
        %v763 = vsub.s32 1, %v762
        %v764 = vrot.slane %v676, %v763
        %v765 = vmul.f32 %v731, %v764
        %v766 = vmul.f32 %v735, %v764
        %v767 = vmul.f32 %v739, %v764
        %v768 = vmul.f32 %v743, %v764
        %v769 = vmul.f32 %v747, %v764
        %v770 = vmul.f32 %v751, %v764
        %v771 = vmul.f32 %v755, %v764
        %v772 = vmul.f32 %v759, %v764
        %v773 = vadd.f32 %v721, %v765
        %v774 = vadd.f32 %v722, %v766
        %v775 = vadd.f32 %v723, %v767
        %v776 = vadd.f32 %v724, %v768
        %v777 = vadd.f32 %v725, %v769
        %v778 = vadd.f32 %v726, %v770
        %v779 = vadd.f32 %v727, %v771
        %v780 = vadd.f32 %v728, %v772
        %781 = vset.pattern.permute.xlu0 2
        %782 = vperm.xlu0 %781, %v667
        %v783 = vpop.permute.xlu0 %782
        %785 = vset.pattern.permute.xlu0 2
        %786 = vperm.xlu0 %785, %v668
        %v787 = vpop.permute.xlu0 %786
        %789 = vset.pattern.permute.xlu0 2
        %790 = vperm.xlu0 %789, %v669
        %v791 = vpop.permute.xlu0 %790
        %793 = vset.pattern.permute.xlu0 2
        %794 = vperm.xlu0 %793, %v670
        %v795 = vpop.permute.xlu0 %794
        %797 = vset.pattern.permute.xlu0 2
        %798 = vperm.xlu0 %797, %v671
        %v799 = vpop.permute.xlu0 %798
        %801 = vset.pattern.permute.xlu0 2
        %802 = vperm.xlu0 %801, %v672
        %v803 = vpop.permute.xlu0 %802
        %805 = vset.pattern.permute.xlu0 2
        %806 = vperm.xlu0 %805, %v673
        %v807 = vpop.permute.xlu0 %806
        %809 = vset.pattern.permute.xlu0 2
        %810 = vperm.xlu0 %809, %v674
        %v811 = vpop.permute.xlu0 %810
        %v813 = vlaneseq
        %v814 = vshrl.u32 %v813, 7
        %v815 = vsub.s32 2, %v814
        %v816 = vrot.slane %v676, %v815
        %v817 = vmul.f32 %v783, %v816
        %v818 = vmul.f32 %v787, %v816
        %v819 = vmul.f32 %v791, %v816
        %v820 = vmul.f32 %v795, %v816
        %v821 = vmul.f32 %v799, %v816
        %v822 = vmul.f32 %v803, %v816
        %v823 = vmul.f32 %v807, %v816
        %v824 = vmul.f32 %v811, %v816
        %v825 = vadd.f32 %v773, %v817
        %v826 = vadd.f32 %v774, %v818
        %v827 = vadd.f32 %v775, %v819
        %v828 = vadd.f32 %v776, %v820
        %v829 = vadd.f32 %v777, %v821
        %v830 = vadd.f32 %v778, %v822
        %v831 = vadd.f32 %v779, %v823
        %v832 = vadd.f32 %v780, %v824
        %v833 = vld [vmem:[#allocation7] sm:$0x1]
        %v835 = vlaneseq
        %v836 = vshrl.u32 %v835, 7
        %v837 = vsub.s32 0, %v836
        %v838 = vrot.slane %v833, %v837
        %v840 = vadd.f32 %v825, %v838
        %v841 = vadd.f32 %v826, %v838
        %v842 = vadd.f32 %v827, %v838
        %v843 = vadd.f32 %v828, %v838
        %v844 = vadd.f32 %v829, %v838
        %v845 = vadd.f32 %v830, %v838
        %v846 = vadd.f32 %v831, %v838
        %v847 = vadd.f32 %v832, %v838
        %v848 = vmax.f32 %v840, 0.0
        %v849 = vmax.f32 %v841, 0.0
        %v850 = vmax.f32 %v842, 0.0
        %v851 = vmax.f32 %v843, 0.0
        %v852 = vmax.f32 %v844, 0.0
        %v853 = vmax.f32 %v845, 0.0
        %v854 = vmax.f32 %v846, 0.0
        %v855 = vmax.f32 %v847, 0.0
        %v856 = vpack.c.bf16 %v849, %v848
        %v857 = vpack.c.bf16 %v851, %v850
        %v858 = vpack.c.bf16 %v853, %v852
        %v859 = vpack.c.bf16 %v855, %v854
        %v860 = vld [vmem:[#allocation9] sm:$0xf]
        %v861 = vld [vmem:[#allocation9 + $0x4] sm:$0xf]
        %v862 = vld [vmem:[#allocation9 + $0x8] sm:$0xf]
        %v863 = vld [vmem:[#allocation9 + $0xc] sm:$0xf]
        %v864 = vld [vmem:[#allocation9 + $0x10] sm:$0xf]
        %v865 = vld [vmem:[#allocation9 + $0x14] sm:$0xf]
        %v866 = vld [vmem:[#allocation9 + $0x18] sm:$0xf]
        %v867 = vld [vmem:[#allocation9 + $0x1c] sm:$0xf]
        %v868 = vld [vmem:[#allocation10] sm:$0x1]
        %v870 = vlaneseq
        %v871 = vshrl.u32 %v870, 7
        %v872 = vsub.s32 0, %v871
        %v873 = vrot.slane %v868, %v872
        %v883 = vunpack.c.l.b16 %v860
        %v884 = vunpack.c.l.b16 %v861
        %v885 = vunpack.c.l.b16 %v862
        %v886 = vunpack.c.l.b16 %v863
        %v887 = vunpack.c.l.b16 %v864
        %v888 = vunpack.c.l.b16 %v865
        %v889 = vunpack.c.l.b16 %v866
        %v890 = vunpack.c.l.b16 %v867
        %v891 = vpack.c.b16 %v884, %v883
        %v892 = vpack.c.b16 %v886, %v885
        %v893 = vpack.c.b16 %v888, %v887
        %v894 = vpack.c.b16 %v890, %v889
        %vm899 = vcmask 523264
        %v901 = vsel %vm899, %v856, 0
        %v904 = vsel %vm899, %v857, 0
        %v907 = vsel %vm899, %v858, 0
        %v910 = vsel %vm899, %v859, 0
        %912 = vmatprep.subr.bf16.mxu0 0
        %913 = vmatpush1.bf16.msra.mxu0 %v891
        %914 = vmatprep.subr.bf16.mxu0 0
        %915 = vmatpush1.bf16.msra.mxu0 %v892
        %916 = vmatprep.subr.bf16.mxu0 0
        %917 = vmatpush1.bf16.msra.mxu0 %v893
        %918 = vmatprep.subr.bf16.mxu0 0
        %919 = vmatpush1.bf16.msra.mxu0 %v894
        %920 = vmatprep.subr.bf16.mxu0 0
        %921 = vmatpush1.bf16.msra.mxu0 0
        %922 = vmatprep.subr.bf16.mxu0 0
        %923 = vmatpush1.bf16.msra.mxu0 0
        %924 = vmatprep.subr.bf16.mxu0 0
        %925 = vmatpush1.bf16.msra.mxu0 0
        %926 = vmatprep.subr.bf16.mxu0 0
        %927 = vmatpush1.bf16.msra.mxu0 0
        %928 = vmatprep.subr.bf16.mxu0 0
        %929 = vmatpush1.bf16.msra.mxu0 0
        %930 = vmatprep.subr.bf16.mxu0 0
        %931 = vmatpush1.bf16.msra.mxu0 0
        %932 = vmatprep.subr.bf16.mxu0 0
        %933 = vmatpush1.bf16.msra.mxu0 0
        %934 = vmatprep.subr.bf16.mxu0 0
        %935 = vmatpush1.bf16.msra.mxu0 0
        %936 = vmatprep.subr.bf16.mxu0 0
        %937 = vmatpush1.bf16.msra.mxu0 0
        %938 = vmatprep.subr.bf16.mxu0 0
        %939 = vmatpush1.bf16.msra.mxu0 0
        %940 = vmatprep.subr.bf16.mxu0 0
        %941 = vmatpush1.bf16.msra.mxu0 0
        %942 = vmatprep.subr.bf16.mxu0 0
        %943 = vmatpush1.bf16.msra.mxu0 0
        %944 = vmatprep.mubr.bf16.mxu0 0
        %945 = vmatmul.mubr.bf16.gmra.mrb[0].mxu0 %v901
        %v946 = vpop.f32.mrb[0].mxu0
        %v947 = vadd.f32 %v873, %v946
        %v948 = vpop.f32.mrb[0].mxu0
        %v949 = vpop.f32.mrb[0].mxu0
        %v950 = vadd.f32 %v873, %v949
        %v951 = vpop.f32.mrb[0].mxu0
        %952 = vmatprep.mubr.bf16.mxu0 0
        %953 = vmatmul.mubr.bf16.gmra.mrb[0].mxu0 %v904
        %v954 = vpop.f32.mrb[0].mxu0
        %v955 = vadd.f32 %v873, %v954
        %v956 = vpop.f32.mrb[0].mxu0
        %v957 = vpop.f32.mrb[0].mxu0
        %v958 = vadd.f32 %v873, %v957
        %v959 = vpop.f32.mrb[0].mxu0
        %960 = vmatprep.mubr.bf16.mxu0 0
        %961 = vmatmul.mubr.bf16.gmra.mrb[0].mxu0 %v907
        %v962 = vpop.f32.mrb[0].mxu0
        %v963 = vadd.f32 %v873, %v962
        %v964 = vpop.f32.mrb[0].mxu0
        %v965 = vpop.f32.mrb[0].mxu0
        %v966 = vadd.f32 %v873, %v965
        %v967 = vpop.f32.mrb[0].mxu0
        %968 = vmatprep.mubr.bf16.mxu0 0
        %969 = vmatmul.mubr.bf16.gmra.mrb[0].mxu0 %v910
        %v970 = vpop.f32.mrb[0].mxu0
        %v971 = vadd.f32 %v873, %v970
        %v972 = vpop.f32.mrb[0].mxu0
        %v973 = vpop.f32.mrb[0].mxu0
        %v974 = vadd.f32 %v873, %v973
        %v975 = vpop.f32.mrb[0].mxu0
        %976 = vdwg.mxu0
        %v977 = vmax.f32 %v947, 0.0
        %v978 = vmax.f32 %v950, 0.0
        %v979 = vmax.f32 %v955, 0.0
        %v980 = vmax.f32 %v958, 0.0
        %v981 = vmax.f32 %v963, 0.0
        %v982 = vmax.f32 %v966, 0.0
        %v983 = vmax.f32 %v971, 0.0
        %v984 = vmax.f32 %v974, 0.0
        %v985 = vpack.c.bf16 %v978, %v977
        %v986 = vpack.c.bf16 %v980, %v979
        %v987 = vpack.c.bf16 %v982, %v981
        %v988 = vpack.c.bf16 %v984, %v983
        // Predicated region
        $region117: #{pointcloud_autoencoder.1} parent=67 // pred_check
          %p989 = pneg %p627
        $region118: #{pointcloud_autoencoder.1} parent=67 // pred_check_branch
          %991 = sbr.rel (%p989) target = $region120
        $region119: #{pointcloud_autoencoder.1} parent=67 // pred_region
          %992 = vst [vmem:[#allocation2] sm:$0xff] 0.0
        $region120: #{pointcloud_autoencoder.1} parent=67 // pred_fallthru
          _
        %v993 = vld [vmem:[#allocation12] sm:$0xff]
        %v994 = vld [vmem:[#allocation12 + $0x20] sm:$0xff]
        %v995 = vld [vmem:[#allocation12 + $0x40] sm:$0xff]
        %v996 = vld [vmem:[#allocation12 + $0x60] sm:$0xff]
        %v997 = vld [vmem:[#allocation12 + $0x80] sm:$0xff]
        %v998 = vld [vmem:[#allocation12 + $0xa0] sm:$0xff]
        %v999 = vld [vmem:[#allocation12 + $0xc0] sm:$0xff]
        %v1000 = vld [vmem:[#allocation12 + $0xe0] sm:$0xff]
        %v1001 = vld [vmem:[#allocation12 + $0x100] sm:$0xff]
        %v1002 = vld [vmem:[#allocation12 + $0x120] sm:$0xff]
        %v1003 = vld [vmem:[#allocation12 + $0x140] sm:$0xff]
        %v1004 = vld [vmem:[#allocation12 + $0x160] sm:$0xff]
        %v1005 = vld [vmem:[#allocation12 + $0x180] sm:$0xff]
        %v1006 = vld [vmem:[#allocation12 + $0x1a0] sm:$0xff]
        %v1007 = vld [vmem:[#allocation12 + $0x1c0] sm:$0xff]
        %v1008 = vld [vmem:[#allocation12 + $0x1e0] sm:$0xff]
        %v1009 = vld [vmem:[#allocation13] sm:$0x3]
        %v1011 = vlaneseq
        %v1012 = vshrl.u32 %v1011, 7
        %v1013 = vsub.s32 0, %v1012
        %v1014 = vrot.slane %v1009, %v1013
        %v1015 = vlaneseq
        %v1016 = vshrl.u32 %v1015, 7
        %v1017 = vsub.s32 1, %v1016
        %v1018 = vrot.slane %v1009, %v1017
        %v1037 = vunpack.c.l.b16 %v993
        %v1038 = vunpack.c.h.b16 %v993
        %v1039 = vunpack.c.l.b16 %v994
        %v1040 = vunpack.c.h.b16 %v994
        %v1041 = vunpack.c.l.b16 %v995
        %v1042 = vunpack.c.h.b16 %v995
        %v1043 = vunpack.c.l.b16 %v996
        %v1044 = vunpack.c.h.b16 %v996
        %v1045 = vunpack.c.l.b16 %v997
        %v1046 = vunpack.c.h.b16 %v997
        %v1047 = vunpack.c.l.b16 %v998
        %v1048 = vunpack.c.h.b16 %v998
        %v1049 = vunpack.c.l.b16 %v999
        %v1050 = vunpack.c.h.b16 %v999
        %v1051 = vunpack.c.l.b16 %v1000
        %v1052 = vunpack.c.h.b16 %v1000
        %v1053 = vunpack.c.l.b16 %v1001
        %v1054 = vunpack.c.h.b16 %v1001
        %v1055 = vunpack.c.l.b16 %v1002
        %v1056 = vunpack.c.h.b16 %v1002
        %v1057 = vunpack.c.l.b16 %v1003
        %v1058 = vunpack.c.h.b16 %v1003
        %v1059 = vunpack.c.l.b16 %v1004
        %v1060 = vunpack.c.h.b16 %v1004
        %v1061 = vunpack.c.l.b16 %v1005
        %v1062 = vunpack.c.h.b16 %v1005
        %v1063 = vunpack.c.l.b16 %v1006
        %v1064 = vunpack.c.h.b16 %v1006
        %v1065 = vunpack.c.l.b16 %v1007
        %v1066 = vunpack.c.h.b16 %v1007
        %v1067 = vunpack.c.l.b16 %v1008
        %v1068 = vunpack.c.h.b16 %v1008
        %v1069 = vpack.c.b16 %v1039, %v1037
        %v1070 = vpack.c.b16 %v1040, %v1038
        %v1071 = vpack.c.b16 %v1043, %v1041
        %v1072 = vpack.c.b16 %v1044, %v1042
        %v1073 = vpack.c.b16 %v1047, %v1045
        %v1074 = vpack.c.b16 %v1048, %v1046
        %v1075 = vpack.c.b16 %v1051, %v1049
        %v1076 = vpack.c.b16 %v1052, %v1050
        %v1077 = vpack.c.b16 %v1055, %v1053
        %v1078 = vpack.c.b16 %v1056, %v1054
        %v1079 = vpack.c.b16 %v1059, %v1057
        %v1080 = vpack.c.b16 %v1060, %v1058
        %v1081 = vpack.c.b16 %v1063, %v1061
        %v1082 = vpack.c.b16 %v1064, %v1062
        %v1083 = vpack.c.b16 %v1067, %v1065
        %v1084 = vpack.c.b16 %v1068, %v1066
        %1101 = vmatprep.subr.bf16.mxu0 %v1070
        %1102 = vmatpush1.bf16.msra.mxu0 %v1069
        %1103 = vmatprep.subr.bf16.mxu0 %v1072
        %1104 = vmatpush1.bf16.msra.mxu0 %v1071
        %1105 = vmatprep.subr.bf16.mxu0 %v1074
        %1106 = vmatpush1.bf16.msra.mxu0 %v1073
        %1107 = vmatprep.subr.bf16.mxu0 %v1076
        %1108 = vmatpush1.bf16.msra.mxu0 %v1075
        %1109 = vmatprep.subr.bf16.mxu0 %v1078
        %1110 = vmatpush1.bf16.msra.mxu0 %v1077
        %1111 = vmatprep.subr.bf16.mxu0 %v1080
        %1112 = vmatpush1.bf16.msra.mxu0 %v1079
        %1113 = vmatprep.subr.bf16.mxu0 %v1082
        %1114 = vmatpush1.bf16.msra.mxu0 %v1081
        %1115 = vmatprep.subr.bf16.mxu0 %v1084
        %1116 = vmatpush1.bf16.msra.mxu0 %v1083
        %1117 = vmatprep.subr.bf16.mxu0 0
        %1118 = vmatpush1.bf16.msra.mxu0 0
        %1119 = vmatprep.subr.bf16.mxu0 0
        %1120 = vmatpush1.bf16.msra.mxu0 0
        %1121 = vmatprep.subr.bf16.mxu0 0
        %1122 = vmatpush1.bf16.msra.mxu0 0
        %1123 = vmatprep.subr.bf16.mxu0 0
        %1124 = vmatpush1.bf16.msra.mxu0 0
        %1125 = vmatprep.subr.bf16.mxu0 0
        %1126 = vmatpush1.bf16.msra.mxu0 0
        %1127 = vmatprep.subr.bf16.mxu0 0
        %1128 = vmatpush1.bf16.msra.mxu0 0
        %1129 = vmatprep.subr.bf16.mxu0 0
        %1130 = vmatpush1.bf16.msra.mxu0 0
        %1131 = vmatprep.subr.bf16.mxu0 0
        %1132 = vmatpush1.bf16.msra.mxu0 0
        %1133 = vmatprep.mubr.bf16.mxu0 0
        %1134 = vmatmul.mubr.bf16.gmra.mrb[0].mxu0 %v985
        %v1135 = vpop.f32.mrb[0].mxu0
        %v1136 = vadd.f32 %v1014, %v1135
        %v1137 = vpop.f32.mrb[0].mxu0
        %v1138 = vadd.f32 %v1018, %v1137
        %v1139 = vpop.f32.mrb[0].mxu0
        %v1140 = vadd.f32 %v1014, %v1139
        %v1141 = vpop.f32.mrb[0].mxu0
        %v1142 = vadd.f32 %v1018, %v1141
        %1143 = vmatprep.mubr.bf16.mxu0 0
        %1144 = vmatmul.mubr.bf16.gmra.mrb[0].mxu0 %v986
        %v1145 = vpop.f32.mrb[0].mxu0
        %v1146 = vadd.f32 %v1014, %v1145
        %v1147 = vpop.f32.mrb[0].mxu0
        %v1148 = vadd.f32 %v1018, %v1147
        %v1149 = vpop.f32.mrb[0].mxu0
        %v1150 = vadd.f32 %v1014, %v1149
        %v1151 = vpop.f32.mrb[0].mxu0
        %v1152 = vadd.f32 %v1018, %v1151
        %1153 = vmatprep.mubr.bf16.mxu0 0
        %1154 = vmatmul.mubr.bf16.gmra.mrb[0].mxu0 %v987
        %v1155 = vpop.f32.mrb[0].mxu0
        %v1156 = vadd.f32 %v1014, %v1155
        %v1157 = vpop.f32.mrb[0].mxu0
        %v1158 = vadd.f32 %v1018, %v1157
        %v1159 = vpop.f32.mrb[0].mxu0
        %v1160 = vadd.f32 %v1014, %v1159
        %v1161 = vpop.f32.mrb[0].mxu0
        %v1162 = vadd.f32 %v1018, %v1161
        %1163 = vmatprep.mubr.bf16.mxu0 0
        %1164 = vmatmul.mubr.bf16.gmra.mrb[0].mxu0 %v988
        %v1165 = vpop.f32.mrb[0].mxu0
        %v1166 = vadd.f32 %v1014, %v1165
        %v1167 = vpop.f32.mrb[0].mxu0
        %v1168 = vadd.f32 %v1018, %v1167
        %v1169 = vpop.f32.mrb[0].mxu0
        %v1170 = vadd.f32 %v1014, %v1169
        %v1171 = vpop.f32.mrb[0].mxu0
        %v1172 = vadd.f32 %v1018, %v1171
        %1173 = vdwg.mxu0
        %v1174 = vmax.f32 %v1136, 0.0
        %v1175 = vmax.f32 %v1138, 0.0
        %v1176 = vmax.f32 %v1140, 0.0
        %v1177 = vmax.f32 %v1142, 0.0
        %v1178 = vmax.f32 %v1146, 0.0
        %v1179 = vmax.f32 %v1148, 0.0
        %v1180 = vmax.f32 %v1150, 0.0
        %v1181 = vmax.f32 %v1152, 0.0
        %v1182 = vmax.f32 %v1156, 0.0
        %v1183 = vmax.f32 %v1158, 0.0
        %v1184 = vmax.f32 %v1160, 0.0
        %v1185 = vmax.f32 %v1162, 0.0
        %v1186 = vmax.f32 %v1166, 0.0
        %v1187 = vmax.f32 %v1168, 0.0
        %v1188 = vmax.f32 %v1170, 0.0
        %v1189 = vmax.f32 %v1172, 0.0
        %v1190 = vld [vmem:[#allocation2] sm:$0x3]
        %v1191 = vmax.f32 %v1174, %v1178
        %v1192 = vmax.f32 %v1176, %v1180
        %v1193 = vmax.f32 %v1191, %v1182
        %v1194 = vmax.f32 %v1192, %v1184
        %v1195 = vmax.f32 %v1193, %v1186
        %v1196 = vmax.f32 %v1194, %v1188
        %v1197 = vmax.f32 %v1195, %v1196
        %v1198 = vrot.slane %v1197, 4
        %v1199 = vmax.f32 %v1197, %v1198
        %v1200 = vrot.slane %v1199, 2
        %v1201 = vmax.f32 %v1199, %v1200
        %v1202 = vrot.slane %v1201, 1
        %v1203 = vmax.f32 %v1201, %v1202
        %v1204 = vmax.f32 %v1175, %v1179
        %v1205 = vmax.f32 %v1177, %v1181
        %v1206 = vmax.f32 %v1204, %v1183
        %v1207 = vmax.f32 %v1205, %v1185
        %v1208 = vmax.f32 %v1206, %v1187
        %v1209 = vmax.f32 %v1207, %v1189
        %v1210 = vmax.f32 %v1208, %v1209
        %v1211 = vrot.slane %v1210, 4
        %v1212 = vmax.f32 %v1210, %v1211
        %v1213 = vrot.slane %v1212, 2
        %v1214 = vmax.f32 %v1212, %v1213
        %v1215 = vrot.slane %v1214, 1
        %v1216 = vmax.f32 %v1214, %v1215
        %v1219 = vcombine.low %v1203, %v1216
        %v1221 = vunpack.c.l.s4 1966171168
        %v1222 = vunpack.c.0.s8 %v1221
        %v1223 = vlaneseq
        %v1224 = vshrl.u32 %v1223, 7
        %v1225 = vsub.s32 %v1222, %v1224
        %v1226 = vrot.slane %v1219, %v1225
        %v1228 = vunpack.c.l.s4 1966171168
        %v1229 = vunpack.c.0.s8 %v1228
        %v1230 = vlaneseq
        %v1231 = vshrl.u32 %v1230, 7
        %v1232 = vsub.s32 %v1229, %v1231
        %v1233 = vrot.slane %v1226, %v1232
        %v1235 = vmax.f32 %v1190, %v1233
        %v1236 = vlaneseq
        %vm1237 = vcmp.ge.s32.totalorder %v1236, 0
        %vm1238 = vcmp.lt.s32.totalorder %v1236, 256
        %vm1239 = vmand %vm1237, %vm1238
        %1240 = vst.msk [vmem:[#allocation2] sm:$0x3] %vm1239, %v1235
        %v1241 = vld [vmem:[#allocation12 + $0x8] sm:$0xff]
        %v1242 = vld [vmem:[#allocation12 + $0x28] sm:$0xff]
        %v1243 = vld [vmem:[#allocation12 + $0x48] sm:$0xff]
        %v1244 = vld [vmem:[#allocation12 + $0x68] sm:$0xff]
        %v1245 = vld [vmem:[#allocation12 + $0x88] sm:$0xff]
        %v1246 = vld [vmem:[#allocation12 + $0xa8] sm:$0xff]
        %v1247 = vld [vmem:[#allocation12 + $0xc8] sm:$0xff]
        %v1248 = vld [vmem:[#allocation12 + $0xe8] sm:$0xff]
        %v1249 = vld [vmem:[#allocation12 + $0x108] sm:$0xff]
        %v1250 = vld [vmem:[#allocation12 + $0x128] sm:$0xff]
        %v1251 = vld [vmem:[#allocation12 + $0x148] sm:$0xff]
        %v1252 = vld [vmem:[#allocation12 + $0x168] sm:$0xff]
        %v1253 = vld [vmem:[#allocation12 + $0x188] sm:$0xff]
        %v1254 = vld [vmem:[#allocation12 + $0x1a8] sm:$0xff]
        %v1255 = vld [vmem:[#allocation12 + $0x1c8] sm:$0xff]
        %v1256 = vld [vmem:[#allocation12 + $0x1e8] sm:$0xff]
        %v1257 = vld [vmem:[#allocation13 + $0x2] sm:$0x3]
        %v1259 = vlaneseq
        %v1260 = vshrl.u32 %v1259, 7
        %v1261 = vsub.s32 0, %v1260
        %v1262 = vrot.slane %v1257, %v1261
        %v1263 = vlaneseq
        %v1264 = vshrl.u32 %v1263, 7
        %v1265 = vsub.s32 1, %v1264
        %v1266 = vrot.slane %v1257, %v1265
        %v1285 = vunpack.c.l.b16 %v1241
        %v1286 = vunpack.c.h.b16 %v1241
        %v1287 = vunpack.c.l.b16 %v1242
        %v1288 = vunpack.c.h.b16 %v1242
        %v1289 = vunpack.c.l.b16 %v1243
        %v1290 = vunpack.c.h.b16 %v1243
        %v1291 = vunpack.c.l.b16 %v1244
        %v1292 = vunpack.c.h.b16 %v1244
        %v1293 = vunpack.c.l.b16 %v1245
        %v1294 = vunpack.c.h.b16 %v1245
        %v1295 = vunpack.c.l.b16 %v1246
        %v1296 = vunpack.c.h.b16 %v1246
        %v1297 = vunpack.c.l.b16 %v1247
        %v1298 = vunpack.c.h.b16 %v1247
        %v1299 = vunpack.c.l.b16 %v1248
        %v1300 = vunpack.c.h.b16 %v1248
        %v1301 = vunpack.c.l.b16 %v1249
        %v1302 = vunpack.c.h.b16 %v1249
        %v1303 = vunpack.c.l.b16 %v1250
        %v1304 = vunpack.c.h.b16 %v1250
        %v1305 = vunpack.c.l.b16 %v1251
        %v1306 = vunpack.c.h.b16 %v1251
        %v1307 = vunpack.c.l.b16 %v1252
        %v1308 = vunpack.c.h.b16 %v1252
        %v1309 = vunpack.c.l.b16 %v1253
        %v1310 = vunpack.c.h.b16 %v1253
        %v1311 = vunpack.c.l.b16 %v1254
        %v1312 = vunpack.c.h.b16 %v1254
        %v1313 = vunpack.c.l.b16 %v1255
        %v1314 = vunpack.c.h.b16 %v1255
        %v1315 = vunpack.c.l.b16 %v1256
        %v1316 = vunpack.c.h.b16 %v1256
        %v1317 = vpack.c.b16 %v1287, %v1285
        %v1318 = vpack.c.b16 %v1288, %v1286
        %v1319 = vpack.c.b16 %v1291, %v1289
        %v1320 = vpack.c.b16 %v1292, %v1290
        %v1321 = vpack.c.b16 %v1295, %v1293
        %v1322 = vpack.c.b16 %v1296, %v1294
        %v1323 = vpack.c.b16 %v1299, %v1297
        %v1324 = vpack.c.b16 %v1300, %v1298
        %v1325 = vpack.c.b16 %v1303, %v1301
        %v1326 = vpack.c.b16 %v1304, %v1302
        %v1327 = vpack.c.b16 %v1307, %v1305
        %v1328 = vpack.c.b16 %v1308, %v1306
        %v1329 = vpack.c.b16 %v1311, %v1309
        %v1330 = vpack.c.b16 %v1312, %v1310
        %v1331 = vpack.c.b16 %v1315, %v1313
        %v1332 = vpack.c.b16 %v1316, %v1314
        %1349 = vmatprep.subr.bf16.mxu0 %v1318
        %1350 = vmatpush1.bf16.msra.mxu0 %v1317
        %1351 = vmatprep.subr.bf16.mxu0 %v1320
        %1352 = vmatpush1.bf16.msra.mxu0 %v1319
        %1353 = vmatprep.subr.bf16.mxu0 %v1322
        %1354 = vmatpush1.bf16.msra.mxu0 %v1321
        %1355 = vmatprep.subr.bf16.mxu0 %v1324
        %1356 = vmatpush1.bf16.msra.mxu0 %v1323
        %1357 = vmatprep.subr.bf16.mxu0 %v1326
        %1358 = vmatpush1.bf16.msra.mxu0 %v1325
        %1359 = vmatprep.subr.bf16.mxu0 %v1328
        %1360 = vmatpush1.bf16.msra.mxu0 %v1327
        %1361 = vmatprep.subr.bf16.mxu0 %v1330
        %1362 = vmatpush1.bf16.msra.mxu0 %v1329
        %1363 = vmatprep.subr.bf16.mxu0 %v1332
        %1364 = vmatpush1.bf16.msra.mxu0 %v1331
        %1365 = vmatprep.subr.bf16.mxu0 0
        %1366 = vmatpush1.bf16.msra.mxu0 0
        %1367 = vmatprep.subr.bf16.mxu0 0
        %1368 = vmatpush1.bf16.msra.mxu0 0
        %1369 = vmatprep.subr.bf16.mxu0 0
        %1370 = vmatpush1.bf16.msra.mxu0 0
        %1371 = vmatprep.subr.bf16.mxu0 0
        %1372 = vmatpush1.bf16.msra.mxu0 0
        %1373 = vmatprep.subr.bf16.mxu0 0
        %1374 = vmatpush1.bf16.msra.mxu0 0
        %1375 = vmatprep.subr.bf16.mxu0 0
        %1376 = vmatpush1.bf16.msra.mxu0 0
        %1377 = vmatprep.subr.bf16.mxu0 0
        %1378 = vmatpush1.bf16.msra.mxu0 0
        %1379 = vmatprep.subr.bf16.mxu0 0
        %1380 = vmatpush1.bf16.msra.mxu0 0
        %1381 = vmatprep.mubr.bf16.mxu0 0
        %1382 = vmatmul.mubr.bf16.gmra.mrb[0].mxu0 %v985
        %v1383 = vpop.f32.mrb[0].mxu0
        %v1384 = vadd.f32 %v1262, %v1383
        %v1385 = vpop.f32.mrb[0].mxu0
        %v1386 = vadd.f32 %v1266, %v1385
        %v1387 = vpop.f32.mrb[0].mxu0
        %v1388 = vadd.f32 %v1262, %v1387
        %v1389 = vpop.f32.mrb[0].mxu0
        %v1390 = vadd.f32 %v1266, %v1389
        %1391 = vmatprep.mubr.bf16.mxu0 0
        %1392 = vmatmul.mubr.bf16.gmra.mrb[0].mxu0 %v986
        %v1393 = vpop.f32.mrb[0].mxu0
        %v1394 = vadd.f32 %v1262, %v1393
        %v1395 = vpop.f32.mrb[0].mxu0
        %v1396 = vadd.f32 %v1266, %v1395
        %v1397 = vpop.f32.mrb[0].mxu0
        %v1398 = vadd.f32 %v1262, %v1397
        %v1399 = vpop.f32.mrb[0].mxu0
        %v1400 = vadd.f32 %v1266, %v1399
        %1401 = vmatprep.mubr.bf16.mxu0 0
        %1402 = vmatmul.mubr.bf16.gmra.mrb[0].mxu0 %v987
        %v1403 = vpop.f32.mrb[0].mxu0
        %v1404 = vadd.f32 %v1262, %v1403
        %v1405 = vpop.f32.mrb[0].mxu0
        %v1406 = vadd.f32 %v1266, %v1405
        %v1407 = vpop.f32.mrb[0].mxu0
        %v1408 = vadd.f32 %v1262, %v1407
        %v1409 = vpop.f32.mrb[0].mxu0
        %v1410 = vadd.f32 %v1266, %v1409
        %1411 = vmatprep.mubr.bf16.mxu0 0
        %1412 = vmatmul.mubr.bf16.gmra.mrb[0].mxu0 %v988
        %v1413 = vpop.f32.mrb[0].mxu0
        %v1414 = vadd.f32 %v1262, %v1413
        %v1415 = vpop.f32.mrb[0].mxu0
        %v1416 = vadd.f32 %v1266, %v1415
        %v1417 = vpop.f32.mrb[0].mxu0
        %v1418 = vadd.f32 %v1262, %v1417
        %v1419 = vpop.f32.mrb[0].mxu0
        %v1420 = vadd.f32 %v1266, %v1419
        %1421 = vdwg.mxu0
        %v1422 = vmax.f32 %v1384, 0.0
        %v1423 = vmax.f32 %v1386, 0.0
        %v1424 = vmax.f32 %v1388, 0.0
        %v1425 = vmax.f32 %v1390, 0.0
        %v1426 = vmax.f32 %v1394, 0.0
        %v1427 = vmax.f32 %v1396, 0.0
        %v1428 = vmax.f32 %v1398, 0.0
        %v1429 = vmax.f32 %v1400, 0.0
        %v1430 = vmax.f32 %v1404, 0.0
        %v1431 = vmax.f32 %v1406, 0.0
        %v1432 = vmax.f32 %v1408, 0.0
        %v1433 = vmax.f32 %v1410, 0.0
        %v1434 = vmax.f32 %v1414, 0.0
        %v1435 = vmax.f32 %v1416, 0.0
        %v1436 = vmax.f32 %v1418, 0.0
        %v1437 = vmax.f32 %v1420, 0.0
        %v1438 = vld [vmem:[#allocation2 + $0x2] sm:$0x3]
        %v1439 = vmax.f32 %v1422, %v1426
        %v1440 = vmax.f32 %v1424, %v1428
        %v1441 = vmax.f32 %v1439, %v1430
        %v1442 = vmax.f32 %v1440, %v1432
        %v1443 = vmax.f32 %v1441, %v1434
        %v1444 = vmax.f32 %v1442, %v1436
        %v1445 = vmax.f32 %v1443, %v1444
        %v1446 = vrot.slane %v1445, 4
        %v1447 = vmax.f32 %v1445, %v1446
        %v1448 = vrot.slane %v1447, 2
        %v1449 = vmax.f32 %v1447, %v1448
        %v1450 = vrot.slane %v1449, 1
        %v1451 = vmax.f32 %v1449, %v1450
        %v1452 = vmax.f32 %v1423, %v1427
        %v1453 = vmax.f32 %v1425, %v1429
        %v1454 = vmax.f32 %v1452, %v1431
        %v1455 = vmax.f32 %v1453, %v1433
        %v1456 = vmax.f32 %v1454, %v1435
        %v1457 = vmax.f32 %v1455, %v1437
        %v1458 = vmax.f32 %v1456, %v1457
        %v1459 = vrot.slane %v1458, 4
        %v1460 = vmax.f32 %v1458, %v1459
        %v1461 = vrot.slane %v1460, 2
        %v1462 = vmax.f32 %v1460, %v1461
        %v1463 = vrot.slane %v1462, 1
        %v1464 = vmax.f32 %v1462, %v1463
        %v1467 = vcombine.low %v1451, %v1464
        %v1469 = vunpack.c.l.s4 1966171168
        %v1470 = vunpack.c.0.s8 %v1469
        %v1471 = vlaneseq
        %v1472 = vshrl.u32 %v1471, 7
        %v1473 = vsub.s32 %v1470, %v1472
        %v1474 = vrot.slane %v1467, %v1473
        %v1476 = vunpack.c.l.s4 1966171168
        %v1477 = vunpack.c.0.s8 %v1476
        %v1478 = vlaneseq
        %v1479 = vshrl.u32 %v1478, 7
        %v1480 = vsub.s32 %v1477, %v1479
        %v1481 = vrot.slane %v1474, %v1480
        %v1483 = vmax.f32 %v1438, %v1481
        %1484 = vst.msk [vmem:[#allocation2 + $0x2] sm:$0x3] %vm1239, %v1483
        %v1485 = vld [vmem:[#allocation12 + $0x10] sm:$0xff]
        %v1486 = vld [vmem:[#allocation12 + $0x30] sm:$0xff]
        %v1487 = vld [vmem:[#allocation12 + $0x50] sm:$0xff]
        %v1488 = vld [vmem:[#allocation12 + $0x70] sm:$0xff]
        %v1489 = vld [vmem:[#allocation12 + $0x90] sm:$0xff]
        %v1490 = vld [vmem:[#allocation12 + $0xb0] sm:$0xff]
        %v1491 = vld [vmem:[#allocation12 + $0xd0] sm:$0xff]
        %v1492 = vld [vmem:[#allocation12 + $0xf0] sm:$0xff]
        %v1493 = vld [vmem:[#allocation12 + $0x110] sm:$0xff]
        %v1494 = vld [vmem:[#allocation12 + $0x130] sm:$0xff]
        %v1495 = vld [vmem:[#allocation12 + $0x150] sm:$0xff]
        %v1496 = vld [vmem:[#allocation12 + $0x170] sm:$0xff]
        %v1497 = vld [vmem:[#allocation12 + $0x190] sm:$0xff]
        %v1498 = vld [vmem:[#allocation12 + $0x1b0] sm:$0xff]
        %v1499 = vld [vmem:[#allocation12 + $0x1d0] sm:$0xff]
        %v1500 = vld [vmem:[#allocation12 + $0x1f0] sm:$0xff]
        %v1501 = vld [vmem:[#allocation13 + $0x4] sm:$0x3]
        %v1503 = vlaneseq
        %v1504 = vshrl.u32 %v1503, 7
        %v1505 = vsub.s32 0, %v1504
        %v1506 = vrot.slane %v1501, %v1505
        %v1507 = vlaneseq
        %v1508 = vshrl.u32 %v1507, 7
        %v1509 = vsub.s32 1, %v1508
        %v1510 = vrot.slane %v1501, %v1509
        %v1529 = vunpack.c.l.b16 %v1485
        %v1530 = vunpack.c.h.b16 %v1485
        %v1531 = vunpack.c.l.b16 %v1486
        %v1532 = vunpack.c.h.b16 %v1486
        %v1533 = vunpack.c.l.b16 %v1487
        %v1534 = vunpack.c.h.b16 %v1487
        %v1535 = vunpack.c.l.b16 %v1488
        %v1536 = vunpack.c.h.b16 %v1488
        %v1537 = vunpack.c.l.b16 %v1489
        %v1538 = vunpack.c.h.b16 %v1489
        %v1539 = vunpack.c.l.b16 %v1490
        %v1540 = vunpack.c.h.b16 %v1490
        %v1541 = vunpack.c.l.b16 %v1491
        %v1542 = vunpack.c.h.b16 %v1491
        %v1543 = vunpack.c.l.b16 %v1492
        %v1544 = vunpack.c.h.b16 %v1492
        %v1545 = vunpack.c.l.b16 %v1493
        %v1546 = vunpack.c.h.b16 %v1493
        %v1547 = vunpack.c.l.b16 %v1494
        %v1548 = vunpack.c.h.b16 %v1494
        %v1549 = vunpack.c.l.b16 %v1495
        %v1550 = vunpack.c.h.b16 %v1495
        %v1551 = vunpack.c.l.b16 %v1496
        %v1552 = vunpack.c.h.b16 %v1496
        %v1553 = vunpack.c.l.b16 %v1497
        %v1554 = vunpack.c.h.b16 %v1497
        %v1555 = vunpack.c.l.b16 %v1498
        %v1556 = vunpack.c.h.b16 %v1498
        %v1557 = vunpack.c.l.b16 %v1499
        %v1558 = vunpack.c.h.b16 %v1499
        %v1559 = vunpack.c.l.b16 %v1500
        %v1560 = vunpack.c.h.b16 %v1500
        %v1561 = vpack.c.b16 %v1531, %v1529
        %v1562 = vpack.c.b16 %v1532, %v1530
        %v1563 = vpack.c.b16 %v1535, %v1533
        %v1564 = vpack.c.b16 %v1536, %v1534
        %v1565 = vpack.c.b16 %v1539, %v1537
        %v1566 = vpack.c.b16 %v1540, %v1538
        %v1567 = vpack.c.b16 %v1543, %v1541
        %v1568 = vpack.c.b16 %v1544, %v1542
        %v1569 = vpack.c.b16 %v1547, %v1545
        %v1570 = vpack.c.b16 %v1548, %v1546
        %v1571 = vpack.c.b16 %v1551, %v1549
        %v1572 = vpack.c.b16 %v1552, %v1550
        %v1573 = vpack.c.b16 %v1555, %v1553
        %v1574 = vpack.c.b16 %v1556, %v1554
        %v1575 = vpack.c.b16 %v1559, %v1557
        %v1576 = vpack.c.b16 %v1560, %v1558
        %1593 = vmatprep.subr.bf16.mxu0 %v1562
        %1594 = vmatpush1.bf16.msra.mxu0 %v1561
        %1595 = vmatprep.subr.bf16.mxu0 %v1564
        %1596 = vmatpush1.bf16.msra.mxu0 %v1563
        %1597 = vmatprep.subr.bf16.mxu0 %v1566
        %1598 = vmatpush1.bf16.msra.mxu0 %v1565
        %1599 = vmatprep.subr.bf16.mxu0 %v1568
        %1600 = vmatpush1.bf16.msra.mxu0 %v1567
        %1601 = vmatprep.subr.bf16.mxu0 %v1570
        %1602 = vmatpush1.bf16.msra.mxu0 %v1569
        %1603 = vmatprep.subr.bf16.mxu0 %v1572
        %1604 = vmatpush1.bf16.msra.mxu0 %v1571
        %1605 = vmatprep.subr.bf16.mxu0 %v1574
        %1606 = vmatpush1.bf16.msra.mxu0 %v1573
        %1607 = vmatprep.subr.bf16.mxu0 %v1576
        %1608 = vmatpush1.bf16.msra.mxu0 %v1575
        %1609 = vmatprep.subr.bf16.mxu0 0
        %1610 = vmatpush1.bf16.msra.mxu0 0
        %1611 = vmatprep.subr.bf16.mxu0 0
        %1612 = vmatpush1.bf16.msra.mxu0 0
        %1613 = vmatprep.subr.bf16.mxu0 0
        %1614 = vmatpush1.bf16.msra.mxu0 0
        %1615 = vmatprep.subr.bf16.mxu0 0
        %1616 = vmatpush1.bf16.msra.mxu0 0
        %1617 = vmatprep.subr.bf16.mxu0 0
        %1618 = vmatpush1.bf16.msra.mxu0 0
        %1619 = vmatprep.subr.bf16.mxu0 0
        %1620 = vmatpush1.bf16.msra.mxu0 0
        %1621 = vmatprep.subr.bf16.mxu0 0
        %1622 = vmatpush1.bf16.msra.mxu0 0
        %1623 = vmatprep.subr.bf16.mxu0 0
        %1624 = vmatpush1.bf16.msra.mxu0 0
        %1625 = vmatprep.mubr.bf16.mxu0 0
        %1626 = vmatmul.mubr.bf16.gmra.mrb[0].mxu0 %v985
        %v1627 = vpop.f32.mrb[0].mxu0
        %v1628 = vadd.f32 %v1506, %v1627
        %v1629 = vpop.f32.mrb[0].mxu0
        %v1630 = vadd.f32 %v1510, %v1629
        %v1631 = vpop.f32.mrb[0].mxu0
        %v1632 = vadd.f32 %v1506, %v1631
        %v1633 = vpop.f32.mrb[0].mxu0
        %v1634 = vadd.f32 %v1510, %v1633
        %1635 = vmatprep.mubr.bf16.mxu0 0
        %1636 = vmatmul.mubr.bf16.gmra.mrb[0].mxu0 %v986
        %v1637 = vpop.f32.mrb[0].mxu0
        %v1638 = vadd.f32 %v1506, %v1637
        %v1639 = vpop.f32.mrb[0].mxu0
        %v1640 = vadd.f32 %v1510, %v1639
        %v1641 = vpop.f32.mrb[0].mxu0
        %v1642 = vadd.f32 %v1506, %v1641
        %v1643 = vpop.f32.mrb[0].mxu0
        %v1644 = vadd.f32 %v1510, %v1643
        %1645 = vmatprep.mubr.bf16.mxu0 0
        %1646 = vmatmul.mubr.bf16.gmra.mrb[0].mxu0 %v987
        %v1647 = vpop.f32.mrb[0].mxu0
        %v1648 = vadd.f32 %v1506, %v1647
        %v1649 = vpop.f32.mrb[0].mxu0
        %v1650 = vadd.f32 %v1510, %v1649
        %v1651 = vpop.f32.mrb[0].mxu0
        %v1652 = vadd.f32 %v1506, %v1651
        %v1653 = vpop.f32.mrb[0].mxu0
        %v1654 = vadd.f32 %v1510, %v1653
        %1655 = vmatprep.mubr.bf16.mxu0 0
        %1656 = vmatmul.mubr.bf16.gmra.mrb[0].mxu0 %v988
        %v1657 = vpop.f32.mrb[0].mxu0
        %v1658 = vadd.f32 %v1506, %v1657
        %v1659 = vpop.f32.mrb[0].mxu0
        %v1660 = vadd.f32 %v1510, %v1659
        %v1661 = vpop.f32.mrb[0].mxu0
        %v1662 = vadd.f32 %v1506, %v1661
        %v1663 = vpop.f32.mrb[0].mxu0
        %v1664 = vadd.f32 %v1510, %v1663
        %1665 = vdwg.mxu0
        %v1666 = vmax.f32 %v1628, 0.0
        %v1667 = vmax.f32 %v1630, 0.0
        %v1668 = vmax.f32 %v1632, 0.0
        %v1669 = vmax.f32 %v1634, 0.0
        %v1670 = vmax.f32 %v1638, 0.0
        %v1671 = vmax.f32 %v1640, 0.0
        %v1672 = vmax.f32 %v1642, 0.0
        %v1673 = vmax.f32 %v1644, 0.0
        %v1674 = vmax.f32 %v1648, 0.0
        %v1675 = vmax.f32 %v1650, 0.0
        %v1676 = vmax.f32 %v1652, 0.0
        %v1677 = vmax.f32 %v1654, 0.0
        %v1678 = vmax.f32 %v1658, 0.0
        %v1679 = vmax.f32 %v1660, 0.0
        %v1680 = vmax.f32 %v1662, 0.0
        %v1681 = vmax.f32 %v1664, 0.0
        %v1682 = vld [vmem:[#allocation2 + $0x4] sm:$0x3]
        %v1683 = vmax.f32 %v1666, %v1670
        %v1684 = vmax.f32 %v1668, %v1672
        %v1685 = vmax.f32 %v1683, %v1674
        %v1686 = vmax.f32 %v1684, %v1676
        %v1687 = vmax.f32 %v1685, %v1678
        %v1688 = vmax.f32 %v1686, %v1680
        %v1689 = vmax.f32 %v1687, %v1688
        %v1690 = vrot.slane %v1689, 4
        %v1691 = vmax.f32 %v1689, %v1690
        %v1692 = vrot.slane %v1691, 2
        %v1693 = vmax.f32 %v1691, %v1692
        %v1694 = vrot.slane %v1693, 1
        %v1695 = vmax.f32 %v1693, %v1694
        %v1696 = vmax.f32 %v1667, %v1671
        %v1697 = vmax.f32 %v1669, %v1673
        %v1698 = vmax.f32 %v1696, %v1675
        %v1699 = vmax.f32 %v1697, %v1677
        %v1700 = vmax.f32 %v1698, %v1679
        %v1701 = vmax.f32 %v1699, %v1681
        %v1702 = vmax.f32 %v1700, %v1701
        %v1703 = vrot.slane %v1702, 4
        %v1704 = vmax.f32 %v1702, %v1703
        %v1705 = vrot.slane %v1704, 2
        %v1706 = vmax.f32 %v1704, %v1705
        %v1707 = vrot.slane %v1706, 1
        %v1708 = vmax.f32 %v1706, %v1707
        %v1711 = vcombine.low %v1695, %v1708
        %v1713 = vunpack.c.l.s4 1966171168
        %v1714 = vunpack.c.0.s8 %v1713
        %v1715 = vlaneseq
        %v1716 = vshrl.u32 %v1715, 7
        %v1717 = vsub.s32 %v1714, %v1716
        %v1718 = vrot.slane %v1711, %v1717
        %v1720 = vunpack.c.l.s4 1966171168
        %v1721 = vunpack.c.0.s8 %v1720
        %v1722 = vlaneseq
        %v1723 = vshrl.u32 %v1722, 7
        %v1724 = vsub.s32 %v1721, %v1723
        %v1725 = vrot.slane %v1718, %v1724
        %v1727 = vmax.f32 %v1682, %v1725
        %1728 = vst.msk [vmem:[#allocation2 + $0x4] sm:$0x3] %vm1239, %v1727
        %v1729 = vld [vmem:[#allocation12 + $0x18] sm:$0xff]
        %v1730 = vld [vmem:[#allocation12 + $0x38] sm:$0xff]
        %v1731 = vld [vmem:[#allocation12 + $0x58] sm:$0xff]
        %v1732 = vld [vmem:[#allocation12 + $0x78] sm:$0xff]
        %v1733 = vld [vmem:[#allocation12 + $0x98] sm:$0xff]
        %v1734 = vld [vmem:[#allocation12 + $0xb8] sm:$0xff]
        %v1735 = vld [vmem:[#allocation12 + $0xd8] sm:$0xff]
        %v1736 = vld [vmem:[#allocation12 + $0xf8] sm:$0xff]
        %v1737 = vld [vmem:[#allocation12 + $0x118] sm:$0xff]
        %v1738 = vld [vmem:[#allocation12 + $0x138] sm:$0xff]
        %v1739 = vld [vmem:[#allocation12 + $0x158] sm:$0xff]
        %v1740 = vld [vmem:[#allocation12 + $0x178] sm:$0xff]
        %v1741 = vld [vmem:[#allocation12 + $0x198] sm:$0xff]
        %v1742 = vld [vmem:[#allocation12 + $0x1b8] sm:$0xff]
        %v1743 = vld [vmem:[#allocation12 + $0x1d8] sm:$0xff]
        %v1744 = vld [vmem:[#allocation12 + $0x1f8] sm:$0xff]
        %v1745 = vld [vmem:[#allocation13 + $0x6] sm:$0x3]
        %v1747 = vlaneseq
        %v1748 = vshrl.u32 %v1747, 7
        %v1749 = vsub.s32 0, %v1748
        %v1750 = vrot.slane %v1745, %v1749
        %v1751 = vlaneseq
        %v1752 = vshrl.u32 %v1751, 7
        %v1753 = vsub.s32 1, %v1752
        %v1754 = vrot.slane %v1745, %v1753
        %v1773 = vunpack.c.l.b16 %v1729
        %v1774 = vunpack.c.h.b16 %v1729
        %v1775 = vunpack.c.l.b16 %v1730
        %v1776 = vunpack.c.h.b16 %v1730
        %v1777 = vunpack.c.l.b16 %v1731
        %v1778 = vunpack.c.h.b16 %v1731
        %v1779 = vunpack.c.l.b16 %v1732
        %v1780 = vunpack.c.h.b16 %v1732
        %v1781 = vunpack.c.l.b16 %v1733
        %v1782 = vunpack.c.h.b16 %v1733
        %v1783 = vunpack.c.l.b16 %v1734
        %v1784 = vunpack.c.h.b16 %v1734
        %v1785 = vunpack.c.l.b16 %v1735
        %v1786 = vunpack.c.h.b16 %v1735
        %v1787 = vunpack.c.l.b16 %v1736
        %v1788 = vunpack.c.h.b16 %v1736
        %v1789 = vunpack.c.l.b16 %v1737
        %v1790 = vunpack.c.h.b16 %v1737
        %v1791 = vunpack.c.l.b16 %v1738
        %v1792 = vunpack.c.h.b16 %v1738
        %v1793 = vunpack.c.l.b16 %v1739
        %v1794 = vunpack.c.h.b16 %v1739
        %v1795 = vunpack.c.l.b16 %v1740
        %v1796 = vunpack.c.h.b16 %v1740
        %v1797 = vunpack.c.l.b16 %v1741
        %v1798 = vunpack.c.h.b16 %v1741
        %v1799 = vunpack.c.l.b16 %v1742
        %v1800 = vunpack.c.h.b16 %v1742
        %v1801 = vunpack.c.l.b16 %v1743
        %v1802 = vunpack.c.h.b16 %v1743
        %v1803 = vunpack.c.l.b16 %v1744
        %v1804 = vunpack.c.h.b16 %v1744
        %v1805 = vpack.c.b16 %v1775, %v1773
        %v1806 = vpack.c.b16 %v1776, %v1774
        %v1807 = vpack.c.b16 %v1779, %v1777
        %v1808 = vpack.c.b16 %v1780, %v1778
        %v1809 = vpack.c.b16 %v1783, %v1781
        %v1810 = vpack.c.b16 %v1784, %v1782
        %v1811 = vpack.c.b16 %v1787, %v1785
        %v1812 = vpack.c.b16 %v1788, %v1786
        %v1813 = vpack.c.b16 %v1791, %v1789
        %v1814 = vpack.c.b16 %v1792, %v1790
        %v1815 = vpack.c.b16 %v1795, %v1793
        %v1816 = vpack.c.b16 %v1796, %v1794
        %v1817 = vpack.c.b16 %v1799, %v1797
        %v1818 = vpack.c.b16 %v1800, %v1798
        %v1819 = vpack.c.b16 %v1803, %v1801
        %v1820 = vpack.c.b16 %v1804, %v1802
        %1837 = vmatprep.subr.bf16.mxu0 %v1806
        %1838 = vmatpush1.bf16.msra.mxu0 %v1805
        %1839 = vmatprep.subr.bf16.mxu0 %v1808
        %1840 = vmatpush1.bf16.msra.mxu0 %v1807
        %1841 = vmatprep.subr.bf16.mxu0 %v1810
        %1842 = vmatpush1.bf16.msra.mxu0 %v1809
        %1843 = vmatprep.subr.bf16.mxu0 %v1812
        %1844 = vmatpush1.bf16.msra.mxu0 %v1811
        %1845 = vmatprep.subr.bf16.mxu0 %v1814
        %1846 = vmatpush1.bf16.msra.mxu0 %v1813
        %1847 = vmatprep.subr.bf16.mxu0 %v1816
        %1848 = vmatpush1.bf16.msra.mxu0 %v1815
        %1849 = vmatprep.subr.bf16.mxu0 %v1818
        %1850 = vmatpush1.bf16.msra.mxu0 %v1817
        %1851 = vmatprep.subr.bf16.mxu0 %v1820
        %1852 = vmatpush1.bf16.msra.mxu0 %v1819
        %1853 = vmatprep.subr.bf16.mxu0 0
        %1854 = vmatpush1.bf16.msra.mxu0 0
        %1855 = vmatprep.subr.bf16.mxu0 0
        %1856 = vmatpush1.bf16.msra.mxu0 0
        %1857 = vmatprep.subr.bf16.mxu0 0
        %1858 = vmatpush1.bf16.msra.mxu0 0
        %1859 = vmatprep.subr.bf16.mxu0 0
        %1860 = vmatpush1.bf16.msra.mxu0 0
        %1861 = vmatprep.subr.bf16.mxu0 0
        %1862 = vmatpush1.bf16.msra.mxu0 0
        %1863 = vmatprep.subr.bf16.mxu0 0
        %1864 = vmatpush1.bf16.msra.mxu0 0
        %1865 = vmatprep.subr.bf16.mxu0 0
        %1866 = vmatpush1.bf16.msra.mxu0 0
        %1867 = vmatprep.subr.bf16.mxu0 0
        %1868 = vmatpush1.bf16.msra.mxu0 0
        %1869 = vmatprep.mubr.bf16.mxu0 0
        %1870 = vmatmul.mubr.bf16.gmra.mrb[0].mxu0 %v985
        %v1871 = vpop.f32.mrb[0].mxu0
        %v1872 = vadd.f32 %v1750, %v1871
        %v1873 = vpop.f32.mrb[0].mxu0
        %v1874 = vadd.f32 %v1754, %v1873
        %v1875 = vpop.f32.mrb[0].mxu0
        %v1876 = vadd.f32 %v1750, %v1875
        %v1877 = vpop.f32.mrb[0].mxu0
        %v1878 = vadd.f32 %v1754, %v1877
        %1879 = vmatprep.mubr.bf16.mxu0 0
        %1880 = vmatmul.mubr.bf16.gmra.mrb[0].mxu0 %v986
        %v1881 = vpop.f32.mrb[0].mxu0
        %v1882 = vadd.f32 %v1750, %v1881
        %v1883 = vpop.f32.mrb[0].mxu0
        %v1884 = vadd.f32 %v1754, %v1883
        %v1885 = vpop.f32.mrb[0].mxu0
        %v1886 = vadd.f32 %v1750, %v1885
        %v1887 = vpop.f32.mrb[0].mxu0
        %v1888 = vadd.f32 %v1754, %v1887
        %1889 = vmatprep.mubr.bf16.mxu0 0
        %1890 = vmatmul.mubr.bf16.gmra.mrb[0].mxu0 %v987
        %v1891 = vpop.f32.mrb[0].mxu0
        %v1892 = vadd.f32 %v1750, %v1891
        %v1893 = vpop.f32.mrb[0].mxu0
        %v1894 = vadd.f32 %v1754, %v1893
        %v1895 = vpop.f32.mrb[0].mxu0
        %v1896 = vadd.f32 %v1750, %v1895
        %v1897 = vpop.f32.mrb[0].mxu0
        %v1898 = vadd.f32 %v1754, %v1897
        %1899 = vmatprep.mubr.bf16.mxu0 0
        %1900 = vmatmul.mubr.bf16.gmra.mrb[0].mxu0 %v988
        %v1901 = vpop.f32.mrb[0].mxu0
        %v1902 = vadd.f32 %v1750, %v1901
        %v1903 = vpop.f32.mrb[0].mxu0
        %v1904 = vadd.f32 %v1754, %v1903
        %v1905 = vpop.f32.mrb[0].mxu0
        %v1906 = vadd.f32 %v1750, %v1905
        %v1907 = vpop.f32.mrb[0].mxu0
        %v1908 = vadd.f32 %v1754, %v1907
        %1909 = vdwg.mxu0
        %v1910 = vmax.f32 %v1872, 0.0
        %v1911 = vmax.f32 %v1874, 0.0
        %v1912 = vmax.f32 %v1876, 0.0
        %v1913 = vmax.f32 %v1878, 0.0
        %v1914 = vmax.f32 %v1882, 0.0
        %v1915 = vmax.f32 %v1884, 0.0
        %v1916 = vmax.f32 %v1886, 0.0
        %v1917 = vmax.f32 %v1888, 0.0
        %v1918 = vmax.f32 %v1892, 0.0
        %v1919 = vmax.f32 %v1894, 0.0
        %v1920 = vmax.f32 %v1896, 0.0
        %v1921 = vmax.f32 %v1898, 0.0
        %v1922 = vmax.f32 %v1902, 0.0
        %v1923 = vmax.f32 %v1904, 0.0
        %v1924 = vmax.f32 %v1906, 0.0
        %v1925 = vmax.f32 %v1908, 0.0
        %v1926 = vld [vmem:[#allocation2 + $0x6] sm:$0x3]
        %v1927 = vmax.f32 %v1910, %v1914
        %v1928 = vmax.f32 %v1912, %v1916
        %v1929 = vmax.f32 %v1927, %v1918
        %v1930 = vmax.f32 %v1928, %v1920
        %v1931 = vmax.f32 %v1929, %v1922
        %v1932 = vmax.f32 %v1930, %v1924
        %v1933 = vmax.f32 %v1931, %v1932
        %v1934 = vrot.slane %v1933, 4
        %v1935 = vmax.f32 %v1933, %v1934
        %v1936 = vrot.slane %v1935, 2
        %v1937 = vmax.f32 %v1935, %v1936
        %v1938 = vrot.slane %v1937, 1
        %v1939 = vmax.f32 %v1937, %v1938
        %v1940 = vmax.f32 %v1911, %v1915
        %v1941 = vmax.f32 %v1913, %v1917
        %v1942 = vmax.f32 %v1940, %v1919
        %v1943 = vmax.f32 %v1941, %v1921
        %v1944 = vmax.f32 %v1942, %v1923
        %v1945 = vmax.f32 %v1943, %v1925
        %v1946 = vmax.f32 %v1944, %v1945
        %v1947 = vrot.slane %v1946, 4
        %v1948 = vmax.f32 %v1946, %v1947
        %v1949 = vrot.slane %v1948, 2
        %v1950 = vmax.f32 %v1948, %v1949
        %v1951 = vrot.slane %v1950, 1
        %v1952 = vmax.f32 %v1950, %v1951
        %v1955 = vcombine.low %v1939, %v1952
        %v1957 = vunpack.c.l.s4 1966171168
        %v1958 = vunpack.c.0.s8 %v1957
        %v1959 = vlaneseq
        %v1960 = vshrl.u32 %v1959, 7
        %v1961 = vsub.s32 %v1958, %v1960
        %v1962 = vrot.slane %v1955, %v1961
        %v1964 = vunpack.c.l.s4 1966171168
        %v1965 = vunpack.c.0.s8 %v1964
        %v1966 = vlaneseq
        %v1967 = vshrl.u32 %v1966, 7
        %v1968 = vsub.s32 %v1965, %v1967
        %v1969 = vrot.slane %v1962, %v1968
        %v1971 = vmax.f32 %v1926, %v1969
        %1972 = vst.msk [vmem:[#allocation2 + $0x6] sm:$0x3] %vm1239, %v1971
        // Predicated region
        $region121: #{pointcloud_autoencoder.1} parent=67 // pred_check
          %p1973 = pneg %p627
        $region122: #{pointcloud_autoencoder.1} parent=67 // pred_check_branch
          %1975 = sbr.rel (%p1973) target = $region124
        $region123: #{pointcloud_autoencoder.1} parent=67 // pred_region
          %v1976 = vld [vmem:[#allocation2] sm:$0xff]
          %v1978 = vlaneseq
          %v1979 = vshrl.u32 %v1978, 7
          %v1980 = vsub.s32 0, %v1979
          %v1981 = vrot.slane %v1976, %v1980
          %v1982 = vlaneseq
          %v1983 = vshrl.u32 %v1982, 7
          %v1984 = vsub.s32 1, %v1983
          %v1985 = vrot.slane %v1976, %v1984
          %v1986 = vlaneseq
          %v1987 = vshrl.u32 %v1986, 7
          %v1988 = vsub.s32 2, %v1987
          %v1989 = vrot.slane %v1976, %v1988
          %v1990 = vlaneseq
          %v1991 = vshrl.u32 %v1990, 7
          %v1992 = vsub.s32 3, %v1991
          %v1993 = vrot.slane %v1976, %v1992
          %v1994 = vlaneseq
          %v1995 = vshrl.u32 %v1994, 7
          %v1996 = vsub.s32 4, %v1995
          %v1997 = vrot.slane %v1976, %v1996
          %v1998 = vlaneseq
          %v1999 = vshrl.u32 %v1998, 7
          %v2000 = vsub.s32 5, %v1999
          %v2001 = vrot.slane %v1976, %v2000
          %v2002 = vlaneseq
          %v2003 = vshrl.u32 %v2002, 7
          %v2004 = vsub.s32 6, %v2003
          %v2005 = vrot.slane %v1976, %v2004
          %v2006 = vlaneseq
          %v2007 = vshrl.u32 %v2006, 7
          %v2008 = vsub.s32 7, %v2007
          %v2009 = vrot.slane %v1976, %v2008
          %v2018 = vpack.c.bf16 %v1981, %v1981
          %v2019 = vpack.c.bf16 %v1985, %v1985
          %v2020 = vpack.c.bf16 %v1989, %v1989
          %v2021 = vpack.c.bf16 %v1993, %v1993
          %v2022 = vpack.c.bf16 %v1997, %v1997
          %v2023 = vpack.c.bf16 %v2001, %v2001
          %v2024 = vpack.c.bf16 %v2005, %v2005
          %v2025 = vpack.c.bf16 %v2009, %v2009
          %v2026 = vld [vmem:[#allocation15] sm:$0xff]
          %v2027 = vld [vmem:[#allocation15 + $0x8] sm:$0xff]
          %v2028 = vld [vmem:[#allocation15 + $0x10] sm:$0xff]
          %v2029 = vld [vmem:[#allocation15 + $0x18] sm:$0xff]
          %v2030 = vld [vmem:[#allocation15 + $0x20] sm:$0xff]
          %v2031 = vld [vmem:[#allocation15 + $0x28] sm:$0xff]
          %v2032 = vld [vmem:[#allocation15 + $0x30] sm:$0xff]
          %v2033 = vld [vmem:[#allocation15 + $0x38] sm:$0xff]
          %v2034 = vld [vmem:[#allocation15 + $0x40] sm:$0xff]
          %v2035 = vld [vmem:[#allocation15 + $0x48] sm:$0xff]
          %v2036 = vld [vmem:[#allocation15 + $0x50] sm:$0xff]
          %v2037 = vld [vmem:[#allocation15 + $0x58] sm:$0xff]
          %v2038 = vld [vmem:[#allocation15 + $0x60] sm:$0xff]
          %v2039 = vld [vmem:[#allocation15 + $0x68] sm:$0xff]
          %v2040 = vld [vmem:[#allocation15 + $0x70] sm:$0xff]
          %v2041 = vld [vmem:[#allocation15 + $0x78] sm:$0xff]
          %v2042 = vld [vmem:[#allocation15 + $0x80] sm:$0xff]
          %v2043 = vld [vmem:[#allocation15 + $0x88] sm:$0xff]
          %v2044 = vld [vmem:[#allocation15 + $0x90] sm:$0xff]
          %v2045 = vld [vmem:[#allocation15 + $0x98] sm:$0xff]
          %v2046 = vld [vmem:[#allocation15 + $0xa0] sm:$0xff]
          %v2047 = vld [vmem:[#allocation15 + $0xa8] sm:$0xff]
          %v2048 = vld [vmem:[#allocation15 + $0xb0] sm:$0xff]
          %v2049 = vld [vmem:[#allocation15 + $0xb8] sm:$0xff]
          %v2050 = vld [vmem:[#allocation15 + $0xc0] sm:$0xff]
          %v2051 = vld [vmem:[#allocation15 + $0xc8] sm:$0xff]
          %v2052 = vld [vmem:[#allocation15 + $0xd0] sm:$0xff]
          %v2053 = vld [vmem:[#allocation15 + $0xd8] sm:$0xff]
          %v2054 = vld [vmem:[#allocation15 + $0xe0] sm:$0xff]
          %v2055 = vld [vmem:[#allocation15 + $0xe8] sm:$0xff]
          %v2056 = vld [vmem:[#allocation15 + $0xf0] sm:$0xff]
          %v2057 = vld [vmem:[#allocation15 + $0xf8] sm:$0xff]
          %v2058 = vld [vmem:[#allocation15 + $0x100] sm:$0xff]
          %v2059 = vld [vmem:[#allocation15 + $0x108] sm:$0xff]
          %v2060 = vld [vmem:[#allocation15 + $0x110] sm:$0xff]
          %v2061 = vld [vmem:[#allocation15 + $0x118] sm:$0xff]
          %v2062 = vld [vmem:[#allocation15 + $0x120] sm:$0xff]
          %v2063 = vld [vmem:[#allocation15 + $0x128] sm:$0xff]
          %v2064 = vld [vmem:[#allocation15 + $0x130] sm:$0xff]
          %v2065 = vld [vmem:[#allocation15 + $0x138] sm:$0xff]
          %v2066 = vld [vmem:[#allocation15 + $0x140] sm:$0xff]
          %v2067 = vld [vmem:[#allocation15 + $0x148] sm:$0xff]
          %v2068 = vld [vmem:[#allocation15 + $0x150] sm:$0xff]
          %v2069 = vld [vmem:[#allocation15 + $0x158] sm:$0xff]
          %v2070 = vld [vmem:[#allocation15 + $0x160] sm:$0xff]
          %v2071 = vld [vmem:[#allocation15 + $0x168] sm:$0xff]
          %v2072 = vld [vmem:[#allocation15 + $0x170] sm:$0xff]
          %v2073 = vld [vmem:[#allocation15 + $0x178] sm:$0xff]
          %v2074 = vld [vmem:[#allocation15 + $0x180] sm:$0xff]
          %v2075 = vld [vmem:[#allocation15 + $0x188] sm:$0xff]
          %v2076 = vld [vmem:[#allocation15 + $0x190] sm:$0xff]
          %v2077 = vld [vmem:[#allocation15 + $0x198] sm:$0xff]
          %v2078 = vld [vmem:[#allocation15 + $0x1a0] sm:$0xff]
          %v2079 = vld [vmem:[#allocation15 + $0x1a8] sm:$0xff]
          %v2080 = vld [vmem:[#allocation15 + $0x1b0] sm:$0xff]
          %v2081 = vld [vmem:[#allocation15 + $0x1b8] sm:$0xff]
          %v2082 = vld [vmem:[#allocation15 + $0x1c0] sm:$0xff]
          %v2083 = vld [vmem:[#allocation15 + $0x1c8] sm:$0xff]
          %v2084 = vld [vmem:[#allocation15 + $0x1d0] sm:$0xff]
          %v2085 = vld [vmem:[#allocation15 + $0x1d8] sm:$0xff]
          %v2086 = vld [vmem:[#allocation15 + $0x1e0] sm:$0xff]
          %v2087 = vld [vmem:[#allocation15 + $0x1e8] sm:$0xff]
          %v2088 = vld [vmem:[#allocation15 + $0x1f0] sm:$0xff]
          %v2089 = vld [vmem:[#allocation15 + $0x1f8] sm:$0xff]
          %v2090 = vld [vmem:[#allocation15 + $0x200] sm:$0xff]
          %v2091 = vld [vmem:[#allocation15 + $0x208] sm:$0xff]
          %v2092 = vld [vmem:[#allocation15 + $0x210] sm:$0xff]
          %v2093 = vld [vmem:[#allocation15 + $0x218] sm:$0xff]
          %v2094 = vld [vmem:[#allocation15 + $0x220] sm:$0xff]
          %v2095 = vld [vmem:[#allocation15 + $0x228] sm:$0xff]
          %v2096 = vld [vmem:[#allocation15 + $0x230] sm:$0xff]
          %v2097 = vld [vmem:[#allocation15 + $0x238] sm:$0xff]
          %v2098 = vld [vmem:[#allocation15 + $0x240] sm:$0xff]
          %v2099 = vld [vmem:[#allocation15 + $0x248] sm:$0xff]
          %v2100 = vld [vmem:[#allocation15 + $0x250] sm:$0xff]
          %v2101 = vld [vmem:[#allocation15 + $0x258] sm:$0xff]
          %v2102 = vld [vmem:[#allocation15 + $0x260] sm:$0xff]
          %v2103 = vld [vmem:[#allocation15 + $0x268] sm:$0xff]
          %v2104 = vld [vmem:[#allocation15 + $0x270] sm:$0xff]
          %v2105 = vld [vmem:[#allocation15 + $0x278] sm:$0xff]
          %v2106 = vld [vmem:[#allocation15 + $0x280] sm:$0xff]
          %v2107 = vld [vmem:[#allocation15 + $0x288] sm:$0xff]
          %v2108 = vld [vmem:[#allocation15 + $0x290] sm:$0xff]
          %v2109 = vld [vmem:[#allocation15 + $0x298] sm:$0xff]
          %v2110 = vld [vmem:[#allocation15 + $0x2a0] sm:$0xff]
          %v2111 = vld [vmem:[#allocation15 + $0x2a8] sm:$0xff]
          %v2112 = vld [vmem:[#allocation15 + $0x2b0] sm:$0xff]
          %v2113 = vld [vmem:[#allocation15 + $0x2b8] sm:$0xff]
          %v2114 = vld [vmem:[#allocation15 + $0x2c0] sm:$0xff]
          %v2115 = vld [vmem:[#allocation15 + $0x2c8] sm:$0xff]
          %v2116 = vld [vmem:[#allocation15 + $0x2d0] sm:$0xff]
          %v2117 = vld [vmem:[#allocation15 + $0x2d8] sm:$0xff]
          %v2118 = vld [vmem:[#allocation15 + $0x2e0] sm:$0xff]
          %v2119 = vld [vmem:[#allocation15 + $0x2e8] sm:$0xff]
          %v2120 = vld [vmem:[#allocation15 + $0x2f0] sm:$0xff]
          %v2121 = vld [vmem:[#allocation15 + $0x2f8] sm:$0xff]
          %v2122 = vld [vmem:[#allocation15 + $0x300] sm:$0xff]
          %v2123 = vld [vmem:[#allocation15 + $0x308] sm:$0xff]
          %v2124 = vld [vmem:[#allocation15 + $0x310] sm:$0xff]
          %v2125 = vld [vmem:[#allocation15 + $0x318] sm:$0xff]
          %v2126 = vld [vmem:[#allocation15 + $0x320] sm:$0xff]
          %v2127 = vld [vmem:[#allocation15 + $0x328] sm:$0xff]
          %v2128 = vld [vmem:[#allocation15 + $0x330] sm:$0xff]
          %v2129 = vld [vmem:[#allocation15 + $0x338] sm:$0xff]
          %v2130 = vld [vmem:[#allocation15 + $0x340] sm:$0xff]
          %v2131 = vld [vmem:[#allocation15 + $0x348] sm:$0xff]
          %v2132 = vld [vmem:[#allocation15 + $0x350] sm:$0xff]
          %v2133 = vld [vmem:[#allocation15 + $0x358] sm:$0xff]
          %v2134 = vld [vmem:[#allocation15 + $0x360] sm:$0xff]
          %v2135 = vld [vmem:[#allocation15 + $0x368] sm:$0xff]
          %v2136 = vld [vmem:[#allocation15 + $0x370] sm:$0xff]
          %v2137 = vld [vmem:[#allocation15 + $0x378] sm:$0xff]
          %v2138 = vld [vmem:[#allocation15 + $0x380] sm:$0xff]
          %v2139 = vld [vmem:[#allocation15 + $0x388] sm:$0xff]
          %v2140 = vld [vmem:[#allocation15 + $0x390] sm:$0xff]
          %v2141 = vld [vmem:[#allocation15 + $0x398] sm:$0xff]
          %v2142 = vld [vmem:[#allocation15 + $0x3a0] sm:$0xff]
          %v2143 = vld [vmem:[#allocation15 + $0x3a8] sm:$0xff]
          %v2144 = vld [vmem:[#allocation15 + $0x3b0] sm:$0xff]
          %v2145 = vld [vmem:[#allocation15 + $0x3b8] sm:$0xff]
          %v2146 = vld [vmem:[#allocation15 + $0x3c0] sm:$0xff]
          %v2147 = vld [vmem:[#allocation15 + $0x3c8] sm:$0xff]
          %v2148 = vld [vmem:[#allocation15 + $0x3d0] sm:$0xff]
          %v2149 = vld [vmem:[#allocation15 + $0x3d8] sm:$0xff]
          %v2150 = vld [vmem:[#allocation15 + $0x3e0] sm:$0xff]
          %v2151 = vld [vmem:[#allocation15 + $0x3e8] sm:$0xff]
          %v2152 = vld [vmem:[#allocation15 + $0x3f0] sm:$0xff]
          %v2153 = vld [vmem:[#allocation15 + $0x3f8] sm:$0xff]
          %v2154 = vld [vmem:[#allocation16] sm:$0x3]
          %v2283 = vunpack.c.l.b16 %v2026
          %v2284 = vunpack.c.h.b16 %v2026
          %v2285 = vunpack.c.l.b16 %v2027
          %v2286 = vunpack.c.h.b16 %v2027
          %v2287 = vunpack.c.l.b16 %v2028
          %v2288 = vunpack.c.h.b16 %v2028
          %v2289 = vunpack.c.l.b16 %v2029
          %v2290 = vunpack.c.h.b16 %v2029
          %v2291 = vunpack.c.l.b16 %v2030
          %v2292 = vunpack.c.h.b16 %v2030
          %v2293 = vunpack.c.l.b16 %v2031
          %v2294 = vunpack.c.h.b16 %v2031
          %v2295 = vunpack.c.l.b16 %v2032
          %v2296 = vunpack.c.h.b16 %v2032
          %v2297 = vunpack.c.l.b16 %v2033
          %v2298 = vunpack.c.h.b16 %v2033
          %v2299 = vunpack.c.l.b16 %v2034
          %v2300 = vunpack.c.h.b16 %v2034
          %v2301 = vunpack.c.l.b16 %v2035
          %v2302 = vunpack.c.h.b16 %v2035
          %v2303 = vunpack.c.l.b16 %v2036
          %v2304 = vunpack.c.h.b16 %v2036
          %v2305 = vunpack.c.l.b16 %v2037
          %v2306 = vunpack.c.h.b16 %v2037
          %v2307 = vunpack.c.l.b16 %v2038
          %v2308 = vunpack.c.h.b16 %v2038
          %v2309 = vunpack.c.l.b16 %v2039
          %v2310 = vunpack.c.h.b16 %v2039
          %v2311 = vunpack.c.l.b16 %v2040
          %v2312 = vunpack.c.h.b16 %v2040
          %v2313 = vunpack.c.l.b16 %v2041
          %v2314 = vunpack.c.h.b16 %v2041
          %v2315 = vunpack.c.l.b16 %v2042
          %v2316 = vunpack.c.h.b16 %v2042
          %v2317 = vunpack.c.l.b16 %v2043
          %v2318 = vunpack.c.h.b16 %v2043
          %v2319 = vunpack.c.l.b16 %v2044
          %v2320 = vunpack.c.h.b16 %v2044
          %v2321 = vunpack.c.l.b16 %v2045
          %v2322 = vunpack.c.h.b16 %v2045
          %v2323 = vunpack.c.l.b16 %v2046
          %v2324 = vunpack.c.h.b16 %v2046
          %v2325 = vunpack.c.l.b16 %v2047
          %v2326 = vunpack.c.h.b16 %v2047
          %v2327 = vunpack.c.l.b16 %v2048
          %v2328 = vunpack.c.h.b16 %v2048
          %v2329 = vunpack.c.l.b16 %v2049
          %v2330 = vunpack.c.h.b16 %v2049
          %v2331 = vunpack.c.l.b16 %v2050
          %v2332 = vunpack.c.h.b16 %v2050
          %v2333 = vunpack.c.l.b16 %v2051
          %v2334 = vunpack.c.h.b16 %v2051
          %v2335 = vunpack.c.l.b16 %v2052
          %v2336 = vunpack.c.h.b16 %v2052
          %v2337 = vunpack.c.l.b16 %v2053
          %v2338 = vunpack.c.h.b16 %v2053
          %v2339 = vunpack.c.l.b16 %v2054
          %v2340 = vunpack.c.h.b16 %v2054
          %v2341 = vunpack.c.l.b16 %v2055
          %v2342 = vunpack.c.h.b16 %v2055
          %v2343 = vunpack.c.l.b16 %v2056
          %v2344 = vunpack.c.h.b16 %v2056
          %v2345 = vunpack.c.l.b16 %v2057
          %v2346 = vunpack.c.h.b16 %v2057
          %v2347 = vunpack.c.l.b16 %v2058
          %v2348 = vunpack.c.h.b16 %v2058
          %v2349 = vunpack.c.l.b16 %v2059
          %v2350 = vunpack.c.h.b16 %v2059
          %v2351 = vunpack.c.l.b16 %v2060
          %v2352 = vunpack.c.h.b16 %v2060
          %v2353 = vunpack.c.l.b16 %v2061
          %v2354 = vunpack.c.h.b16 %v2061
          %v2355 = vunpack.c.l.b16 %v2062
          %v2356 = vunpack.c.h.b16 %v2062
          %v2357 = vunpack.c.l.b16 %v2063
          %v2358 = vunpack.c.h.b16 %v2063
          %v2359 = vunpack.c.l.b16 %v2064
          %v2360 = vunpack.c.h.b16 %v2064
          %v2361 = vunpack.c.l.b16 %v2065
          %v2362 = vunpack.c.h.b16 %v2065
          %v2363 = vunpack.c.l.b16 %v2066
          %v2364 = vunpack.c.h.b16 %v2066
          %v2365 = vunpack.c.l.b16 %v2067
          %v2366 = vunpack.c.h.b16 %v2067
          %v2367 = vunpack.c.l.b16 %v2068
          %v2368 = vunpack.c.h.b16 %v2068
          %v2369 = vunpack.c.l.b16 %v2069
          %v2370 = vunpack.c.h.b16 %v2069
          %v2371 = vunpack.c.l.b16 %v2070
          %v2372 = vunpack.c.h.b16 %v2070
          %v2373 = vunpack.c.l.b16 %v2071
          %v2374 = vunpack.c.h.b16 %v2071
          %v2375 = vunpack.c.l.b16 %v2072
          %v2376 = vunpack.c.h.b16 %v2072
          %v2377 = vunpack.c.l.b16 %v2073
          %v2378 = vunpack.c.h.b16 %v2073
          %v2379 = vunpack.c.l.b16 %v2074
          %v2380 = vunpack.c.h.b16 %v2074
          %v2381 = vunpack.c.l.b16 %v2075
          %v2382 = vunpack.c.h.b16 %v2075
          %v2383 = vunpack.c.l.b16 %v2076
          %v2384 = vunpack.c.h.b16 %v2076
          %v2385 = vunpack.c.l.b16 %v2077
          %v2386 = vunpack.c.h.b16 %v2077
          %v2387 = vunpack.c.l.b16 %v2078
          %v2388 = vunpack.c.h.b16 %v2078
          %v2389 = vunpack.c.l.b16 %v2079
          %v2390 = vunpack.c.h.b16 %v2079
          %v2391 = vunpack.c.l.b16 %v2080
          %v2392 = vunpack.c.h.b16 %v2080
          %v2393 = vunpack.c.l.b16 %v2081
          %v2394 = vunpack.c.h.b16 %v2081
          %v2395 = vunpack.c.l.b16 %v2082
          %v2396 = vunpack.c.h.b16 %v2082
          %v2397 = vunpack.c.l.b16 %v2083
          %v2398 = vunpack.c.h.b16 %v2083
          %v2399 = vunpack.c.l.b16 %v2084
          %v2400 = vunpack.c.h.b16 %v2084
          %v2401 = vunpack.c.l.b16 %v2085
          %v2402 = vunpack.c.h.b16 %v2085
          %v2403 = vunpack.c.l.b16 %v2086
          %v2404 = vunpack.c.h.b16 %v2086
          %v2405 = vunpack.c.l.b16 %v2087
          %v2406 = vunpack.c.h.b16 %v2087
          %v2407 = vunpack.c.l.b16 %v2088
          %v2408 = vunpack.c.h.b16 %v2088
          %v2409 = vunpack.c.l.b16 %v2089
          %v2410 = vunpack.c.h.b16 %v2089
          %v2411 = vunpack.c.l.b16 %v2090
          %v2412 = vunpack.c.h.b16 %v2090
          %v2413 = vunpack.c.l.b16 %v2091
          %v2414 = vunpack.c.h.b16 %v2091
          %v2415 = vunpack.c.l.b16 %v2092
          %v2416 = vunpack.c.h.b16 %v2092
          %v2417 = vunpack.c.l.b16 %v2093
          %v2418 = vunpack.c.h.b16 %v2093
          %v2419 = vunpack.c.l.b16 %v2094
          %v2420 = vunpack.c.h.b16 %v2094
          %v2421 = vunpack.c.l.b16 %v2095
          %v2422 = vunpack.c.h.b16 %v2095
          %v2423 = vunpack.c.l.b16 %v2096
          %v2424 = vunpack.c.h.b16 %v2096
          %v2425 = vunpack.c.l.b16 %v2097
          %v2426 = vunpack.c.h.b16 %v2097
          %v2427 = vunpack.c.l.b16 %v2098
          %v2428 = vunpack.c.h.b16 %v2098
          %v2429 = vunpack.c.l.b16 %v2099
          %v2430 = vunpack.c.h.b16 %v2099
          %v2431 = vunpack.c.l.b16 %v2100
          %v2432 = vunpack.c.h.b16 %v2100
          %v2433 = vunpack.c.l.b16 %v2101
          %v2434 = vunpack.c.h.b16 %v2101
          %v2435 = vunpack.c.l.b16 %v2102
          %v2436 = vunpack.c.h.b16 %v2102
          %v2437 = vunpack.c.l.b16 %v2103
          %v2438 = vunpack.c.h.b16 %v2103
          %v2439 = vunpack.c.l.b16 %v2104
          %v2440 = vunpack.c.h.b16 %v2104
          %v2441 = vunpack.c.l.b16 %v2105
          %v2442 = vunpack.c.h.b16 %v2105
          %v2443 = vunpack.c.l.b16 %v2106
          %v2444 = vunpack.c.h.b16 %v2106
          %v2445 = vunpack.c.l.b16 %v2107
          %v2446 = vunpack.c.h.b16 %v2107
          %v2447 = vunpack.c.l.b16 %v2108
          %v2448 = vunpack.c.h.b16 %v2108
          %v2449 = vunpack.c.l.b16 %v2109
          %v2450 = vunpack.c.h.b16 %v2109
          %v2451 = vunpack.c.l.b16 %v2110
          %v2452 = vunpack.c.h.b16 %v2110
          %v2453 = vunpack.c.l.b16 %v2111
          %v2454 = vunpack.c.h.b16 %v2111
          %v2455 = vunpack.c.l.b16 %v2112
          %v2456 = vunpack.c.h.b16 %v2112
          %v2457 = vunpack.c.l.b16 %v2113
          %v2458 = vunpack.c.h.b16 %v2113
          %v2459 = vunpack.c.l.b16 %v2114
          %v2460 = vunpack.c.h.b16 %v2114
          %v2461 = vunpack.c.l.b16 %v2115
          %v2462 = vunpack.c.h.b16 %v2115
          %v2463 = vunpack.c.l.b16 %v2116
          %v2464 = vunpack.c.h.b16 %v2116
          %v2465 = vunpack.c.l.b16 %v2117
          %v2466 = vunpack.c.h.b16 %v2117
          %v2467 = vunpack.c.l.b16 %v2118
          %v2468 = vunpack.c.h.b16 %v2118
          %v2469 = vunpack.c.l.b16 %v2119
          %v2470 = vunpack.c.h.b16 %v2119
          %v2471 = vunpack.c.l.b16 %v2120
          %v2472 = vunpack.c.h.b16 %v2120
          %v2473 = vunpack.c.l.b16 %v2121
          %v2474 = vunpack.c.h.b16 %v2121
          %v2475 = vunpack.c.l.b16 %v2122
          %v2476 = vunpack.c.h.b16 %v2122
          %v2477 = vunpack.c.l.b16 %v2123
          %v2478 = vunpack.c.h.b16 %v2123
          %v2479 = vunpack.c.l.b16 %v2124
          %v2480 = vunpack.c.h.b16 %v2124
          %v2481 = vunpack.c.l.b16 %v2125
          %v2482 = vunpack.c.h.b16 %v2125
          %v2483 = vunpack.c.l.b16 %v2126
          %v2484 = vunpack.c.h.b16 %v2126
          %v2485 = vunpack.c.l.b16 %v2127
          %v2486 = vunpack.c.h.b16 %v2127
          %v2487 = vunpack.c.l.b16 %v2128
          %v2488 = vunpack.c.h.b16 %v2128
          %v2489 = vunpack.c.l.b16 %v2129
          %v2490 = vunpack.c.h.b16 %v2129
          %v2491 = vunpack.c.l.b16 %v2130
          %v2492 = vunpack.c.h.b16 %v2130
          %v2493 = vunpack.c.l.b16 %v2131
          %v2494 = vunpack.c.h.b16 %v2131
          %v2495 = vunpack.c.l.b16 %v2132
          %v2496 = vunpack.c.h.b16 %v2132
          %v2497 = vunpack.c.l.b16 %v2133
          %v2498 = vunpack.c.h.b16 %v2133
          %v2499 = vunpack.c.l.b16 %v2134
          %v2500 = vunpack.c.h.b16 %v2134
          %v2501 = vunpack.c.l.b16 %v2135
          %v2502 = vunpack.c.h.b16 %v2135
          %v2503 = vunpack.c.l.b16 %v2136
          %v2504 = vunpack.c.h.b16 %v2136
          %v2505 = vunpack.c.l.b16 %v2137
          %v2506 = vunpack.c.h.b16 %v2137
          %v2507 = vunpack.c.l.b16 %v2138
          %v2508 = vunpack.c.h.b16 %v2138
          %v2509 = vunpack.c.l.b16 %v2139
          %v2510 = vunpack.c.h.b16 %v2139
          %v2511 = vunpack.c.l.b16 %v2140
          %v2512 = vunpack.c.h.b16 %v2140
          %v2513 = vunpack.c.l.b16 %v2141
          %v2514 = vunpack.c.h.b16 %v2141
          %v2515 = vunpack.c.l.b16 %v2142
          %v2516 = vunpack.c.h.b16 %v2142
          %v2517 = vunpack.c.l.b16 %v2143
          %v2518 = vunpack.c.h.b16 %v2143
          %v2519 = vunpack.c.l.b16 %v2144
          %v2520 = vunpack.c.h.b16 %v2144
          %v2521 = vunpack.c.l.b16 %v2145
          %v2522 = vunpack.c.h.b16 %v2145
          %v2523 = vunpack.c.l.b16 %v2146
          %v2524 = vunpack.c.h.b16 %v2146
          %v2525 = vunpack.c.l.b16 %v2147
          %v2526 = vunpack.c.h.b16 %v2147
          %v2527 = vunpack.c.l.b16 %v2148
          %v2528 = vunpack.c.h.b16 %v2148
          %v2529 = vunpack.c.l.b16 %v2149
          %v2530 = vunpack.c.h.b16 %v2149
          %v2531 = vunpack.c.l.b16 %v2150
          %v2532 = vunpack.c.h.b16 %v2150
          %v2533 = vunpack.c.l.b16 %v2151
          %v2534 = vunpack.c.h.b16 %v2151
          %v2535 = vunpack.c.l.b16 %v2152
          %v2536 = vunpack.c.h.b16 %v2152
          %v2537 = vunpack.c.l.b16 %v2153
          %v2538 = vunpack.c.h.b16 %v2153
          %v2539 = vpack.c.b16 %v2285, %v2283
          %v2540 = vpack.c.b16 %v2286, %v2284
          %v2541 = vpack.c.b16 %v2289, %v2287
          %v2542 = vpack.c.b16 %v2290, %v2288
          %v2543 = vpack.c.b16 %v2293, %v2291
          %v2544 = vpack.c.b16 %v2294, %v2292
          %v2545 = vpack.c.b16 %v2297, %v2295
          %v2546 = vpack.c.b16 %v2298, %v2296
          %v2547 = vpack.c.b16 %v2301, %v2299
          %v2548 = vpack.c.b16 %v2302, %v2300
          %v2549 = vpack.c.b16 %v2305, %v2303
          %v2550 = vpack.c.b16 %v2306, %v2304
          %v2551 = vpack.c.b16 %v2309, %v2307
          %v2552 = vpack.c.b16 %v2310, %v2308
          %v2553 = vpack.c.b16 %v2313, %v2311
          %v2554 = vpack.c.b16 %v2314, %v2312
          %v2555 = vpack.c.b16 %v2317, %v2315
          %v2556 = vpack.c.b16 %v2318, %v2316
          %v2557 = vpack.c.b16 %v2321, %v2319
          %v2558 = vpack.c.b16 %v2322, %v2320
          %v2559 = vpack.c.b16 %v2325, %v2323
          %v2560 = vpack.c.b16 %v2326, %v2324
          %v2561 = vpack.c.b16 %v2329, %v2327
          %v2562 = vpack.c.b16 %v2330, %v2328
          %v2563 = vpack.c.b16 %v2333, %v2331
          %v2564 = vpack.c.b16 %v2334, %v2332
          %v2565 = vpack.c.b16 %v2337, %v2335
          %v2566 = vpack.c.b16 %v2338, %v2336
          %v2567 = vpack.c.b16 %v2341, %v2339
          %v2568 = vpack.c.b16 %v2342, %v2340
          %v2569 = vpack.c.b16 %v2345, %v2343
          %v2570 = vpack.c.b16 %v2346, %v2344
          %v2571 = vpack.c.b16 %v2349, %v2347
          %v2572 = vpack.c.b16 %v2350, %v2348
          %v2573 = vpack.c.b16 %v2353, %v2351
          %v2574 = vpack.c.b16 %v2354, %v2352
          %v2575 = vpack.c.b16 %v2357, %v2355
          %v2576 = vpack.c.b16 %v2358, %v2356
          %v2577 = vpack.c.b16 %v2361, %v2359
          %v2578 = vpack.c.b16 %v2362, %v2360
          %v2579 = vpack.c.b16 %v2365, %v2363
          %v2580 = vpack.c.b16 %v2366, %v2364
          %v2581 = vpack.c.b16 %v2369, %v2367
          %v2582 = vpack.c.b16 %v2370, %v2368
          %v2583 = vpack.c.b16 %v2373, %v2371
          %v2584 = vpack.c.b16 %v2374, %v2372
          %v2585 = vpack.c.b16 %v2377, %v2375
          %v2586 = vpack.c.b16 %v2378, %v2376
          %v2587 = vpack.c.b16 %v2381, %v2379
          %v2588 = vpack.c.b16 %v2382, %v2380
          %v2589 = vpack.c.b16 %v2385, %v2383
          %v2590 = vpack.c.b16 %v2386, %v2384
          %v2591 = vpack.c.b16 %v2389, %v2387
          %v2592 = vpack.c.b16 %v2390, %v2388
          %v2593 = vpack.c.b16 %v2393, %v2391
          %v2594 = vpack.c.b16 %v2394, %v2392
          %v2595 = vpack.c.b16 %v2397, %v2395
          %v2596 = vpack.c.b16 %v2398, %v2396
          %v2597 = vpack.c.b16 %v2401, %v2399
          %v2598 = vpack.c.b16 %v2402, %v2400
          %v2599 = vpack.c.b16 %v2405, %v2403
          %v2600 = vpack.c.b16 %v2406, %v2404
          %v2601 = vpack.c.b16 %v2409, %v2407
          %v2602 = vpack.c.b16 %v2410, %v2408
          %v2603 = vpack.c.b16 %v2413, %v2411
          %v2604 = vpack.c.b16 %v2414, %v2412
          %v2605 = vpack.c.b16 %v2417, %v2415
          %v2606 = vpack.c.b16 %v2418, %v2416
          %v2607 = vpack.c.b16 %v2421, %v2419
          %v2608 = vpack.c.b16 %v2422, %v2420
          %v2609 = vpack.c.b16 %v2425, %v2423
          %v2610 = vpack.c.b16 %v2426, %v2424
          %v2611 = vpack.c.b16 %v2429, %v2427
          %v2612 = vpack.c.b16 %v2430, %v2428
          %v2613 = vpack.c.b16 %v2433, %v2431
          %v2614 = vpack.c.b16 %v2434, %v2432
          %v2615 = vpack.c.b16 %v2437, %v2435
          %v2616 = vpack.c.b16 %v2438, %v2436
          %v2617 = vpack.c.b16 %v2441, %v2439
          %v2618 = vpack.c.b16 %v2442, %v2440
          %v2619 = vpack.c.b16 %v2445, %v2443
          %v2620 = vpack.c.b16 %v2446, %v2444
          %v2621 = vpack.c.b16 %v2449, %v2447
          %v2622 = vpack.c.b16 %v2450, %v2448
          %v2623 = vpack.c.b16 %v2453, %v2451
          %v2624 = vpack.c.b16 %v2454, %v2452
          %v2625 = vpack.c.b16 %v2457, %v2455
          %v2626 = vpack.c.b16 %v2458, %v2456
          %v2627 = vpack.c.b16 %v2461, %v2459
          %v2628 = vpack.c.b16 %v2462, %v2460
          %v2629 = vpack.c.b16 %v2465, %v2463
          %v2630 = vpack.c.b16 %v2466, %v2464
          %v2631 = vpack.c.b16 %v2469, %v2467
          %v2632 = vpack.c.b16 %v2470, %v2468
          %v2633 = vpack.c.b16 %v2473, %v2471
          %v2634 = vpack.c.b16 %v2474, %v2472
          %v2635 = vpack.c.b16 %v2477, %v2475
          %v2636 = vpack.c.b16 %v2478, %v2476
          %v2637 = vpack.c.b16 %v2481, %v2479
          %v2638 = vpack.c.b16 %v2482, %v2480
          %v2639 = vpack.c.b16 %v2485, %v2483
          %v2640 = vpack.c.b16 %v2486, %v2484
          %v2641 = vpack.c.b16 %v2489, %v2487
          %v2642 = vpack.c.b16 %v2490, %v2488
          %v2643 = vpack.c.b16 %v2493, %v2491
          %v2644 = vpack.c.b16 %v2494, %v2492
          %v2645 = vpack.c.b16 %v2497, %v2495
          %v2646 = vpack.c.b16 %v2498, %v2496
          %v2647 = vpack.c.b16 %v2501, %v2499
          %v2648 = vpack.c.b16 %v2502, %v2500
          %v2649 = vpack.c.b16 %v2505, %v2503
          %v2650 = vpack.c.b16 %v2506, %v2504
          %v2651 = vpack.c.b16 %v2509, %v2507
          %v2652 = vpack.c.b16 %v2510, %v2508
          %v2653 = vpack.c.b16 %v2513, %v2511
          %v2654 = vpack.c.b16 %v2514, %v2512
          %v2655 = vpack.c.b16 %v2517, %v2515
          %v2656 = vpack.c.b16 %v2518, %v2516
          %v2657 = vpack.c.b16 %v2521, %v2519
          %v2658 = vpack.c.b16 %v2522, %v2520
          %v2659 = vpack.c.b16 %v2525, %v2523
          %v2660 = vpack.c.b16 %v2526, %v2524
          %v2661 = vpack.c.b16 %v2529, %v2527
          %v2662 = vpack.c.b16 %v2530, %v2528
          %v2663 = vpack.c.b16 %v2533, %v2531
          %v2664 = vpack.c.b16 %v2534, %v2532
          %v2665 = vpack.c.b16 %v2537, %v2535
          %v2666 = vpack.c.b16 %v2538, %v2536
          %v2796 = vlaneseq
          %v2797 = vshrl.u32 %v2796, 7
          %v2798 = vsub.s32 0, %v2797
          %v2799 = vrot.slane %v2154, %v2798
          %v2800 = vlaneseq
          %v2801 = vshrl.u32 %v2800, 7
          %v2802 = vsub.s32 1, %v2801
          %v2803 = vrot.slane %v2154, %v2802
          %2806 = vmatprep.subr.bf16.mxu0 %v2540
          %2807 = vmatpush1.bf16.msra.mxu0 %v2539
          %2808 = vmatprep.subr.bf16.mxu0 %v2542
          %2809 = vmatpush1.bf16.msra.mxu0 %v2541
          %2810 = vmatprep.subr.bf16.mxu0 %v2544
          %2811 = vmatpush1.bf16.msra.mxu0 %v2543
          %2812 = vmatprep.subr.bf16.mxu0 %v2546
          %2813 = vmatpush1.bf16.msra.mxu0 %v2545
          %2814 = vmatprep.subr.bf16.mxu0 %v2548
          %2815 = vmatpush1.bf16.msra.mxu0 %v2547
          %2816 = vmatprep.subr.bf16.mxu0 %v2550
          %2817 = vmatpush1.bf16.msra.mxu0 %v2549
          %2818 = vmatprep.subr.bf16.mxu0 %v2552
          %2819 = vmatpush1.bf16.msra.mxu0 %v2551
          %2820 = vmatprep.subr.bf16.mxu0 %v2554
          %2821 = vmatpush1.bf16.msra.mxu0 %v2553
          %2822 = vmatprep.subr.bf16.mxu0 %v2556
          %2823 = vmatpush1.bf16.msra.mxu0 %v2555
          %2824 = vmatprep.subr.bf16.mxu0 %v2558
          %2825 = vmatpush1.bf16.msra.mxu0 %v2557
          %2826 = vmatprep.subr.bf16.mxu0 %v2560
          %2827 = vmatpush1.bf16.msra.mxu0 %v2559
          %2828 = vmatprep.subr.bf16.mxu0 %v2562
          %2829 = vmatpush1.bf16.msra.mxu0 %v2561
          %2830 = vmatprep.subr.bf16.mxu0 %v2564
          %2831 = vmatpush1.bf16.msra.mxu0 %v2563
          %2832 = vmatprep.subr.bf16.mxu0 %v2566
          %2833 = vmatpush1.bf16.msra.mxu0 %v2565
          %2834 = vmatprep.subr.bf16.mxu0 %v2568
          %2835 = vmatpush1.bf16.msra.mxu0 %v2567
          %2836 = vmatprep.subr.bf16.mxu0 %v2570
          %2837 = vmatpush1.bf16.msra.mxu0 %v2569
          %2838 = vmatprep.mubr.bf16.mxu0 %v2019
          %2839 = vmatmul.mubr.bf16.gmra.mrb[0].mxu0 %v2018
          %v2840 = vpop.f32.mrb[0].mxu0
          %v2841 = vadd.f32 %v2799, %v2840
          %v2842 = vpop.f32.mrb[0].mxu0
          %v2843 = vadd.f32 %v2803, %v2842
          %v2844 = vpop.f32.mrb[0].mxu0
          %v2845 = vpop.f32.mrb[0].mxu0
          %2846 = vdwg.mxu0
          %2847 = vmatprep.subr.bf16.mxu0 %v2572
          %2848 = vmatpush1.bf16.msra.mxu0 %v2571
          %2849 = vmatprep.subr.bf16.mxu0 %v2574
          %2850 = vmatpush1.bf16.msra.mxu0 %v2573
          %2851 = vmatprep.subr.bf16.mxu0 %v2576
          %2852 = vmatpush1.bf16.msra.mxu0 %v2575
          %2853 = vmatprep.subr.bf16.mxu0 %v2578
          %2854 = vmatpush1.bf16.msra.mxu0 %v2577
          %2855 = vmatprep.subr.bf16.mxu0 %v2580
          %2856 = vmatpush1.bf16.msra.mxu0 %v2579
          %2857 = vmatprep.subr.bf16.mxu0 %v2582
          %2858 = vmatpush1.bf16.msra.mxu0 %v2581
          %2859 = vmatprep.subr.bf16.mxu0 %v2584
          %2860 = vmatpush1.bf16.msra.mxu0 %v2583
          %2861 = vmatprep.subr.bf16.mxu0 %v2586
          %2862 = vmatpush1.bf16.msra.mxu0 %v2585
          %2863 = vmatprep.subr.bf16.mxu0 %v2588
          %2864 = vmatpush1.bf16.msra.mxu0 %v2587
          %2865 = vmatprep.subr.bf16.mxu0 %v2590
          %2866 = vmatpush1.bf16.msra.mxu0 %v2589
          %2867 = vmatprep.subr.bf16.mxu0 %v2592
          %2868 = vmatpush1.bf16.msra.mxu0 %v2591
          %2869 = vmatprep.subr.bf16.mxu0 %v2594
          %2870 = vmatpush1.bf16.msra.mxu0 %v2593
          %2871 = vmatprep.subr.bf16.mxu0 %v2596
          %2872 = vmatpush1.bf16.msra.mxu0 %v2595
          %2873 = vmatprep.subr.bf16.mxu0 %v2598
          %2874 = vmatpush1.bf16.msra.mxu0 %v2597
          %2875 = vmatprep.subr.bf16.mxu0 %v2600
          %2876 = vmatpush1.bf16.msra.mxu0 %v2599
          %2877 = vmatprep.subr.bf16.mxu0 %v2602
          %2878 = vmatpush1.bf16.msra.mxu0 %v2601
          %2879 = vmatprep.mubr.bf16.mxu0 %v2021
          %2880 = vmatmul.mubr.bf16.gmra.mrb[0].mxu0 %v2020
          %v2881 = vpop.f32.mrb[0].mxu0
          %v2882 = vadd.f32 %v2841, %v2881
          %v2883 = vpop.f32.mrb[0].mxu0
          %v2884 = vadd.f32 %v2843, %v2883
          %v2885 = vpop.f32.mrb[0].mxu0
          %v2886 = vpop.f32.mrb[0].mxu0
          %2887 = vdwg.mxu0
          %2888 = vmatprep.subr.bf16.mxu0 %v2604
          %2889 = vmatpush1.bf16.msra.mxu0 %v2603
          %2890 = vmatprep.subr.bf16.mxu0 %v2606
          %2891 = vmatpush1.bf16.msra.mxu0 %v2605
          %2892 = vmatprep.subr.bf16.mxu0 %v2608
          %2893 = vmatpush1.bf16.msra.mxu0 %v2607
          %2894 = vmatprep.subr.bf16.mxu0 %v2610
          %2895 = vmatpush1.bf16.msra.mxu0 %v2609
          %2896 = vmatprep.subr.bf16.mxu0 %v2612
          %2897 = vmatpush1.bf16.msra.mxu0 %v2611
          %2898 = vmatprep.subr.bf16.mxu0 %v2614
          %2899 = vmatpush1.bf16.msra.mxu0 %v2613
          %2900 = vmatprep.subr.bf16.mxu0 %v2616
          %2901 = vmatpush1.bf16.msra.mxu0 %v2615
          %2902 = vmatprep.subr.bf16.mxu0 %v2618
          %2903 = vmatpush1.bf16.msra.mxu0 %v2617
          %2904 = vmatprep.subr.bf16.mxu0 %v2620
          %2905 = vmatpush1.bf16.msra.mxu0 %v2619
          %2906 = vmatprep.subr.bf16.mxu0 %v2622
          %2907 = vmatpush1.bf16.msra.mxu0 %v2621
          %2908 = vmatprep.subr.bf16.mxu0 %v2624
          %2909 = vmatpush1.bf16.msra.mxu0 %v2623
          %2910 = vmatprep.subr.bf16.mxu0 %v2626
          %2911 = vmatpush1.bf16.msra.mxu0 %v2625
          %2912 = vmatprep.subr.bf16.mxu0 %v2628
          %2913 = vmatpush1.bf16.msra.mxu0 %v2627
          %2914 = vmatprep.subr.bf16.mxu0 %v2630
          %2915 = vmatpush1.bf16.msra.mxu0 %v2629
          %2916 = vmatprep.subr.bf16.mxu0 %v2632
          %2917 = vmatpush1.bf16.msra.mxu0 %v2631
          %2918 = vmatprep.subr.bf16.mxu0 %v2634
          %2919 = vmatpush1.bf16.msra.mxu0 %v2633
          %2920 = vmatprep.mubr.bf16.mxu0 %v2023
          %2921 = vmatmul.mubr.bf16.gmra.mrb[0].mxu0 %v2022
          %v2922 = vpop.f32.mrb[0].mxu0
          %v2923 = vadd.f32 %v2882, %v2922
          %v2924 = vpop.f32.mrb[0].mxu0
          %v2925 = vadd.f32 %v2884, %v2924
          %v2926 = vpop.f32.mrb[0].mxu0
          %v2927 = vpop.f32.mrb[0].mxu0
          %2928 = vdwg.mxu0
          %2929 = vmatprep.subr.bf16.mxu0 %v2636
          %2930 = vmatpush1.bf16.msra.mxu0 %v2635
          %2931 = vmatprep.subr.bf16.mxu0 %v2638
          %2932 = vmatpush1.bf16.msra.mxu0 %v2637
          %2933 = vmatprep.subr.bf16.mxu0 %v2640
          %2934 = vmatpush1.bf16.msra.mxu0 %v2639
          %2935 = vmatprep.subr.bf16.mxu0 %v2642
          %2936 = vmatpush1.bf16.msra.mxu0 %v2641
          %2937 = vmatprep.subr.bf16.mxu0 %v2644
          %2938 = vmatpush1.bf16.msra.mxu0 %v2643
          %2939 = vmatprep.subr.bf16.mxu0 %v2646
          %2940 = vmatpush1.bf16.msra.mxu0 %v2645
          %2941 = vmatprep.subr.bf16.mxu0 %v2648
          %2942 = vmatpush1.bf16.msra.mxu0 %v2647
          %2943 = vmatprep.subr.bf16.mxu0 %v2650
          %2944 = vmatpush1.bf16.msra.mxu0 %v2649
          %2945 = vmatprep.subr.bf16.mxu0 %v2652
          %2946 = vmatpush1.bf16.msra.mxu0 %v2651
          %2947 = vmatprep.subr.bf16.mxu0 %v2654
          %2948 = vmatpush1.bf16.msra.mxu0 %v2653
          %2949 = vmatprep.subr.bf16.mxu0 %v2656
          %2950 = vmatpush1.bf16.msra.mxu0 %v2655
          %2951 = vmatprep.subr.bf16.mxu0 %v2658
          %2952 = vmatpush1.bf16.msra.mxu0 %v2657
          %2953 = vmatprep.subr.bf16.mxu0 %v2660
          %2954 = vmatpush1.bf16.msra.mxu0 %v2659
          %2955 = vmatprep.subr.bf16.mxu0 %v2662
          %2956 = vmatpush1.bf16.msra.mxu0 %v2661
          %2957 = vmatprep.subr.bf16.mxu0 %v2664
          %2958 = vmatpush1.bf16.msra.mxu0 %v2663
          %2959 = vmatprep.subr.bf16.mxu0 %v2666
          %2960 = vmatpush1.bf16.msra.mxu0 %v2665
          %2961 = vmatprep.mubr.bf16.mxu0 %v2025
          %2962 = vmatmul.mubr.bf16.gmra.mrb[0].mxu0 %v2024
          %v2963 = vpop.f32.mrb[0].mxu0
          %v2964 = vadd.f32 %v2923, %v2963
          %v2965 = vpop.f32.mrb[0].mxu0
          %v2966 = vadd.f32 %v2925, %v2965
          %v2967 = vpop.f32.mrb[0].mxu0
          %v2968 = vpop.f32.mrb[0].mxu0
          %2969 = vdwg.mxu0
          %v2972 = vcombine.low %v2964, %v2966
          %v2974 = vunpack.c.l.s4 1966171168
          %v2975 = vunpack.c.0.s8 %v2974
          %v2976 = vlaneseq
          %v2977 = vshrl.u32 %v2976, 7
          %v2978 = vsub.s32 %v2975, %v2977
          %v2979 = vrot.slane %v2972, %v2978
          %v2981 = vunpack.c.l.s4 1966171168
          %v2982 = vunpack.c.0.s8 %v2981
          %v2983 = vlaneseq
          %v2984 = vshrl.u32 %v2983, 7
          %v2985 = vsub.s32 %v2982, %v2984
          %v2986 = vrot.slane %v2979, %v2985
          %2988 = vst.msk [vmem:[%s620] sm:$0x3] %vm1239, %v2986
          %v2989 = vpack.c.bf16 %v2964, %v2964
          %v2990 = vpack.c.bf16 %v2966, %v2966
          %v2991 = vld [vmem:[#allocation18] sm:$0xff]
          %v2992 = vld [vmem:[#allocation18 + $0x8] sm:$0xff]
          %v2993 = vld [vmem:[#allocation18 + $0x10] sm:$0xff]
          %v2994 = vld [vmem:[#allocation18 + $0x18] sm:$0xff]
          %v2995 = vld [vmem:[#allocation18 + $0x20] sm:$0xff]
          %v2996 = vld [vmem:[#allocation18 + $0x28] sm:$0xff]
          %v2997 = vld [vmem:[#allocation18 + $0x30] sm:$0xff]
          %v2998 = vld [vmem:[#allocation18 + $0x38] sm:$0xff]
          %v2999 = vld [vmem:[#allocation18 + $0x40] sm:$0xff]
          %v3000 = vld [vmem:[#allocation18 + $0x48] sm:$0xff]
          %v3001 = vld [vmem:[#allocation18 + $0x50] sm:$0xff]
          %v3002 = vld [vmem:[#allocation18 + $0x58] sm:$0xff]
          %v3003 = vld [vmem:[#allocation18 + $0x60] sm:$0xff]
          %v3004 = vld [vmem:[#allocation18 + $0x68] sm:$0xff]
          %v3005 = vld [vmem:[#allocation18 + $0x70] sm:$0xff]
          %v3006 = vld [vmem:[#allocation18 + $0x78] sm:$0xff]
          %v3007 = vld [vmem:[#allocation18 + $0x80] sm:$0xff]
          %v3008 = vld [vmem:[#allocation18 + $0x88] sm:$0xff]
          %v3009 = vld [vmem:[#allocation18 + $0x90] sm:$0xff]
          %v3010 = vld [vmem:[#allocation18 + $0x98] sm:$0xff]
          %v3011 = vld [vmem:[#allocation18 + $0xa0] sm:$0xff]
          %v3012 = vld [vmem:[#allocation18 + $0xa8] sm:$0xff]
          %v3013 = vld [vmem:[#allocation18 + $0xb0] sm:$0xff]
          %v3014 = vld [vmem:[#allocation18 + $0xb8] sm:$0xff]
          %v3015 = vld [vmem:[#allocation18 + $0xc0] sm:$0xff]
          %v3016 = vld [vmem:[#allocation18 + $0xc8] sm:$0xff]
          %v3017 = vld [vmem:[#allocation18 + $0xd0] sm:$0xff]
          %v3018 = vld [vmem:[#allocation18 + $0xd8] sm:$0xff]
          %v3019 = vld [vmem:[#allocation18 + $0xe0] sm:$0xff]
          %v3020 = vld [vmem:[#allocation18 + $0xe8] sm:$0xff]
          %v3021 = vld [vmem:[#allocation18 + $0xf0] sm:$0xff]
          %v3022 = vld [vmem:[#allocation18 + $0xf8] sm:$0xff]
          %v3023 = vld [vmem:[#allocation18 + $0x100] sm:$0xff]
          %v3024 = vld [vmem:[#allocation18 + $0x108] sm:$0xff]
          %v3025 = vld [vmem:[#allocation18 + $0x110] sm:$0xff]
          %v3026 = vld [vmem:[#allocation18 + $0x118] sm:$0xff]
          %v3027 = vld [vmem:[#allocation18 + $0x120] sm:$0xff]
          %v3028 = vld [vmem:[#allocation18 + $0x128] sm:$0xff]
          %v3029 = vld [vmem:[#allocation18 + $0x130] sm:$0xff]
          %v3030 = vld [vmem:[#allocation18 + $0x138] sm:$0xff]
          %v3031 = vld [vmem:[#allocation18 + $0x140] sm:$0xff]
          %v3032 = vld [vmem:[#allocation18 + $0x148] sm:$0xff]
          %v3033 = vld [vmem:[#allocation18 + $0x150] sm:$0xff]
          %v3034 = vld [vmem:[#allocation18 + $0x158] sm:$0xff]
          %v3035 = vld [vmem:[#allocation18 + $0x160] sm:$0xff]
          %v3036 = vld [vmem:[#allocation18 + $0x168] sm:$0xff]
          %v3037 = vld [vmem:[#allocation18 + $0x170] sm:$0xff]
          %v3038 = vld [vmem:[#allocation18 + $0x178] sm:$0xff]
          %v3039 = vld [vmem:[#allocation18 + $0x180] sm:$0xff]
          %v3040 = vld [vmem:[#allocation18 + $0x188] sm:$0xff]
          %v3041 = vld [vmem:[#allocation18 + $0x190] sm:$0xff]
          %v3042 = vld [vmem:[#allocation18 + $0x198] sm:$0xff]
          %v3043 = vld [vmem:[#allocation18 + $0x1a0] sm:$0xff]
          %v3044 = vld [vmem:[#allocation18 + $0x1a8] sm:$0xff]
          %v3045 = vld [vmem:[#allocation18 + $0x1b0] sm:$0xff]
          %v3046 = vld [vmem:[#allocation18 + $0x1b8] sm:$0xff]
          %v3047 = vld [vmem:[#allocation18 + $0x1c0] sm:$0xff]
          %v3048 = vld [vmem:[#allocation18 + $0x1c8] sm:$0xff]
          %v3049 = vld [vmem:[#allocation18 + $0x1d0] sm:$0xff]
          %v3050 = vld [vmem:[#allocation18 + $0x1d8] sm:$0xff]
          %v3051 = vld [vmem:[#allocation18 + $0x1e0] sm:$0xff]
          %v3052 = vld [vmem:[#allocation18 + $0x1e8] sm:$0xff]
          %v3053 = vld [vmem:[#allocation18 + $0x1f0] sm:$0xff]
          %v3054 = vld [vmem:[#allocation18 + $0x1f8] sm:$0xff]
          %v3055 = vld [vmem:[#allocation18 + $0x200] sm:$0xff]
          %v3056 = vld [vmem:[#allocation18 + $0x208] sm:$0xff]
          %v3057 = vld [vmem:[#allocation18 + $0x210] sm:$0xff]
          %v3058 = vld [vmem:[#allocation18 + $0x218] sm:$0xff]
          %v3059 = vld [vmem:[#allocation18 + $0x220] sm:$0xff]
          %v3060 = vld [vmem:[#allocation18 + $0x228] sm:$0xff]
          %v3061 = vld [vmem:[#allocation18 + $0x230] sm:$0xff]
          %v3062 = vld [vmem:[#allocation18 + $0x238] sm:$0xff]
          %v3063 = vld [vmem:[#allocation18 + $0x240] sm:$0xff]
          %v3064 = vld [vmem:[#allocation18 + $0x248] sm:$0xff]
          %v3065 = vld [vmem:[#allocation18 + $0x250] sm:$0xff]
          %v3066 = vld [vmem:[#allocation18 + $0x258] sm:$0xff]
          %v3067 = vld [vmem:[#allocation18 + $0x260] sm:$0xff]
          %v3068 = vld [vmem:[#allocation18 + $0x268] sm:$0xff]
          %v3069 = vld [vmem:[#allocation18 + $0x270] sm:$0xff]
          %v3070 = vld [vmem:[#allocation18 + $0x278] sm:$0xff]
          %v3071 = vld [vmem:[#allocation18 + $0x280] sm:$0xff]
          %v3072 = vld [vmem:[#allocation18 + $0x288] sm:$0xff]
          %v3073 = vld [vmem:[#allocation18 + $0x290] sm:$0xff]
          %v3074 = vld [vmem:[#allocation18 + $0x298] sm:$0xff]
          %v3075 = vld [vmem:[#allocation18 + $0x2a0] sm:$0xff]
          %v3076 = vld [vmem:[#allocation18 + $0x2a8] sm:$0xff]
          %v3077 = vld [vmem:[#allocation18 + $0x2b0] sm:$0xff]
          %v3078 = vld [vmem:[#allocation18 + $0x2b8] sm:$0xff]
          %v3079 = vld [vmem:[#allocation18 + $0x2c0] sm:$0xff]
          %v3080 = vld [vmem:[#allocation18 + $0x2c8] sm:$0xff]
          %v3081 = vld [vmem:[#allocation18 + $0x2d0] sm:$0xff]
          %v3082 = vld [vmem:[#allocation18 + $0x2d8] sm:$0xff]
          %v3083 = vld [vmem:[#allocation18 + $0x2e0] sm:$0xff]
          %v3084 = vld [vmem:[#allocation18 + $0x2e8] sm:$0xff]
          %v3085 = vld [vmem:[#allocation18 + $0x2f0] sm:$0xff]
          %v3086 = vld [vmem:[#allocation18 + $0x2f8] sm:$0xff]
          %v3087 = vld [vmem:[#allocation18 + $0x300] sm:$0xff]
          %v3088 = vld [vmem:[#allocation18 + $0x308] sm:$0xff]
          %v3089 = vld [vmem:[#allocation18 + $0x310] sm:$0xff]
          %v3090 = vld [vmem:[#allocation18 + $0x318] sm:$0xff]
          %v3091 = vld [vmem:[#allocation18 + $0x320] sm:$0xff]
          %v3092 = vld [vmem:[#allocation18 + $0x328] sm:$0xff]
          %v3093 = vld [vmem:[#allocation18 + $0x330] sm:$0xff]
          %v3094 = vld [vmem:[#allocation18 + $0x338] sm:$0xff]
          %v3095 = vld [vmem:[#allocation18 + $0x340] sm:$0xff]
          %v3096 = vld [vmem:[#allocation18 + $0x348] sm:$0xff]
          %v3097 = vld [vmem:[#allocation18 + $0x350] sm:$0xff]
          %v3098 = vld [vmem:[#allocation18 + $0x358] sm:$0xff]
          %v3099 = vld [vmem:[#allocation18 + $0x360] sm:$0xff]
          %v3100 = vld [vmem:[#allocation18 + $0x368] sm:$0xff]
          %v3101 = vld [vmem:[#allocation18 + $0x370] sm:$0xff]
          %v3102 = vld [vmem:[#allocation18 + $0x378] sm:$0xff]
          %v3103 = vld [vmem:[#allocation18 + $0x380] sm:$0xff]
          %v3104 = vld [vmem:[#allocation18 + $0x388] sm:$0xff]
          %v3105 = vld [vmem:[#allocation18 + $0x390] sm:$0xff]
          %v3106 = vld [vmem:[#allocation18 + $0x398] sm:$0xff]
          %v3107 = vld [vmem:[#allocation18 + $0x3a0] sm:$0xff]
          %v3108 = vld [vmem:[#allocation18 + $0x3a8] sm:$0xff]
          %v3109 = vld [vmem:[#allocation18 + $0x3b0] sm:$0xff]
          %v3110 = vld [vmem:[#allocation18 + $0x3b8] sm:$0xff]
          %v3111 = vld [vmem:[#allocation18 + $0x3c0] sm:$0xff]
          %v3112 = vld [vmem:[#allocation18 + $0x3c8] sm:$0xff]
          %v3113 = vld [vmem:[#allocation18 + $0x3d0] sm:$0xff]
          %v3114 = vld [vmem:[#allocation18 + $0x3d8] sm:$0xff]
          %v3115 = vld [vmem:[#allocation18 + $0x3e0] sm:$0xff]
          %v3116 = vld [vmem:[#allocation18 + $0x3e8] sm:$0xff]
          %v3117 = vld [vmem:[#allocation18 + $0x3f0] sm:$0xff]
          %v3118 = vld [vmem:[#allocation18 + $0x3f8] sm:$0xff]
          %v3119 = vld [vmem:[#allocation19] sm:$0xff]
          %v3248 = vunpack.c.l.b16 %v2991
          %v3249 = vunpack.c.h.b16 %v2991
          %v3250 = vunpack.c.l.b16 %v2992
          %v3251 = vunpack.c.h.b16 %v2992
          %v3252 = vunpack.c.l.b16 %v2993
          %v3253 = vunpack.c.h.b16 %v2993
          %v3254 = vunpack.c.l.b16 %v2994
          %v3255 = vunpack.c.h.b16 %v2994
          %v3256 = vunpack.c.l.b16 %v2995
          %v3257 = vunpack.c.h.b16 %v2995
          %v3258 = vunpack.c.l.b16 %v2996
          %v3259 = vunpack.c.h.b16 %v2996
          %v3260 = vunpack.c.l.b16 %v2997
          %v3261 = vunpack.c.h.b16 %v2997
          %v3262 = vunpack.c.l.b16 %v2998
          %v3263 = vunpack.c.h.b16 %v2998
          %v3264 = vunpack.c.l.b16 %v2999
          %v3265 = vunpack.c.h.b16 %v2999
          %v3266 = vunpack.c.l.b16 %v3000
          %v3267 = vunpack.c.h.b16 %v3000
          %v3268 = vunpack.c.l.b16 %v3001
          %v3269 = vunpack.c.h.b16 %v3001
          %v3270 = vunpack.c.l.b16 %v3002
          %v3271 = vunpack.c.h.b16 %v3002
          %v3272 = vunpack.c.l.b16 %v3003
          %v3273 = vunpack.c.h.b16 %v3003
          %v3274 = vunpack.c.l.b16 %v3004
          %v3275 = vunpack.c.h.b16 %v3004
          %v3276 = vunpack.c.l.b16 %v3005
          %v3277 = vunpack.c.h.b16 %v3005
          %v3278 = vunpack.c.l.b16 %v3006
          %v3279 = vunpack.c.h.b16 %v3006
          %v3280 = vunpack.c.l.b16 %v3007
          %v3281 = vunpack.c.h.b16 %v3007
          %v3282 = vunpack.c.l.b16 %v3008
          %v3283 = vunpack.c.h.b16 %v3008
          %v3284 = vunpack.c.l.b16 %v3009
          %v3285 = vunpack.c.h.b16 %v3009
          %v3286 = vunpack.c.l.b16 %v3010
          %v3287 = vunpack.c.h.b16 %v3010
          %v3288 = vunpack.c.l.b16 %v3011
          %v3289 = vunpack.c.h.b16 %v3011
          %v3290 = vunpack.c.l.b16 %v3012
          %v3291 = vunpack.c.h.b16 %v3012
          %v3292 = vunpack.c.l.b16 %v3013
          %v3293 = vunpack.c.h.b16 %v3013
          %v3294 = vunpack.c.l.b16 %v3014
          %v3295 = vunpack.c.h.b16 %v3014
          %v3296 = vunpack.c.l.b16 %v3015
          %v3297 = vunpack.c.h.b16 %v3015
          %v3298 = vunpack.c.l.b16 %v3016
          %v3299 = vunpack.c.h.b16 %v3016
          %v3300 = vunpack.c.l.b16 %v3017
          %v3301 = vunpack.c.h.b16 %v3017
          %v3302 = vunpack.c.l.b16 %v3018
          %v3303 = vunpack.c.h.b16 %v3018
          %v3304 = vunpack.c.l.b16 %v3019
          %v3305 = vunpack.c.h.b16 %v3019
          %v3306 = vunpack.c.l.b16 %v3020
          %v3307 = vunpack.c.h.b16 %v3020
          %v3308 = vunpack.c.l.b16 %v3021
          %v3309 = vunpack.c.h.b16 %v3021
          %v3310 = vunpack.c.l.b16 %v3022
          %v3311 = vunpack.c.h.b16 %v3022
          %v3312 = vunpack.c.l.b16 %v3023
          %v3313 = vunpack.c.h.b16 %v3023
          %v3314 = vunpack.c.l.b16 %v3024
          %v3315 = vunpack.c.h.b16 %v3024
          %v3316 = vunpack.c.l.b16 %v3025
          %v3317 = vunpack.c.h.b16 %v3025
          %v3318 = vunpack.c.l.b16 %v3026
          %v3319 = vunpack.c.h.b16 %v3026
          %v3320 = vunpack.c.l.b16 %v3027
          %v3321 = vunpack.c.h.b16 %v3027
          %v3322 = vunpack.c.l.b16 %v3028
          %v3323 = vunpack.c.h.b16 %v3028
          %v3324 = vunpack.c.l.b16 %v3029
          %v3325 = vunpack.c.h.b16 %v3029
          %v3326 = vunpack.c.l.b16 %v3030
          %v3327 = vunpack.c.h.b16 %v3030
          %v3328 = vunpack.c.l.b16 %v3031
          %v3329 = vunpack.c.h.b16 %v3031
          %v3330 = vunpack.c.l.b16 %v3032
          %v3331 = vunpack.c.h.b16 %v3032
          %v3332 = vunpack.c.l.b16 %v3033
          %v3333 = vunpack.c.h.b16 %v3033
          %v3334 = vunpack.c.l.b16 %v3034
          %v3335 = vunpack.c.h.b16 %v3034
          %v3336 = vunpack.c.l.b16 %v3035
          %v3337 = vunpack.c.h.b16 %v3035
          %v3338 = vunpack.c.l.b16 %v3036
          %v3339 = vunpack.c.h.b16 %v3036
          %v3340 = vunpack.c.l.b16 %v3037
          %v3341 = vunpack.c.h.b16 %v3037
          %v3342 = vunpack.c.l.b16 %v3038
          %v3343 = vunpack.c.h.b16 %v3038
          %v3344 = vunpack.c.l.b16 %v3039
          %v3345 = vunpack.c.h.b16 %v3039
          %v3346 = vunpack.c.l.b16 %v3040
          %v3347 = vunpack.c.h.b16 %v3040
          %v3348 = vunpack.c.l.b16 %v3041
          %v3349 = vunpack.c.h.b16 %v3041
          %v3350 = vunpack.c.l.b16 %v3042
          %v3351 = vunpack.c.h.b16 %v3042
          %v3352 = vunpack.c.l.b16 %v3043
          %v3353 = vunpack.c.h.b16 %v3043
          %v3354 = vunpack.c.l.b16 %v3044
          %v3355 = vunpack.c.h.b16 %v3044
          %v3356 = vunpack.c.l.b16 %v3045
          %v3357 = vunpack.c.h.b16 %v3045
          %v3358 = vunpack.c.l.b16 %v3046
          %v3359 = vunpack.c.h.b16 %v3046
          %v3360 = vunpack.c.l.b16 %v3047
          %v3361 = vunpack.c.h.b16 %v3047
          %v3362 = vunpack.c.l.b16 %v3048
          %v3363 = vunpack.c.h.b16 %v3048
          %v3364 = vunpack.c.l.b16 %v3049
          %v3365 = vunpack.c.h.b16 %v3049
          %v3366 = vunpack.c.l.b16 %v3050
          %v3367 = vunpack.c.h.b16 %v3050
          %v3368 = vunpack.c.l.b16 %v3051
          %v3369 = vunpack.c.h.b16 %v3051
          %v3370 = vunpack.c.l.b16 %v3052
          %v3371 = vunpack.c.h.b16 %v3052
          %v3372 = vunpack.c.l.b16 %v3053
          %v3373 = vunpack.c.h.b16 %v3053
          %v3374 = vunpack.c.l.b16 %v3054
          %v3375 = vunpack.c.h.b16 %v3054
          %v3376 = vunpack.c.l.b16 %v3055
          %v3377 = vunpack.c.h.b16 %v3055
          %v3378 = vunpack.c.l.b16 %v3056
          %v3379 = vunpack.c.h.b16 %v3056
          %v3380 = vunpack.c.l.b16 %v3057
          %v3381 = vunpack.c.h.b16 %v3057
          %v3382 = vunpack.c.l.b16 %v3058
          %v3383 = vunpack.c.h.b16 %v3058
          %v3384 = vunpack.c.l.b16 %v3059
          %v3385 = vunpack.c.h.b16 %v3059
          %v3386 = vunpack.c.l.b16 %v3060
          %v3387 = vunpack.c.h.b16 %v3060
          %v3388 = vunpack.c.l.b16 %v3061
          %v3389 = vunpack.c.h.b16 %v3061
          %v3390 = vunpack.c.l.b16 %v3062
          %v3391 = vunpack.c.h.b16 %v3062
          %v3392 = vunpack.c.l.b16 %v3063
          %v3393 = vunpack.c.h.b16 %v3063
          %v3394 = vunpack.c.l.b16 %v3064
          %v3395 = vunpack.c.h.b16 %v3064
          %v3396 = vunpack.c.l.b16 %v3065
          %v3397 = vunpack.c.h.b16 %v3065
          %v3398 = vunpack.c.l.b16 %v3066
          %v3399 = vunpack.c.h.b16 %v3066
          %v3400 = vunpack.c.l.b16 %v3067
          %v3401 = vunpack.c.h.b16 %v3067
          %v3402 = vunpack.c.l.b16 %v3068
          %v3403 = vunpack.c.h.b16 %v3068
          %v3404 = vunpack.c.l.b16 %v3069
          %v3405 = vunpack.c.h.b16 %v3069
          %v3406 = vunpack.c.l.b16 %v3070
          %v3407 = vunpack.c.h.b16 %v3070
          %v3408 = vunpack.c.l.b16 %v3071
          %v3409 = vunpack.c.h.b16 %v3071
          %v3410 = vunpack.c.l.b16 %v3072
          %v3411 = vunpack.c.h.b16 %v3072
          %v3412 = vunpack.c.l.b16 %v3073
          %v3413 = vunpack.c.h.b16 %v3073
          %v3414 = vunpack.c.l.b16 %v3074
          %v3415 = vunpack.c.h.b16 %v3074
          %v3416 = vunpack.c.l.b16 %v3075
          %v3417 = vunpack.c.h.b16 %v3075
          %v3418 = vunpack.c.l.b16 %v3076
          %v3419 = vunpack.c.h.b16 %v3076
          %v3420 = vunpack.c.l.b16 %v3077
          %v3421 = vunpack.c.h.b16 %v3077
          %v3422 = vunpack.c.l.b16 %v3078
          %v3423 = vunpack.c.h.b16 %v3078
          %v3424 = vunpack.c.l.b16 %v3079
          %v3425 = vunpack.c.h.b16 %v3079
          %v3426 = vunpack.c.l.b16 %v3080
          %v3427 = vunpack.c.h.b16 %v3080
          %v3428 = vunpack.c.l.b16 %v3081
          %v3429 = vunpack.c.h.b16 %v3081
          %v3430 = vunpack.c.l.b16 %v3082
          %v3431 = vunpack.c.h.b16 %v3082
          %v3432 = vunpack.c.l.b16 %v3083
          %v3433 = vunpack.c.h.b16 %v3083
          %v3434 = vunpack.c.l.b16 %v3084
          %v3435 = vunpack.c.h.b16 %v3084
          %v3436 = vunpack.c.l.b16 %v3085
          %v3437 = vunpack.c.h.b16 %v3085
          %v3438 = vunpack.c.l.b16 %v3086
          %v3439 = vunpack.c.h.b16 %v3086
          %v3440 = vunpack.c.l.b16 %v3087
          %v3441 = vunpack.c.h.b16 %v3087
          %v3442 = vunpack.c.l.b16 %v3088
          %v3443 = vunpack.c.h.b16 %v3088
          %v3444 = vunpack.c.l.b16 %v3089
          %v3445 = vunpack.c.h.b16 %v3089
          %v3446 = vunpack.c.l.b16 %v3090
          %v3447 = vunpack.c.h.b16 %v3090
          %v3448 = vunpack.c.l.b16 %v3091
          %v3449 = vunpack.c.h.b16 %v3091
          %v3450 = vunpack.c.l.b16 %v3092
          %v3451 = vunpack.c.h.b16 %v3092
          %v3452 = vunpack.c.l.b16 %v3093
          %v3453 = vunpack.c.h.b16 %v3093
          %v3454 = vunpack.c.l.b16 %v3094
          %v3455 = vunpack.c.h.b16 %v3094
          %v3456 = vunpack.c.l.b16 %v3095
          %v3457 = vunpack.c.h.b16 %v3095
          %v3458 = vunpack.c.l.b16 %v3096
          %v3459 = vunpack.c.h.b16 %v3096
          %v3460 = vunpack.c.l.b16 %v3097
          %v3461 = vunpack.c.h.b16 %v3097
          %v3462 = vunpack.c.l.b16 %v3098
          %v3463 = vunpack.c.h.b16 %v3098
          %v3464 = vunpack.c.l.b16 %v3099
          %v3465 = vunpack.c.h.b16 %v3099
          %v3466 = vunpack.c.l.b16 %v3100
          %v3467 = vunpack.c.h.b16 %v3100
          %v3468 = vunpack.c.l.b16 %v3101
          %v3469 = vunpack.c.h.b16 %v3101
          %v3470 = vunpack.c.l.b16 %v3102
          %v3471 = vunpack.c.h.b16 %v3102
          %v3472 = vunpack.c.l.b16 %v3103
          %v3473 = vunpack.c.h.b16 %v3103
          %v3474 = vunpack.c.l.b16 %v3104
          %v3475 = vunpack.c.h.b16 %v3104
          %v3476 = vunpack.c.l.b16 %v3105
          %v3477 = vunpack.c.h.b16 %v3105
          %v3478 = vunpack.c.l.b16 %v3106
          %v3479 = vunpack.c.h.b16 %v3106
          %v3480 = vunpack.c.l.b16 %v3107
          %v3481 = vunpack.c.h.b16 %v3107
          %v3482 = vunpack.c.l.b16 %v3108
          %v3483 = vunpack.c.h.b16 %v3108
          %v3484 = vunpack.c.l.b16 %v3109
          %v3485 = vunpack.c.h.b16 %v3109
          %v3486 = vunpack.c.l.b16 %v3110
          %v3487 = vunpack.c.h.b16 %v3110
          %v3488 = vunpack.c.l.b16 %v3111
          %v3489 = vunpack.c.h.b16 %v3111
          %v3490 = vunpack.c.l.b16 %v3112
          %v3491 = vunpack.c.h.b16 %v3112
          %v3492 = vunpack.c.l.b16 %v3113
          %v3493 = vunpack.c.h.b16 %v3113
          %v3494 = vunpack.c.l.b16 %v3114
          %v3495 = vunpack.c.h.b16 %v3114
          %v3496 = vunpack.c.l.b16 %v3115
          %v3497 = vunpack.c.h.b16 %v3115
          %v3498 = vunpack.c.l.b16 %v3116
          %v3499 = vunpack.c.h.b16 %v3116
          %v3500 = vunpack.c.l.b16 %v3117
          %v3501 = vunpack.c.h.b16 %v3117
          %v3502 = vunpack.c.l.b16 %v3118
          %v3503 = vunpack.c.h.b16 %v3118
          %v3504 = vpack.c.b16 %v3256, %v3248
          %v3505 = vpack.c.b16 %v3257, %v3249
          %v3506 = vpack.c.b16 %v3258, %v3250
          %v3507 = vpack.c.b16 %v3259, %v3251
          %v3508 = vpack.c.b16 %v3260, %v3252
          %v3509 = vpack.c.b16 %v3261, %v3253
          %v3510 = vpack.c.b16 %v3262, %v3254
          %v3511 = vpack.c.b16 %v3263, %v3255
          %v3512 = vpack.c.b16 %v3272, %v3264
          %v3513 = vpack.c.b16 %v3273, %v3265
          %v3514 = vpack.c.b16 %v3274, %v3266
          %v3515 = vpack.c.b16 %v3275, %v3267
          %v3516 = vpack.c.b16 %v3276, %v3268
          %v3517 = vpack.c.b16 %v3277, %v3269
          %v3518 = vpack.c.b16 %v3278, %v3270
          %v3519 = vpack.c.b16 %v3279, %v3271
          %v3520 = vpack.c.b16 %v3288, %v3280
          %v3521 = vpack.c.b16 %v3289, %v3281
          %v3522 = vpack.c.b16 %v3290, %v3282
          %v3523 = vpack.c.b16 %v3291, %v3283
          %v3524 = vpack.c.b16 %v3292, %v3284
          %v3525 = vpack.c.b16 %v3293, %v3285
          %v3526 = vpack.c.b16 %v3294, %v3286
          %v3527 = vpack.c.b16 %v3295, %v3287
          %v3528 = vpack.c.b16 %v3304, %v3296
          %v3529 = vpack.c.b16 %v3305, %v3297
          %v3530 = vpack.c.b16 %v3306, %v3298
          %v3531 = vpack.c.b16 %v3307, %v3299
          %v3532 = vpack.c.b16 %v3308, %v3300
          %v3533 = vpack.c.b16 %v3309, %v3301
          %v3534 = vpack.c.b16 %v3310, %v3302
          %v3535 = vpack.c.b16 %v3311, %v3303
          %v3536 = vpack.c.b16 %v3320, %v3312
          %v3537 = vpack.c.b16 %v3321, %v3313
          %v3538 = vpack.c.b16 %v3322, %v3314
          %v3539 = vpack.c.b16 %v3323, %v3315
          %v3540 = vpack.c.b16 %v3324, %v3316
          %v3541 = vpack.c.b16 %v3325, %v3317
          %v3542 = vpack.c.b16 %v3326, %v3318
          %v3543 = vpack.c.b16 %v3327, %v3319
          %v3544 = vpack.c.b16 %v3336, %v3328
          %v3545 = vpack.c.b16 %v3337, %v3329
          %v3546 = vpack.c.b16 %v3338, %v3330
          %v3547 = vpack.c.b16 %v3339, %v3331
          %v3548 = vpack.c.b16 %v3340, %v3332
          %v3549 = vpack.c.b16 %v3341, %v3333
          %v3550 = vpack.c.b16 %v3342, %v3334
          %v3551 = vpack.c.b16 %v3343, %v3335
          %v3552 = vpack.c.b16 %v3352, %v3344
          %v3553 = vpack.c.b16 %v3353, %v3345
          %v3554 = vpack.c.b16 %v3354, %v3346
          %v3555 = vpack.c.b16 %v3355, %v3347
          %v3556 = vpack.c.b16 %v3356, %v3348
          %v3557 = vpack.c.b16 %v3357, %v3349
          %v3558 = vpack.c.b16 %v3358, %v3350
          %v3559 = vpack.c.b16 %v3359, %v3351
          %v3560 = vpack.c.b16 %v3368, %v3360
          %v3561 = vpack.c.b16 %v3369, %v3361
          %v3562 = vpack.c.b16 %v3370, %v3362
          %v3563 = vpack.c.b16 %v3371, %v3363
          %v3564 = vpack.c.b16 %v3372, %v3364
          %v3565 = vpack.c.b16 %v3373, %v3365
          %v3566 = vpack.c.b16 %v3374, %v3366
          %v3567 = vpack.c.b16 %v3375, %v3367
          %v3568 = vpack.c.b16 %v3384, %v3376
          %v3569 = vpack.c.b16 %v3385, %v3377
          %v3570 = vpack.c.b16 %v3386, %v3378
          %v3571 = vpack.c.b16 %v3387, %v3379
          %v3572 = vpack.c.b16 %v3388, %v3380
          %v3573 = vpack.c.b16 %v3389, %v3381
          %v3574 = vpack.c.b16 %v3390, %v3382
          %v3575 = vpack.c.b16 %v3391, %v3383
          %v3576 = vpack.c.b16 %v3400, %v3392
          %v3577 = vpack.c.b16 %v3401, %v3393
          %v3578 = vpack.c.b16 %v3402, %v3394
          %v3579 = vpack.c.b16 %v3403, %v3395
          %v3580 = vpack.c.b16 %v3404, %v3396
          %v3581 = vpack.c.b16 %v3405, %v3397
          %v3582 = vpack.c.b16 %v3406, %v3398
          %v3583 = vpack.c.b16 %v3407, %v3399
          %v3584 = vpack.c.b16 %v3416, %v3408
          %v3585 = vpack.c.b16 %v3417, %v3409
          %v3586 = vpack.c.b16 %v3418, %v3410
          %v3587 = vpack.c.b16 %v3419, %v3411
          %v3588 = vpack.c.b16 %v3420, %v3412
          %v3589 = vpack.c.b16 %v3421, %v3413
          %v3590 = vpack.c.b16 %v3422, %v3414
          %v3591 = vpack.c.b16 %v3423, %v3415
          %v3592 = vpack.c.b16 %v3432, %v3424
          %v3593 = vpack.c.b16 %v3433, %v3425
          %v3594 = vpack.c.b16 %v3434, %v3426
          %v3595 = vpack.c.b16 %v3435, %v3427
          %v3596 = vpack.c.b16 %v3436, %v3428
          %v3597 = vpack.c.b16 %v3437, %v3429
          %v3598 = vpack.c.b16 %v3438, %v3430
          %v3599 = vpack.c.b16 %v3439, %v3431
          %v3600 = vpack.c.b16 %v3448, %v3440
          %v3601 = vpack.c.b16 %v3449, %v3441
          %v3602 = vpack.c.b16 %v3450, %v3442
          %v3603 = vpack.c.b16 %v3451, %v3443
          %v3604 = vpack.c.b16 %v3452, %v3444
          %v3605 = vpack.c.b16 %v3453, %v3445
          %v3606 = vpack.c.b16 %v3454, %v3446
          %v3607 = vpack.c.b16 %v3455, %v3447
          %v3608 = vpack.c.b16 %v3464, %v3456
          %v3609 = vpack.c.b16 %v3465, %v3457
          %v3610 = vpack.c.b16 %v3466, %v3458
          %v3611 = vpack.c.b16 %v3467, %v3459
          %v3612 = vpack.c.b16 %v3468, %v3460
          %v3613 = vpack.c.b16 %v3469, %v3461
          %v3614 = vpack.c.b16 %v3470, %v3462
          %v3615 = vpack.c.b16 %v3471, %v3463
          %v3616 = vpack.c.b16 %v3480, %v3472
          %v3617 = vpack.c.b16 %v3481, %v3473
          %v3618 = vpack.c.b16 %v3482, %v3474
          %v3619 = vpack.c.b16 %v3483, %v3475
          %v3620 = vpack.c.b16 %v3484, %v3476
          %v3621 = vpack.c.b16 %v3485, %v3477
          %v3622 = vpack.c.b16 %v3486, %v3478
          %v3623 = vpack.c.b16 %v3487, %v3479
          %v3624 = vpack.c.b16 %v3496, %v3488
          %v3625 = vpack.c.b16 %v3497, %v3489
          %v3626 = vpack.c.b16 %v3498, %v3490
          %v3627 = vpack.c.b16 %v3499, %v3491
          %v3628 = vpack.c.b16 %v3500, %v3492
          %v3629 = vpack.c.b16 %v3501, %v3493
          %v3630 = vpack.c.b16 %v3502, %v3494
          %v3631 = vpack.c.b16 %v3503, %v3495
          %v3761 = vlaneseq
          %v3762 = vshrl.u32 %v3761, 7
          %v3763 = vsub.s32 0, %v3762
          %v3764 = vrot.slane %v3119, %v3763
          %v3765 = vlaneseq
          %v3766 = vshrl.u32 %v3765, 7
          %v3767 = vsub.s32 1, %v3766
          %v3768 = vrot.slane %v3119, %v3767
          %v3769 = vlaneseq
          %v3770 = vshrl.u32 %v3769, 7
          %v3771 = vsub.s32 2, %v3770
          %v3772 = vrot.slane %v3119, %v3771
          %v3773 = vlaneseq
          %v3774 = vshrl.u32 %v3773, 7
          %v3775 = vsub.s32 3, %v3774
          %v3776 = vrot.slane %v3119, %v3775
          %v3777 = vlaneseq
          %v3778 = vshrl.u32 %v3777, 7
          %v3779 = vsub.s32 4, %v3778
          %v3780 = vrot.slane %v3119, %v3779
          %v3781 = vlaneseq
          %v3782 = vshrl.u32 %v3781, 7
          %v3783 = vsub.s32 5, %v3782
          %v3784 = vrot.slane %v3119, %v3783
          %v3785 = vlaneseq
          %v3786 = vshrl.u32 %v3785, 7
          %v3787 = vsub.s32 6, %v3786
          %v3788 = vrot.slane %v3119, %v3787
          %v3789 = vlaneseq
          %v3790 = vshrl.u32 %v3789, 7
          %v3791 = vsub.s32 7, %v3790
          %v3792 = vrot.slane %v3119, %v3791
          %3801 = vmatprep.subr.bf16.mxu0 %v3505
          %3802 = vmatpush1.bf16.msra.mxu0 %v3504
          %3803 = vmatprep.subr.bf16.mxu0 %v3513
          %3804 = vmatpush1.bf16.msra.mxu0 %v3512
          %3805 = vmatprep.subr.bf16.mxu0 %v3521
          %3806 = vmatpush1.bf16.msra.mxu0 %v3520
          %3807 = vmatprep.subr.bf16.mxu0 %v3529
          %3808 = vmatpush1.bf16.msra.mxu0 %v3528
          %3809 = vmatprep.subr.bf16.mxu0 %v3537
          %3810 = vmatpush1.bf16.msra.mxu0 %v3536
          %3811 = vmatprep.subr.bf16.mxu0 %v3545
          %3812 = vmatpush1.bf16.msra.mxu0 %v3544
          %3813 = vmatprep.subr.bf16.mxu0 %v3553
          %3814 = vmatpush1.bf16.msra.mxu0 %v3552
          %3815 = vmatprep.subr.bf16.mxu0 %v3561
          %3816 = vmatpush1.bf16.msra.mxu0 %v3560
          %3817 = vmatprep.subr.bf16.mxu0 %v3569
          %3818 = vmatpush1.bf16.msra.mxu0 %v3568
          %3819 = vmatprep.subr.bf16.mxu0 %v3577
          %3820 = vmatpush1.bf16.msra.mxu0 %v3576
          %3821 = vmatprep.subr.bf16.mxu0 %v3585
          %3822 = vmatpush1.bf16.msra.mxu0 %v3584
          %3823 = vmatprep.subr.bf16.mxu0 %v3593
          %3824 = vmatpush1.bf16.msra.mxu0 %v3592
          %3825 = vmatprep.subr.bf16.mxu0 %v3601
          %3826 = vmatpush1.bf16.msra.mxu0 %v3600
          %3827 = vmatprep.subr.bf16.mxu0 %v3609
          %3828 = vmatpush1.bf16.msra.mxu0 %v3608
          %3829 = vmatprep.subr.bf16.mxu0 %v3617
          %3830 = vmatpush1.bf16.msra.mxu0 %v3616
          %3831 = vmatprep.subr.bf16.mxu0 %v3625
          %3832 = vmatpush1.bf16.msra.mxu0 %v3624
          %3833 = vmatprep.mubr.bf16.mxu0 %v2990
          %3834 = vmatmul.mubr.bf16.gmra.mrb[0].mxu0 %v2989
          %v3835 = vpop.f32.mrb[0].mxu0
          %v3836 = vadd.f32 %v3764, %v3835
          %v3837 = vpop.f32.mrb[0].mxu0
          %v3838 = vadd.f32 %v3768, %v3837
          %v3839 = vpop.f32.mrb[0].mxu0
          %v3840 = vpop.f32.mrb[0].mxu0
          %3841 = vdwg.mxu0
          %3842 = vmatprep.subr.bf16.mxu0 %v3507
          %3843 = vmatpush1.bf16.msra.mxu0 %v3506
          %3844 = vmatprep.subr.bf16.mxu0 %v3515
          %3845 = vmatpush1.bf16.msra.mxu0 %v3514
          %3846 = vmatprep.subr.bf16.mxu0 %v3523
          %3847 = vmatpush1.bf16.msra.mxu0 %v3522
          %3848 = vmatprep.subr.bf16.mxu0 %v3531
          %3849 = vmatpush1.bf16.msra.mxu0 %v3530
          %3850 = vmatprep.subr.bf16.mxu0 %v3539
          %3851 = vmatpush1.bf16.msra.mxu0 %v3538
          %3852 = vmatprep.subr.bf16.mxu0 %v3547
          %3853 = vmatpush1.bf16.msra.mxu0 %v3546
          %3854 = vmatprep.subr.bf16.mxu0 %v3555
          %3855 = vmatpush1.bf16.msra.mxu0 %v3554
          %3856 = vmatprep.subr.bf16.mxu0 %v3563
          %3857 = vmatpush1.bf16.msra.mxu0 %v3562
          %3858 = vmatprep.subr.bf16.mxu0 %v3571
          %3859 = vmatpush1.bf16.msra.mxu0 %v3570
          %3860 = vmatprep.subr.bf16.mxu0 %v3579
          %3861 = vmatpush1.bf16.msra.mxu0 %v3578
          %3862 = vmatprep.subr.bf16.mxu0 %v3587
          %3863 = vmatpush1.bf16.msra.mxu0 %v3586
          %3864 = vmatprep.subr.bf16.mxu0 %v3595
          %3865 = vmatpush1.bf16.msra.mxu0 %v3594
          %3866 = vmatprep.subr.bf16.mxu0 %v3603
          %3867 = vmatpush1.bf16.msra.mxu0 %v3602
          %3868 = vmatprep.subr.bf16.mxu0 %v3611
          %3869 = vmatpush1.bf16.msra.mxu0 %v3610
          %3870 = vmatprep.subr.bf16.mxu0 %v3619
          %3871 = vmatpush1.bf16.msra.mxu0 %v3618
          %3872 = vmatprep.subr.bf16.mxu0 %v3627
          %3873 = vmatpush1.bf16.msra.mxu0 %v3626
          %3874 = vmatprep.mubr.bf16.mxu0 %v2990
          %3875 = vmatmul.mubr.bf16.gmra.mrb[0].mxu0 %v2989
          %v3876 = vpop.f32.mrb[0].mxu0
          %v3877 = vadd.f32 %v3772, %v3876
          %v3878 = vpop.f32.mrb[0].mxu0
          %v3879 = vadd.f32 %v3776, %v3878
          %v3880 = vpop.f32.mrb[0].mxu0
          %v3881 = vpop.f32.mrb[0].mxu0
          %3882 = vdwg.mxu0
          %3883 = vmatprep.subr.bf16.mxu0 %v3509
          %3884 = vmatpush1.bf16.msra.mxu0 %v3508
          %3885 = vmatprep.subr.bf16.mxu0 %v3517
          %3886 = vmatpush1.bf16.msra.mxu0 %v3516
          %3887 = vmatprep.subr.bf16.mxu0 %v3525
          %3888 = vmatpush1.bf16.msra.mxu0 %v3524
          %3889 = vmatprep.subr.bf16.mxu0 %v3533
          %3890 = vmatpush1.bf16.msra.mxu0 %v3532
          %3891 = vmatprep.subr.bf16.mxu0 %v3541
          %3892 = vmatpush1.bf16.msra.mxu0 %v3540
          %3893 = vmatprep.subr.bf16.mxu0 %v3549
          %3894 = vmatpush1.bf16.msra.mxu0 %v3548
          %3895 = vmatprep.subr.bf16.mxu0 %v3557
          %3896 = vmatpush1.bf16.msra.mxu0 %v3556
          %3897 = vmatprep.subr.bf16.mxu0 %v3565
          %3898 = vmatpush1.bf16.msra.mxu0 %v3564
          %3899 = vmatprep.subr.bf16.mxu0 %v3573
          %3900 = vmatpush1.bf16.msra.mxu0 %v3572
          %3901 = vmatprep.subr.bf16.mxu0 %v3581
          %3902 = vmatpush1.bf16.msra.mxu0 %v3580
          %3903 = vmatprep.subr.bf16.mxu0 %v3589
          %3904 = vmatpush1.bf16.msra.mxu0 %v3588
          %3905 = vmatprep.subr.bf16.mxu0 %v3597
          %3906 = vmatpush1.bf16.msra.mxu0 %v3596
          %3907 = vmatprep.subr.bf16.mxu0 %v3605
          %3908 = vmatpush1.bf16.msra.mxu0 %v3604
          %3909 = vmatprep.subr.bf16.mxu0 %v3613
          %3910 = vmatpush1.bf16.msra.mxu0 %v3612
          %3911 = vmatprep.subr.bf16.mxu0 %v3621
          %3912 = vmatpush1.bf16.msra.mxu0 %v3620
          %3913 = vmatprep.subr.bf16.mxu0 %v3629
          %3914 = vmatpush1.bf16.msra.mxu0 %v3628
          %3915 = vmatprep.mubr.bf16.mxu0 %v2990
          %3916 = vmatmul.mubr.bf16.gmra.mrb[0].mxu0 %v2989
          %v3917 = vpop.f32.mrb[0].mxu0
          %v3918 = vadd.f32 %v3780, %v3917
          %v3919 = vpop.f32.mrb[0].mxu0
          %v3920 = vadd.f32 %v3784, %v3919
          %v3921 = vpop.f32.mrb[0].mxu0
          %v3922 = vpop.f32.mrb[0].mxu0
          %3923 = vdwg.mxu0
          %3924 = vmatprep.subr.bf16.mxu0 %v3511
          %3925 = vmatpush1.bf16.msra.mxu0 %v3510
          %3926 = vmatprep.subr.bf16.mxu0 %v3519
          %3927 = vmatpush1.bf16.msra.mxu0 %v3518
          %3928 = vmatprep.subr.bf16.mxu0 %v3527
          %3929 = vmatpush1.bf16.msra.mxu0 %v3526
          %3930 = vmatprep.subr.bf16.mxu0 %v3535
          %3931 = vmatpush1.bf16.msra.mxu0 %v3534
          %3932 = vmatprep.subr.bf16.mxu0 %v3543
          %3933 = vmatpush1.bf16.msra.mxu0 %v3542
          %3934 = vmatprep.subr.bf16.mxu0 %v3551
          %3935 = vmatpush1.bf16.msra.mxu0 %v3550
          %3936 = vmatprep.subr.bf16.mxu0 %v3559
          %3937 = vmatpush1.bf16.msra.mxu0 %v3558
          %3938 = vmatprep.subr.bf16.mxu0 %v3567
          %3939 = vmatpush1.bf16.msra.mxu0 %v3566
          %3940 = vmatprep.subr.bf16.mxu0 %v3575
          %3941 = vmatpush1.bf16.msra.mxu0 %v3574
          %3942 = vmatprep.subr.bf16.mxu0 %v3583
          %3943 = vmatpush1.bf16.msra.mxu0 %v3582
          %3944 = vmatprep.subr.bf16.mxu0 %v3591
          %3945 = vmatpush1.bf16.msra.mxu0 %v3590
          %3946 = vmatprep.subr.bf16.mxu0 %v3599
          %3947 = vmatpush1.bf16.msra.mxu0 %v3598
          %3948 = vmatprep.subr.bf16.mxu0 %v3607
          %3949 = vmatpush1.bf16.msra.mxu0 %v3606
          %3950 = vmatprep.subr.bf16.mxu0 %v3615
          %3951 = vmatpush1.bf16.msra.mxu0 %v3614
          %3952 = vmatprep.subr.bf16.mxu0 %v3623
          %3953 = vmatpush1.bf16.msra.mxu0 %v3622
          %3954 = vmatprep.subr.bf16.mxu0 %v3631
          %3955 = vmatpush1.bf16.msra.mxu0 %v3630
          %3956 = vmatprep.mubr.bf16.mxu0 %v2990
          %3957 = vmatmul.mubr.bf16.gmra.mrb[0].mxu0 %v2989
          %v3958 = vpop.f32.mrb[0].mxu0
          %v3959 = vadd.f32 %v3788, %v3958
          %v3960 = vpop.f32.mrb[0].mxu0
          %v3961 = vadd.f32 %v3792, %v3960
          %v3962 = vpop.f32.mrb[0].mxu0
          %v3963 = vpop.f32.mrb[0].mxu0
          %3964 = vdwg.mxu0
          %v3965 = vmax.f32 %v3836, 0.0
          %v3966 = vmax.f32 %v3838, 0.0
          %v3967 = vmax.f32 %v3877, 0.0
          %v3968 = vmax.f32 %v3879, 0.0
          %v3969 = vmax.f32 %v3918, 0.0
          %v3970 = vmax.f32 %v3920, 0.0
          %v3971 = vmax.f32 %v3959, 0.0
          %v3972 = vmax.f32 %v3961, 0.0
          // Predicated region
          $region125: #{pointcloud_autoencoder.1} parent=123 // pred_check
            %p3973 = pneg %p626
          $region126: #{pointcloud_autoencoder.1} parent=123 // pred_check_branch
            %3975 = sbr.rel (%p3973) target = $region128
          $region127: #{pointcloud_autoencoder.1} parent=123 // pred_region
            %s3976 = smul.u32 4, 128
            %s3977 = smul.u32 %s3976, 24
            %s3978 = sshll.u32 %s3977, 4
            %3979 = dma.done [#allocation4], %s3978
          $region128: #{pointcloud_autoencoder.1} parent=123 // pred_fallthru
            _
          %v3980 = vpack.c.bf16 %v3965, %v3965
          %v3981 = vpack.c.bf16 %v3966, %v3966
          %v3982 = vpack.c.bf16 %v3967, %v3967
          %v3983 = vpack.c.bf16 %v3968, %v3968
          %v3984 = vpack.c.bf16 %v3969, %v3969
          %v3985 = vpack.c.bf16 %v3970, %v3970
          %v3986 = vpack.c.bf16 %v3971, %v3971
          %v3987 = vpack.c.bf16 %v3972, %v3972
          %v3988 = vld [vmem:[#allocation3] sm:$0xff]
          %v3989 = vld [vmem:[#allocation3 + $0x8] sm:$0xff]
          %v3990 = vld [vmem:[#allocation3 + $0x10] sm:$0xff]
          %v3991 = vld [vmem:[#allocation3 + $0x18] sm:$0xff]
          %v3992 = vld [vmem:[#allocation3 + $0x20] sm:$0xff]
          %v3993 = vld [vmem:[#allocation3 + $0x28] sm:$0xff]
          %v3994 = vld [vmem:[#allocation3 + $0x30] sm:$0xff]
          %v3995 = vld [vmem:[#allocation3 + $0x38] sm:$0xff]
          %v3996 = vld [vmem:[#allocation3 + $0x40] sm:$0xff]
          %v3997 = vld [vmem:[#allocation3 + $0x48] sm:$0xff]
          %v3998 = vld [vmem:[#allocation3 + $0x50] sm:$0xff]
          %v3999 = vld [vmem:[#allocation3 + $0x58] sm:$0xff]
          %v4000 = vld [vmem:[#allocation3 + $0x60] sm:$0xff]
          %v4001 = vld [vmem:[#allocation3 + $0x68] sm:$0xff]
          %v4002 = vld [vmem:[#allocation3 + $0x70] sm:$0xff]
          %v4003 = vld [vmem:[#allocation3 + $0x78] sm:$0xff]
          %v4004 = vld [vmem:[#allocation3 + $0x80] sm:$0xff]
          %v4005 = vld [vmem:[#allocation3 + $0x88] sm:$0xff]
          %v4006 = vld [vmem:[#allocation3 + $0x90] sm:$0xff]
          %v4007 = vld [vmem:[#allocation3 + $0x98] sm:$0xff]
          %v4008 = vld [vmem:[#allocation3 + $0xa0] sm:$0xff]
          %v4009 = vld [vmem:[#allocation3 + $0xa8] sm:$0xff]
          %v4010 = vld [vmem:[#allocation3 + $0xb0] sm:$0xff]
          %v4011 = vld [vmem:[#allocation3 + $0xb8] sm:$0xff]
          %v4012 = vld [vmem:[#allocation3 + $0xc0] sm:$0xff]
          %v4013 = vld [vmem:[#allocation3 + $0xc8] sm:$0xff]
          %v4014 = vld [vmem:[#allocation3 + $0xd0] sm:$0xff]
          %v4015 = vld [vmem:[#allocation3 + $0xd8] sm:$0xff]
          %v4016 = vld [vmem:[#allocation3 + $0xe0] sm:$0xff]
          %v4017 = vld [vmem:[#allocation3 + $0xe8] sm:$0xff]
          %v4018 = vld [vmem:[#allocation3 + $0xf0] sm:$0xff]
          %v4019 = vld [vmem:[#allocation3 + $0xf8] sm:$0xff]
          %v4020 = vld [vmem:[#allocation3 + $0x100] sm:$0xff]
          %v4021 = vld [vmem:[#allocation3 + $0x108] sm:$0xff]
          %v4022 = vld [vmem:[#allocation3 + $0x110] sm:$0xff]
          %v4023 = vld [vmem:[#allocation3 + $0x118] sm:$0xff]
          %v4024 = vld [vmem:[#allocation3 + $0x120] sm:$0xff]
          %v4025 = vld [vmem:[#allocation3 + $0x128] sm:$0xff]
          %v4026 = vld [vmem:[#allocation3 + $0x130] sm:$0xff]
          %v4027 = vld [vmem:[#allocation3 + $0x138] sm:$0xff]
          %v4028 = vld [vmem:[#allocation3 + $0x140] sm:$0xff]
          %v4029 = vld [vmem:[#allocation3 + $0x148] sm:$0xff]
          %v4030 = vld [vmem:[#allocation3 + $0x150] sm:$0xff]
          %v4031 = vld [vmem:[#allocation3 + $0x158] sm:$0xff]
          %v4032 = vld [vmem:[#allocation3 + $0x160] sm:$0xff]
          %v4033 = vld [vmem:[#allocation3 + $0x168] sm:$0xff]
          %v4034 = vld [vmem:[#allocation3 + $0x170] sm:$0xff]
          %v4035 = vld [vmem:[#allocation3 + $0x178] sm:$0xff]
          %v4036 = vld [vmem:[#allocation3 + $0x180] sm:$0xff]
          %v4037 = vld [vmem:[#allocation3 + $0x188] sm:$0xff]
          %v4038 = vld [vmem:[#allocation3 + $0x190] sm:$0xff]
          %v4039 = vld [vmem:[#allocation3 + $0x198] sm:$0xff]
          %v4040 = vld [vmem:[#allocation3 + $0x1a0] sm:$0xff]
          %v4041 = vld [vmem:[#allocation3 + $0x1a8] sm:$0xff]
          %v4042 = vld [vmem:[#allocation3 + $0x1b0] sm:$0xff]
          %v4043 = vld [vmem:[#allocation3 + $0x1b8] sm:$0xff]
          %v4044 = vld [vmem:[#allocation3 + $0x1c0] sm:$0xff]
          %v4045 = vld [vmem:[#allocation3 + $0x1c8] sm:$0xff]
          %v4046 = vld [vmem:[#allocation3 + $0x1d0] sm:$0xff]
          %v4047 = vld [vmem:[#allocation3 + $0x1d8] sm:$0xff]
          %v4048 = vld [vmem:[#allocation3 + $0x1e0] sm:$0xff]
          %v4049 = vld [vmem:[#allocation3 + $0x1e8] sm:$0xff]
          %v4050 = vld [vmem:[#allocation3 + $0x1f0] sm:$0xff]
          %v4051 = vld [vmem:[#allocation3 + $0x1f8] sm:$0xff]
          %v4052 = vld [vmem:[#allocation3 + $0x200] sm:$0xff]
          %v4053 = vld [vmem:[#allocation3 + $0x208] sm:$0xff]
          %v4054 = vld [vmem:[#allocation3 + $0x210] sm:$0xff]
          %v4055 = vld [vmem:[#allocation3 + $0x218] sm:$0xff]
          %v4056 = vld [vmem:[#allocation3 + $0x220] sm:$0xff]
          %v4057 = vld [vmem:[#allocation3 + $0x228] sm:$0xff]
          %v4058 = vld [vmem:[#allocation3 + $0x230] sm:$0xff]
          %v4059 = vld [vmem:[#allocation3 + $0x238] sm:$0xff]
          %v4060 = vld [vmem:[#allocation3 + $0x240] sm:$0xff]
          %v4061 = vld [vmem:[#allocation3 + $0x248] sm:$0xff]
          %v4062 = vld [vmem:[#allocation3 + $0x250] sm:$0xff]
          %v4063 = vld [vmem:[#allocation3 + $0x258] sm:$0xff]
          %v4064 = vld [vmem:[#allocation3 + $0x260] sm:$0xff]
          %v4065 = vld [vmem:[#allocation3 + $0x268] sm:$0xff]
          %v4066 = vld [vmem:[#allocation3 + $0x270] sm:$0xff]
          %v4067 = vld [vmem:[#allocation3 + $0x278] sm:$0xff]
          %v4068 = vld [vmem:[#allocation3 + $0x280] sm:$0xff]
          %v4069 = vld [vmem:[#allocation3 + $0x288] sm:$0xff]
          %v4070 = vld [vmem:[#allocation3 + $0x290] sm:$0xff]
          %v4071 = vld [vmem:[#allocation3 + $0x298] sm:$0xff]
          %v4072 = vld [vmem:[#allocation3 + $0x2a0] sm:$0xff]
          %v4073 = vld [vmem:[#allocation3 + $0x2a8] sm:$0xff]
          %v4074 = vld [vmem:[#allocation3 + $0x2b0] sm:$0xff]
          %v4075 = vld [vmem:[#allocation3 + $0x2b8] sm:$0xff]
          %v4076 = vld [vmem:[#allocation3 + $0x2c0] sm:$0xff]
          %v4077 = vld [vmem:[#allocation3 + $0x2c8] sm:$0xff]
          %v4078 = vld [vmem:[#allocation3 + $0x2d0] sm:$0xff]
          %v4079 = vld [vmem:[#allocation3 + $0x2d8] sm:$0xff]
          %v4080 = vld [vmem:[#allocation3 + $0x2e0] sm:$0xff]
          %v4081 = vld [vmem:[#allocation3 + $0x2e8] sm:$0xff]
          %v4082 = vld [vmem:[#allocation3 + $0x2f0] sm:$0xff]
          %v4083 = vld [vmem:[#allocation3 + $0x2f8] sm:$0xff]
          %v4084 = vld [vmem:[#allocation3 + $0x300] sm:$0xff]
          %v4085 = vld [vmem:[#allocation3 + $0x308] sm:$0xff]
          %v4086 = vld [vmem:[#allocation3 + $0x310] sm:$0xff]
          %v4087 = vld [vmem:[#allocation3 + $0x318] sm:$0xff]
          %v4088 = vld [vmem:[#allocation3 + $0x320] sm:$0xff]
          %v4089 = vld [vmem:[#allocation3 + $0x328] sm:$0xff]
          %v4090 = vld [vmem:[#allocation3 + $0x330] sm:$0xff]
          %v4091 = vld [vmem:[#allocation3 + $0x338] sm:$0xff]
          %v4092 = vld [vmem:[#allocation3 + $0x340] sm:$0xff]
          %v4093 = vld [vmem:[#allocation3 + $0x348] sm:$0xff]
          %v4094 = vld [vmem:[#allocation3 + $0x350] sm:$0xff]
          %v4095 = vld [vmem:[#allocation3 + $0x358] sm:$0xff]
          %v4096 = vld [vmem:[#allocation3 + $0x360] sm:$0xff]
          %v4097 = vld [vmem:[#allocation3 + $0x368] sm:$0xff]
          %v4098 = vld [vmem:[#allocation3 + $0x370] sm:$0xff]
          %v4099 = vld [vmem:[#allocation3 + $0x378] sm:$0xff]
          %v4100 = vld [vmem:[#allocation3 + $0x380] sm:$0xff]
          %v4101 = vld [vmem:[#allocation3 + $0x388] sm:$0xff]
          %v4102 = vld [vmem:[#allocation3 + $0x390] sm:$0xff]
          %v4103 = vld [vmem:[#allocation3 + $0x398] sm:$0xff]
          %v4104 = vld [vmem:[#allocation3 + $0x3a0] sm:$0xff]
          %v4105 = vld [vmem:[#allocation3 + $0x3a8] sm:$0xff]
          %v4106 = vld [vmem:[#allocation3 + $0x3b0] sm:$0xff]
          %v4107 = vld [vmem:[#allocation3 + $0x3b8] sm:$0xff]
          %v4108 = vld [vmem:[#allocation3 + $0x3c0] sm:$0xff]
          %v4109 = vld [vmem:[#allocation3 + $0x3c8] sm:$0xff]
          %v4110 = vld [vmem:[#allocation3 + $0x3d0] sm:$0xff]
          %v4111 = vld [vmem:[#allocation3 + $0x3d8] sm:$0xff]
          %v4112 = vld [vmem:[#allocation3 + $0x3e0] sm:$0xff]
          %v4113 = vld [vmem:[#allocation3 + $0x3e8] sm:$0xff]
          %v4114 = vld [vmem:[#allocation3 + $0x3f0] sm:$0xff]
          %v4115 = vld [vmem:[#allocation3 + $0x3f8] sm:$0xff]
          %v4116 = vld [vmem:[#allocation3 + $0x400] sm:$0xff]
          %v4117 = vld [vmem:[#allocation3 + $0x408] sm:$0xff]
          %v4118 = vld [vmem:[#allocation3 + $0x410] sm:$0xff]
          %v4119 = vld [vmem:[#allocation3 + $0x418] sm:$0xff]
          %v4120 = vld [vmem:[#allocation3 + $0x420] sm:$0xff]
          %v4121 = vld [vmem:[#allocation3 + $0x428] sm:$0xff]
          %v4122 = vld [vmem:[#allocation3 + $0x430] sm:$0xff]
          %v4123 = vld [vmem:[#allocation3 + $0x438] sm:$0xff]
          %v4124 = vld [vmem:[#allocation3 + $0x440] sm:$0xff]
          %v4125 = vld [vmem:[#allocation3 + $0x448] sm:$0xff]
          %v4126 = vld [vmem:[#allocation3 + $0x450] sm:$0xff]
          %v4127 = vld [vmem:[#allocation3 + $0x458] sm:$0xff]
          %v4128 = vld [vmem:[#allocation3 + $0x460] sm:$0xff]
          %v4129 = vld [vmem:[#allocation3 + $0x468] sm:$0xff]
          %v4130 = vld [vmem:[#allocation3 + $0x470] sm:$0xff]
          %v4131 = vld [vmem:[#allocation3 + $0x478] sm:$0xff]
          %v4132 = vld [vmem:[#allocation3 + $0x480] sm:$0xff]
          %v4133 = vld [vmem:[#allocation3 + $0x488] sm:$0xff]
          %v4134 = vld [vmem:[#allocation3 + $0x490] sm:$0xff]
          %v4135 = vld [vmem:[#allocation3 + $0x498] sm:$0xff]
          %v4136 = vld [vmem:[#allocation3 + $0x4a0] sm:$0xff]
          %v4137 = vld [vmem:[#allocation3 + $0x4a8] sm:$0xff]
          %v4138 = vld [vmem:[#allocation3 + $0x4b0] sm:$0xff]
          %v4139 = vld [vmem:[#allocation3 + $0x4b8] sm:$0xff]
          %v4140 = vld [vmem:[#allocation3 + $0x4c0] sm:$0xff]
          %v4141 = vld [vmem:[#allocation3 + $0x4c8] sm:$0xff]
          %v4142 = vld [vmem:[#allocation3 + $0x4d0] sm:$0xff]
          %v4143 = vld [vmem:[#allocation3 + $0x4d8] sm:$0xff]
          %v4144 = vld [vmem:[#allocation3 + $0x4e0] sm:$0xff]
          %v4145 = vld [vmem:[#allocation3 + $0x4e8] sm:$0xff]
          %v4146 = vld [vmem:[#allocation3 + $0x4f0] sm:$0xff]
          %v4147 = vld [vmem:[#allocation3 + $0x4f8] sm:$0xff]
          %v4148 = vld [vmem:[#allocation3 + $0x500] sm:$0xff]
          %v4149 = vld [vmem:[#allocation3 + $0x508] sm:$0xff]
          %v4150 = vld [vmem:[#allocation3 + $0x510] sm:$0xff]
          %v4151 = vld [vmem:[#allocation3 + $0x518] sm:$0xff]
          %v4152 = vld [vmem:[#allocation3 + $0x520] sm:$0xff]
          %v4153 = vld [vmem:[#allocation3 + $0x528] sm:$0xff]
          %v4154 = vld [vmem:[#allocation3 + $0x530] sm:$0xff]
          %v4155 = vld [vmem:[#allocation3 + $0x538] sm:$0xff]
          %v4156 = vld [vmem:[#allocation3 + $0x540] sm:$0xff]
          %v4157 = vld [vmem:[#allocation3 + $0x548] sm:$0xff]
          %v4158 = vld [vmem:[#allocation3 + $0x550] sm:$0xff]
          %v4159 = vld [vmem:[#allocation3 + $0x558] sm:$0xff]
          %v4160 = vld [vmem:[#allocation3 + $0x560] sm:$0xff]
          %v4161 = vld [vmem:[#allocation3 + $0x568] sm:$0xff]
          %v4162 = vld [vmem:[#allocation3 + $0x570] sm:$0xff]
          %v4163 = vld [vmem:[#allocation3 + $0x578] sm:$0xff]
          %v4164 = vld [vmem:[#allocation3 + $0x580] sm:$0xff]
          %v4165 = vld [vmem:[#allocation3 + $0x588] sm:$0xff]
          %v4166 = vld [vmem:[#allocation3 + $0x590] sm:$0xff]
          %v4167 = vld [vmem:[#allocation3 + $0x598] sm:$0xff]
          %v4168 = vld [vmem:[#allocation3 + $0x5a0] sm:$0xff]
          %v4169 = vld [vmem:[#allocation3 + $0x5a8] sm:$0xff]
          %v4170 = vld [vmem:[#allocation3 + $0x5b0] sm:$0xff]
          %v4171 = vld [vmem:[#allocation3 + $0x5b8] sm:$0xff]
          %v4172 = vld [vmem:[#allocation3 + $0x5c0] sm:$0xff]
          %v4173 = vld [vmem:[#allocation3 + $0x5c8] sm:$0xff]
          %v4174 = vld [vmem:[#allocation3 + $0x5d0] sm:$0xff]
          %v4175 = vld [vmem:[#allocation3 + $0x5d8] sm:$0xff]
          %v4176 = vld [vmem:[#allocation3 + $0x5e0] sm:$0xff]
          %v4177 = vld [vmem:[#allocation3 + $0x5e8] sm:$0xff]
          %v4178 = vld [vmem:[#allocation3 + $0x5f0] sm:$0xff]
          %v4179 = vld [vmem:[#allocation3 + $0x5f8] sm:$0xff]
          %v4180 = vld [vmem:[#allocation3 + $0x600] sm:$0xff]
          %v4181 = vld [vmem:[#allocation3 + $0x608] sm:$0xff]
          %v4182 = vld [vmem:[#allocation3 + $0x610] sm:$0xff]
          %v4183 = vld [vmem:[#allocation3 + $0x618] sm:$0xff]
          %v4184 = vld [vmem:[#allocation3 + $0x620] sm:$0xff]
          %v4185 = vld [vmem:[#allocation3 + $0x628] sm:$0xff]
          %v4186 = vld [vmem:[#allocation3 + $0x630] sm:$0xff]
          %v4187 = vld [vmem:[#allocation3 + $0x638] sm:$0xff]
          %v4188 = vld [vmem:[#allocation3 + $0x640] sm:$0xff]
          %v4189 = vld [vmem:[#allocation3 + $0x648] sm:$0xff]
          %v4190 = vld [vmem:[#allocation3 + $0x650] sm:$0xff]
          %v4191 = vld [vmem:[#allocation3 + $0x658] sm:$0xff]
          %v4192 = vld [vmem:[#allocation3 + $0x660] sm:$0xff]
          %v4193 = vld [vmem:[#allocation3 + $0x668] sm:$0xff]
          %v4194 = vld [vmem:[#allocation3 + $0x670] sm:$0xff]
          %v4195 = vld [vmem:[#allocation3 + $0x678] sm:$0xff]
          %v4196 = vld [vmem:[#allocation3 + $0x680] sm:$0xff]
          %v4197 = vld [vmem:[#allocation3 + $0x688] sm:$0xff]
          %v4198 = vld [vmem:[#allocation3 + $0x690] sm:$0xff]
          %v4199 = vld [vmem:[#allocation3 + $0x698] sm:$0xff]
          %v4200 = vld [vmem:[#allocation3 + $0x6a0] sm:$0xff]
          %v4201 = vld [vmem:[#allocation3 + $0x6a8] sm:$0xff]
          %v4202 = vld [vmem:[#allocation3 + $0x6b0] sm:$0xff]
          %v4203 = vld [vmem:[#allocation3 + $0x6b8] sm:$0xff]
          %v4204 = vld [vmem:[#allocation3 + $0x6c0] sm:$0xff]
          %v4205 = vld [vmem:[#allocation3 + $0x6c8] sm:$0xff]
          %v4206 = vld [vmem:[#allocation3 + $0x6d0] sm:$0xff]
          %v4207 = vld [vmem:[#allocation3 + $0x6d8] sm:$0xff]
          %v4208 = vld [vmem:[#allocation3 + $0x6e0] sm:$0xff]
          %v4209 = vld [vmem:[#allocation3 + $0x6e8] sm:$0xff]
          %v4210 = vld [vmem:[#allocation3 + $0x6f0] sm:$0xff]
          %v4211 = vld [vmem:[#allocation3 + $0x6f8] sm:$0xff]
          %v4212 = vld [vmem:[#allocation3 + $0x700] sm:$0xff]
          %v4213 = vld [vmem:[#allocation3 + $0x708] sm:$0xff]
          %v4214 = vld [vmem:[#allocation3 + $0x710] sm:$0xff]
          %v4215 = vld [vmem:[#allocation3 + $0x718] sm:$0xff]
          %v4216 = vld [vmem:[#allocation3 + $0x720] sm:$0xff]
          %v4217 = vld [vmem:[#allocation3 + $0x728] sm:$0xff]
          %v4218 = vld [vmem:[#allocation3 + $0x730] sm:$0xff]
          %v4219 = vld [vmem:[#allocation3 + $0x738] sm:$0xff]
          %v4220 = vld [vmem:[#allocation3 + $0x740] sm:$0xff]
          %v4221 = vld [vmem:[#allocation3 + $0x748] sm:$0xff]
          %v4222 = vld [vmem:[#allocation3 + $0x750] sm:$0xff]
          %v4223 = vld [vmem:[#allocation3 + $0x758] sm:$0xff]
          %v4224 = vld [vmem:[#allocation3 + $0x760] sm:$0xff]
          %v4225 = vld [vmem:[#allocation3 + $0x768] sm:$0xff]
          %v4226 = vld [vmem:[#allocation3 + $0x770] sm:$0xff]
          %v4227 = vld [vmem:[#allocation3 + $0x778] sm:$0xff]
          %v4228 = vld [vmem:[#allocation3 + $0x780] sm:$0xff]
          %v4229 = vld [vmem:[#allocation3 + $0x788] sm:$0xff]
          %v4230 = vld [vmem:[#allocation3 + $0x790] sm:$0xff]
          %v4231 = vld [vmem:[#allocation3 + $0x798] sm:$0xff]
          %v4232 = vld [vmem:[#allocation3 + $0x7a0] sm:$0xff]
          %v4233 = vld [vmem:[#allocation3 + $0x7a8] sm:$0xff]
          %v4234 = vld [vmem:[#allocation3 + $0x7b0] sm:$0xff]
          %v4235 = vld [vmem:[#allocation3 + $0x7b8] sm:$0xff]
          %v4236 = vld [vmem:[#allocation3 + $0x7c0] sm:$0xff]
          %v4237 = vld [vmem:[#allocation3 + $0x7c8] sm:$0xff]
          %v4238 = vld [vmem:[#allocation3 + $0x7d0] sm:$0xff]
          %v4239 = vld [vmem:[#allocation3 + $0x7d8] sm:$0xff]
          %v4240 = vld [vmem:[#allocation3 + $0x7e0] sm:$0xff]
          %v4241 = vld [vmem:[#allocation3 + $0x7e8] sm:$0xff]
          %v4242 = vld [vmem:[#allocation3 + $0x7f0] sm:$0xff]
          %v4243 = vld [vmem:[#allocation3 + $0x7f8] sm:$0xff]
          %v4244 = vld [vmem:[#allocation3 + $0x800] sm:$0xff]
          %v4245 = vld [vmem:[#allocation3 + $0x808] sm:$0xff]
          %v4246 = vld [vmem:[#allocation3 + $0x810] sm:$0xff]
          %v4247 = vld [vmem:[#allocation3 + $0x818] sm:$0xff]
          %v4248 = vld [vmem:[#allocation3 + $0x820] sm:$0xff]
          %v4249 = vld [vmem:[#allocation3 + $0x828] sm:$0xff]
          %v4250 = vld [vmem:[#allocation3 + $0x830] sm:$0xff]
          %v4251 = vld [vmem:[#allocation3 + $0x838] sm:$0xff]
          %v4252 = vld [vmem:[#allocation3 + $0x840] sm:$0xff]
          %v4253 = vld [vmem:[#allocation3 + $0x848] sm:$0xff]
          %v4254 = vld [vmem:[#allocation3 + $0x850] sm:$0xff]
          %v4255 = vld [vmem:[#allocation3 + $0x858] sm:$0xff]
          %v4256 = vld [vmem:[#allocation3 + $0x860] sm:$0xff]
          %v4257 = vld [vmem:[#allocation3 + $0x868] sm:$0xff]
          %v4258 = vld [vmem:[#allocation3 + $0x870] sm:$0xff]
          %v4259 = vld [vmem:[#allocation3 + $0x878] sm:$0xff]
          %v4260 = vld [vmem:[#allocation3 + $0x880] sm:$0xff]
          %v4261 = vld [vmem:[#allocation3 + $0x888] sm:$0xff]
          %v4262 = vld [vmem:[#allocation3 + $0x890] sm:$0xff]
          %v4263 = vld [vmem:[#allocation3 + $0x898] sm:$0xff]
          %v4264 = vld [vmem:[#allocation3 + $0x8a0] sm:$0xff]
          %v4265 = vld [vmem:[#allocation3 + $0x8a8] sm:$0xff]
          %v4266 = vld [vmem:[#allocation3 + $0x8b0] sm:$0xff]
          %v4267 = vld [vmem:[#allocation3 + $0x8b8] sm:$0xff]
          %v4268 = vld [vmem:[#allocation3 + $0x8c0] sm:$0xff]
          %v4269 = vld [vmem:[#allocation3 + $0x8c8] sm:$0xff]
          %v4270 = vld [vmem:[#allocation3 + $0x8d0] sm:$0xff]
          %v4271 = vld [vmem:[#allocation3 + $0x8d8] sm:$0xff]
          %v4272 = vld [vmem:[#allocation3 + $0x8e0] sm:$0xff]
          %v4273 = vld [vmem:[#allocation3 + $0x8e8] sm:$0xff]
          %v4274 = vld [vmem:[#allocation3 + $0x8f0] sm:$0xff]
          %v4275 = vld [vmem:[#allocation3 + $0x8f8] sm:$0xff]
          %v4276 = vld [vmem:[#allocation3 + $0x900] sm:$0xff]
          %v4277 = vld [vmem:[#allocation3 + $0x908] sm:$0xff]
          %v4278 = vld [vmem:[#allocation3 + $0x910] sm:$0xff]
          %v4279 = vld [vmem:[#allocation3 + $0x918] sm:$0xff]
          %v4280 = vld [vmem:[#allocation3 + $0x920] sm:$0xff]
          %v4281 = vld [vmem:[#allocation3 + $0x928] sm:$0xff]
          %v4282 = vld [vmem:[#allocation3 + $0x930] sm:$0xff]
          %v4283 = vld [vmem:[#allocation3 + $0x938] sm:$0xff]
          %v4284 = vld [vmem:[#allocation3 + $0x940] sm:$0xff]
          %v4285 = vld [vmem:[#allocation3 + $0x948] sm:$0xff]
          %v4286 = vld [vmem:[#allocation3 + $0x950] sm:$0xff]
          %v4287 = vld [vmem:[#allocation3 + $0x958] sm:$0xff]
          %v4288 = vld [vmem:[#allocation3 + $0x960] sm:$0xff]
          %v4289 = vld [vmem:[#allocation3 + $0x968] sm:$0xff]
          %v4290 = vld [vmem:[#allocation3 + $0x970] sm:$0xff]
          %v4291 = vld [vmem:[#allocation3 + $0x978] sm:$0xff]
          %v4292 = vld [vmem:[#allocation3 + $0x980] sm:$0xff]
          %v4293 = vld [vmem:[#allocation3 + $0x988] sm:$0xff]
          %v4294 = vld [vmem:[#allocation3 + $0x990] sm:$0xff]
          %v4295 = vld [vmem:[#allocation3 + $0x998] sm:$0xff]
          %v4296 = vld [vmem:[#allocation3 + $0x9a0] sm:$0xff]
          %v4297 = vld [vmem:[#allocation3 + $0x9a8] sm:$0xff]
          %v4298 = vld [vmem:[#allocation3 + $0x9b0] sm:$0xff]
          %v4299 = vld [vmem:[#allocation3 + $0x9b8] sm:$0xff]
          %v4300 = vld [vmem:[#allocation3 + $0x9c0] sm:$0xff]
          %v4301 = vld [vmem:[#allocation3 + $0x9c8] sm:$0xff]
          %v4302 = vld [vmem:[#allocation3 + $0x9d0] sm:$0xff]
          %v4303 = vld [vmem:[#allocation3 + $0x9d8] sm:$0xff]
          %v4304 = vld [vmem:[#allocation3 + $0x9e0] sm:$0xff]
          %v4305 = vld [vmem:[#allocation3 + $0x9e8] sm:$0xff]
          %v4306 = vld [vmem:[#allocation3 + $0x9f0] sm:$0xff]
          %v4307 = vld [vmem:[#allocation3 + $0x9f8] sm:$0xff]
          %v4308 = vld [vmem:[#allocation3 + $0xa00] sm:$0xff]
          %v4309 = vld [vmem:[#allocation3 + $0xa08] sm:$0xff]
          %v4310 = vld [vmem:[#allocation3 + $0xa10] sm:$0xff]
          %v4311 = vld [vmem:[#allocation3 + $0xa18] sm:$0xff]
          %v4312 = vld [vmem:[#allocation3 + $0xa20] sm:$0xff]
          %v4313 = vld [vmem:[#allocation3 + $0xa28] sm:$0xff]
          %v4314 = vld [vmem:[#allocation3 + $0xa30] sm:$0xff]
          %v4315 = vld [vmem:[#allocation3 + $0xa38] sm:$0xff]
          %v4316 = vld [vmem:[#allocation3 + $0xa40] sm:$0xff]
          %v4317 = vld [vmem:[#allocation3 + $0xa48] sm:$0xff]
          %v4318 = vld [vmem:[#allocation3 + $0xa50] sm:$0xff]
          %v4319 = vld [vmem:[#allocation3 + $0xa58] sm:$0xff]
          %v4320 = vld [vmem:[#allocation3 + $0xa60] sm:$0xff]
          %v4321 = vld [vmem:[#allocation3 + $0xa68] sm:$0xff]
          %v4322 = vld [vmem:[#allocation3 + $0xa70] sm:$0xff]
          %v4323 = vld [vmem:[#allocation3 + $0xa78] sm:$0xff]
          %v4324 = vld [vmem:[#allocation3 + $0xa80] sm:$0xff]
          %v4325 = vld [vmem:[#allocation3 + $0xa88] sm:$0xff]
          %v4326 = vld [vmem:[#allocation3 + $0xa90] sm:$0xff]
          %v4327 = vld [vmem:[#allocation3 + $0xa98] sm:$0xff]
          %v4328 = vld [vmem:[#allocation3 + $0xaa0] sm:$0xff]
          %v4329 = vld [vmem:[#allocation3 + $0xaa8] sm:$0xff]
          %v4330 = vld [vmem:[#allocation3 + $0xab0] sm:$0xff]
          %v4331 = vld [vmem:[#allocation3 + $0xab8] sm:$0xff]
          %v4332 = vld [vmem:[#allocation3 + $0xac0] sm:$0xff]
          %v4333 = vld [vmem:[#allocation3 + $0xac8] sm:$0xff]
          %v4334 = vld [vmem:[#allocation3 + $0xad0] sm:$0xff]
          %v4335 = vld [vmem:[#allocation3 + $0xad8] sm:$0xff]
          %v4336 = vld [vmem:[#allocation3 + $0xae0] sm:$0xff]
          %v4337 = vld [vmem:[#allocation3 + $0xae8] sm:$0xff]
          %v4338 = vld [vmem:[#allocation3 + $0xaf0] sm:$0xff]
          %v4339 = vld [vmem:[#allocation3 + $0xaf8] sm:$0xff]
          %v4340 = vld [vmem:[#allocation3 + $0xb00] sm:$0xff]
          %v4341 = vld [vmem:[#allocation3 + $0xb08] sm:$0xff]
          %v4342 = vld [vmem:[#allocation3 + $0xb10] sm:$0xff]
          %v4343 = vld [vmem:[#allocation3 + $0xb18] sm:$0xff]
          %v4344 = vld [vmem:[#allocation3 + $0xb20] sm:$0xff]
          %v4345 = vld [vmem:[#allocation3 + $0xb28] sm:$0xff]
          %v4346 = vld [vmem:[#allocation3 + $0xb30] sm:$0xff]
          %v4347 = vld [vmem:[#allocation3 + $0xb38] sm:$0xff]
          %v4348 = vld [vmem:[#allocation3 + $0xb40] sm:$0xff]
          %v4349 = vld [vmem:[#allocation3 + $0xb48] sm:$0xff]
          %v4350 = vld [vmem:[#allocation3 + $0xb50] sm:$0xff]
          %v4351 = vld [vmem:[#allocation3 + $0xb58] sm:$0xff]
          %v4352 = vld [vmem:[#allocation3 + $0xb60] sm:$0xff]
          %v4353 = vld [vmem:[#allocation3 + $0xb68] sm:$0xff]
          %v4354 = vld [vmem:[#allocation3 + $0xb70] sm:$0xff]
          %v4355 = vld [vmem:[#allocation3 + $0xb78] sm:$0xff]
          %v4356 = vld [vmem:[#allocation3 + $0xb80] sm:$0xff]
          %v4357 = vld [vmem:[#allocation3 + $0xb88] sm:$0xff]
          %v4358 = vld [vmem:[#allocation3 + $0xb90] sm:$0xff]
          %v4359 = vld [vmem:[#allocation3 + $0xb98] sm:$0xff]
          %v4360 = vld [vmem:[#allocation3 + $0xba0] sm:$0xff]
          %v4361 = vld [vmem:[#allocation3 + $0xba8] sm:$0xff]
          %v4362 = vld [vmem:[#allocation3 + $0xbb0] sm:$0xff]
          %v4363 = vld [vmem:[#allocation3 + $0xbb8] sm:$0xff]
          %v4364 = vld [vmem:[#allocation3 + $0xbc0] sm:$0xff]
          %v4365 = vld [vmem:[#allocation3 + $0xbc8] sm:$0xff]
          %v4366 = vld [vmem:[#allocation3 + $0xbd0] sm:$0xff]
          %v4367 = vld [vmem:[#allocation3 + $0xbd8] sm:$0xff]
          %v4368 = vld [vmem:[#allocation3 + $0xbe0] sm:$0xff]
          %v4369 = vld [vmem:[#allocation3 + $0xbe8] sm:$0xff]
          %v4370 = vld [vmem:[#allocation3 + $0xbf0] sm:$0xff]
          %v4371 = vld [vmem:[#allocation3 + $0xbf8] sm:$0xff]
          %v4372 = vld [vmem:[#allocation3 + $0xc00] sm:$0xff]
          %v4373 = vld [vmem:[#allocation3 + $0xc08] sm:$0xff]
          %v4374 = vld [vmem:[#allocation3 + $0xc10] sm:$0xff]
          %v4375 = vld [vmem:[#allocation3 + $0xc18] sm:$0xff]
          %v4376 = vld [vmem:[#allocation3 + $0xc20] sm:$0xff]
          %v4377 = vld [vmem:[#allocation3 + $0xc28] sm:$0xff]
          %v4378 = vld [vmem:[#allocation3 + $0xc30] sm:$0xff]
          %v4379 = vld [vmem:[#allocation3 + $0xc38] sm:$0xff]
          %v4380 = vld [vmem:[#allocation3 + $0xc40] sm:$0xff]
          %v4381 = vld [vmem:[#allocation3 + $0xc48] sm:$0xff]
          %v4382 = vld [vmem:[#allocation3 + $0xc50] sm:$0xff]
          %v4383 = vld [vmem:[#allocation3 + $0xc58] sm:$0xff]
          %v4384 = vld [vmem:[#allocation3 + $0xc60] sm:$0xff]
          %v4385 = vld [vmem:[#allocation3 + $0xc68] sm:$0xff]
          %v4386 = vld [vmem:[#allocation3 + $0xc70] sm:$0xff]
          %v4387 = vld [vmem:[#allocation3 + $0xc78] sm:$0xff]
          %v4388 = vld [vmem:[#allocation3 + $0xc80] sm:$0xff]
          %v4389 = vld [vmem:[#allocation3 + $0xc88] sm:$0xff]
          %v4390 = vld [vmem:[#allocation3 + $0xc90] sm:$0xff]
          %v4391 = vld [vmem:[#allocation3 + $0xc98] sm:$0xff]
          %v4392 = vld [vmem:[#allocation3 + $0xca0] sm:$0xff]
          %v4393 = vld [vmem:[#allocation3 + $0xca8] sm:$0xff]
          %v4394 = vld [vmem:[#allocation3 + $0xcb0] sm:$0xff]
          %v4395 = vld [vmem:[#allocation3 + $0xcb8] sm:$0xff]
          %v4396 = vld [vmem:[#allocation3 + $0xcc0] sm:$0xff]
          %v4397 = vld [vmem:[#allocation3 + $0xcc8] sm:$0xff]
          %v4398 = vld [vmem:[#allocation3 + $0xcd0] sm:$0xff]
          %v4399 = vld [vmem:[#allocation3 + $0xcd8] sm:$0xff]
          %v4400 = vld [vmem:[#allocation3 + $0xce0] sm:$0xff]
          %v4401 = vld [vmem:[#allocation3 + $0xce8] sm:$0xff]
          %v4402 = vld [vmem:[#allocation3 + $0xcf0] sm:$0xff]
          %v4403 = vld [vmem:[#allocation3 + $0xcf8] sm:$0xff]
          %v4404 = vld [vmem:[#allocation3 + $0xd00] sm:$0xff]
          %v4405 = vld [vmem:[#allocation3 + $0xd08] sm:$0xff]
          %v4406 = vld [vmem:[#allocation3 + $0xd10] sm:$0xff]
          %v4407 = vld [vmem:[#allocation3 + $0xd18] sm:$0xff]
          %v4408 = vld [vmem:[#allocation3 + $0xd20] sm:$0xff]
          %v4409 = vld [vmem:[#allocation3 + $0xd28] sm:$0xff]
          %v4410 = vld [vmem:[#allocation3 + $0xd30] sm:$0xff]
          %v4411 = vld [vmem:[#allocation3 + $0xd38] sm:$0xff]
          %v4412 = vld [vmem:[#allocation3 + $0xd40] sm:$0xff]
          %v4413 = vld [vmem:[#allocation3 + $0xd48] sm:$0xff]
          %v4414 = vld [vmem:[#allocation3 + $0xd50] sm:$0xff]
          %v4415 = vld [vmem:[#allocation3 + $0xd58] sm:$0xff]
          %v4416 = vld [vmem:[#allocation3 + $0xd60] sm:$0xff]
          %v4417 = vld [vmem:[#allocation3 + $0xd68] sm:$0xff]
          %v4418 = vld [vmem:[#allocation3 + $0xd70] sm:$0xff]
          %v4419 = vld [vmem:[#allocation3 + $0xd78] sm:$0xff]
          %v4420 = vld [vmem:[#allocation3 + $0xd80] sm:$0xff]
          %v4421 = vld [vmem:[#allocation3 + $0xd88] sm:$0xff]
          %v4422 = vld [vmem:[#allocation3 + $0xd90] sm:$0xff]
          %v4423 = vld [vmem:[#allocation3 + $0xd98] sm:$0xff]
          %v4424 = vld [vmem:[#allocation3 + $0xda0] sm:$0xff]
          %v4425 = vld [vmem:[#allocation3 + $0xda8] sm:$0xff]
          %v4426 = vld [vmem:[#allocation3 + $0xdb0] sm:$0xff]
          %v4427 = vld [vmem:[#allocation3 + $0xdb8] sm:$0xff]
          %v4428 = vld [vmem:[#allocation3 + $0xdc0] sm:$0xff]
          %v4429 = vld [vmem:[#allocation3 + $0xdc8] sm:$0xff]
          %v4430 = vld [vmem:[#allocation3 + $0xdd0] sm:$0xff]
          %v4431 = vld [vmem:[#allocation3 + $0xdd8] sm:$0xff]
          %v4432 = vld [vmem:[#allocation3 + $0xde0] sm:$0xff]
          %v4433 = vld [vmem:[#allocation3 + $0xde8] sm:$0xff]
          %v4434 = vld [vmem:[#allocation3 + $0xdf0] sm:$0xff]
          %v4435 = vld [vmem:[#allocation3 + $0xdf8] sm:$0xff]
          %v4436 = vld [vmem:[#allocation3 + $0xe00] sm:$0xff]
          %v4437 = vld [vmem:[#allocation3 + $0xe08] sm:$0xff]
          %v4438 = vld [vmem:[#allocation3 + $0xe10] sm:$0xff]
          %v4439 = vld [vmem:[#allocation3 + $0xe18] sm:$0xff]
          %v4440 = vld [vmem:[#allocation3 + $0xe20] sm:$0xff]
          %v4441 = vld [vmem:[#allocation3 + $0xe28] sm:$0xff]
          %v4442 = vld [vmem:[#allocation3 + $0xe30] sm:$0xff]
          %v4443 = vld [vmem:[#allocation3 + $0xe38] sm:$0xff]
          %v4444 = vld [vmem:[#allocation3 + $0xe40] sm:$0xff]
          %v4445 = vld [vmem:[#allocation3 + $0xe48] sm:$0xff]
          %v4446 = vld [vmem:[#allocation3 + $0xe50] sm:$0xff]
          %v4447 = vld [vmem:[#allocation3 + $0xe58] sm:$0xff]
          %v4448 = vld [vmem:[#allocation3 + $0xe60] sm:$0xff]
          %v4449 = vld [vmem:[#allocation3 + $0xe68] sm:$0xff]
          %v4450 = vld [vmem:[#allocation3 + $0xe70] sm:$0xff]
          %v4451 = vld [vmem:[#allocation3 + $0xe78] sm:$0xff]
          %v4452 = vld [vmem:[#allocation3 + $0xe80] sm:$0xff]
          %v4453 = vld [vmem:[#allocation3 + $0xe88] sm:$0xff]
          %v4454 = vld [vmem:[#allocation3 + $0xe90] sm:$0xff]
          %v4455 = vld [vmem:[#allocation3 + $0xe98] sm:$0xff]
          %v4456 = vld [vmem:[#allocation3 + $0xea0] sm:$0xff]
          %v4457 = vld [vmem:[#allocation3 + $0xea8] sm:$0xff]
          %v4458 = vld [vmem:[#allocation3 + $0xeb0] sm:$0xff]
          %v4459 = vld [vmem:[#allocation3 + $0xeb8] sm:$0xff]
          %v4460 = vld [vmem:[#allocation3 + $0xec0] sm:$0xff]
          %v4461 = vld [vmem:[#allocation3 + $0xec8] sm:$0xff]
          %v4462 = vld [vmem:[#allocation3 + $0xed0] sm:$0xff]
          %v4463 = vld [vmem:[#allocation3 + $0xed8] sm:$0xff]
          %v4464 = vld [vmem:[#allocation3 + $0xee0] sm:$0xff]
          %v4465 = vld [vmem:[#allocation3 + $0xee8] sm:$0xff]
          %v4466 = vld [vmem:[#allocation3 + $0xef0] sm:$0xff]
          %v4467 = vld [vmem:[#allocation3 + $0xef8] sm:$0xff]
          %v4468 = vld [vmem:[#allocation3 + $0xf00] sm:$0xff]
          %v4469 = vld [vmem:[#allocation3 + $0xf08] sm:$0xff]
          %v4470 = vld [vmem:[#allocation3 + $0xf10] sm:$0xff]
          %v4471 = vld [vmem:[#allocation3 + $0xf18] sm:$0xff]
          %v4472 = vld [vmem:[#allocation3 + $0xf20] sm:$0xff]
          %v4473 = vld [vmem:[#allocation3 + $0xf28] sm:$0xff]
          %v4474 = vld [vmem:[#allocation3 + $0xf30] sm:$0xff]
          %v4475 = vld [vmem:[#allocation3 + $0xf38] sm:$0xff]
          %v4476 = vld [vmem:[#allocation3 + $0xf40] sm:$0xff]
          %v4477 = vld [vmem:[#allocation3 + $0xf48] sm:$0xff]
          %v4478 = vld [vmem:[#allocation3 + $0xf50] sm:$0xff]
          %v4479 = vld [vmem:[#allocation3 + $0xf58] sm:$0xff]
          %v4480 = vld [vmem:[#allocation3 + $0xf60] sm:$0xff]
          %v4481 = vld [vmem:[#allocation3 + $0xf68] sm:$0xff]
          %v4482 = vld [vmem:[#allocation3 + $0xf70] sm:$0xff]
          %v4483 = vld [vmem:[#allocation3 + $0xf78] sm:$0xff]
          %v4484 = vld [vmem:[#allocation3 + $0xf80] sm:$0xff]
          %v4485 = vld [vmem:[#allocation3 + $0xf88] sm:$0xff]
          %v4486 = vld [vmem:[#allocation3 + $0xf90] sm:$0xff]
          %v4487 = vld [vmem:[#allocation3 + $0xf98] sm:$0xff]
          %v4488 = vld [vmem:[#allocation3 + $0xfa0] sm:$0xff]
          %v4489 = vld [vmem:[#allocation3 + $0xfa8] sm:$0xff]
          %v4490 = vld [vmem:[#allocation3 + $0xfb0] sm:$0xff]
          %v4491 = vld [vmem:[#allocation3 + $0xfb8] sm:$0xff]
          %v4492 = vld [vmem:[#allocation3 + $0xfc0] sm:$0xff]
          %v4493 = vld [vmem:[#allocation3 + $0xfc8] sm:$0xff]
          %v4494 = vld [vmem:[#allocation3 + $0xfd0] sm:$0xff]
          %v4495 = vld [vmem:[#allocation3 + $0xfd8] sm:$0xff]
          %v4496 = vld [vmem:[#allocation3 + $0xfe0] sm:$0xff]
          %v4497 = vld [vmem:[#allocation3 + $0xfe8] sm:$0xff]
          %v4498 = vld [vmem:[#allocation3 + $0xff0] sm:$0xff]
          %v4499 = vld [vmem:[#allocation3 + $0xff8] sm:$0xff]
          %v4500 = vld [vmem:[#allocation3 + $0x1000] sm:$0xff]
          %v4501 = vld [vmem:[#allocation3 + $0x1008] sm:$0xff]
          %v4502 = vld [vmem:[#allocation3 + $0x1010] sm:$0xff]
          %v4503 = vld [vmem:[#allocation3 + $0x1018] sm:$0xff]
          %v4504 = vld [vmem:[#allocation3 + $0x1020] sm:$0xff]
          %v4505 = vld [vmem:[#allocation3 + $0x1028] sm:$0xff]
          %v4506 = vld [vmem:[#allocation3 + $0x1030] sm:$0xff]
          %v4507 = vld [vmem:[#allocation3 + $0x1038] sm:$0xff]
          %v4508 = vld [vmem:[#allocation3 + $0x1040] sm:$0xff]
          %v4509 = vld [vmem:[#allocation3 + $0x1048] sm:$0xff]
          %v4510 = vld [vmem:[#allocation3 + $0x1050] sm:$0xff]
          %v4511 = vld [vmem:[#allocation3 + $0x1058] sm:$0xff]
          %v4512 = vld [vmem:[#allocation3 + $0x1060] sm:$0xff]
          %v4513 = vld [vmem:[#allocation3 + $0x1068] sm:$0xff]
          %v4514 = vld [vmem:[#allocation3 + $0x1070] sm:$0xff]
          %v4515 = vld [vmem:[#allocation3 + $0x1078] sm:$0xff]
          %v4516 = vld [vmem:[#allocation3 + $0x1080] sm:$0xff]
          %v4517 = vld [vmem:[#allocation3 + $0x1088] sm:$0xff]
          %v4518 = vld [vmem:[#allocation3 + $0x1090] sm:$0xff]
          %v4519 = vld [vmem:[#allocation3 + $0x1098] sm:$0xff]
          %v4520 = vld [vmem:[#allocation3 + $0x10a0] sm:$0xff]
          %v4521 = vld [vmem:[#allocation3 + $0x10a8] sm:$0xff]
          %v4522 = vld [vmem:[#allocation3 + $0x10b0] sm:$0xff]
          %v4523 = vld [vmem:[#allocation3 + $0x10b8] sm:$0xff]
          %v4524 = vld [vmem:[#allocation3 + $0x10c0] sm:$0xff]
          %v4525 = vld [vmem:[#allocation3 + $0x10c8] sm:$0xff]
          %v4526 = vld [vmem:[#allocation3 + $0x10d0] sm:$0xff]
          %v4527 = vld [vmem:[#allocation3 + $0x10d8] sm:$0xff]
          %v4528 = vld [vmem:[#allocation3 + $0x10e0] sm:$0xff]
          %v4529 = vld [vmem:[#allocation3 + $0x10e8] sm:$0xff]
          %v4530 = vld [vmem:[#allocation3 + $0x10f0] sm:$0xff]
          %v4531 = vld [vmem:[#allocation3 + $0x10f8] sm:$0xff]
          %v4532 = vld [vmem:[#allocation3 + $0x1100] sm:$0xff]
          %v4533 = vld [vmem:[#allocation3 + $0x1108] sm:$0xff]
          %v4534 = vld [vmem:[#allocation3 + $0x1110] sm:$0xff]
          %v4535 = vld [vmem:[#allocation3 + $0x1118] sm:$0xff]
          %v4536 = vld [vmem:[#allocation3 + $0x1120] sm:$0xff]
          %v4537 = vld [vmem:[#allocation3 + $0x1128] sm:$0xff]
          %v4538 = vld [vmem:[#allocation3 + $0x1130] sm:$0xff]
          %v4539 = vld [vmem:[#allocation3 + $0x1138] sm:$0xff]
          %v4540 = vld [vmem:[#allocation3 + $0x1140] sm:$0xff]
          %v4541 = vld [vmem:[#allocation3 + $0x1148] sm:$0xff]
          %v4542 = vld [vmem:[#allocation3 + $0x1150] sm:$0xff]
          %v4543 = vld [vmem:[#allocation3 + $0x1158] sm:$0xff]
          %v4544 = vld [vmem:[#allocation3 + $0x1160] sm:$0xff]
          %v4545 = vld [vmem:[#allocation3 + $0x1168] sm:$0xff]
          %v4546 = vld [vmem:[#allocation3 + $0x1170] sm:$0xff]
          %v4547 = vld [vmem:[#allocation3 + $0x1178] sm:$0xff]
          %v4548 = vld [vmem:[#allocation3 + $0x1180] sm:$0xff]
          %v4549 = vld [vmem:[#allocation3 + $0x1188] sm:$0xff]
          %v4550 = vld [vmem:[#allocation3 + $0x1190] sm:$0xff]
          %v4551 = vld [vmem:[#allocation3 + $0x1198] sm:$0xff]
          %v4552 = vld [vmem:[#allocation3 + $0x11a0] sm:$0xff]
          %v4553 = vld [vmem:[#allocation3 + $0x11a8] sm:$0xff]
          %v4554 = vld [vmem:[#allocation3 + $0x11b0] sm:$0xff]
          %v4555 = vld [vmem:[#allocation3 + $0x11b8] sm:$0xff]
          %v4556 = vld [vmem:[#allocation3 + $0x11c0] sm:$0xff]
          %v4557 = vld [vmem:[#allocation3 + $0x11c8] sm:$0xff]
          %v4558 = vld [vmem:[#allocation3 + $0x11d0] sm:$0xff]
          %v4559 = vld [vmem:[#allocation3 + $0x11d8] sm:$0xff]
          %v4560 = vld [vmem:[#allocation3 + $0x11e0] sm:$0xff]
          %v4561 = vld [vmem:[#allocation3 + $0x11e8] sm:$0xff]
          %v4562 = vld [vmem:[#allocation3 + $0x11f0] sm:$0xff]
          %v4563 = vld [vmem:[#allocation3 + $0x11f8] sm:$0xff]
          %v4564 = vld [vmem:[#allocation3 + $0x1200] sm:$0xff]
          %v4565 = vld [vmem:[#allocation3 + $0x1208] sm:$0xff]
          %v4566 = vld [vmem:[#allocation3 + $0x1210] sm:$0xff]
          %v4567 = vld [vmem:[#allocation3 + $0x1218] sm:$0xff]
          %v4568 = vld [vmem:[#allocation3 + $0x1220] sm:$0xff]
          %v4569 = vld [vmem:[#allocation3 + $0x1228] sm:$0xff]
          %v4570 = vld [vmem:[#allocation3 + $0x1230] sm:$0xff]
          %v4571 = vld [vmem:[#allocation3 + $0x1238] sm:$0xff]
          %v4572 = vld [vmem:[#allocation3 + $0x1240] sm:$0xff]
          %v4573 = vld [vmem:[#allocation3 + $0x1248] sm:$0xff]
          %v4574 = vld [vmem:[#allocation3 + $0x1250] sm:$0xff]
          %v4575 = vld [vmem:[#allocation3 + $0x1258] sm:$0xff]
          %v4576 = vld [vmem:[#allocation3 + $0x1260] sm:$0xff]
          %v4577 = vld [vmem:[#allocation3 + $0x1268] sm:$0xff]
          %v4578 = vld [vmem:[#allocation3 + $0x1270] sm:$0xff]
          %v4579 = vld [vmem:[#allocation3 + $0x1278] sm:$0xff]
          %v4580 = vld [vmem:[#allocation3 + $0x1280] sm:$0xff]
          %v4581 = vld [vmem:[#allocation3 + $0x1288] sm:$0xff]
          %v4582 = vld [vmem:[#allocation3 + $0x1290] sm:$0xff]
          %v4583 = vld [vmem:[#allocation3 + $0x1298] sm:$0xff]
          %v4584 = vld [vmem:[#allocation3 + $0x12a0] sm:$0xff]
          %v4585 = vld [vmem:[#allocation3 + $0x12a8] sm:$0xff]
          %v4586 = vld [vmem:[#allocation3 + $0x12b0] sm:$0xff]
          %v4587 = vld [vmem:[#allocation3 + $0x12b8] sm:$0xff]
          %v4588 = vld [vmem:[#allocation3 + $0x12c0] sm:$0xff]
          %v4589 = vld [vmem:[#allocation3 + $0x12c8] sm:$0xff]
          %v4590 = vld [vmem:[#allocation3 + $0x12d0] sm:$0xff]
          %v4591 = vld [vmem:[#allocation3 + $0x12d8] sm:$0xff]
          %v4592 = vld [vmem:[#allocation3 + $0x12e0] sm:$0xff]
          %v4593 = vld [vmem:[#allocation3 + $0x12e8] sm:$0xff]
          %v4594 = vld [vmem:[#allocation3 + $0x12f0] sm:$0xff]
          %v4595 = vld [vmem:[#allocation3 + $0x12f8] sm:$0xff]
          %v4596 = vld [vmem:[#allocation3 + $0x1300] sm:$0xff]
          %v4597 = vld [vmem:[#allocation3 + $0x1308] sm:$0xff]
          %v4598 = vld [vmem:[#allocation3 + $0x1310] sm:$0xff]
          %v4599 = vld [vmem:[#allocation3 + $0x1318] sm:$0xff]
          %v4600 = vld [vmem:[#allocation3 + $0x1320] sm:$0xff]
          %v4601 = vld [vmem:[#allocation3 + $0x1328] sm:$0xff]
          %v4602 = vld [vmem:[#allocation3 + $0x1330] sm:$0xff]
          %v4603 = vld [vmem:[#allocation3 + $0x1338] sm:$0xff]
          %v4604 = vld [vmem:[#allocation3 + $0x1340] sm:$0xff]
          %v4605 = vld [vmem:[#allocation3 + $0x1348] sm:$0xff]
          %v4606 = vld [vmem:[#allocation3 + $0x1350] sm:$0xff]
          %v4607 = vld [vmem:[#allocation3 + $0x1358] sm:$0xff]
          %v4608 = vld [vmem:[#allocation3 + $0x1360] sm:$0xff]
          %v4609 = vld [vmem:[#allocation3 + $0x1368] sm:$0xff]
          %v4610 = vld [vmem:[#allocation3 + $0x1370] sm:$0xff]
          %v4611 = vld [vmem:[#allocation3 + $0x1378] sm:$0xff]
          %v4612 = vld [vmem:[#allocation3 + $0x1380] sm:$0xff]
          %v4613 = vld [vmem:[#allocation3 + $0x1388] sm:$0xff]
          %v4614 = vld [vmem:[#allocation3 + $0x1390] sm:$0xff]
          %v4615 = vld [vmem:[#allocation3 + $0x1398] sm:$0xff]
          %v4616 = vld [vmem:[#allocation3 + $0x13a0] sm:$0xff]
          %v4617 = vld [vmem:[#allocation3 + $0x13a8] sm:$0xff]
          %v4618 = vld [vmem:[#allocation3 + $0x13b0] sm:$0xff]
          %v4619 = vld [vmem:[#allocation3 + $0x13b8] sm:$0xff]
          %v4620 = vld [vmem:[#allocation3 + $0x13c0] sm:$0xff]
          %v4621 = vld [vmem:[#allocation3 + $0x13c8] sm:$0xff]
          %v4622 = vld [vmem:[#allocation3 + $0x13d0] sm:$0xff]
          %v4623 = vld [vmem:[#allocation3 + $0x13d8] sm:$0xff]
          %v4624 = vld [vmem:[#allocation3 + $0x13e0] sm:$0xff]
          %v4625 = vld [vmem:[#allocation3 + $0x13e8] sm:$0xff]
          %v4626 = vld [vmem:[#allocation3 + $0x13f0] sm:$0xff]
          %v4627 = vld [vmem:[#allocation3 + $0x13f8] sm:$0xff]
          %v4628 = vld [vmem:[#allocation3 + $0x1400] sm:$0xff]
          %v4629 = vld [vmem:[#allocation3 + $0x1408] sm:$0xff]
          %v4630 = vld [vmem:[#allocation3 + $0x1410] sm:$0xff]
          %v4631 = vld [vmem:[#allocation3 + $0x1418] sm:$0xff]
          %v4632 = vld [vmem:[#allocation3 + $0x1420] sm:$0xff]
          %v4633 = vld [vmem:[#allocation3 + $0x1428] sm:$0xff]
          %v4634 = vld [vmem:[#allocation3 + $0x1430] sm:$0xff]
          %v4635 = vld [vmem:[#allocation3 + $0x1438] sm:$0xff]
          %v4636 = vld [vmem:[#allocation3 + $0x1440] sm:$0xff]
          %v4637 = vld [vmem:[#allocation3 + $0x1448] sm:$0xff]
          %v4638 = vld [vmem:[#allocation3 + $0x1450] sm:$0xff]
          %v4639 = vld [vmem:[#allocation3 + $0x1458] sm:$0xff]
          %v4640 = vld [vmem:[#allocation3 + $0x1460] sm:$0xff]
          %v4641 = vld [vmem:[#allocation3 + $0x1468] sm:$0xff]
          %v4642 = vld [vmem:[#allocation3 + $0x1470] sm:$0xff]
          %v4643 = vld [vmem:[#allocation3 + $0x1478] sm:$0xff]
          %v4644 = vld [vmem:[#allocation3 + $0x1480] sm:$0xff]
          %v4645 = vld [vmem:[#allocation3 + $0x1488] sm:$0xff]
          %v4646 = vld [vmem:[#allocation3 + $0x1490] sm:$0xff]
          %v4647 = vld [vmem:[#allocation3 + $0x1498] sm:$0xff]
          %v4648 = vld [vmem:[#allocation3 + $0x14a0] sm:$0xff]
          %v4649 = vld [vmem:[#allocation3 + $0x14a8] sm:$0xff]
          %v4650 = vld [vmem:[#allocation3 + $0x14b0] sm:$0xff]
          %v4651 = vld [vmem:[#allocation3 + $0x14b8] sm:$0xff]
          %v4652 = vld [vmem:[#allocation3 + $0x14c0] sm:$0xff]
          %v4653 = vld [vmem:[#allocation3 + $0x14c8] sm:$0xff]
          %v4654 = vld [vmem:[#allocation3 + $0x14d0] sm:$0xff]
          %v4655 = vld [vmem:[#allocation3 + $0x14d8] sm:$0xff]
          %v4656 = vld [vmem:[#allocation3 + $0x14e0] sm:$0xff]
          %v4657 = vld [vmem:[#allocation3 + $0x14e8] sm:$0xff]
          %v4658 = vld [vmem:[#allocation3 + $0x14f0] sm:$0xff]
          %v4659 = vld [vmem:[#allocation3 + $0x14f8] sm:$0xff]
          %v4660 = vld [vmem:[#allocation3 + $0x1500] sm:$0xff]
          %v4661 = vld [vmem:[#allocation3 + $0x1508] sm:$0xff]
          %v4662 = vld [vmem:[#allocation3 + $0x1510] sm:$0xff]
          %v4663 = vld [vmem:[#allocation3 + $0x1518] sm:$0xff]
          %v4664 = vld [vmem:[#allocation3 + $0x1520] sm:$0xff]
          %v4665 = vld [vmem:[#allocation3 + $0x1528] sm:$0xff]
          %v4666 = vld [vmem:[#allocation3 + $0x1530] sm:$0xff]
          %v4667 = vld [vmem:[#allocation3 + $0x1538] sm:$0xff]
          %v4668 = vld [vmem:[#allocation3 + $0x1540] sm:$0xff]
          %v4669 = vld [vmem:[#allocation3 + $0x1548] sm:$0xff]
          %v4670 = vld [vmem:[#allocation3 + $0x1550] sm:$0xff]
          %v4671 = vld [vmem:[#allocation3 + $0x1558] sm:$0xff]
          %v4672 = vld [vmem:[#allocation3 + $0x1560] sm:$0xff]
          %v4673 = vld [vmem:[#allocation3 + $0x1568] sm:$0xff]
          %v4674 = vld [vmem:[#allocation3 + $0x1570] sm:$0xff]
          %v4675 = vld [vmem:[#allocation3 + $0x1578] sm:$0xff]
          %v4676 = vld [vmem:[#allocation3 + $0x1580] sm:$0xff]
          %v4677 = vld [vmem:[#allocation3 + $0x1588] sm:$0xff]
          %v4678 = vld [vmem:[#allocation3 + $0x1590] sm:$0xff]
          %v4679 = vld [vmem:[#allocation3 + $0x1598] sm:$0xff]
          %v4680 = vld [vmem:[#allocation3 + $0x15a0] sm:$0xff]
          %v4681 = vld [vmem:[#allocation3 + $0x15a8] sm:$0xff]
          %v4682 = vld [vmem:[#allocation3 + $0x15b0] sm:$0xff]
          %v4683 = vld [vmem:[#allocation3 + $0x15b8] sm:$0xff]
          %v4684 = vld [vmem:[#allocation3 + $0x15c0] sm:$0xff]
          %v4685 = vld [vmem:[#allocation3 + $0x15c8] sm:$0xff]
          %v4686 = vld [vmem:[#allocation3 + $0x15d0] sm:$0xff]
          %v4687 = vld [vmem:[#allocation3 + $0x15d8] sm:$0xff]
          %v4688 = vld [vmem:[#allocation3 + $0x15e0] sm:$0xff]
          %v4689 = vld [vmem:[#allocation3 + $0x15e8] sm:$0xff]
          %v4690 = vld [vmem:[#allocation3 + $0x15f0] sm:$0xff]
          %v4691 = vld [vmem:[#allocation3 + $0x15f8] sm:$0xff]
          %v4692 = vld [vmem:[#allocation3 + $0x1600] sm:$0xff]
          %v4693 = vld [vmem:[#allocation3 + $0x1608] sm:$0xff]
          %v4694 = vld [vmem:[#allocation3 + $0x1610] sm:$0xff]
          %v4695 = vld [vmem:[#allocation3 + $0x1618] sm:$0xff]
          %v4696 = vld [vmem:[#allocation3 + $0x1620] sm:$0xff]
          %v4697 = vld [vmem:[#allocation3 + $0x1628] sm:$0xff]
          %v4698 = vld [vmem:[#allocation3 + $0x1630] sm:$0xff]
          %v4699 = vld [vmem:[#allocation3 + $0x1638] sm:$0xff]
          %v4700 = vld [vmem:[#allocation3 + $0x1640] sm:$0xff]
          %v4701 = vld [vmem:[#allocation3 + $0x1648] sm:$0xff]
          %v4702 = vld [vmem:[#allocation3 + $0x1650] sm:$0xff]
          %v4703 = vld [vmem:[#allocation3 + $0x1658] sm:$0xff]
          %v4704 = vld [vmem:[#allocation3 + $0x1660] sm:$0xff]
          %v4705 = vld [vmem:[#allocation3 + $0x1668] sm:$0xff]
          %v4706 = vld [vmem:[#allocation3 + $0x1670] sm:$0xff]
          %v4707 = vld [vmem:[#allocation3 + $0x1678] sm:$0xff]
          %v4708 = vld [vmem:[#allocation3 + $0x1680] sm:$0xff]
          %v4709 = vld [vmem:[#allocation3 + $0x1688] sm:$0xff]
          %v4710 = vld [vmem:[#allocation3 + $0x1690] sm:$0xff]
          %v4711 = vld [vmem:[#allocation3 + $0x1698] sm:$0xff]
          %v4712 = vld [vmem:[#allocation3 + $0x16a0] sm:$0xff]
          %v4713 = vld [vmem:[#allocation3 + $0x16a8] sm:$0xff]
          %v4714 = vld [vmem:[#allocation3 + $0x16b0] sm:$0xff]
          %v4715 = vld [vmem:[#allocation3 + $0x16b8] sm:$0xff]
          %v4716 = vld [vmem:[#allocation3 + $0x16c0] sm:$0xff]
          %v4717 = vld [vmem:[#allocation3 + $0x16c8] sm:$0xff]
          %v4718 = vld [vmem:[#allocation3 + $0x16d0] sm:$0xff]
          %v4719 = vld [vmem:[#allocation3 + $0x16d8] sm:$0xff]
          %v4720 = vld [vmem:[#allocation3 + $0x16e0] sm:$0xff]
          %v4721 = vld [vmem:[#allocation3 + $0x16e8] sm:$0xff]
          %v4722 = vld [vmem:[#allocation3 + $0x16f0] sm:$0xff]
          %v4723 = vld [vmem:[#allocation3 + $0x16f8] sm:$0xff]
          %v4724 = vld [vmem:[#allocation3 + $0x1700] sm:$0xff]
          %v4725 = vld [vmem:[#allocation3 + $0x1708] sm:$0xff]
          %v4726 = vld [vmem:[#allocation3 + $0x1710] sm:$0xff]
          %v4727 = vld [vmem:[#allocation3 + $0x1718] sm:$0xff]
          %v4728 = vld [vmem:[#allocation3 + $0x1720] sm:$0xff]
          %v4729 = vld [vmem:[#allocation3 + $0x1728] sm:$0xff]
          %v4730 = vld [vmem:[#allocation3 + $0x1730] sm:$0xff]
          %v4731 = vld [vmem:[#allocation3 + $0x1738] sm:$0xff]
          %v4732 = vld [vmem:[#allocation3 + $0x1740] sm:$0xff]
          %v4733 = vld [vmem:[#allocation3 + $0x1748] sm:$0xff]
          %v4734 = vld [vmem:[#allocation3 + $0x1750] sm:$0xff]
          %v4735 = vld [vmem:[#allocation3 + $0x1758] sm:$0xff]
          %v4736 = vld [vmem:[#allocation3 + $0x1760] sm:$0xff]
          %v4737 = vld [vmem:[#allocation3 + $0x1768] sm:$0xff]
          %v4738 = vld [vmem:[#allocation3 + $0x1770] sm:$0xff]
          %v4739 = vld [vmem:[#allocation3 + $0x1778] sm:$0xff]
          %v4740 = vld [vmem:[#allocation3 + $0x1780] sm:$0xff]
          %v4741 = vld [vmem:[#allocation3 + $0x1788] sm:$0xff]
          %v4742 = vld [vmem:[#allocation3 + $0x1790] sm:$0xff]
          %v4743 = vld [vmem:[#allocation3 + $0x1798] sm:$0xff]
          %v4744 = vld [vmem:[#allocation3 + $0x17a0] sm:$0xff]
          %v4745 = vld [vmem:[#allocation3 + $0x17a8] sm:$0xff]
          %v4746 = vld [vmem:[#allocation3 + $0x17b0] sm:$0xff]
          %v4747 = vld [vmem:[#allocation3 + $0x17b8] sm:$0xff]
          %v4748 = vld [vmem:[#allocation3 + $0x17c0] sm:$0xff]
          %v4749 = vld [vmem:[#allocation3 + $0x17c8] sm:$0xff]
          %v4750 = vld [vmem:[#allocation3 + $0x17d0] sm:$0xff]
          %v4751 = vld [vmem:[#allocation3 + $0x17d8] sm:$0xff]
          %v4752 = vld [vmem:[#allocation3 + $0x17e0] sm:$0xff]
          %v4753 = vld [vmem:[#allocation3 + $0x17e8] sm:$0xff]
          %v4754 = vld [vmem:[#allocation3 + $0x17f0] sm:$0xff]
          %v4755 = vld [vmem:[#allocation3 + $0x17f8] sm:$0xff]
          %v4756 = vld [vmem:[#allocation3 + $0x1800] sm:$0xff]
          %v4757 = vld [vmem:[#allocation3 + $0x1808] sm:$0xff]
          %v4758 = vld [vmem:[#allocation3 + $0x1810] sm:$0xff]
          %v4759 = vld [vmem:[#allocation3 + $0x1818] sm:$0xff]
          %v4760 = vld [vmem:[#allocation3 + $0x1820] sm:$0xff]
          %v4761 = vld [vmem:[#allocation3 + $0x1828] sm:$0xff]
          %v4762 = vld [vmem:[#allocation3 + $0x1830] sm:$0xff]
          %v4763 = vld [vmem:[#allocation3 + $0x1838] sm:$0xff]
          %v4764 = vld [vmem:[#allocation3 + $0x1840] sm:$0xff]
          %v4765 = vld [vmem:[#allocation3 + $0x1848] sm:$0xff]
          %v4766 = vld [vmem:[#allocation3 + $0x1850] sm:$0xff]
          %v4767 = vld [vmem:[#allocation3 + $0x1858] sm:$0xff]
          %v4768 = vld [vmem:[#allocation3 + $0x1860] sm:$0xff]
          %v4769 = vld [vmem:[#allocation3 + $0x1868] sm:$0xff]
          %v4770 = vld [vmem:[#allocation3 + $0x1870] sm:$0xff]
          %v4771 = vld [vmem:[#allocation3 + $0x1878] sm:$0xff]
          %v4772 = vld [vmem:[#allocation3 + $0x1880] sm:$0xff]
          %v4773 = vld [vmem:[#allocation3 + $0x1888] sm:$0xff]
          %v4774 = vld [vmem:[#allocation3 + $0x1890] sm:$0xff]
          %v4775 = vld [vmem:[#allocation3 + $0x1898] sm:$0xff]
          %v4776 = vld [vmem:[#allocation3 + $0x18a0] sm:$0xff]
          %v4777 = vld [vmem:[#allocation3 + $0x18a8] sm:$0xff]
          %v4778 = vld [vmem:[#allocation3 + $0x18b0] sm:$0xff]
          %v4779 = vld [vmem:[#allocation3 + $0x18b8] sm:$0xff]
          %v4780 = vld [vmem:[#allocation3 + $0x18c0] sm:$0xff]
          %v4781 = vld [vmem:[#allocation3 + $0x18c8] sm:$0xff]
          %v4782 = vld [vmem:[#allocation3 + $0x18d0] sm:$0xff]
          %v4783 = vld [vmem:[#allocation3 + $0x18d8] sm:$0xff]
          %v4784 = vld [vmem:[#allocation3 + $0x18e0] sm:$0xff]
          %v4785 = vld [vmem:[#allocation3 + $0x18e8] sm:$0xff]
          %v4786 = vld [vmem:[#allocation3 + $0x18f0] sm:$0xff]
          %v4787 = vld [vmem:[#allocation3 + $0x18f8] sm:$0xff]
          %v4788 = vld [vmem:[#allocation3 + $0x1900] sm:$0xff]
          %v4789 = vld [vmem:[#allocation3 + $0x1908] sm:$0xff]
          %v4790 = vld [vmem:[#allocation3 + $0x1910] sm:$0xff]
          %v4791 = vld [vmem:[#allocation3 + $0x1918] sm:$0xff]
          %v4792 = vld [vmem:[#allocation3 + $0x1920] sm:$0xff]
          %v4793 = vld [vmem:[#allocation3 + $0x1928] sm:$0xff]
          %v4794 = vld [vmem:[#allocation3 + $0x1930] sm:$0xff]
          %v4795 = vld [vmem:[#allocation3 + $0x1938] sm:$0xff]
          %v4796 = vld [vmem:[#allocation3 + $0x1940] sm:$0xff]
          %v4797 = vld [vmem:[#allocation3 + $0x1948] sm:$0xff]
          %v4798 = vld [vmem:[#allocation3 + $0x1950] sm:$0xff]
          %v4799 = vld [vmem:[#allocation3 + $0x1958] sm:$0xff]
          %v4800 = vld [vmem:[#allocation3 + $0x1960] sm:$0xff]
          %v4801 = vld [vmem:[#allocation3 + $0x1968] sm:$0xff]
          %v4802 = vld [vmem:[#allocation3 + $0x1970] sm:$0xff]
          %v4803 = vld [vmem:[#allocation3 + $0x1978] sm:$0xff]
          %v4804 = vld [vmem:[#allocation3 + $0x1980] sm:$0xff]
          %v4805 = vld [vmem:[#allocation3 + $0x1988] sm:$0xff]
          %v4806 = vld [vmem:[#allocation3 + $0x1990] sm:$0xff]
          %v4807 = vld [vmem:[#allocation3 + $0x1998] sm:$0xff]
          %v4808 = vld [vmem:[#allocation3 + $0x19a0] sm:$0xff]
          %v4809 = vld [vmem:[#allocation3 + $0x19a8] sm:$0xff]
          %v4810 = vld [vmem:[#allocation3 + $0x19b0] sm:$0xff]
          %v4811 = vld [vmem:[#allocation3 + $0x19b8] sm:$0xff]
          %v4812 = vld [vmem:[#allocation3 + $0x19c0] sm:$0xff]
          %v4813 = vld [vmem:[#allocation3 + $0x19c8] sm:$0xff]
          %v4814 = vld [vmem:[#allocation3 + $0x19d0] sm:$0xff]
          %v4815 = vld [vmem:[#allocation3 + $0x19d8] sm:$0xff]
          %v4816 = vld [vmem:[#allocation3 + $0x19e0] sm:$0xff]
          %v4817 = vld [vmem:[#allocation3 + $0x19e8] sm:$0xff]
          %v4818 = vld [vmem:[#allocation3 + $0x19f0] sm:$0xff]
          %v4819 = vld [vmem:[#allocation3 + $0x19f8] sm:$0xff]
          %v4820 = vld [vmem:[#allocation3 + $0x1a00] sm:$0xff]
          %v4821 = vld [vmem:[#allocation3 + $0x1a08] sm:$0xff]
          %v4822 = vld [vmem:[#allocation3 + $0x1a10] sm:$0xff]
          %v4823 = vld [vmem:[#allocation3 + $0x1a18] sm:$0xff]
          %v4824 = vld [vmem:[#allocation3 + $0x1a20] sm:$0xff]
          %v4825 = vld [vmem:[#allocation3 + $0x1a28] sm:$0xff]
          %v4826 = vld [vmem:[#allocation3 + $0x1a30] sm:$0xff]
          %v4827 = vld [vmem:[#allocation3 + $0x1a38] sm:$0xff]
          %v4828 = vld [vmem:[#allocation3 + $0x1a40] sm:$0xff]
          %v4829 = vld [vmem:[#allocation3 + $0x1a48] sm:$0xff]
          %v4830 = vld [vmem:[#allocation3 + $0x1a50] sm:$0xff]
          %v4831 = vld [vmem:[#allocation3 + $0x1a58] sm:$0xff]
          %v4832 = vld [vmem:[#allocation3 + $0x1a60] sm:$0xff]
          %v4833 = vld [vmem:[#allocation3 + $0x1a68] sm:$0xff]
          %v4834 = vld [vmem:[#allocation3 + $0x1a70] sm:$0xff]
          %v4835 = vld [vmem:[#allocation3 + $0x1a78] sm:$0xff]
          %v4836 = vld [vmem:[#allocation3 + $0x1a80] sm:$0xff]
          %v4837 = vld [vmem:[#allocation3 + $0x1a88] sm:$0xff]
          %v4838 = vld [vmem:[#allocation3 + $0x1a90] sm:$0xff]
          %v4839 = vld [vmem:[#allocation3 + $0x1a98] sm:$0xff]
          %v4840 = vld [vmem:[#allocation3 + $0x1aa0] sm:$0xff]
          %v4841 = vld [vmem:[#allocation3 + $0x1aa8] sm:$0xff]
          %v4842 = vld [vmem:[#allocation3 + $0x1ab0] sm:$0xff]
          %v4843 = vld [vmem:[#allocation3 + $0x1ab8] sm:$0xff]
          %v4844 = vld [vmem:[#allocation3 + $0x1ac0] sm:$0xff]
          %v4845 = vld [vmem:[#allocation3 + $0x1ac8] sm:$0xff]
          %v4846 = vld [vmem:[#allocation3 + $0x1ad0] sm:$0xff]
          %v4847 = vld [vmem:[#allocation3 + $0x1ad8] sm:$0xff]
          %v4848 = vld [vmem:[#allocation3 + $0x1ae0] sm:$0xff]
          %v4849 = vld [vmem:[#allocation3 + $0x1ae8] sm:$0xff]
          %v4850 = vld [vmem:[#allocation3 + $0x1af0] sm:$0xff]
          %v4851 = vld [vmem:[#allocation3 + $0x1af8] sm:$0xff]
          %v4852 = vld [vmem:[#allocation3 + $0x1b00] sm:$0xff]
          %v4853 = vld [vmem:[#allocation3 + $0x1b08] sm:$0xff]
          %v4854 = vld [vmem:[#allocation3 + $0x1b10] sm:$0xff]
          %v4855 = vld [vmem:[#allocation3 + $0x1b18] sm:$0xff]
          %v4856 = vld [vmem:[#allocation3 + $0x1b20] sm:$0xff]
          %v4857 = vld [vmem:[#allocation3 + $0x1b28] sm:$0xff]
          %v4858 = vld [vmem:[#allocation3 + $0x1b30] sm:$0xff]
          %v4859 = vld [vmem:[#allocation3 + $0x1b38] sm:$0xff]
          %v4860 = vld [vmem:[#allocation3 + $0x1b40] sm:$0xff]
          %v4861 = vld [vmem:[#allocation3 + $0x1b48] sm:$0xff]
          %v4862 = vld [vmem:[#allocation3 + $0x1b50] sm:$0xff]
          %v4863 = vld [vmem:[#allocation3 + $0x1b58] sm:$0xff]
          %v4864 = vld [vmem:[#allocation3 + $0x1b60] sm:$0xff]
          %v4865 = vld [vmem:[#allocation3 + $0x1b68] sm:$0xff]
          %v4866 = vld [vmem:[#allocation3 + $0x1b70] sm:$0xff]
          %v4867 = vld [vmem:[#allocation3 + $0x1b78] sm:$0xff]
          %v4868 = vld [vmem:[#allocation3 + $0x1b80] sm:$0xff]
          %v4869 = vld [vmem:[#allocation3 + $0x1b88] sm:$0xff]
          %v4870 = vld [vmem:[#allocation3 + $0x1b90] sm:$0xff]
          %v4871 = vld [vmem:[#allocation3 + $0x1b98] sm:$0xff]
          %v4872 = vld [vmem:[#allocation3 + $0x1ba0] sm:$0xff]
          %v4873 = vld [vmem:[#allocation3 + $0x1ba8] sm:$0xff]
          %v4874 = vld [vmem:[#allocation3 + $0x1bb0] sm:$0xff]
          %v4875 = vld [vmem:[#allocation3 + $0x1bb8] sm:$0xff]
          %v4876 = vld [vmem:[#allocation3 + $0x1bc0] sm:$0xff]
          %v4877 = vld [vmem:[#allocation3 + $0x1bc8] sm:$0xff]
          %v4878 = vld [vmem:[#allocation3 + $0x1bd0] sm:$0xff]
          %v4879 = vld [vmem:[#allocation3 + $0x1bd8] sm:$0xff]
          %v4880 = vld [vmem:[#allocation3 + $0x1be0] sm:$0xff]
          %v4881 = vld [vmem:[#allocation3 + $0x1be8] sm:$0xff]
          %v4882 = vld [vmem:[#allocation3 + $0x1bf0] sm:$0xff]
          %v4883 = vld [vmem:[#allocation3 + $0x1bf8] sm:$0xff]
          %v4884 = vld [vmem:[#allocation3 + $0x1c00] sm:$0xff]
          %v4885 = vld [vmem:[#allocation3 + $0x1c08] sm:$0xff]
          %v4886 = vld [vmem:[#allocation3 + $0x1c10] sm:$0xff]
          %v4887 = vld [vmem:[#allocation3 + $0x1c18] sm:$0xff]
          %v4888 = vld [vmem:[#allocation3 + $0x1c20] sm:$0xff]
          %v4889 = vld [vmem:[#allocation3 + $0x1c28] sm:$0xff]
          %v4890 = vld [vmem:[#allocation3 + $0x1c30] sm:$0xff]
          %v4891 = vld [vmem:[#allocation3 + $0x1c38] sm:$0xff]
          %v4892 = vld [vmem:[#allocation3 + $0x1c40] sm:$0xff]
          %v4893 = vld [vmem:[#allocation3 + $0x1c48] sm:$0xff]
          %v4894 = vld [vmem:[#allocation3 + $0x1c50] sm:$0xff]
          %v4895 = vld [vmem:[#allocation3 + $0x1c58] sm:$0xff]
          %v4896 = vld [vmem:[#allocation3 + $0x1c60] sm:$0xff]
          %v4897 = vld [vmem:[#allocation3 + $0x1c68] sm:$0xff]
          %v4898 = vld [vmem:[#allocation3 + $0x1c70] sm:$0xff]
          %v4899 = vld [vmem:[#allocation3 + $0x1c78] sm:$0xff]
          %v4900 = vld [vmem:[#allocation3 + $0x1c80] sm:$0xff]
          %v4901 = vld [vmem:[#allocation3 + $0x1c88] sm:$0xff]
          %v4902 = vld [vmem:[#allocation3 + $0x1c90] sm:$0xff]
          %v4903 = vld [vmem:[#allocation3 + $0x1c98] sm:$0xff]
          %v4904 = vld [vmem:[#allocation3 + $0x1ca0] sm:$0xff]
          %v4905 = vld [vmem:[#allocation3 + $0x1ca8] sm:$0xff]
          %v4906 = vld [vmem:[#allocation3 + $0x1cb0] sm:$0xff]
          %v4907 = vld [vmem:[#allocation3 + $0x1cb8] sm:$0xff]
          %v4908 = vld [vmem:[#allocation3 + $0x1cc0] sm:$0xff]
          %v4909 = vld [vmem:[#allocation3 + $0x1cc8] sm:$0xff]
          %v4910 = vld [vmem:[#allocation3 + $0x1cd0] sm:$0xff]
          %v4911 = vld [vmem:[#allocation3 + $0x1cd8] sm:$0xff]
          %v4912 = vld [vmem:[#allocation3 + $0x1ce0] sm:$0xff]
          %v4913 = vld [vmem:[#allocation3 + $0x1ce8] sm:$0xff]
          %v4914 = vld [vmem:[#allocation3 + $0x1cf0] sm:$0xff]
          %v4915 = vld [vmem:[#allocation3 + $0x1cf8] sm:$0xff]
          %v4916 = vld [vmem:[#allocation3 + $0x1d00] sm:$0xff]
          %v4917 = vld [vmem:[#allocation3 + $0x1d08] sm:$0xff]
          %v4918 = vld [vmem:[#allocation3 + $0x1d10] sm:$0xff]
          %v4919 = vld [vmem:[#allocation3 + $0x1d18] sm:$0xff]
          %v4920 = vld [vmem:[#allocation3 + $0x1d20] sm:$0xff]
          %v4921 = vld [vmem:[#allocation3 + $0x1d28] sm:$0xff]
          %v4922 = vld [vmem:[#allocation3 + $0x1d30] sm:$0xff]
          %v4923 = vld [vmem:[#allocation3 + $0x1d38] sm:$0xff]
          %v4924 = vld [vmem:[#allocation3 + $0x1d40] sm:$0xff]
          %v4925 = vld [vmem:[#allocation3 + $0x1d48] sm:$0xff]
          %v4926 = vld [vmem:[#allocation3 + $0x1d50] sm:$0xff]
          %v4927 = vld [vmem:[#allocation3 + $0x1d58] sm:$0xff]
          %v4928 = vld [vmem:[#allocation3 + $0x1d60] sm:$0xff]
          %v4929 = vld [vmem:[#allocation3 + $0x1d68] sm:$0xff]
          %v4930 = vld [vmem:[#allocation3 + $0x1d70] sm:$0xff]
          %v4931 = vld [vmem:[#allocation3 + $0x1d78] sm:$0xff]
          %v4932 = vld [vmem:[#allocation3 + $0x1d80] sm:$0xff]
          %v4933 = vld [vmem:[#allocation3 + $0x1d88] sm:$0xff]
          %v4934 = vld [vmem:[#allocation3 + $0x1d90] sm:$0xff]
          %v4935 = vld [vmem:[#allocation3 + $0x1d98] sm:$0xff]
          %v4936 = vld [vmem:[#allocation3 + $0x1da0] sm:$0xff]
          %v4937 = vld [vmem:[#allocation3 + $0x1da8] sm:$0xff]
          %v4938 = vld [vmem:[#allocation3 + $0x1db0] sm:$0xff]
          %v4939 = vld [vmem:[#allocation3 + $0x1db8] sm:$0xff]
          %v4940 = vld [vmem:[#allocation3 + $0x1dc0] sm:$0xff]
          %v4941 = vld [vmem:[#allocation3 + $0x1dc8] sm:$0xff]
          %v4942 = vld [vmem:[#allocation3 + $0x1dd0] sm:$0xff]
          %v4943 = vld [vmem:[#allocation3 + $0x1dd8] sm:$0xff]
          %v4944 = vld [vmem:[#allocation3 + $0x1de0] sm:$0xff]
          %v4945 = vld [vmem:[#allocation3 + $0x1de8] sm:$0xff]
          %v4946 = vld [vmem:[#allocation3 + $0x1df0] sm:$0xff]
          %v4947 = vld [vmem:[#allocation3 + $0x1df8] sm:$0xff]
          %v4948 = vld [vmem:[#allocation3 + $0x1e00] sm:$0xff]
          %v4949 = vld [vmem:[#allocation3 + $0x1e08] sm:$0xff]
          %v4950 = vld [vmem:[#allocation3 + $0x1e10] sm:$0xff]
          %v4951 = vld [vmem:[#allocation3 + $0x1e18] sm:$0xff]
          %v4952 = vld [vmem:[#allocation3 + $0x1e20] sm:$0xff]
          %v4953 = vld [vmem:[#allocation3 + $0x1e28] sm:$0xff]
          %v4954 = vld [vmem:[#allocation3 + $0x1e30] sm:$0xff]
          %v4955 = vld [vmem:[#allocation3 + $0x1e38] sm:$0xff]
          %v4956 = vld [vmem:[#allocation3 + $0x1e40] sm:$0xff]
          %v4957 = vld [vmem:[#allocation3 + $0x1e48] sm:$0xff]
          %v4958 = vld [vmem:[#allocation3 + $0x1e50] sm:$0xff]
          %v4959 = vld [vmem:[#allocation3 + $0x1e58] sm:$0xff]
          %v4960 = vld [vmem:[#allocation3 + $0x1e60] sm:$0xff]
          %v4961 = vld [vmem:[#allocation3 + $0x1e68] sm:$0xff]
          %v4962 = vld [vmem:[#allocation3 + $0x1e70] sm:$0xff]
          %v4963 = vld [vmem:[#allocation3 + $0x1e78] sm:$0xff]
          %v4964 = vld [vmem:[#allocation3 + $0x1e80] sm:$0xff]
          %v4965 = vld [vmem:[#allocation3 + $0x1e88] sm:$0xff]
          %v4966 = vld [vmem:[#allocation3 + $0x1e90] sm:$0xff]
          %v4967 = vld [vmem:[#allocation3 + $0x1e98] sm:$0xff]
          %v4968 = vld [vmem:[#allocation3 + $0x1ea0] sm:$0xff]
          %v4969 = vld [vmem:[#allocation3 + $0x1ea8] sm:$0xff]
          %v4970 = vld [vmem:[#allocation3 + $0x1eb0] sm:$0xff]
          %v4971 = vld [vmem:[#allocation3 + $0x1eb8] sm:$0xff]
          %v4972 = vld [vmem:[#allocation3 + $0x1ec0] sm:$0xff]
          %v4973 = vld [vmem:[#allocation3 + $0x1ec8] sm:$0xff]
          %v4974 = vld [vmem:[#allocation3 + $0x1ed0] sm:$0xff]
          %v4975 = vld [vmem:[#allocation3 + $0x1ed8] sm:$0xff]
          %v4976 = vld [vmem:[#allocation3 + $0x1ee0] sm:$0xff]
          %v4977 = vld [vmem:[#allocation3 + $0x1ee8] sm:$0xff]
          %v4978 = vld [vmem:[#allocation3 + $0x1ef0] sm:$0xff]
          %v4979 = vld [vmem:[#allocation3 + $0x1ef8] sm:$0xff]
          %v4980 = vld [vmem:[#allocation3 + $0x1f00] sm:$0xff]
          %v4981 = vld [vmem:[#allocation3 + $0x1f08] sm:$0xff]
          %v4982 = vld [vmem:[#allocation3 + $0x1f10] sm:$0xff]
          %v4983 = vld [vmem:[#allocation3 + $0x1f18] sm:$0xff]
          %v4984 = vld [vmem:[#allocation3 + $0x1f20] sm:$0xff]
          %v4985 = vld [vmem:[#allocation3 + $0x1f28] sm:$0xff]
          %v4986 = vld [vmem:[#allocation3 + $0x1f30] sm:$0xff]
          %v4987 = vld [vmem:[#allocation3 + $0x1f38] sm:$0xff]
          %v4988 = vld [vmem:[#allocation3 + $0x1f40] sm:$0xff]
          %v4989 = vld [vmem:[#allocation3 + $0x1f48] sm:$0xff]
          %v4990 = vld [vmem:[#allocation3 + $0x1f50] sm:$0xff]
          %v4991 = vld [vmem:[#allocation3 + $0x1f58] sm:$0xff]
          %v4992 = vld [vmem:[#allocation3 + $0x1f60] sm:$0xff]
          %v4993 = vld [vmem:[#allocation3 + $0x1f68] sm:$0xff]
          %v4994 = vld [vmem:[#allocation3 + $0x1f70] sm:$0xff]
          %v4995 = vld [vmem:[#allocation3 + $0x1f78] sm:$0xff]
          %v4996 = vld [vmem:[#allocation3 + $0x1f80] sm:$0xff]
          %v4997 = vld [vmem:[#allocation3 + $0x1f88] sm:$0xff]
          %v4998 = vld [vmem:[#allocation3 + $0x1f90] sm:$0xff]
          %v4999 = vld [vmem:[#allocation3 + $0x1f98] sm:$0xff]
          %v5000 = vld [vmem:[#allocation3 + $0x1fa0] sm:$0xff]
          %v5001 = vld [vmem:[#allocation3 + $0x1fa8] sm:$0xff]
          %v5002 = vld [vmem:[#allocation3 + $0x1fb0] sm:$0xff]
          %v5003 = vld [vmem:[#allocation3 + $0x1fb8] sm:$0xff]
          %v5004 = vld [vmem:[#allocation3 + $0x1fc0] sm:$0xff]
          %v5005 = vld [vmem:[#allocation3 + $0x1fc8] sm:$0xff]
          %v5006 = vld [vmem:[#allocation3 + $0x1fd0] sm:$0xff]
          %v5007 = vld [vmem:[#allocation3 + $0x1fd8] sm:$0xff]
          %v5008 = vld [vmem:[#allocation3 + $0x1fe0] sm:$0xff]
          %v5009 = vld [vmem:[#allocation3 + $0x1fe8] sm:$0xff]
          %v5010 = vld [vmem:[#allocation3 + $0x1ff0] sm:$0xff]
          %v5011 = vld [vmem:[#allocation3 + $0x1ff8] sm:$0xff]
          %v5012 = vld [vmem:[#allocation3 + $0x2000] sm:$0xff]
          %v5013 = vld [vmem:[#allocation3 + $0x2008] sm:$0xff]
          %v5014 = vld [vmem:[#allocation3 + $0x2010] sm:$0xff]
          %v5015 = vld [vmem:[#allocation3 + $0x2018] sm:$0xff]
          %v5016 = vld [vmem:[#allocation3 + $0x2020] sm:$0xff]
          %v5017 = vld [vmem:[#allocation3 + $0x2028] sm:$0xff]
          %v5018 = vld [vmem:[#allocation3 + $0x2030] sm:$0xff]
          %v5019 = vld [vmem:[#allocation3 + $0x2038] sm:$0xff]
          %v5020 = vld [vmem:[#allocation3 + $0x2040] sm:$0xff]
          %v5021 = vld [vmem:[#allocation3 + $0x2048] sm:$0xff]
          %v5022 = vld [vmem:[#allocation3 + $0x2050] sm:$0xff]
          %v5023 = vld [vmem:[#allocation3 + $0x2058] sm:$0xff]
          %v5024 = vld [vmem:[#allocation3 + $0x2060] sm:$0xff]
          %v5025 = vld [vmem:[#allocation3 + $0x2068] sm:$0xff]
          %v5026 = vld [vmem:[#allocation3 + $0x2070] sm:$0xff]
          %v5027 = vld [vmem:[#allocation3 + $0x2078] sm:$0xff]
          %v5028 = vld [vmem:[#allocation3 + $0x2080] sm:$0xff]
          %v5029 = vld [vmem:[#allocation3 + $0x2088] sm:$0xff]
          %v5030 = vld [vmem:[#allocation3 + $0x2090] sm:$0xff]
          %v5031 = vld [vmem:[#allocation3 + $0x2098] sm:$0xff]
          %v5032 = vld [vmem:[#allocation3 + $0x20a0] sm:$0xff]
          %v5033 = vld [vmem:[#allocation3 + $0x20a8] sm:$0xff]
          %v5034 = vld [vmem:[#allocation3 + $0x20b0] sm:$0xff]
          %v5035 = vld [vmem:[#allocation3 + $0x20b8] sm:$0xff]
          %v5036 = vld [vmem:[#allocation3 + $0x20c0] sm:$0xff]
          %v5037 = vld [vmem:[#allocation3 + $0x20c8] sm:$0xff]
          %v5038 = vld [vmem:[#allocation3 + $0x20d0] sm:$0xff]
          %v5039 = vld [vmem:[#allocation3 + $0x20d8] sm:$0xff]
          %v5040 = vld [vmem:[#allocation3 + $0x20e0] sm:$0xff]
          %v5041 = vld [vmem:[#allocation3 + $0x20e8] sm:$0xff]
          %v5042 = vld [vmem:[#allocation3 + $0x20f0] sm:$0xff]
          %v5043 = vld [vmem:[#allocation3 + $0x20f8] sm:$0xff]
          %v5044 = vld [vmem:[#allocation3 + $0x2100] sm:$0xff]
          %v5045 = vld [vmem:[#allocation3 + $0x2108] sm:$0xff]
          %v5046 = vld [vmem:[#allocation3 + $0x2110] sm:$0xff]
          %v5047 = vld [vmem:[#allocation3 + $0x2118] sm:$0xff]
          %v5048 = vld [vmem:[#allocation3 + $0x2120] sm:$0xff]
          %v5049 = vld [vmem:[#allocation3 + $0x2128] sm:$0xff]
          %v5050 = vld [vmem:[#allocation3 + $0x2130] sm:$0xff]
          %v5051 = vld [vmem:[#allocation3 + $0x2138] sm:$0xff]
          %v5052 = vld [vmem:[#allocation3 + $0x2140] sm:$0xff]
          %v5053 = vld [vmem:[#allocation3 + $0x2148] sm:$0xff]
          %v5054 = vld [vmem:[#allocation3 + $0x2150] sm:$0xff]
          %v5055 = vld [vmem:[#allocation3 + $0x2158] sm:$0xff]
          %v5056 = vld [vmem:[#allocation3 + $0x2160] sm:$0xff]
          %v5057 = vld [vmem:[#allocation3 + $0x2168] sm:$0xff]
          %v5058 = vld [vmem:[#allocation3 + $0x2170] sm:$0xff]
          %v5059 = vld [vmem:[#allocation3 + $0x2178] sm:$0xff]
          %v5060 = vld [vmem:[#allocation3 + $0x2180] sm:$0xff]
          %v5061 = vld [vmem:[#allocation3 + $0x2188] sm:$0xff]
          %v5062 = vld [vmem:[#allocation3 + $0x2190] sm:$0xff]
          %v5063 = vld [vmem:[#allocation3 + $0x2198] sm:$0xff]
          %v5064 = vld [vmem:[#allocation3 + $0x21a0] sm:$0xff]
          %v5065 = vld [vmem:[#allocation3 + $0x21a8] sm:$0xff]
          %v5066 = vld [vmem:[#allocation3 + $0x21b0] sm:$0xff]
          %v5067 = vld [vmem:[#allocation3 + $0x21b8] sm:$0xff]
          %v5068 = vld [vmem:[#allocation3 + $0x21c0] sm:$0xff]
          %v5069 = vld [vmem:[#allocation3 + $0x21c8] sm:$0xff]
          %v5070 = vld [vmem:[#allocation3 + $0x21d0] sm:$0xff]
          %v5071 = vld [vmem:[#allocation3 + $0x21d8] sm:$0xff]
          %v5072 = vld [vmem:[#allocation3 + $0x21e0] sm:$0xff]
          %v5073 = vld [vmem:[#allocation3 + $0x21e8] sm:$0xff]
          %v5074 = vld [vmem:[#allocation3 + $0x21f0] sm:$0xff]
          %v5075 = vld [vmem:[#allocation3 + $0x21f8] sm:$0xff]
          %v5076 = vld [vmem:[#allocation3 + $0x2200] sm:$0xff]
          %v5077 = vld [vmem:[#allocation3 + $0x2208] sm:$0xff]
          %v5078 = vld [vmem:[#allocation3 + $0x2210] sm:$0xff]
          %v5079 = vld [vmem:[#allocation3 + $0x2218] sm:$0xff]
          %v5080 = vld [vmem:[#allocation3 + $0x2220] sm:$0xff]
          %v5081 = vld [vmem:[#allocation3 + $0x2228] sm:$0xff]
          %v5082 = vld [vmem:[#allocation3 + $0x2230] sm:$0xff]
          %v5083 = vld [vmem:[#allocation3 + $0x2238] sm:$0xff]
          %v5084 = vld [vmem:[#allocation3 + $0x2240] sm:$0xff]
          %v5085 = vld [vmem:[#allocation3 + $0x2248] sm:$0xff]
          %v5086 = vld [vmem:[#allocation3 + $0x2250] sm:$0xff]
          %v5087 = vld [vmem:[#allocation3 + $0x2258] sm:$0xff]
          %v5088 = vld [vmem:[#allocation3 + $0x2260] sm:$0xff]
          %v5089 = vld [vmem:[#allocation3 + $0x2268] sm:$0xff]
          %v5090 = vld [vmem:[#allocation3 + $0x2270] sm:$0xff]
          %v5091 = vld [vmem:[#allocation3 + $0x2278] sm:$0xff]
          %v5092 = vld [vmem:[#allocation3 + $0x2280] sm:$0xff]
          %v5093 = vld [vmem:[#allocation3 + $0x2288] sm:$0xff]
          %v5094 = vld [vmem:[#allocation3 + $0x2290] sm:$0xff]
          %v5095 = vld [vmem:[#allocation3 + $0x2298] sm:$0xff]
          %v5096 = vld [vmem:[#allocation3 + $0x22a0] sm:$0xff]
          %v5097 = vld [vmem:[#allocation3 + $0x22a8] sm:$0xff]
          %v5098 = vld [vmem:[#allocation3 + $0x22b0] sm:$0xff]
          %v5099 = vld [vmem:[#allocation3 + $0x22b8] sm:$0xff]
          %v5100 = vld [vmem:[#allocation3 + $0x22c0] sm:$0xff]
          %v5101 = vld [vmem:[#allocation3 + $0x22c8] sm:$0xff]
          %v5102 = vld [vmem:[#allocation3 + $0x22d0] sm:$0xff]
          %v5103 = vld [vmem:[#allocation3 + $0x22d8] sm:$0xff]
          %v5104 = vld [vmem:[#allocation3 + $0x22e0] sm:$0xff]
          %v5105 = vld [vmem:[#allocation3 + $0x22e8] sm:$0xff]
          %v5106 = vld [vmem:[#allocation3 + $0x22f0] sm:$0xff]
          %v5107 = vld [vmem:[#allocation3 + $0x22f8] sm:$0xff]
          %v5108 = vld [vmem:[#allocation3 + $0x2300] sm:$0xff]
          %v5109 = vld [vmem:[#allocation3 + $0x2308] sm:$0xff]
          %v5110 = vld [vmem:[#allocation3 + $0x2310] sm:$0xff]
          %v5111 = vld [vmem:[#allocation3 + $0x2318] sm:$0xff]
          %v5112 = vld [vmem:[#allocation3 + $0x2320] sm:$0xff]
          %v5113 = vld [vmem:[#allocation3 + $0x2328] sm:$0xff]
          %v5114 = vld [vmem:[#allocation3 + $0x2330] sm:$0xff]
          %v5115 = vld [vmem:[#allocation3 + $0x2338] sm:$0xff]
          %v5116 = vld [vmem:[#allocation3 + $0x2340] sm:$0xff]
          %v5117 = vld [vmem:[#allocation3 + $0x2348] sm:$0xff]
          %v5118 = vld [vmem:[#allocation3 + $0x2350] sm:$0xff]
          %v5119 = vld [vmem:[#allocation3 + $0x2358] sm:$0xff]
          %v5120 = vld [vmem:[#allocation3 + $0x2360] sm:$0xff]
          %v5121 = vld [vmem:[#allocation3 + $0x2368] sm:$0xff]
          %v5122 = vld [vmem:[#allocation3 + $0x2370] sm:$0xff]
          %v5123 = vld [vmem:[#allocation3 + $0x2378] sm:$0xff]
          %v5124 = vld [vmem:[#allocation3 + $0x2380] sm:$0xff]
          %v5125 = vld [vmem:[#allocation3 + $0x2388] sm:$0xff]
          %v5126 = vld [vmem:[#allocation3 + $0x2390] sm:$0xff]
          %v5127 = vld [vmem:[#allocation3 + $0x2398] sm:$0xff]
          %v5128 = vld [vmem:[#allocation3 + $0x23a0] sm:$0xff]
          %v5129 = vld [vmem:[#allocation3 + $0x23a8] sm:$0xff]
          %v5130 = vld [vmem:[#allocation3 + $0x23b0] sm:$0xff]
          %v5131 = vld [vmem:[#allocation3 + $0x23b8] sm:$0xff]
          %v5132 = vld [vmem:[#allocation3 + $0x23c0] sm:$0xff]
          %v5133 = vld [vmem:[#allocation3 + $0x23c8] sm:$0xff]
          %v5134 = vld [vmem:[#allocation3 + $0x23d0] sm:$0xff]
          %v5135 = vld [vmem:[#allocation3 + $0x23d8] sm:$0xff]
          %v5136 = vld [vmem:[#allocation3 + $0x23e0] sm:$0xff]
          %v5137 = vld [vmem:[#allocation3 + $0x23e8] sm:$0xff]
          %v5138 = vld [vmem:[#allocation3 + $0x23f0] sm:$0xff]
          %v5139 = vld [vmem:[#allocation3 + $0x23f8] sm:$0xff]
          %v5140 = vld [vmem:[#allocation3 + $0x2400] sm:$0xff]
          %v5141 = vld [vmem:[#allocation3 + $0x2408] sm:$0xff]
          %v5142 = vld [vmem:[#allocation3 + $0x2410] sm:$0xff]
          %v5143 = vld [vmem:[#allocation3 + $0x2418] sm:$0xff]
          %v5144 = vld [vmem:[#allocation3 + $0x2420] sm:$0xff]
          %v5145 = vld [vmem:[#allocation3 + $0x2428] sm:$0xff]
          %v5146 = vld [vmem:[#allocation3 + $0x2430] sm:$0xff]
          %v5147 = vld [vmem:[#allocation3 + $0x2438] sm:$0xff]
          %v5148 = vld [vmem:[#allocation3 + $0x2440] sm:$0xff]
          %v5149 = vld [vmem:[#allocation3 + $0x2448] sm:$0xff]
          %v5150 = vld [vmem:[#allocation3 + $0x2450] sm:$0xff]
          %v5151 = vld [vmem:[#allocation3 + $0x2458] sm:$0xff]
          %v5152 = vld [vmem:[#allocation3 + $0x2460] sm:$0xff]
          %v5153 = vld [vmem:[#allocation3 + $0x2468] sm:$0xff]
          %v5154 = vld [vmem:[#allocation3 + $0x2470] sm:$0xff]
          %v5155 = vld [vmem:[#allocation3 + $0x2478] sm:$0xff]
          %v5156 = vld [vmem:[#allocation3 + $0x2480] sm:$0xff]
          %v5157 = vld [vmem:[#allocation3 + $0x2488] sm:$0xff]
          %v5158 = vld [vmem:[#allocation3 + $0x2490] sm:$0xff]
          %v5159 = vld [vmem:[#allocation3 + $0x2498] sm:$0xff]
          %v5160 = vld [vmem:[#allocation3 + $0x24a0] sm:$0xff]
          %v5161 = vld [vmem:[#allocation3 + $0x24a8] sm:$0xff]
          %v5162 = vld [vmem:[#allocation3 + $0x24b0] sm:$0xff]
          %v5163 = vld [vmem:[#allocation3 + $0x24b8] sm:$0xff]
          %v5164 = vld [vmem:[#allocation3 + $0x24c0] sm:$0xff]
          %v5165 = vld [vmem:[#allocation3 + $0x24c8] sm:$0xff]
          %v5166 = vld [vmem:[#allocation3 + $0x24d0] sm:$0xff]
          %v5167 = vld [vmem:[#allocation3 + $0x24d8] sm:$0xff]
          %v5168 = vld [vmem:[#allocation3 + $0x24e0] sm:$0xff]
          %v5169 = vld [vmem:[#allocation3 + $0x24e8] sm:$0xff]
          %v5170 = vld [vmem:[#allocation3 + $0x24f0] sm:$0xff]
          %v5171 = vld [vmem:[#allocation3 + $0x24f8] sm:$0xff]
          %v5172 = vld [vmem:[#allocation3 + $0x2500] sm:$0xff]
          %v5173 = vld [vmem:[#allocation3 + $0x2508] sm:$0xff]
          %v5174 = vld [vmem:[#allocation3 + $0x2510] sm:$0xff]
          %v5175 = vld [vmem:[#allocation3 + $0x2518] sm:$0xff]
          %v5176 = vld [vmem:[#allocation3 + $0x2520] sm:$0xff]
          %v5177 = vld [vmem:[#allocation3 + $0x2528] sm:$0xff]
          %v5178 = vld [vmem:[#allocation3 + $0x2530] sm:$0xff]
          %v5179 = vld [vmem:[#allocation3 + $0x2538] sm:$0xff]
          %v5180 = vld [vmem:[#allocation3 + $0x2540] sm:$0xff]
          %v5181 = vld [vmem:[#allocation3 + $0x2548] sm:$0xff]
          %v5182 = vld [vmem:[#allocation3 + $0x2550] sm:$0xff]
          %v5183 = vld [vmem:[#allocation3 + $0x2558] sm:$0xff]
          %v5184 = vld [vmem:[#allocation3 + $0x2560] sm:$0xff]
          %v5185 = vld [vmem:[#allocation3 + $0x2568] sm:$0xff]
          %v5186 = vld [vmem:[#allocation3 + $0x2570] sm:$0xff]
          %v5187 = vld [vmem:[#allocation3 + $0x2578] sm:$0xff]
          %v5188 = vld [vmem:[#allocation3 + $0x2580] sm:$0xff]
          %v5189 = vld [vmem:[#allocation3 + $0x2588] sm:$0xff]
          %v5190 = vld [vmem:[#allocation3 + $0x2590] sm:$0xff]
          %v5191 = vld [vmem:[#allocation3 + $0x2598] sm:$0xff]
          %v5192 = vld [vmem:[#allocation3 + $0x25a0] sm:$0xff]
          %v5193 = vld [vmem:[#allocation3 + $0x25a8] sm:$0xff]
          %v5194 = vld [vmem:[#allocation3 + $0x25b0] sm:$0xff]
          %v5195 = vld [vmem:[#allocation3 + $0x25b8] sm:$0xff]
          %v5196 = vld [vmem:[#allocation3 + $0x25c0] sm:$0xff]
          %v5197 = vld [vmem:[#allocation3 + $0x25c8] sm:$0xff]
          %v5198 = vld [vmem:[#allocation3 + $0x25d0] sm:$0xff]
          %v5199 = vld [vmem:[#allocation3 + $0x25d8] sm:$0xff]
          %v5200 = vld [vmem:[#allocation3 + $0x25e0] sm:$0xff]
          %v5201 = vld [vmem:[#allocation3 + $0x25e8] sm:$0xff]
          %v5202 = vld [vmem:[#allocation3 + $0x25f0] sm:$0xff]
          %v5203 = vld [vmem:[#allocation3 + $0x25f8] sm:$0xff]
          %v5204 = vld [vmem:[#allocation3 + $0x2600] sm:$0xff]
          %v5205 = vld [vmem:[#allocation3 + $0x2608] sm:$0xff]
          %v5206 = vld [vmem:[#allocation3 + $0x2610] sm:$0xff]
          %v5207 = vld [vmem:[#allocation3 + $0x2618] sm:$0xff]
          %v5208 = vld [vmem:[#allocation3 + $0x2620] sm:$0xff]
          %v5209 = vld [vmem:[#allocation3 + $0x2628] sm:$0xff]
          %v5210 = vld [vmem:[#allocation3 + $0x2630] sm:$0xff]
          %v5211 = vld [vmem:[#allocation3 + $0x2638] sm:$0xff]
          %v5212 = vld [vmem:[#allocation3 + $0x2640] sm:$0xff]
          %v5213 = vld [vmem:[#allocation3 + $0x2648] sm:$0xff]
          %v5214 = vld [vmem:[#allocation3 + $0x2650] sm:$0xff]
          %v5215 = vld [vmem:[#allocation3 + $0x2658] sm:$0xff]
          %v5216 = vld [vmem:[#allocation3 + $0x2660] sm:$0xff]
          %v5217 = vld [vmem:[#allocation3 + $0x2668] sm:$0xff]
          %v5218 = vld [vmem:[#allocation3 + $0x2670] sm:$0xff]
          %v5219 = vld [vmem:[#allocation3 + $0x2678] sm:$0xff]
          %v5220 = vld [vmem:[#allocation3 + $0x2680] sm:$0xff]
          %v5221 = vld [vmem:[#allocation3 + $0x2688] sm:$0xff]
          %v5222 = vld [vmem:[#allocation3 + $0x2690] sm:$0xff]
          %v5223 = vld [vmem:[#allocation3 + $0x2698] sm:$0xff]
          %v5224 = vld [vmem:[#allocation3 + $0x26a0] sm:$0xff]
          %v5225 = vld [vmem:[#allocation3 + $0x26a8] sm:$0xff]
          %v5226 = vld [vmem:[#allocation3 + $0x26b0] sm:$0xff]
          %v5227 = vld [vmem:[#allocation3 + $0x26b8] sm:$0xff]
          %v5228 = vld [vmem:[#allocation3 + $0x26c0] sm:$0xff]
          %v5229 = vld [vmem:[#allocation3 + $0x26c8] sm:$0xff]
          %v5230 = vld [vmem:[#allocation3 + $0x26d0] sm:$0xff]
          %v5231 = vld [vmem:[#allocation3 + $0x26d8] sm:$0xff]
          %v5232 = vld [vmem:[#allocation3 + $0x26e0] sm:$0xff]
          %v5233 = vld [vmem:[#allocation3 + $0x26e8] sm:$0xff]
          %v5234 = vld [vmem:[#allocation3 + $0x26f0] sm:$0xff]
          %v5235 = vld [vmem:[#allocation3 + $0x26f8] sm:$0xff]
          %v5236 = vld [vmem:[#allocation3 + $0x2700] sm:$0xff]
          %v5237 = vld [vmem:[#allocation3 + $0x2708] sm:$0xff]
          %v5238 = vld [vmem:[#allocation3 + $0x2710] sm:$0xff]
          %v5239 = vld [vmem:[#allocation3 + $0x2718] sm:$0xff]
          %v5240 = vld [vmem:[#allocation3 + $0x2720] sm:$0xff]
          %v5241 = vld [vmem:[#allocation3 + $0x2728] sm:$0xff]
          %v5242 = vld [vmem:[#allocation3 + $0x2730] sm:$0xff]
          %v5243 = vld [vmem:[#allocation3 + $0x2738] sm:$0xff]
          %v5244 = vld [vmem:[#allocation3 + $0x2740] sm:$0xff]
          %v5245 = vld [vmem:[#allocation3 + $0x2748] sm:$0xff]
          %v5246 = vld [vmem:[#allocation3 + $0x2750] sm:$0xff]
          %v5247 = vld [vmem:[#allocation3 + $0x2758] sm:$0xff]
          %v5248 = vld [vmem:[#allocation3 + $0x2760] sm:$0xff]
          %v5249 = vld [vmem:[#allocation3 + $0x2768] sm:$0xff]
          %v5250 = vld [vmem:[#allocation3 + $0x2770] sm:$0xff]
          %v5251 = vld [vmem:[#allocation3 + $0x2778] sm:$0xff]
          %v5252 = vld [vmem:[#allocation3 + $0x2780] sm:$0xff]
          %v5253 = vld [vmem:[#allocation3 + $0x2788] sm:$0xff]
          %v5254 = vld [vmem:[#allocation3 + $0x2790] sm:$0xff]
          %v5255 = vld [vmem:[#allocation3 + $0x2798] sm:$0xff]
          %v5256 = vld [vmem:[#allocation3 + $0x27a0] sm:$0xff]
          %v5257 = vld [vmem:[#allocation3 + $0x27a8] sm:$0xff]
          %v5258 = vld [vmem:[#allocation3 + $0x27b0] sm:$0xff]
          %v5259 = vld [vmem:[#allocation3 + $0x27b8] sm:$0xff]
          %v5260 = vld [vmem:[#allocation3 + $0x27c0] sm:$0xff]
          %v5261 = vld [vmem:[#allocation3 + $0x27c8] sm:$0xff]
          %v5262 = vld [vmem:[#allocation3 + $0x27d0] sm:$0xff]
          %v5263 = vld [vmem:[#allocation3 + $0x27d8] sm:$0xff]
          %v5264 = vld [vmem:[#allocation3 + $0x27e0] sm:$0xff]
          %v5265 = vld [vmem:[#allocation3 + $0x27e8] sm:$0xff]
          %v5266 = vld [vmem:[#allocation3 + $0x27f0] sm:$0xff]
          %v5267 = vld [vmem:[#allocation3 + $0x27f8] sm:$0xff]
          %v5268 = vld [vmem:[#allocation3 + $0x2800] sm:$0xff]
          %v5269 = vld [vmem:[#allocation3 + $0x2808] sm:$0xff]
          %v5270 = vld [vmem:[#allocation3 + $0x2810] sm:$0xff]
          %v5271 = vld [vmem:[#allocation3 + $0x2818] sm:$0xff]
          %v5272 = vld [vmem:[#allocation3 + $0x2820] sm:$0xff]
          %v5273 = vld [vmem:[#allocation3 + $0x2828] sm:$0xff]
          %v5274 = vld [vmem:[#allocation3 + $0x2830] sm:$0xff]
          %v5275 = vld [vmem:[#allocation3 + $0x2838] sm:$0xff]
          %v5276 = vld [vmem:[#allocation3 + $0x2840] sm:$0xff]
          %v5277 = vld [vmem:[#allocation3 + $0x2848] sm:$0xff]
          %v5278 = vld [vmem:[#allocation3 + $0x2850] sm:$0xff]
          %v5279 = vld [vmem:[#allocation3 + $0x2858] sm:$0xff]
          %v5280 = vld [vmem:[#allocation3 + $0x2860] sm:$0xff]
          %v5281 = vld [vmem:[#allocation3 + $0x2868] sm:$0xff]
          %v5282 = vld [vmem:[#allocation3 + $0x2870] sm:$0xff]
          %v5283 = vld [vmem:[#allocation3 + $0x2878] sm:$0xff]
          %v5284 = vld [vmem:[#allocation3 + $0x2880] sm:$0xff]
          %v5285 = vld [vmem:[#allocation3 + $0x2888] sm:$0xff]
          %v5286 = vld [vmem:[#allocation3 + $0x2890] sm:$0xff]
          %v5287 = vld [vmem:[#allocation3 + $0x2898] sm:$0xff]
          %v5288 = vld [vmem:[#allocation3 + $0x28a0] sm:$0xff]
          %v5289 = vld [vmem:[#allocation3 + $0x28a8] sm:$0xff]
          %v5290 = vld [vmem:[#allocation3 + $0x28b0] sm:$0xff]
          %v5291 = vld [vmem:[#allocation3 + $0x28b8] sm:$0xff]
          %v5292 = vld [vmem:[#allocation3 + $0x28c0] sm:$0xff]
          %v5293 = vld [vmem:[#allocation3 + $0x28c8] sm:$0xff]
          %v5294 = vld [vmem:[#allocation3 + $0x28d0] sm:$0xff]
          %v5295 = vld [vmem:[#allocation3 + $0x28d8] sm:$0xff]
          %v5296 = vld [vmem:[#allocation3 + $0x28e0] sm:$0xff]
          %v5297 = vld [vmem:[#allocation3 + $0x28e8] sm:$0xff]
          %v5298 = vld [vmem:[#allocation3 + $0x28f0] sm:$0xff]
          %v5299 = vld [vmem:[#allocation3 + $0x28f8] sm:$0xff]
          %v5300 = vld [vmem:[#allocation3 + $0x2900] sm:$0xff]
          %v5301 = vld [vmem:[#allocation3 + $0x2908] sm:$0xff]
          %v5302 = vld [vmem:[#allocation3 + $0x2910] sm:$0xff]
          %v5303 = vld [vmem:[#allocation3 + $0x2918] sm:$0xff]
          %v5304 = vld [vmem:[#allocation3 + $0x2920] sm:$0xff]
          %v5305 = vld [vmem:[#allocation3 + $0x2928] sm:$0xff]
          %v5306 = vld [vmem:[#allocation3 + $0x2930] sm:$0xff]
          %v5307 = vld [vmem:[#allocation3 + $0x2938] sm:$0xff]
          %v5308 = vld [vmem:[#allocation3 + $0x2940] sm:$0xff]
          %v5309 = vld [vmem:[#allocation3 + $0x2948] sm:$0xff]
          %v5310 = vld [vmem:[#allocation3 + $0x2950] sm:$0xff]
          %v5311 = vld [vmem:[#allocation3 + $0x2958] sm:$0xff]
          %v5312 = vld [vmem:[#allocation3 + $0x2960] sm:$0xff]
          %v5313 = vld [vmem:[#allocation3 + $0x2968] sm:$0xff]
          %v5314 = vld [vmem:[#allocation3 + $0x2970] sm:$0xff]
          %v5315 = vld [vmem:[#allocation3 + $0x2978] sm:$0xff]
          %v5316 = vld [vmem:[#allocation3 + $0x2980] sm:$0xff]
          %v5317 = vld [vmem:[#allocation3 + $0x2988] sm:$0xff]
          %v5318 = vld [vmem:[#allocation3 + $0x2990] sm:$0xff]
          %v5319 = vld [vmem:[#allocation3 + $0x2998] sm:$0xff]
          %v5320 = vld [vmem:[#allocation3 + $0x29a0] sm:$0xff]
          %v5321 = vld [vmem:[#allocation3 + $0x29a8] sm:$0xff]
          %v5322 = vld [vmem:[#allocation3 + $0x29b0] sm:$0xff]
          %v5323 = vld [vmem:[#allocation3 + $0x29b8] sm:$0xff]
          %v5324 = vld [vmem:[#allocation3 + $0x29c0] sm:$0xff]
          %v5325 = vld [vmem:[#allocation3 + $0x29c8] sm:$0xff]
          %v5326 = vld [vmem:[#allocation3 + $0x29d0] sm:$0xff]
          %v5327 = vld [vmem:[#allocation3 + $0x29d8] sm:$0xff]
          %v5328 = vld [vmem:[#allocation3 + $0x29e0] sm:$0xff]
          %v5329 = vld [vmem:[#allocation3 + $0x29e8] sm:$0xff]
          %v5330 = vld [vmem:[#allocation3 + $0x29f0] sm:$0xff]
          %v5331 = vld [vmem:[#allocation3 + $0x29f8] sm:$0xff]
          %v5332 = vld [vmem:[#allocation3 + $0x2a00] sm:$0xff]
          %v5333 = vld [vmem:[#allocation3 + $0x2a08] sm:$0xff]
          %v5334 = vld [vmem:[#allocation3 + $0x2a10] sm:$0xff]
          %v5335 = vld [vmem:[#allocation3 + $0x2a18] sm:$0xff]
          %v5336 = vld [vmem:[#allocation3 + $0x2a20] sm:$0xff]
          %v5337 = vld [vmem:[#allocation3 + $0x2a28] sm:$0xff]
          %v5338 = vld [vmem:[#allocation3 + $0x2a30] sm:$0xff]
          %v5339 = vld [vmem:[#allocation3 + $0x2a38] sm:$0xff]
          %v5340 = vld [vmem:[#allocation3 + $0x2a40] sm:$0xff]
          %v5341 = vld [vmem:[#allocation3 + $0x2a48] sm:$0xff]
          %v5342 = vld [vmem:[#allocation3 + $0x2a50] sm:$0xff]
          %v5343 = vld [vmem:[#allocation3 + $0x2a58] sm:$0xff]
          %v5344 = vld [vmem:[#allocation3 + $0x2a60] sm:$0xff]
          %v5345 = vld [vmem:[#allocation3 + $0x2a68] sm:$0xff]
          %v5346 = vld [vmem:[#allocation3 + $0x2a70] sm:$0xff]
          %v5347 = vld [vmem:[#allocation3 + $0x2a78] sm:$0xff]
          %v5348 = vld [vmem:[#allocation3 + $0x2a80] sm:$0xff]
          %v5349 = vld [vmem:[#allocation3 + $0x2a88] sm:$0xff]
          %v5350 = vld [vmem:[#allocation3 + $0x2a90] sm:$0xff]
          %v5351 = vld [vmem:[#allocation3 + $0x2a98] sm:$0xff]
          %v5352 = vld [vmem:[#allocation3 + $0x2aa0] sm:$0xff]
          %v5353 = vld [vmem:[#allocation3 + $0x2aa8] sm:$0xff]
          %v5354 = vld [vmem:[#allocation3 + $0x2ab0] sm:$0xff]
          %v5355 = vld [vmem:[#allocation3 + $0x2ab8] sm:$0xff]
          %v5356 = vld [vmem:[#allocation3 + $0x2ac0] sm:$0xff]
          %v5357 = vld [vmem:[#allocation3 + $0x2ac8] sm:$0xff]
          %v5358 = vld [vmem:[#allocation3 + $0x2ad0] sm:$0xff]
          %v5359 = vld [vmem:[#allocation3 + $0x2ad8] sm:$0xff]
          %v5360 = vld [vmem:[#allocation3 + $0x2ae0] sm:$0xff]
          %v5361 = vld [vmem:[#allocation3 + $0x2ae8] sm:$0xff]
          %v5362 = vld [vmem:[#allocation3 + $0x2af0] sm:$0xff]
          %v5363 = vld [vmem:[#allocation3 + $0x2af8] sm:$0xff]
          %v5364 = vld [vmem:[#allocation3 + $0x2b00] sm:$0xff]
          %v5365 = vld [vmem:[#allocation3 + $0x2b08] sm:$0xff]
          %v5366 = vld [vmem:[#allocation3 + $0x2b10] sm:$0xff]
          %v5367 = vld [vmem:[#allocation3 + $0x2b18] sm:$0xff]
          %v5368 = vld [vmem:[#allocation3 + $0x2b20] sm:$0xff]
          %v5369 = vld [vmem:[#allocation3 + $0x2b28] sm:$0xff]
          %v5370 = vld [vmem:[#allocation3 + $0x2b30] sm:$0xff]
          %v5371 = vld [vmem:[#allocation3 + $0x2b38] sm:$0xff]
          %v5372 = vld [vmem:[#allocation3 + $0x2b40] sm:$0xff]
          %v5373 = vld [vmem:[#allocation3 + $0x2b48] sm:$0xff]
          %v5374 = vld [vmem:[#allocation3 + $0x2b50] sm:$0xff]
          %v5375 = vld [vmem:[#allocation3 + $0x2b58] sm:$0xff]
          %v5376 = vld [vmem:[#allocation3 + $0x2b60] sm:$0xff]
          %v5377 = vld [vmem:[#allocation3 + $0x2b68] sm:$0xff]
          %v5378 = vld [vmem:[#allocation3 + $0x2b70] sm:$0xff]
          %v5379 = vld [vmem:[#allocation3 + $0x2b78] sm:$0xff]
          %v5380 = vld [vmem:[#allocation3 + $0x2b80] sm:$0xff]
          %v5381 = vld [vmem:[#allocation3 + $0x2b88] sm:$0xff]
          %v5382 = vld [vmem:[#allocation3 + $0x2b90] sm:$0xff]
          %v5383 = vld [vmem:[#allocation3 + $0x2b98] sm:$0xff]
          %v5384 = vld [vmem:[#allocation3 + $0x2ba0] sm:$0xff]
          %v5385 = vld [vmem:[#allocation3 + $0x2ba8] sm:$0xff]
          %v5386 = vld [vmem:[#allocation3 + $0x2bb0] sm:$0xff]
          %v5387 = vld [vmem:[#allocation3 + $0x2bb8] sm:$0xff]
          %v5388 = vld [vmem:[#allocation3 + $0x2bc0] sm:$0xff]
          %v5389 = vld [vmem:[#allocation3 + $0x2bc8] sm:$0xff]
          %v5390 = vld [vmem:[#allocation3 + $0x2bd0] sm:$0xff]
          %v5391 = vld [vmem:[#allocation3 + $0x2bd8] sm:$0xff]
          %v5392 = vld [vmem:[#allocation3 + $0x2be0] sm:$0xff]
          %v5393 = vld [vmem:[#allocation3 + $0x2be8] sm:$0xff]
          %v5394 = vld [vmem:[#allocation3 + $0x2bf0] sm:$0xff]
          %v5395 = vld [vmem:[#allocation3 + $0x2bf8] sm:$0xff]
          %v5396 = vld [vmem:[#allocation3 + $0x2c00] sm:$0xff]
          %v5397 = vld [vmem:[#allocation3 + $0x2c08] sm:$0xff]
          %v5398 = vld [vmem:[#allocation3 + $0x2c10] sm:$0xff]
          %v5399 = vld [vmem:[#allocation3 + $0x2c18] sm:$0xff]
          %v5400 = vld [vmem:[#allocation3 + $0x2c20] sm:$0xff]
          %v5401 = vld [vmem:[#allocation3 + $0x2c28] sm:$0xff]
          %v5402 = vld [vmem:[#allocation3 + $0x2c30] sm:$0xff]
          %v5403 = vld [vmem:[#allocation3 + $0x2c38] sm:$0xff]
          %v5404 = vld [vmem:[#allocation3 + $0x2c40] sm:$0xff]
          %v5405 = vld [vmem:[#allocation3 + $0x2c48] sm:$0xff]
          %v5406 = vld [vmem:[#allocation3 + $0x2c50] sm:$0xff]
          %v5407 = vld [vmem:[#allocation3 + $0x2c58] sm:$0xff]
          %v5408 = vld [vmem:[#allocation3 + $0x2c60] sm:$0xff]
          %v5409 = vld [vmem:[#allocation3 + $0x2c68] sm:$0xff]
          %v5410 = vld [vmem:[#allocation3 + $0x2c70] sm:$0xff]
          %v5411 = vld [vmem:[#allocation3 + $0x2c78] sm:$0xff]
          %v5412 = vld [vmem:[#allocation3 + $0x2c80] sm:$0xff]
          %v5413 = vld [vmem:[#allocation3 + $0x2c88] sm:$0xff]
          %v5414 = vld [vmem:[#allocation3 + $0x2c90] sm:$0xff]
          %v5415 = vld [vmem:[#allocation3 + $0x2c98] sm:$0xff]
          %v5416 = vld [vmem:[#allocation3 + $0x2ca0] sm:$0xff]
          %v5417 = vld [vmem:[#allocation3 + $0x2ca8] sm:$0xff]
          %v5418 = vld [vmem:[#allocation3 + $0x2cb0] sm:$0xff]
          %v5419 = vld [vmem:[#allocation3 + $0x2cb8] sm:$0xff]
          %v5420 = vld [vmem:[#allocation3 + $0x2cc0] sm:$0xff]
          %v5421 = vld [vmem:[#allocation3 + $0x2cc8] sm:$0xff]
          %v5422 = vld [vmem:[#allocation3 + $0x2cd0] sm:$0xff]
          %v5423 = vld [vmem:[#allocation3 + $0x2cd8] sm:$0xff]
          %v5424 = vld [vmem:[#allocation3 + $0x2ce0] sm:$0xff]
          %v5425 = vld [vmem:[#allocation3 + $0x2ce8] sm:$0xff]
          %v5426 = vld [vmem:[#allocation3 + $0x2cf0] sm:$0xff]
          %v5427 = vld [vmem:[#allocation3 + $0x2cf8] sm:$0xff]
          %v5428 = vld [vmem:[#allocation3 + $0x2d00] sm:$0xff]
          %v5429 = vld [vmem:[#allocation3 + $0x2d08] sm:$0xff]
          %v5430 = vld [vmem:[#allocation3 + $0x2d10] sm:$0xff]
          %v5431 = vld [vmem:[#allocation3 + $0x2d18] sm:$0xff]
          %v5432 = vld [vmem:[#allocation3 + $0x2d20] sm:$0xff]
          %v5433 = vld [vmem:[#allocation3 + $0x2d28] sm:$0xff]
          %v5434 = vld [vmem:[#allocation3 + $0x2d30] sm:$0xff]
          %v5435 = vld [vmem:[#allocation3 + $0x2d38] sm:$0xff]
          %v5436 = vld [vmem:[#allocation3 + $0x2d40] sm:$0xff]
          %v5437 = vld [vmem:[#allocation3 + $0x2d48] sm:$0xff]
          %v5438 = vld [vmem:[#allocation3 + $0x2d50] sm:$0xff]
          %v5439 = vld [vmem:[#allocation3 + $0x2d58] sm:$0xff]
          %v5440 = vld [vmem:[#allocation3 + $0x2d60] sm:$0xff]
          %v5441 = vld [vmem:[#allocation3 + $0x2d68] sm:$0xff]
          %v5442 = vld [vmem:[#allocation3 + $0x2d70] sm:$0xff]
          %v5443 = vld [vmem:[#allocation3 + $0x2d78] sm:$0xff]
          %v5444 = vld [vmem:[#allocation3 + $0x2d80] sm:$0xff]
          %v5445 = vld [vmem:[#allocation3 + $0x2d88] sm:$0xff]
          %v5446 = vld [vmem:[#allocation3 + $0x2d90] sm:$0xff]
          %v5447 = vld [vmem:[#allocation3 + $0x2d98] sm:$0xff]
          %v5448 = vld [vmem:[#allocation3 + $0x2da0] sm:$0xff]
          %v5449 = vld [vmem:[#allocation3 + $0x2da8] sm:$0xff]
          %v5450 = vld [vmem:[#allocation3 + $0x2db0] sm:$0xff]
          %v5451 = vld [vmem:[#allocation3 + $0x2db8] sm:$0xff]
          %v5452 = vld [vmem:[#allocation3 + $0x2dc0] sm:$0xff]
          %v5453 = vld [vmem:[#allocation3 + $0x2dc8] sm:$0xff]
          %v5454 = vld [vmem:[#allocation3 + $0x2dd0] sm:$0xff]
          %v5455 = vld [vmem:[#allocation3 + $0x2dd8] sm:$0xff]
          %v5456 = vld [vmem:[#allocation3 + $0x2de0] sm:$0xff]
          %v5457 = vld [vmem:[#allocation3 + $0x2de8] sm:$0xff]
          %v5458 = vld [vmem:[#allocation3 + $0x2df0] sm:$0xff]
          %v5459 = vld [vmem:[#allocation3 + $0x2df8] sm:$0xff]
          %v5460 = vld [vmem:[#allocation3 + $0x2e00] sm:$0xff]
          %v5461 = vld [vmem:[#allocation3 + $0x2e08] sm:$0xff]
          %v5462 = vld [vmem:[#allocation3 + $0x2e10] sm:$0xff]
          %v5463 = vld [vmem:[#allocation3 + $0x2e18] sm:$0xff]
          %v5464 = vld [vmem:[#allocation3 + $0x2e20] sm:$0xff]
          %v5465 = vld [vmem:[#allocation3 + $0x2e28] sm:$0xff]
          %v5466 = vld [vmem:[#allocation3 + $0x2e30] sm:$0xff]
          %v5467 = vld [vmem:[#allocation3 + $0x2e38] sm:$0xff]
          %v5468 = vld [vmem:[#allocation3 + $0x2e40] sm:$0xff]
          %v5469 = vld [vmem:[#allocation3 + $0x2e48] sm:$0xff]
          %v5470 = vld [vmem:[#allocation3 + $0x2e50] sm:$0xff]
          %v5471 = vld [vmem:[#allocation3 + $0x2e58] sm:$0xff]
          %v5472 = vld [vmem:[#allocation3 + $0x2e60] sm:$0xff]
          %v5473 = vld [vmem:[#allocation3 + $0x2e68] sm:$0xff]
          %v5474 = vld [vmem:[#allocation3 + $0x2e70] sm:$0xff]
          %v5475 = vld [vmem:[#allocation3 + $0x2e78] sm:$0xff]
          %v5476 = vld [vmem:[#allocation3 + $0x2e80] sm:$0xff]
          %v5477 = vld [vmem:[#allocation3 + $0x2e88] sm:$0xff]
          %v5478 = vld [vmem:[#allocation3 + $0x2e90] sm:$0xff]
          %v5479 = vld [vmem:[#allocation3 + $0x2e98] sm:$0xff]
          %v5480 = vld [vmem:[#allocation3 + $0x2ea0] sm:$0xff]
          %v5481 = vld [vmem:[#allocation3 + $0x2ea8] sm:$0xff]
          %v5482 = vld [vmem:[#allocation3 + $0x2eb0] sm:$0xff]
          %v5483 = vld [vmem:[#allocation3 + $0x2eb8] sm:$0xff]
          %v5484 = vld [vmem:[#allocation3 + $0x2ec0] sm:$0xff]
          %v5485 = vld [vmem:[#allocation3 + $0x2ec8] sm:$0xff]
          %v5486 = vld [vmem:[#allocation3 + $0x2ed0] sm:$0xff]
          %v5487 = vld [vmem:[#allocation3 + $0x2ed8] sm:$0xff]
          %v5488 = vld [vmem:[#allocation3 + $0x2ee0] sm:$0xff]
          %v5489 = vld [vmem:[#allocation3 + $0x2ee8] sm:$0xff]
          %v5490 = vld [vmem:[#allocation3 + $0x2ef0] sm:$0xff]
          %v5491 = vld [vmem:[#allocation3 + $0x2ef8] sm:$0xff]
          %v5492 = vld [vmem:[#allocation3 + $0x2f00] sm:$0xff]
          %v5493 = vld [vmem:[#allocation3 + $0x2f08] sm:$0xff]
          %v5494 = vld [vmem:[#allocation3 + $0x2f10] sm:$0xff]
          %v5495 = vld [vmem:[#allocation3 + $0x2f18] sm:$0xff]
          %v5496 = vld [vmem:[#allocation3 + $0x2f20] sm:$0xff]
          %v5497 = vld [vmem:[#allocation3 + $0x2f28] sm:$0xff]
          %v5498 = vld [vmem:[#allocation3 + $0x2f30] sm:$0xff]
          %v5499 = vld [vmem:[#allocation3 + $0x2f38] sm:$0xff]
          %v5500 = vld [vmem:[#allocation3 + $0x2f40] sm:$0xff]
          %v5501 = vld [vmem:[#allocation3 + $0x2f48] sm:$0xff]
          %v5502 = vld [vmem:[#allocation3 + $0x2f50] sm:$0xff]
          %v5503 = vld [vmem:[#allocation3 + $0x2f58] sm:$0xff]
          %v5504 = vld [vmem:[#allocation3 + $0x2f60] sm:$0xff]
          %v5505 = vld [vmem:[#allocation3 + $0x2f68] sm:$0xff]
          %v5506 = vld [vmem:[#allocation3 + $0x2f70] sm:$0xff]
          %v5507 = vld [vmem:[#allocation3 + $0x2f78] sm:$0xff]
          %v5508 = vld [vmem:[#allocation3 + $0x2f80] sm:$0xff]
          %v5509 = vld [vmem:[#allocation3 + $0x2f88] sm:$0xff]
          %v5510 = vld [vmem:[#allocation3 + $0x2f90] sm:$0xff]
          %v5511 = vld [vmem:[#allocation3 + $0x2f98] sm:$0xff]
          %v5512 = vld [vmem:[#allocation3 + $0x2fa0] sm:$0xff]
          %v5513 = vld [vmem:[#allocation3 + $0x2fa8] sm:$0xff]
          %v5514 = vld [vmem:[#allocation3 + $0x2fb0] sm:$0xff]
          %v5515 = vld [vmem:[#allocation3 + $0x2fb8] sm:$0xff]
          %v5516 = vld [vmem:[#allocation3 + $0x2fc0] sm:$0xff]
          %v5517 = vld [vmem:[#allocation3 + $0x2fc8] sm:$0xff]
          %v5518 = vld [vmem:[#allocation3 + $0x2fd0] sm:$0xff]
          %v5519 = vld [vmem:[#allocation3 + $0x2fd8] sm:$0xff]
          %v5520 = vld [vmem:[#allocation3 + $0x2fe0] sm:$0xff]
          %v5521 = vld [vmem:[#allocation3 + $0x2fe8] sm:$0xff]
          %v5522 = vld [vmem:[#allocation3 + $0x2ff0] sm:$0xff]
          %v5523 = vld [vmem:[#allocation3 + $0x2ff8] sm:$0xff]
          %v5524 = vld [vmem:[#allocation21] sm:$0xff]
          %v5525 = vld [vmem:[#allocation21 + $0x8] sm:$0xff]
          %v5526 = vld [vmem:[#allocation21 + $0x10] sm:$0xff]
          %v5530 = vlaneseq
          %v5531 = vshrl.u32 %v5530, 7
          %v5532 = vsub.s32 0, %v5531
          %v5533 = vrot.slane %v5524, %v5532
          %v5534 = vlaneseq
          %v5535 = vshrl.u32 %v5534, 7
          %v5536 = vsub.s32 1, %v5535
          %v5537 = vrot.slane %v5524, %v5536
          %v5538 = vlaneseq
          %v5539 = vshrl.u32 %v5538, 7
          %v5540 = vsub.s32 2, %v5539
          %v5541 = vrot.slane %v5524, %v5540
          %v5542 = vlaneseq
          %v5543 = vshrl.u32 %v5542, 7
          %v5544 = vsub.s32 3, %v5543
          %v5545 = vrot.slane %v5524, %v5544
          %v5546 = vlaneseq
          %v5547 = vshrl.u32 %v5546, 7
          %v5548 = vsub.s32 4, %v5547
          %v5549 = vrot.slane %v5524, %v5548
          %v5550 = vlaneseq
          %v5551 = vshrl.u32 %v5550, 7
          %v5552 = vsub.s32 5, %v5551
          %v5553 = vrot.slane %v5524, %v5552
          %v5554 = vlaneseq
          %v5555 = vshrl.u32 %v5554, 7
          %v5556 = vsub.s32 6, %v5555
          %v5557 = vrot.slane %v5524, %v5556
          %v5558 = vlaneseq
          %v5559 = vshrl.u32 %v5558, 7
          %v5560 = vsub.s32 7, %v5559
          %v5561 = vrot.slane %v5524, %v5560
          %v5562 = vlaneseq
          %v5563 = vshrl.u32 %v5562, 7
          %v5564 = vsub.s32 0, %v5563
          %v5565 = vrot.slane %v5525, %v5564
          %v5566 = vlaneseq
          %v5567 = vshrl.u32 %v5566, 7
          %v5568 = vsub.s32 1, %v5567
          %v5569 = vrot.slane %v5525, %v5568
          %v5570 = vlaneseq
          %v5571 = vshrl.u32 %v5570, 7
          %v5572 = vsub.s32 2, %v5571
          %v5573 = vrot.slane %v5525, %v5572
          %v5574 = vlaneseq
          %v5575 = vshrl.u32 %v5574, 7
          %v5576 = vsub.s32 3, %v5575
          %v5577 = vrot.slane %v5525, %v5576
          %v5578 = vlaneseq
          %v5579 = vshrl.u32 %v5578, 7
          %v5580 = vsub.s32 4, %v5579
          %v5581 = vrot.slane %v5525, %v5580
          %v5582 = vlaneseq
          %v5583 = vshrl.u32 %v5582, 7
          %v5584 = vsub.s32 5, %v5583
          %v5585 = vrot.slane %v5525, %v5584
          %v5586 = vlaneseq
          %v5587 = vshrl.u32 %v5586, 7
          %v5588 = vsub.s32 6, %v5587
          %v5589 = vrot.slane %v5525, %v5588
          %v5590 = vlaneseq
          %v5591 = vshrl.u32 %v5590, 7
          %v5592 = vsub.s32 7, %v5591
          %v5593 = vrot.slane %v5525, %v5592
          %v5594 = vlaneseq
          %v5595 = vshrl.u32 %v5594, 7
          %v5596 = vsub.s32 0, %v5595
          %v5597 = vrot.slane %v5526, %v5596
          %v5598 = vlaneseq
          %v5599 = vshrl.u32 %v5598, 7
          %v5600 = vsub.s32 1, %v5599
          %v5601 = vrot.slane %v5526, %v5600
          %v5602 = vlaneseq
          %v5603 = vshrl.u32 %v5602, 7
          %v5604 = vsub.s32 2, %v5603
          %v5605 = vrot.slane %v5526, %v5604
          %v5606 = vlaneseq
          %v5607 = vshrl.u32 %v5606, 7
          %v5608 = vsub.s32 3, %v5607
          %v5609 = vrot.slane %v5526, %v5608
          %v5610 = vlaneseq
          %v5611 = vshrl.u32 %v5610, 7
          %v5612 = vsub.s32 4, %v5611
          %v5613 = vrot.slane %v5526, %v5612
          %v5614 = vlaneseq
          %v5615 = vshrl.u32 %v5614, 7
          %v5616 = vsub.s32 5, %v5615
          %v5617 = vrot.slane %v5526, %v5616
          %v5618 = vlaneseq
          %v5619 = vshrl.u32 %v5618, 7
          %v5620 = vsub.s32 6, %v5619
          %v5621 = vrot.slane %v5526, %v5620
          %v5622 = vlaneseq
          %v5623 = vshrl.u32 %v5622, 7
          %v5624 = vsub.s32 7, %v5623
          %v5625 = vrot.slane %v5526, %v5624
          %5650 = vmatprep.subr.bf16.mxu0 %v3989
          %5651 = vmatpush1.bf16.msra.mxu0 %v3988
          %5652 = vmatprep.subr.bf16.mxu0 %v4013
          %5653 = vmatpush1.bf16.msra.mxu0 %v4012
          %5654 = vmatprep.subr.bf16.mxu0 %v4037
          %5655 = vmatpush1.bf16.msra.mxu0 %v4036
          %5656 = vmatprep.subr.bf16.mxu0 %v4061
          %5657 = vmatpush1.bf16.msra.mxu0 %v4060
          %5658 = vmatprep.subr.bf16.mxu0 %v4085
          %5659 = vmatpush1.bf16.msra.mxu0 %v4084
          %5660 = vmatprep.subr.bf16.mxu0 %v4109
          %5661 = vmatpush1.bf16.msra.mxu0 %v4108
          %5662 = vmatprep.subr.bf16.mxu0 %v4133
          %5663 = vmatpush1.bf16.msra.mxu0 %v4132
          %5664 = vmatprep.subr.bf16.mxu0 %v4157
          %5665 = vmatpush1.bf16.msra.mxu0 %v4156
          %5666 = vmatprep.subr.bf16.mxu0 %v4181
          %5667 = vmatpush1.bf16.msra.mxu0 %v4180
          %5668 = vmatprep.subr.bf16.mxu0 %v4205
          %5669 = vmatpush1.bf16.msra.mxu0 %v4204
          %5670 = vmatprep.subr.bf16.mxu0 %v4229
          %5671 = vmatpush1.bf16.msra.mxu0 %v4228
          %5672 = vmatprep.subr.bf16.mxu0 %v4253
          %5673 = vmatpush1.bf16.msra.mxu0 %v4252
          %5674 = vmatprep.subr.bf16.mxu0 %v4277
          %5675 = vmatpush1.bf16.msra.mxu0 %v4276
          %5676 = vmatprep.subr.bf16.mxu0 %v4301
          %5677 = vmatpush1.bf16.msra.mxu0 %v4300
          %5678 = vmatprep.subr.bf16.mxu0 %v4325
          %5679 = vmatpush1.bf16.msra.mxu0 %v4324
          %5680 = vmatprep.subr.bf16.mxu0 %v4349
          %5681 = vmatpush1.bf16.msra.mxu0 %v4348
          %5682 = vmatprep.mubr.bf16.mxu0 %v3981
          %5683 = vmatmul.mubr.bf16.gmra.mrb[0].mxu0 %v3980
          %v5684 = vpop.f32.mrb[0].mxu0
          %v5685 = vadd.f32 %v5533, %v5684
          %v5686 = vpop.f32.mrb[0].mxu0
          %v5687 = vadd.f32 %v5537, %v5686
          %v5688 = vpop.f32.mrb[0].mxu0
          %v5689 = vpop.f32.mrb[0].mxu0
          %5690 = vdwg.mxu0
          %5691 = vmatprep.subr.bf16.mxu0 %v4373
          %5692 = vmatpush1.bf16.msra.mxu0 %v4372
          %5693 = vmatprep.subr.bf16.mxu0 %v4397
          %5694 = vmatpush1.bf16.msra.mxu0 %v4396
          %5695 = vmatprep.subr.bf16.mxu0 %v4421
          %5696 = vmatpush1.bf16.msra.mxu0 %v4420
          %5697 = vmatprep.subr.bf16.mxu0 %v4445
          %5698 = vmatpush1.bf16.msra.mxu0 %v4444
          %5699 = vmatprep.subr.bf16.mxu0 %v4469
          %5700 = vmatpush1.bf16.msra.mxu0 %v4468
          %5701 = vmatprep.subr.bf16.mxu0 %v4493
          %5702 = vmatpush1.bf16.msra.mxu0 %v4492
          %5703 = vmatprep.subr.bf16.mxu0 %v4517
          %5704 = vmatpush1.bf16.msra.mxu0 %v4516
          %5705 = vmatprep.subr.bf16.mxu0 %v4541
          %5706 = vmatpush1.bf16.msra.mxu0 %v4540
          %5707 = vmatprep.subr.bf16.mxu0 %v4565
          %5708 = vmatpush1.bf16.msra.mxu0 %v4564
          %5709 = vmatprep.subr.bf16.mxu0 %v4589
          %5710 = vmatpush1.bf16.msra.mxu0 %v4588
          %5711 = vmatprep.subr.bf16.mxu0 %v4613
          %5712 = vmatpush1.bf16.msra.mxu0 %v4612
          %5713 = vmatprep.subr.bf16.mxu0 %v4637
          %5714 = vmatpush1.bf16.msra.mxu0 %v4636
          %5715 = vmatprep.subr.bf16.mxu0 %v4661
          %5716 = vmatpush1.bf16.msra.mxu0 %v4660
          %5717 = vmatprep.subr.bf16.mxu0 %v4685
          %5718 = vmatpush1.bf16.msra.mxu0 %v4684
          %5719 = vmatprep.subr.bf16.mxu0 %v4709
          %5720 = vmatpush1.bf16.msra.mxu0 %v4708
          %5721 = vmatprep.subr.bf16.mxu0 %v4733
          %5722 = vmatpush1.bf16.msra.mxu0 %v4732
          %5723 = vmatprep.mubr.bf16.mxu0 %v3983
          %5724 = vmatmul.mubr.bf16.gmra.mrb[0].mxu0 %v3982
          %v5725 = vpop.f32.mrb[0].mxu0
          %v5726 = vadd.f32 %v5685, %v5725
          %v5727 = vpop.f32.mrb[0].mxu0
          %v5728 = vadd.f32 %v5687, %v5727
          %v5729 = vpop.f32.mrb[0].mxu0
          %v5730 = vpop.f32.mrb[0].mxu0
          %5731 = vdwg.mxu0
          %5732 = vmatprep.subr.bf16.mxu0 %v4757
          %5733 = vmatpush1.bf16.msra.mxu0 %v4756
          %5734 = vmatprep.subr.bf16.mxu0 %v4781
          %5735 = vmatpush1.bf16.msra.mxu0 %v4780
          %5736 = vmatprep.subr.bf16.mxu0 %v4805
          %5737 = vmatpush1.bf16.msra.mxu0 %v4804
          %5738 = vmatprep.subr.bf16.mxu0 %v4829
          %5739 = vmatpush1.bf16.msra.mxu0 %v4828
          %5740 = vmatprep.subr.bf16.mxu0 %v4853
          %5741 = vmatpush1.bf16.msra.mxu0 %v4852
          %5742 = vmatprep.subr.bf16.mxu0 %v4877
          %5743 = vmatpush1.bf16.msra.mxu0 %v4876
          %5744 = vmatprep.subr.bf16.mxu0 %v4901
          %5745 = vmatpush1.bf16.msra.mxu0 %v4900
          %5746 = vmatprep.subr.bf16.mxu0 %v4925
          %5747 = vmatpush1.bf16.msra.mxu0 %v4924
          %5748 = vmatprep.subr.bf16.mxu0 %v4949
          %5749 = vmatpush1.bf16.msra.mxu0 %v4948
          %5750 = vmatprep.subr.bf16.mxu0 %v4973
          %5751 = vmatpush1.bf16.msra.mxu0 %v4972
          %5752 = vmatprep.subr.bf16.mxu0 %v4997
          %5753 = vmatpush1.bf16.msra.mxu0 %v4996
          %5754 = vmatprep.subr.bf16.mxu0 %v5021
          %5755 = vmatpush1.bf16.msra.mxu0 %v5020
          %5756 = vmatprep.subr.bf16.mxu0 %v5045
          %5757 = vmatpush1.bf16.msra.mxu0 %v5044
          %5758 = vmatprep.subr.bf16.mxu0 %v5069
          %5759 = vmatpush1.bf16.msra.mxu0 %v5068
          %5760 = vmatprep.subr.bf16.mxu0 %v5093
          %5761 = vmatpush1.bf16.msra.mxu0 %v5092
          %5762 = vmatprep.subr.bf16.mxu0 %v5117
          %5763 = vmatpush1.bf16.msra.mxu0 %v5116
          %5764 = vmatprep.mubr.bf16.mxu0 %v3985
          %5765 = vmatmul.mubr.bf16.gmra.mrb[0].mxu0 %v3984
          %v5766 = vpop.f32.mrb[0].mxu0
          %v5767 = vadd.f32 %v5726, %v5766
          %v5768 = vpop.f32.mrb[0].mxu0
          %v5769 = vadd.f32 %v5728, %v5768
          %v5770 = vpop.f32.mrb[0].mxu0
          %v5771 = vpop.f32.mrb[0].mxu0
          %5772 = vdwg.mxu0
          %5773 = vmatprep.subr.bf16.mxu0 %v5141
          %5774 = vmatpush1.bf16.msra.mxu0 %v5140
          %5775 = vmatprep.subr.bf16.mxu0 %v5165
          %5776 = vmatpush1.bf16.msra.mxu0 %v5164
          %5777 = vmatprep.subr.bf16.mxu0 %v5189
          %5778 = vmatpush1.bf16.msra.mxu0 %v5188
          %5779 = vmatprep.subr.bf16.mxu0 %v5213
          %5780 = vmatpush1.bf16.msra.mxu0 %v5212
          %5781 = vmatprep.subr.bf16.mxu0 %v5237
          %5782 = vmatpush1.bf16.msra.mxu0 %v5236
          %5783 = vmatprep.subr.bf16.mxu0 %v5261
          %5784 = vmatpush1.bf16.msra.mxu0 %v5260
          %5785 = vmatprep.subr.bf16.mxu0 %v5285
          %5786 = vmatpush1.bf16.msra.mxu0 %v5284
          %5787 = vmatprep.subr.bf16.mxu0 %v5309
          %5788 = vmatpush1.bf16.msra.mxu0 %v5308
          %5789 = vmatprep.subr.bf16.mxu0 %v5333
          %5790 = vmatpush1.bf16.msra.mxu0 %v5332
          %5791 = vmatprep.subr.bf16.mxu0 %v5357
          %5792 = vmatpush1.bf16.msra.mxu0 %v5356
          %5793 = vmatprep.subr.bf16.mxu0 %v5381
          %5794 = vmatpush1.bf16.msra.mxu0 %v5380
          %5795 = vmatprep.subr.bf16.mxu0 %v5405
          %5796 = vmatpush1.bf16.msra.mxu0 %v5404
          %5797 = vmatprep.subr.bf16.mxu0 %v5429
          %5798 = vmatpush1.bf16.msra.mxu0 %v5428
          %5799 = vmatprep.subr.bf16.mxu0 %v5453
          %5800 = vmatpush1.bf16.msra.mxu0 %v5452
          %5801 = vmatprep.subr.bf16.mxu0 %v5477
          %5802 = vmatpush1.bf16.msra.mxu0 %v5476
          %5803 = vmatprep.subr.bf16.mxu0 %v5501
          %5804 = vmatpush1.bf16.msra.mxu0 %v5500
          %5805 = vmatprep.mubr.bf16.mxu0 %v3987
          %5806 = vmatmul.mubr.bf16.gmra.mrb[0].mxu0 %v3986
          %v5807 = vpop.f32.mrb[0].mxu0
          %v5808 = vadd.f32 %v5767, %v5807
          %v5809 = vpop.f32.mrb[0].mxu0
          %v5810 = vadd.f32 %v5769, %v5809
          %v5811 = vpop.f32.mrb[0].mxu0
          %v5812 = vpop.f32.mrb[0].mxu0
          %5813 = vdwg.mxu0
          %5814 = vmatprep.subr.bf16.mxu0 %v3991
          %5815 = vmatpush1.bf16.msra.mxu0 %v3990
          %5816 = vmatprep.subr.bf16.mxu0 %v4015
          %5817 = vmatpush1.bf16.msra.mxu0 %v4014
          %5818 = vmatprep.subr.bf16.mxu0 %v4039
          %5819 = vmatpush1.bf16.msra.mxu0 %v4038
          %5820 = vmatprep.subr.bf16.mxu0 %v4063
          %5821 = vmatpush1.bf16.msra.mxu0 %v4062
          %5822 = vmatprep.subr.bf16.mxu0 %v4087
          %5823 = vmatpush1.bf16.msra.mxu0 %v4086
          %5824 = vmatprep.subr.bf16.mxu0 %v4111
          %5825 = vmatpush1.bf16.msra.mxu0 %v4110
          %5826 = vmatprep.subr.bf16.mxu0 %v4135
          %5827 = vmatpush1.bf16.msra.mxu0 %v4134
          %5828 = vmatprep.subr.bf16.mxu0 %v4159
          %5829 = vmatpush1.bf16.msra.mxu0 %v4158
          %5830 = vmatprep.subr.bf16.mxu0 %v4183
          %5831 = vmatpush1.bf16.msra.mxu0 %v4182
          %5832 = vmatprep.subr.bf16.mxu0 %v4207
          %5833 = vmatpush1.bf16.msra.mxu0 %v4206
          %5834 = vmatprep.subr.bf16.mxu0 %v4231
          %5835 = vmatpush1.bf16.msra.mxu0 %v4230
          %5836 = vmatprep.subr.bf16.mxu0 %v4255
          %5837 = vmatpush1.bf16.msra.mxu0 %v4254
          %5838 = vmatprep.subr.bf16.mxu0 %v4279
          %5839 = vmatpush1.bf16.msra.mxu0 %v4278
          %5840 = vmatprep.subr.bf16.mxu0 %v4303
          %5841 = vmatpush1.bf16.msra.mxu0 %v4302
          %5842 = vmatprep.subr.bf16.mxu0 %v4327
          %5843 = vmatpush1.bf16.msra.mxu0 %v4326
          %5844 = vmatprep.subr.bf16.mxu0 %v4351
          %5845 = vmatpush1.bf16.msra.mxu0 %v4350
          %5846 = vmatprep.mubr.bf16.mxu0 %v3981
          %5847 = vmatmul.mubr.bf16.gmra.mrb[0].mxu0 %v3980
          %v5848 = vpop.f32.mrb[0].mxu0
          %v5849 = vadd.f32 %v5541, %v5848
          %v5850 = vpop.f32.mrb[0].mxu0
          %v5851 = vadd.f32 %v5545, %v5850
          %v5852 = vpop.f32.mrb[0].mxu0
          %v5853 = vpop.f32.mrb[0].mxu0
          %5854 = vdwg.mxu0
          %5855 = vmatprep.subr.bf16.mxu0 %v4375
          %5856 = vmatpush1.bf16.msra.mxu0 %v4374
          %5857 = vmatprep.subr.bf16.mxu0 %v4399
          %5858 = vmatpush1.bf16.msra.mxu0 %v4398
          %5859 = vmatprep.subr.bf16.mxu0 %v4423
          %5860 = vmatpush1.bf16.msra.mxu0 %v4422
          %5861 = vmatprep.subr.bf16.mxu0 %v4447
          %5862 = vmatpush1.bf16.msra.mxu0 %v4446
          %5863 = vmatprep.subr.bf16.mxu0 %v4471
          %5864 = vmatpush1.bf16.msra.mxu0 %v4470
          %5865 = vmatprep.subr.bf16.mxu0 %v4495
          %5866 = vmatpush1.bf16.msra.mxu0 %v4494
          %5867 = vmatprep.subr.bf16.mxu0 %v4519
          %5868 = vmatpush1.bf16.msra.mxu0 %v4518
          %5869 = vmatprep.subr.bf16.mxu0 %v4543
          %5870 = vmatpush1.bf16.msra.mxu0 %v4542
          %5871 = vmatprep.subr.bf16.mxu0 %v4567
          %5872 = vmatpush1.bf16.msra.mxu0 %v4566
          %5873 = vmatprep.subr.bf16.mxu0 %v4591
          %5874 = vmatpush1.bf16.msra.mxu0 %v4590
          %5875 = vmatprep.subr.bf16.mxu0 %v4615
          %5876 = vmatpush1.bf16.msra.mxu0 %v4614
          %5877 = vmatprep.subr.bf16.mxu0 %v4639
          %5878 = vmatpush1.bf16.msra.mxu0 %v4638
          %5879 = vmatprep.subr.bf16.mxu0 %v4663
          %5880 = vmatpush1.bf16.msra.mxu0 %v4662
          %5881 = vmatprep.subr.bf16.mxu0 %v4687
          %5882 = vmatpush1.bf16.msra.mxu0 %v4686
          %5883 = vmatprep.subr.bf16.mxu0 %v4711
          %5884 = vmatpush1.bf16.msra.mxu0 %v4710
          %5885 = vmatprep.subr.bf16.mxu0 %v4735
          %5886 = vmatpush1.bf16.msra.mxu0 %v4734
          %5887 = vmatprep.mubr.bf16.mxu0 %v3983
          %5888 = vmatmul.mubr.bf16.gmra.mrb[0].mxu0 %v3982
          %v5889 = vpop.f32.mrb[0].mxu0
          %v5890 = vadd.f32 %v5849, %v5889
          %v5891 = vpop.f32.mrb[0].mxu0
          %v5892 = vadd.f32 %v5851, %v5891
          %v5893 = vpop.f32.mrb[0].mxu0
          %v5894 = vpop.f32.mrb[0].mxu0
          %5895 = vdwg.mxu0
          %5896 = vmatprep.subr.bf16.mxu0 %v4759
          %5897 = vmatpush1.bf16.msra.mxu0 %v4758
          %5898 = vmatprep.subr.bf16.mxu0 %v4783
          %5899 = vmatpush1.bf16.msra.mxu0 %v4782
          %5900 = vmatprep.subr.bf16.mxu0 %v4807
          %5901 = vmatpush1.bf16.msra.mxu0 %v4806
          %5902 = vmatprep.subr.bf16.mxu0 %v4831
          %5903 = vmatpush1.bf16.msra.mxu0 %v4830
          %5904 = vmatprep.subr.bf16.mxu0 %v4855
          %5905 = vmatpush1.bf16.msra.mxu0 %v4854
          %5906 = vmatprep.subr.bf16.mxu0 %v4879
          %5907 = vmatpush1.bf16.msra.mxu0 %v4878
          %5908 = vmatprep.subr.bf16.mxu0 %v4903
          %5909 = vmatpush1.bf16.msra.mxu0 %v4902
          %5910 = vmatprep.subr.bf16.mxu0 %v4927
          %5911 = vmatpush1.bf16.msra.mxu0 %v4926
          %5912 = vmatprep.subr.bf16.mxu0 %v4951
          %5913 = vmatpush1.bf16.msra.mxu0 %v4950
          %5914 = vmatprep.subr.bf16.mxu0 %v4975
          %5915 = vmatpush1.bf16.msra.mxu0 %v4974
          %5916 = vmatprep.subr.bf16.mxu0 %v4999
          %5917 = vmatpush1.bf16.msra.mxu0 %v4998
          %5918 = vmatprep.subr.bf16.mxu0 %v5023
          %5919 = vmatpush1.bf16.msra.mxu0 %v5022
          %5920 = vmatprep.subr.bf16.mxu0 %v5047
          %5921 = vmatpush1.bf16.msra.mxu0 %v5046
          %5922 = vmatprep.subr.bf16.mxu0 %v5071
          %5923 = vmatpush1.bf16.msra.mxu0 %v5070
          %5924 = vmatprep.subr.bf16.mxu0 %v5095
          %5925 = vmatpush1.bf16.msra.mxu0 %v5094
          %5926 = vmatprep.subr.bf16.mxu0 %v5119
          %5927 = vmatpush1.bf16.msra.mxu0 %v5118
          %5928 = vmatprep.mubr.bf16.mxu0 %v3985
          %5929 = vmatmul.mubr.bf16.gmra.mrb[0].mxu0 %v3984
          %v5930 = vpop.f32.mrb[0].mxu0
          %v5931 = vadd.f32 %v5890, %v5930
          %v5932 = vpop.f32.mrb[0].mxu0
          %v5933 = vadd.f32 %v5892, %v5932
          %v5934 = vpop.f32.mrb[0].mxu0
          %v5935 = vpop.f32.mrb[0].mxu0
          %5936 = vdwg.mxu0
          %5937 = vmatprep.subr.bf16.mxu0 %v5143
          %5938 = vmatpush1.bf16.msra.mxu0 %v5142
          %5939 = vmatprep.subr.bf16.mxu0 %v5167
          %5940 = vmatpush1.bf16.msra.mxu0 %v5166
          %5941 = vmatprep.subr.bf16.mxu0 %v5191
          %5942 = vmatpush1.bf16.msra.mxu0 %v5190
          %5943 = vmatprep.subr.bf16.mxu0 %v5215
          %5944 = vmatpush1.bf16.msra.mxu0 %v5214
          %5945 = vmatprep.subr.bf16.mxu0 %v5239
          %5946 = vmatpush1.bf16.msra.mxu0 %v5238
          %5947 = vmatprep.subr.bf16.mxu0 %v5263
          %5948 = vmatpush1.bf16.msra.mxu0 %v5262
          %5949 = vmatprep.subr.bf16.mxu0 %v5287
          %5950 = vmatpush1.bf16.msra.mxu0 %v5286
          %5951 = vmatprep.subr.bf16.mxu0 %v5311
          %5952 = vmatpush1.bf16.msra.mxu0 %v5310
          %5953 = vmatprep.subr.bf16.mxu0 %v5335
          %5954 = vmatpush1.bf16.msra.mxu0 %v5334
          %5955 = vmatprep.subr.bf16.mxu0 %v5359
          %5956 = vmatpush1.bf16.msra.mxu0 %v5358
          %5957 = vmatprep.subr.bf16.mxu0 %v5383
          %5958 = vmatpush1.bf16.msra.mxu0 %v5382
          %5959 = vmatprep.subr.bf16.mxu0 %v5407
          %5960 = vmatpush1.bf16.msra.mxu0 %v5406
          %5961 = vmatprep.subr.bf16.mxu0 %v5431
          %5962 = vmatpush1.bf16.msra.mxu0 %v5430
          %5963 = vmatprep.subr.bf16.mxu0 %v5455
          %5964 = vmatpush1.bf16.msra.mxu0 %v5454
          %5965 = vmatprep.subr.bf16.mxu0 %v5479
          %5966 = vmatpush1.bf16.msra.mxu0 %v5478
          %5967 = vmatprep.subr.bf16.mxu0 %v5503
          %5968 = vmatpush1.bf16.msra.mxu0 %v5502
          %5969 = vmatprep.mubr.bf16.mxu0 %v3987
          %5970 = vmatmul.mubr.bf16.gmra.mrb[0].mxu0 %v3986
          %v5971 = vpop.f32.mrb[0].mxu0
          %v5972 = vadd.f32 %v5931, %v5971
          %v5973 = vpop.f32.mrb[0].mxu0
          %v5974 = vadd.f32 %v5933, %v5973
          %v5975 = vpop.f32.mrb[0].mxu0
          %v5976 = vpop.f32.mrb[0].mxu0
          %5977 = vdwg.mxu0
          %5978 = vmatprep.subr.bf16.mxu0 %v3993
          %5979 = vmatpush1.bf16.msra.mxu0 %v3992
          %5980 = vmatprep.subr.bf16.mxu0 %v4017
          %5981 = vmatpush1.bf16.msra.mxu0 %v4016
          %5982 = vmatprep.subr.bf16.mxu0 %v4041
          %5983 = vmatpush1.bf16.msra.mxu0 %v4040
          %5984 = vmatprep.subr.bf16.mxu0 %v4065
          %5985 = vmatpush1.bf16.msra.mxu0 %v4064
          %5986 = vmatprep.subr.bf16.mxu0 %v4089
          %5987 = vmatpush1.bf16.msra.mxu0 %v4088
          %5988 = vmatprep.subr.bf16.mxu0 %v4113
          %5989 = vmatpush1.bf16.msra.mxu0 %v4112
          %5990 = vmatprep.subr.bf16.mxu0 %v4137
          %5991 = vmatpush1.bf16.msra.mxu0 %v4136
          %5992 = vmatprep.subr.bf16.mxu0 %v4161
          %5993 = vmatpush1.bf16.msra.mxu0 %v4160
          %5994 = vmatprep.subr.bf16.mxu0 %v4185
          %5995 = vmatpush1.bf16.msra.mxu0 %v4184
          %5996 = vmatprep.subr.bf16.mxu0 %v4209
          %5997 = vmatpush1.bf16.msra.mxu0 %v4208
          %5998 = vmatprep.subr.bf16.mxu0 %v4233
          %5999 = vmatpush1.bf16.msra.mxu0 %v4232
          %6000 = vmatprep.subr.bf16.mxu0 %v4257
          %6001 = vmatpush1.bf16.msra.mxu0 %v4256
          %6002 = vmatprep.subr.bf16.mxu0 %v4281
          %6003 = vmatpush1.bf16.msra.mxu0 %v4280
          %6004 = vmatprep.subr.bf16.mxu0 %v4305
          %6005 = vmatpush1.bf16.msra.mxu0 %v4304
          %6006 = vmatprep.subr.bf16.mxu0 %v4329
          %6007 = vmatpush1.bf16.msra.mxu0 %v4328
          %6008 = vmatprep.subr.bf16.mxu0 %v4353
          %6009 = vmatpush1.bf16.msra.mxu0 %v4352
          %6010 = vmatprep.mubr.bf16.mxu0 %v3981
          %6011 = vmatmul.mubr.bf16.gmra.mrb[0].mxu0 %v3980
          %v6012 = vpop.f32.mrb[0].mxu0
          %v6013 = vadd.f32 %v5549, %v6012
          %v6014 = vpop.f32.mrb[0].mxu0
          %v6015 = vadd.f32 %v5553, %v6014
          %v6016 = vpop.f32.mrb[0].mxu0
          %v6017 = vpop.f32.mrb[0].mxu0
          %6018 = vdwg.mxu0
          %6019 = vmatprep.subr.bf16.mxu0 %v4377
          %6020 = vmatpush1.bf16.msra.mxu0 %v4376
          %6021 = vmatprep.subr.bf16.mxu0 %v4401
          %6022 = vmatpush1.bf16.msra.mxu0 %v4400
          %6023 = vmatprep.subr.bf16.mxu0 %v4425
          %6024 = vmatpush1.bf16.msra.mxu0 %v4424
          %6025 = vmatprep.subr.bf16.mxu0 %v4449
          %6026 = vmatpush1.bf16.msra.mxu0 %v4448
          %6027 = vmatprep.subr.bf16.mxu0 %v4473
          %6028 = vmatpush1.bf16.msra.mxu0 %v4472
          %6029 = vmatprep.subr.bf16.mxu0 %v4497
          %6030 = vmatpush1.bf16.msra.mxu0 %v4496
          %6031 = vmatprep.subr.bf16.mxu0 %v4521
          %6032 = vmatpush1.bf16.msra.mxu0 %v4520
          %6033 = vmatprep.subr.bf16.mxu0 %v4545
          %6034 = vmatpush1.bf16.msra.mxu0 %v4544
          %6035 = vmatprep.subr.bf16.mxu0 %v4569
          %6036 = vmatpush1.bf16.msra.mxu0 %v4568
          %6037 = vmatprep.subr.bf16.mxu0 %v4593
          %6038 = vmatpush1.bf16.msra.mxu0 %v4592
          %6039 = vmatprep.subr.bf16.mxu0 %v4617
          %6040 = vmatpush1.bf16.msra.mxu0 %v4616
          %6041 = vmatprep.subr.bf16.mxu0 %v4641
          %6042 = vmatpush1.bf16.msra.mxu0 %v4640
          %6043 = vmatprep.subr.bf16.mxu0 %v4665
          %6044 = vmatpush1.bf16.msra.mxu0 %v4664
          %6045 = vmatprep.subr.bf16.mxu0 %v4689
          %6046 = vmatpush1.bf16.msra.mxu0 %v4688
          %6047 = vmatprep.subr.bf16.mxu0 %v4713
          %6048 = vmatpush1.bf16.msra.mxu0 %v4712
          %6049 = vmatprep.subr.bf16.mxu0 %v4737
          %6050 = vmatpush1.bf16.msra.mxu0 %v4736
          %6051 = vmatprep.mubr.bf16.mxu0 %v3983
          %6052 = vmatmul.mubr.bf16.gmra.mrb[0].mxu0 %v3982
          %v6053 = vpop.f32.mrb[0].mxu0
          %v6054 = vadd.f32 %v6013, %v6053
          %v6055 = vpop.f32.mrb[0].mxu0
          %v6056 = vadd.f32 %v6015, %v6055
          %v6057 = vpop.f32.mrb[0].mxu0
          %v6058 = vpop.f32.mrb[0].mxu0
          %6059 = vdwg.mxu0
          %6060 = vmatprep.subr.bf16.mxu0 %v4761
          %6061 = vmatpush1.bf16.msra.mxu0 %v4760
          %6062 = vmatprep.subr.bf16.mxu0 %v4785
          %6063 = vmatpush1.bf16.msra.mxu0 %v4784
          %6064 = vmatprep.subr.bf16.mxu0 %v4809
          %6065 = vmatpush1.bf16.msra.mxu0 %v4808
          %6066 = vmatprep.subr.bf16.mxu0 %v4833
          %6067 = vmatpush1.bf16.msra.mxu0 %v4832
          %6068 = vmatprep.subr.bf16.mxu0 %v4857
          %6069 = vmatpush1.bf16.msra.mxu0 %v4856
          %6070 = vmatprep.subr.bf16.mxu0 %v4881
          %6071 = vmatpush1.bf16.msra.mxu0 %v4880
          %6072 = vmatprep.subr.bf16.mxu0 %v4905
          %6073 = vmatpush1.bf16.msra.mxu0 %v4904
          %6074 = vmatprep.subr.bf16.mxu0 %v4929
          %6075 = vmatpush1.bf16.msra.mxu0 %v4928
          %6076 = vmatprep.subr.bf16.mxu0 %v4953
          %6077 = vmatpush1.bf16.msra.mxu0 %v4952
          %6078 = vmatprep.subr.bf16.mxu0 %v4977
          %6079 = vmatpush1.bf16.msra.mxu0 %v4976
          %6080 = vmatprep.subr.bf16.mxu0 %v5001
          %6081 = vmatpush1.bf16.msra.mxu0 %v5000
          %6082 = vmatprep.subr.bf16.mxu0 %v5025
          %6083 = vmatpush1.bf16.msra.mxu0 %v5024
          %6084 = vmatprep.subr.bf16.mxu0 %v5049
          %6085 = vmatpush1.bf16.msra.mxu0 %v5048
          %6086 = vmatprep.subr.bf16.mxu0 %v5073
          %6087 = vmatpush1.bf16.msra.mxu0 %v5072
          %6088 = vmatprep.subr.bf16.mxu0 %v5097
          %6089 = vmatpush1.bf16.msra.mxu0 %v5096
          %6090 = vmatprep.subr.bf16.mxu0 %v5121
          %6091 = vmatpush1.bf16.msra.mxu0 %v5120
          %6092 = vmatprep.mubr.bf16.mxu0 %v3985
          %6093 = vmatmul.mubr.bf16.gmra.mrb[0].mxu0 %v3984
          %v6094 = vpop.f32.mrb[0].mxu0
          %v6095 = vadd.f32 %v6054, %v6094
          %v6096 = vpop.f32.mrb[0].mxu0
          %v6097 = vadd.f32 %v6056, %v6096
          %v6098 = vpop.f32.mrb[0].mxu0
          %v6099 = vpop.f32.mrb[0].mxu0
          %6100 = vdwg.mxu0
          %6101 = vmatprep.subr.bf16.mxu0 %v5145
          %6102 = vmatpush1.bf16.msra.mxu0 %v5144
          %6103 = vmatprep.subr.bf16.mxu0 %v5169
          %6104 = vmatpush1.bf16.msra.mxu0 %v5168
          %6105 = vmatprep.subr.bf16.mxu0 %v5193
          %6106 = vmatpush1.bf16.msra.mxu0 %v5192
          %6107 = vmatprep.subr.bf16.mxu0 %v5217
          %6108 = vmatpush1.bf16.msra.mxu0 %v5216
          %6109 = vmatprep.subr.bf16.mxu0 %v5241
          %6110 = vmatpush1.bf16.msra.mxu0 %v5240
          %6111 = vmatprep.subr.bf16.mxu0 %v5265
          %6112 = vmatpush1.bf16.msra.mxu0 %v5264
          %6113 = vmatprep.subr.bf16.mxu0 %v5289
          %6114 = vmatpush1.bf16.msra.mxu0 %v5288
          %6115 = vmatprep.subr.bf16.mxu0 %v5313
          %6116 = vmatpush1.bf16.msra.mxu0 %v5312
          %6117 = vmatprep.subr.bf16.mxu0 %v5337
          %6118 = vmatpush1.bf16.msra.mxu0 %v5336
          %6119 = vmatprep.subr.bf16.mxu0 %v5361
          %6120 = vmatpush1.bf16.msra.mxu0 %v5360
          %6121 = vmatprep.subr.bf16.mxu0 %v5385
          %6122 = vmatpush1.bf16.msra.mxu0 %v5384
          %6123 = vmatprep.subr.bf16.mxu0 %v5409
          %6124 = vmatpush1.bf16.msra.mxu0 %v5408
          %6125 = vmatprep.subr.bf16.mxu0 %v5433
          %6126 = vmatpush1.bf16.msra.mxu0 %v5432
          %6127 = vmatprep.subr.bf16.mxu0 %v5457
          %6128 = vmatpush1.bf16.msra.mxu0 %v5456
          %6129 = vmatprep.subr.bf16.mxu0 %v5481
          %6130 = vmatpush1.bf16.msra.mxu0 %v5480
          %6131 = vmatprep.subr.bf16.mxu0 %v5505
          %6132 = vmatpush1.bf16.msra.mxu0 %v5504
          %6133 = vmatprep.mubr.bf16.mxu0 %v3987
          %6134 = vmatmul.mubr.bf16.gmra.mrb[0].mxu0 %v3986
          %v6135 = vpop.f32.mrb[0].mxu0
          %v6136 = vadd.f32 %v6095, %v6135
          %v6137 = vpop.f32.mrb[0].mxu0
          %v6138 = vadd.f32 %v6097, %v6137
          %v6139 = vpop.f32.mrb[0].mxu0
          %v6140 = vpop.f32.mrb[0].mxu0
          %6141 = vdwg.mxu0
          %6142 = vmatprep.subr.bf16.mxu0 %v3995
          %6143 = vmatpush1.bf16.msra.mxu0 %v3994
          %6144 = vmatprep.subr.bf16.mxu0 %v4019
          %6145 = vmatpush1.bf16.msra.mxu0 %v4018
          %6146 = vmatprep.subr.bf16.mxu0 %v4043
          %6147 = vmatpush1.bf16.msra.mxu0 %v4042
          %6148 = vmatprep.subr.bf16.mxu0 %v4067
          %6149 = vmatpush1.bf16.msra.mxu0 %v4066
          %6150 = vmatprep.subr.bf16.mxu0 %v4091
          %6151 = vmatpush1.bf16.msra.mxu0 %v4090
          %6152 = vmatprep.subr.bf16.mxu0 %v4115
          %6153 = vmatpush1.bf16.msra.mxu0 %v4114
          %6154 = vmatprep.subr.bf16.mxu0 %v4139
          %6155 = vmatpush1.bf16.msra.mxu0 %v4138
          %6156 = vmatprep.subr.bf16.mxu0 %v4163
          %6157 = vmatpush1.bf16.msra.mxu0 %v4162
          %6158 = vmatprep.subr.bf16.mxu0 %v4187
          %6159 = vmatpush1.bf16.msra.mxu0 %v4186
          %6160 = vmatprep.subr.bf16.mxu0 %v4211
          %6161 = vmatpush1.bf16.msra.mxu0 %v4210
          %6162 = vmatprep.subr.bf16.mxu0 %v4235
          %6163 = vmatpush1.bf16.msra.mxu0 %v4234
          %6164 = vmatprep.subr.bf16.mxu0 %v4259
          %6165 = vmatpush1.bf16.msra.mxu0 %v4258
          %6166 = vmatprep.subr.bf16.mxu0 %v4283
          %6167 = vmatpush1.bf16.msra.mxu0 %v4282
          %6168 = vmatprep.subr.bf16.mxu0 %v4307
          %6169 = vmatpush1.bf16.msra.mxu0 %v4306
          %6170 = vmatprep.subr.bf16.mxu0 %v4331
          %6171 = vmatpush1.bf16.msra.mxu0 %v4330
          %6172 = vmatprep.subr.bf16.mxu0 %v4355
          %6173 = vmatpush1.bf16.msra.mxu0 %v4354
          %6174 = vmatprep.mubr.bf16.mxu0 %v3981
          %6175 = vmatmul.mubr.bf16.gmra.mrb[0].mxu0 %v3980
          %v6176 = vpop.f32.mrb[0].mxu0
          %v6177 = vadd.f32 %v5557, %v6176
          %v6178 = vpop.f32.mrb[0].mxu0
          %v6179 = vadd.f32 %v5561, %v6178
          %v6180 = vpop.f32.mrb[0].mxu0
          %v6181 = vpop.f32.mrb[0].mxu0
          %6182 = vdwg.mxu0
          %6183 = vmatprep.subr.bf16.mxu0 %v4379
          %6184 = vmatpush1.bf16.msra.mxu0 %v4378
          %6185 = vmatprep.subr.bf16.mxu0 %v4403
          %6186 = vmatpush1.bf16.msra.mxu0 %v4402
          %6187 = vmatprep.subr.bf16.mxu0 %v4427
          %6188 = vmatpush1.bf16.msra.mxu0 %v4426
          %6189 = vmatprep.subr.bf16.mxu0 %v4451
          %6190 = vmatpush1.bf16.msra.mxu0 %v4450
          %6191 = vmatprep.subr.bf16.mxu0 %v4475
          %6192 = vmatpush1.bf16.msra.mxu0 %v4474
          %6193 = vmatprep.subr.bf16.mxu0 %v4499
          %6194 = vmatpush1.bf16.msra.mxu0 %v4498
          %6195 = vmatprep.subr.bf16.mxu0 %v4523
          %6196 = vmatpush1.bf16.msra.mxu0 %v4522
          %6197 = vmatprep.subr.bf16.mxu0 %v4547
          %6198 = vmatpush1.bf16.msra.mxu0 %v4546
          %6199 = vmatprep.subr.bf16.mxu0 %v4571
          %6200 = vmatpush1.bf16.msra.mxu0 %v4570
          %6201 = vmatprep.subr.bf16.mxu0 %v4595
          %6202 = vmatpush1.bf16.msra.mxu0 %v4594
          %6203 = vmatprep.subr.bf16.mxu0 %v4619
          %6204 = vmatpush1.bf16.msra.mxu0 %v4618
          %6205 = vmatprep.subr.bf16.mxu0 %v4643
          %6206 = vmatpush1.bf16.msra.mxu0 %v4642
          %6207 = vmatprep.subr.bf16.mxu0 %v4667
          %6208 = vmatpush1.bf16.msra.mxu0 %v4666
          %6209 = vmatprep.subr.bf16.mxu0 %v4691
          %6210 = vmatpush1.bf16.msra.mxu0 %v4690
          %6211 = vmatprep.subr.bf16.mxu0 %v4715
          %6212 = vmatpush1.bf16.msra.mxu0 %v4714
          %6213 = vmatprep.subr.bf16.mxu0 %v4739
          %6214 = vmatpush1.bf16.msra.mxu0 %v4738
          %6215 = vmatprep.mubr.bf16.mxu0 %v3983
          %6216 = vmatmul.mubr.bf16.gmra.mrb[0].mxu0 %v3982
          %v6217 = vpop.f32.mrb[0].mxu0
          %v6218 = vadd.f32 %v6177, %v6217
          %v6219 = vpop.f32.mrb[0].mxu0
          %v6220 = vadd.f32 %v6179, %v6219
          %v6221 = vpop.f32.mrb[0].mxu0
          %v6222 = vpop.f32.mrb[0].mxu0
          %6223 = vdwg.mxu0
          %6224 = vmatprep.subr.bf16.mxu0 %v4763
          %6225 = vmatpush1.bf16.msra.mxu0 %v4762
          %6226 = vmatprep.subr.bf16.mxu0 %v4787
          %6227 = vmatpush1.bf16.msra.mxu0 %v4786
          %6228 = vmatprep.subr.bf16.mxu0 %v4811
          %6229 = vmatpush1.bf16.msra.mxu0 %v4810
          %6230 = vmatprep.subr.bf16.mxu0 %v4835
          %6231 = vmatpush1.bf16.msra.mxu0 %v4834
          %6232 = vmatprep.subr.bf16.mxu0 %v4859
          %6233 = vmatpush1.bf16.msra.mxu0 %v4858
          %6234 = vmatprep.subr.bf16.mxu0 %v4883
          %6235 = vmatpush1.bf16.msra.mxu0 %v4882
          %6236 = vmatprep.subr.bf16.mxu0 %v4907
          %6237 = vmatpush1.bf16.msra.mxu0 %v4906
          %6238 = vmatprep.subr.bf16.mxu0 %v4931
          %6239 = vmatpush1.bf16.msra.mxu0 %v4930
          %6240 = vmatprep.subr.bf16.mxu0 %v4955
          %6241 = vmatpush1.bf16.msra.mxu0 %v4954
          %6242 = vmatprep.subr.bf16.mxu0 %v4979
          %6243 = vmatpush1.bf16.msra.mxu0 %v4978
          %6244 = vmatprep.subr.bf16.mxu0 %v5003
          %6245 = vmatpush1.bf16.msra.mxu0 %v5002
          %6246 = vmatprep.subr.bf16.mxu0 %v5027
          %6247 = vmatpush1.bf16.msra.mxu0 %v5026
          %6248 = vmatprep.subr.bf16.mxu0 %v5051
          %6249 = vmatpush1.bf16.msra.mxu0 %v5050
          %6250 = vmatprep.subr.bf16.mxu0 %v5075
          %6251 = vmatpush1.bf16.msra.mxu0 %v5074
          %6252 = vmatprep.subr.bf16.mxu0 %v5099
          %6253 = vmatpush1.bf16.msra.mxu0 %v5098
          %6254 = vmatprep.subr.bf16.mxu0 %v5123
          %6255 = vmatpush1.bf16.msra.mxu0 %v5122
          %6256 = vmatprep.mubr.bf16.mxu0 %v3985
          %6257 = vmatmul.mubr.bf16.gmra.mrb[0].mxu0 %v3984
          %v6258 = vpop.f32.mrb[0].mxu0
          %v6259 = vadd.f32 %v6218, %v6258
          %v6260 = vpop.f32.mrb[0].mxu0
          %v6261 = vadd.f32 %v6220, %v6260
          %v6262 = vpop.f32.mrb[0].mxu0
          %v6263 = vpop.f32.mrb[0].mxu0
          %6264 = vdwg.mxu0
          %6265 = vmatprep.subr.bf16.mxu0 %v5147
          %6266 = vmatpush1.bf16.msra.mxu0 %v5146
          %6267 = vmatprep.subr.bf16.mxu0 %v5171
          %6268 = vmatpush1.bf16.msra.mxu0 %v5170
          %6269 = vmatprep.subr.bf16.mxu0 %v5195
          %6270 = vmatpush1.bf16.msra.mxu0 %v5194
          %6271 = vmatprep.subr.bf16.mxu0 %v5219
          %6272 = vmatpush1.bf16.msra.mxu0 %v5218
          %6273 = vmatprep.subr.bf16.mxu0 %v5243
          %6274 = vmatpush1.bf16.msra.mxu0 %v5242
          %6275 = vmatprep.subr.bf16.mxu0 %v5267
          %6276 = vmatpush1.bf16.msra.mxu0 %v5266
          %6277 = vmatprep.subr.bf16.mxu0 %v5291
          %6278 = vmatpush1.bf16.msra.mxu0 %v5290
          %6279 = vmatprep.subr.bf16.mxu0 %v5315
          %6280 = vmatpush1.bf16.msra.mxu0 %v5314
          %6281 = vmatprep.subr.bf16.mxu0 %v5339
          %6282 = vmatpush1.bf16.msra.mxu0 %v5338
          %6283 = vmatprep.subr.bf16.mxu0 %v5363
          %6284 = vmatpush1.bf16.msra.mxu0 %v5362
          %6285 = vmatprep.subr.bf16.mxu0 %v5387
          %6286 = vmatpush1.bf16.msra.mxu0 %v5386
          %6287 = vmatprep.subr.bf16.mxu0 %v5411
          %6288 = vmatpush1.bf16.msra.mxu0 %v5410
          %6289 = vmatprep.subr.bf16.mxu0 %v5435
          %6290 = vmatpush1.bf16.msra.mxu0 %v5434
          %6291 = vmatprep.subr.bf16.mxu0 %v5459
          %6292 = vmatpush1.bf16.msra.mxu0 %v5458
          %6293 = vmatprep.subr.bf16.mxu0 %v5483
          %6294 = vmatpush1.bf16.msra.mxu0 %v5482
          %6295 = vmatprep.subr.bf16.mxu0 %v5507
          %6296 = vmatpush1.bf16.msra.mxu0 %v5506
          %6297 = vmatprep.mubr.bf16.mxu0 %v3987
          %6298 = vmatmul.mubr.bf16.gmra.mrb[0].mxu0 %v3986
          %v6299 = vpop.f32.mrb[0].mxu0
          %v6300 = vadd.f32 %v6259, %v6299
          %v6301 = vpop.f32.mrb[0].mxu0
          %v6302 = vadd.f32 %v6261, %v6301
          %v6303 = vpop.f32.mrb[0].mxu0
          %v6304 = vpop.f32.mrb[0].mxu0
          %6305 = vdwg.mxu0
          %6306 = vmatprep.subr.bf16.mxu0 %v3997
          %6307 = vmatpush1.bf16.msra.mxu0 %v3996
          %6308 = vmatprep.subr.bf16.mxu0 %v4021
          %6309 = vmatpush1.bf16.msra.mxu0 %v4020
          %6310 = vmatprep.subr.bf16.mxu0 %v4045
          %6311 = vmatpush1.bf16.msra.mxu0 %v4044
          %6312 = vmatprep.subr.bf16.mxu0 %v4069
          %6313 = vmatpush1.bf16.msra.mxu0 %v4068
          %6314 = vmatprep.subr.bf16.mxu0 %v4093
          %6315 = vmatpush1.bf16.msra.mxu0 %v4092
          %6316 = vmatprep.subr.bf16.mxu0 %v4117
          %6317 = vmatpush1.bf16.msra.mxu0 %v4116
          %6318 = vmatprep.subr.bf16.mxu0 %v4141
          %6319 = vmatpush1.bf16.msra.mxu0 %v4140
          %6320 = vmatprep.subr.bf16.mxu0 %v4165
          %6321 = vmatpush1.bf16.msra.mxu0 %v4164
          %6322 = vmatprep.subr.bf16.mxu0 %v4189
          %6323 = vmatpush1.bf16.msra.mxu0 %v4188
          %6324 = vmatprep.subr.bf16.mxu0 %v4213
          %6325 = vmatpush1.bf16.msra.mxu0 %v4212
          %6326 = vmatprep.subr.bf16.mxu0 %v4237
          %6327 = vmatpush1.bf16.msra.mxu0 %v4236
          %6328 = vmatprep.subr.bf16.mxu0 %v4261
          %6329 = vmatpush1.bf16.msra.mxu0 %v4260
          %6330 = vmatprep.subr.bf16.mxu0 %v4285
          %6331 = vmatpush1.bf16.msra.mxu0 %v4284
          %6332 = vmatprep.subr.bf16.mxu0 %v4309
          %6333 = vmatpush1.bf16.msra.mxu0 %v4308
          %6334 = vmatprep.subr.bf16.mxu0 %v4333
          %6335 = vmatpush1.bf16.msra.mxu0 %v4332
          %6336 = vmatprep.subr.bf16.mxu0 %v4357
          %6337 = vmatpush1.bf16.msra.mxu0 %v4356
          %6338 = vmatprep.mubr.bf16.mxu0 %v3981
          %6339 = vmatmul.mubr.bf16.gmra.mrb[0].mxu0 %v3980
          %v6340 = vpop.f32.mrb[0].mxu0
          %v6341 = vadd.f32 %v5565, %v6340
          %v6342 = vpop.f32.mrb[0].mxu0
          %v6343 = vadd.f32 %v5569, %v6342
          %v6344 = vpop.f32.mrb[0].mxu0
          %v6345 = vpop.f32.mrb[0].mxu0
          %6346 = vdwg.mxu0
          %6347 = vmatprep.subr.bf16.mxu0 %v4381
          %6348 = vmatpush1.bf16.msra.mxu0 %v4380
          %6349 = vmatprep.subr.bf16.mxu0 %v4405
          %6350 = vmatpush1.bf16.msra.mxu0 %v4404
          %6351 = vmatprep.subr.bf16.mxu0 %v4429
          %6352 = vmatpush1.bf16.msra.mxu0 %v4428
          %6353 = vmatprep.subr.bf16.mxu0 %v4453
          %6354 = vmatpush1.bf16.msra.mxu0 %v4452
          %6355 = vmatprep.subr.bf16.mxu0 %v4477
          %6356 = vmatpush1.bf16.msra.mxu0 %v4476
          %6357 = vmatprep.subr.bf16.mxu0 %v4501
          %6358 = vmatpush1.bf16.msra.mxu0 %v4500
          %6359 = vmatprep.subr.bf16.mxu0 %v4525
          %6360 = vmatpush1.bf16.msra.mxu0 %v4524
          %6361 = vmatprep.subr.bf16.mxu0 %v4549
          %6362 = vmatpush1.bf16.msra.mxu0 %v4548
          %6363 = vmatprep.subr.bf16.mxu0 %v4573
          %6364 = vmatpush1.bf16.msra.mxu0 %v4572
          %6365 = vmatprep.subr.bf16.mxu0 %v4597
          %6366 = vmatpush1.bf16.msra.mxu0 %v4596
          %6367 = vmatprep.subr.bf16.mxu0 %v4621
          %6368 = vmatpush1.bf16.msra.mxu0 %v4620
          %6369 = vmatprep.subr.bf16.mxu0 %v4645
          %6370 = vmatpush1.bf16.msra.mxu0 %v4644
          %6371 = vmatprep.subr.bf16.mxu0 %v4669
          %6372 = vmatpush1.bf16.msra.mxu0 %v4668
          %6373 = vmatprep.subr.bf16.mxu0 %v4693
          %6374 = vmatpush1.bf16.msra.mxu0 %v4692
          %6375 = vmatprep.subr.bf16.mxu0 %v4717
          %6376 = vmatpush1.bf16.msra.mxu0 %v4716
          %6377 = vmatprep.subr.bf16.mxu0 %v4741
          %6378 = vmatpush1.bf16.msra.mxu0 %v4740
          %6379 = vmatprep.mubr.bf16.mxu0 %v3983
          %6380 = vmatmul.mubr.bf16.gmra.mrb[0].mxu0 %v3982
          %v6381 = vpop.f32.mrb[0].mxu0
          %v6382 = vadd.f32 %v6341, %v6381
          %v6383 = vpop.f32.mrb[0].mxu0
          %v6384 = vadd.f32 %v6343, %v6383
          %v6385 = vpop.f32.mrb[0].mxu0
          %v6386 = vpop.f32.mrb[0].mxu0
          %6387 = vdwg.mxu0
          %6388 = vmatprep.subr.bf16.mxu0 %v4765
          %6389 = vmatpush1.bf16.msra.mxu0 %v4764
          %6390 = vmatprep.subr.bf16.mxu0 %v4789
          %6391 = vmatpush1.bf16.msra.mxu0 %v4788
          %6392 = vmatprep.subr.bf16.mxu0 %v4813
          %6393 = vmatpush1.bf16.msra.mxu0 %v4812
          %6394 = vmatprep.subr.bf16.mxu0 %v4837
          %6395 = vmatpush1.bf16.msra.mxu0 %v4836
          %6396 = vmatprep.subr.bf16.mxu0 %v4861
          %6397 = vmatpush1.bf16.msra.mxu0 %v4860
          %6398 = vmatprep.subr.bf16.mxu0 %v4885
          %6399 = vmatpush1.bf16.msra.mxu0 %v4884
          %6400 = vmatprep.subr.bf16.mxu0 %v4909
          %6401 = vmatpush1.bf16.msra.mxu0 %v4908
          %6402 = vmatprep.subr.bf16.mxu0 %v4933
          %6403 = vmatpush1.bf16.msra.mxu0 %v4932
          %6404 = vmatprep.subr.bf16.mxu0 %v4957
          %6405 = vmatpush1.bf16.msra.mxu0 %v4956
          %6406 = vmatprep.subr.bf16.mxu0 %v4981
          %6407 = vmatpush1.bf16.msra.mxu0 %v4980
          %6408 = vmatprep.subr.bf16.mxu0 %v5005
          %6409 = vmatpush1.bf16.msra.mxu0 %v5004
          %6410 = vmatprep.subr.bf16.mxu0 %v5029
          %6411 = vmatpush1.bf16.msra.mxu0 %v5028
          %6412 = vmatprep.subr.bf16.mxu0 %v5053
          %6413 = vmatpush1.bf16.msra.mxu0 %v5052
          %6414 = vmatprep.subr.bf16.mxu0 %v5077
          %6415 = vmatpush1.bf16.msra.mxu0 %v5076
          %6416 = vmatprep.subr.bf16.mxu0 %v5101
          %6417 = vmatpush1.bf16.msra.mxu0 %v5100
          %6418 = vmatprep.subr.bf16.mxu0 %v5125
          %6419 = vmatpush1.bf16.msra.mxu0 %v5124
          %6420 = vmatprep.mubr.bf16.mxu0 %v3985
          %6421 = vmatmul.mubr.bf16.gmra.mrb[0].mxu0 %v3984
          %v6422 = vpop.f32.mrb[0].mxu0
          %v6423 = vadd.f32 %v6382, %v6422
          %v6424 = vpop.f32.mrb[0].mxu0
          %v6425 = vadd.f32 %v6384, %v6424
          %v6426 = vpop.f32.mrb[0].mxu0
          %v6427 = vpop.f32.mrb[0].mxu0
          %6428 = vdwg.mxu0
          %6429 = vmatprep.subr.bf16.mxu0 %v5149
          %6430 = vmatpush1.bf16.msra.mxu0 %v5148
          %6431 = vmatprep.subr.bf16.mxu0 %v5173
          %6432 = vmatpush1.bf16.msra.mxu0 %v5172
          %6433 = vmatprep.subr.bf16.mxu0 %v5197
          %6434 = vmatpush1.bf16.msra.mxu0 %v5196
          %6435 = vmatprep.subr.bf16.mxu0 %v5221
          %6436 = vmatpush1.bf16.msra.mxu0 %v5220
          %6437 = vmatprep.subr.bf16.mxu0 %v5245
          %6438 = vmatpush1.bf16.msra.mxu0 %v5244
          %6439 = vmatprep.subr.bf16.mxu0 %v5269
          %6440 = vmatpush1.bf16.msra.mxu0 %v5268
          %6441 = vmatprep.subr.bf16.mxu0 %v5293
          %6442 = vmatpush1.bf16.msra.mxu0 %v5292
          %6443 = vmatprep.subr.bf16.mxu0 %v5317
          %6444 = vmatpush1.bf16.msra.mxu0 %v5316
          %6445 = vmatprep.subr.bf16.mxu0 %v5341
          %6446 = vmatpush1.bf16.msra.mxu0 %v5340
          %6447 = vmatprep.subr.bf16.mxu0 %v5365
          %6448 = vmatpush1.bf16.msra.mxu0 %v5364
          %6449 = vmatprep.subr.bf16.mxu0 %v5389
          %6450 = vmatpush1.bf16.msra.mxu0 %v5388
          %6451 = vmatprep.subr.bf16.mxu0 %v5413
          %6452 = vmatpush1.bf16.msra.mxu0 %v5412
          %6453 = vmatprep.subr.bf16.mxu0 %v5437
          %6454 = vmatpush1.bf16.msra.mxu0 %v5436
          %6455 = vmatprep.subr.bf16.mxu0 %v5461
          %6456 = vmatpush1.bf16.msra.mxu0 %v5460
          %6457 = vmatprep.subr.bf16.mxu0 %v5485
          %6458 = vmatpush1.bf16.msra.mxu0 %v5484
          %6459 = vmatprep.subr.bf16.mxu0 %v5509
          %6460 = vmatpush1.bf16.msra.mxu0 %v5508
          %6461 = vmatprep.mubr.bf16.mxu0 %v3987
          %6462 = vmatmul.mubr.bf16.gmra.mrb[0].mxu0 %v3986
          %v6463 = vpop.f32.mrb[0].mxu0
          %v6464 = vadd.f32 %v6423, %v6463
          %v6465 = vpop.f32.mrb[0].mxu0
          %v6466 = vadd.f32 %v6425, %v6465
          %v6467 = vpop.f32.mrb[0].mxu0
          %v6468 = vpop.f32.mrb[0].mxu0
          %6469 = vdwg.mxu0
          %6470 = vmatprep.subr.bf16.mxu0 %v3999
          %6471 = vmatpush1.bf16.msra.mxu0 %v3998
          %6472 = vmatprep.subr.bf16.mxu0 %v4023
          %6473 = vmatpush1.bf16.msra.mxu0 %v4022
          %6474 = vmatprep.subr.bf16.mxu0 %v4047
          %6475 = vmatpush1.bf16.msra.mxu0 %v4046
          %6476 = vmatprep.subr.bf16.mxu0 %v4071
          %6477 = vmatpush1.bf16.msra.mxu0 %v4070
          %6478 = vmatprep.subr.bf16.mxu0 %v4095
          %6479 = vmatpush1.bf16.msra.mxu0 %v4094
          %6480 = vmatprep.subr.bf16.mxu0 %v4119
          %6481 = vmatpush1.bf16.msra.mxu0 %v4118
          %6482 = vmatprep.subr.bf16.mxu0 %v4143
          %6483 = vmatpush1.bf16.msra.mxu0 %v4142
          %6484 = vmatprep.subr.bf16.mxu0 %v4167
          %6485 = vmatpush1.bf16.msra.mxu0 %v4166
          %6486 = vmatprep.subr.bf16.mxu0 %v4191
          %6487 = vmatpush1.bf16.msra.mxu0 %v4190
          %6488 = vmatprep.subr.bf16.mxu0 %v4215
          %6489 = vmatpush1.bf16.msra.mxu0 %v4214
          %6490 = vmatprep.subr.bf16.mxu0 %v4239
          %6491 = vmatpush1.bf16.msra.mxu0 %v4238
          %6492 = vmatprep.subr.bf16.mxu0 %v4263
          %6493 = vmatpush1.bf16.msra.mxu0 %v4262
          %6494 = vmatprep.subr.bf16.mxu0 %v4287
          %6495 = vmatpush1.bf16.msra.mxu0 %v4286
          %6496 = vmatprep.subr.bf16.mxu0 %v4311
          %6497 = vmatpush1.bf16.msra.mxu0 %v4310
          %6498 = vmatprep.subr.bf16.mxu0 %v4335
          %6499 = vmatpush1.bf16.msra.mxu0 %v4334
          %6500 = vmatprep.subr.bf16.mxu0 %v4359
          %6501 = vmatpush1.bf16.msra.mxu0 %v4358
          %6502 = vmatprep.mubr.bf16.mxu0 %v3981
          %6503 = vmatmul.mubr.bf16.gmra.mrb[0].mxu0 %v3980
          %v6504 = vpop.f32.mrb[0].mxu0
          %v6505 = vadd.f32 %v5573, %v6504
          %v6506 = vpop.f32.mrb[0].mxu0
          %v6507 = vadd.f32 %v5577, %v6506
          %v6508 = vpop.f32.mrb[0].mxu0
          %v6509 = vpop.f32.mrb[0].mxu0
          %6510 = vdwg.mxu0
          %6511 = vmatprep.subr.bf16.mxu0 %v4383
          %6512 = vmatpush1.bf16.msra.mxu0 %v4382
          %6513 = vmatprep.subr.bf16.mxu0 %v4407
          %6514 = vmatpush1.bf16.msra.mxu0 %v4406
          %6515 = vmatprep.subr.bf16.mxu0 %v4431
          %6516 = vmatpush1.bf16.msra.mxu0 %v4430
          %6517 = vmatprep.subr.bf16.mxu0 %v4455
          %6518 = vmatpush1.bf16.msra.mxu0 %v4454
          %6519 = vmatprep.subr.bf16.mxu0 %v4479
          %6520 = vmatpush1.bf16.msra.mxu0 %v4478
          %6521 = vmatprep.subr.bf16.mxu0 %v4503
          %6522 = vmatpush1.bf16.msra.mxu0 %v4502
          %6523 = vmatprep.subr.bf16.mxu0 %v4527
          %6524 = vmatpush1.bf16.msra.mxu0 %v4526
          %6525 = vmatprep.subr.bf16.mxu0 %v4551
          %6526 = vmatpush1.bf16.msra.mxu0 %v4550
          %6527 = vmatprep.subr.bf16.mxu0 %v4575
          %6528 = vmatpush1.bf16.msra.mxu0 %v4574
          %6529 = vmatprep.subr.bf16.mxu0 %v4599
          %6530 = vmatpush1.bf16.msra.mxu0 %v4598
          %6531 = vmatprep.subr.bf16.mxu0 %v4623
          %6532 = vmatpush1.bf16.msra.mxu0 %v4622
          %6533 = vmatprep.subr.bf16.mxu0 %v4647
          %6534 = vmatpush1.bf16.msra.mxu0 %v4646
          %6535 = vmatprep.subr.bf16.mxu0 %v4671
          %6536 = vmatpush1.bf16.msra.mxu0 %v4670
          %6537 = vmatprep.subr.bf16.mxu0 %v4695
          %6538 = vmatpush1.bf16.msra.mxu0 %v4694
          %6539 = vmatprep.subr.bf16.mxu0 %v4719
          %6540 = vmatpush1.bf16.msra.mxu0 %v4718
          %6541 = vmatprep.subr.bf16.mxu0 %v4743
          %6542 = vmatpush1.bf16.msra.mxu0 %v4742
          %6543 = vmatprep.mubr.bf16.mxu0 %v3983
          %6544 = vmatmul.mubr.bf16.gmra.mrb[0].mxu0 %v3982
          %v6545 = vpop.f32.mrb[0].mxu0
          %v6546 = vadd.f32 %v6505, %v6545
          %v6547 = vpop.f32.mrb[0].mxu0
          %v6548 = vadd.f32 %v6507, %v6547
          %v6549 = vpop.f32.mrb[0].mxu0
          %v6550 = vpop.f32.mrb[0].mxu0
          %6551 = vdwg.mxu0
          %6552 = vmatprep.subr.bf16.mxu0 %v4767
          %6553 = vmatpush1.bf16.msra.mxu0 %v4766
          %6554 = vmatprep.subr.bf16.mxu0 %v4791
          %6555 = vmatpush1.bf16.msra.mxu0 %v4790
          %6556 = vmatprep.subr.bf16.mxu0 %v4815
          %6557 = vmatpush1.bf16.msra.mxu0 %v4814
          %6558 = vmatprep.subr.bf16.mxu0 %v4839
          %6559 = vmatpush1.bf16.msra.mxu0 %v4838
          %6560 = vmatprep.subr.bf16.mxu0 %v4863
          %6561 = vmatpush1.bf16.msra.mxu0 %v4862
          %6562 = vmatprep.subr.bf16.mxu0 %v4887
          %6563 = vmatpush1.bf16.msra.mxu0 %v4886
          %6564 = vmatprep.subr.bf16.mxu0 %v4911
          %6565 = vmatpush1.bf16.msra.mxu0 %v4910
          %6566 = vmatprep.subr.bf16.mxu0 %v4935
          %6567 = vmatpush1.bf16.msra.mxu0 %v4934
          %6568 = vmatprep.subr.bf16.mxu0 %v4959
          %6569 = vmatpush1.bf16.msra.mxu0 %v4958
          %6570 = vmatprep.subr.bf16.mxu0 %v4983
          %6571 = vmatpush1.bf16.msra.mxu0 %v4982
          %6572 = vmatprep.subr.bf16.mxu0 %v5007
          %6573 = vmatpush1.bf16.msra.mxu0 %v5006
          %6574 = vmatprep.subr.bf16.mxu0 %v5031
          %6575 = vmatpush1.bf16.msra.mxu0 %v5030
          %6576 = vmatprep.subr.bf16.mxu0 %v5055
          %6577 = vmatpush1.bf16.msra.mxu0 %v5054
          %6578 = vmatprep.subr.bf16.mxu0 %v5079
          %6579 = vmatpush1.bf16.msra.mxu0 %v5078
          %6580 = vmatprep.subr.bf16.mxu0 %v5103
          %6581 = vmatpush1.bf16.msra.mxu0 %v5102
          %6582 = vmatprep.subr.bf16.mxu0 %v5127
          %6583 = vmatpush1.bf16.msra.mxu0 %v5126
          %6584 = vmatprep.mubr.bf16.mxu0 %v3985
          %6585 = vmatmul.mubr.bf16.gmra.mrb[0].mxu0 %v3984
          %v6586 = vpop.f32.mrb[0].mxu0
          %v6587 = vadd.f32 %v6546, %v6586
          %v6588 = vpop.f32.mrb[0].mxu0
          %v6589 = vadd.f32 %v6548, %v6588
          %v6590 = vpop.f32.mrb[0].mxu0
          %v6591 = vpop.f32.mrb[0].mxu0
          %6592 = vdwg.mxu0
          %6593 = vmatprep.subr.bf16.mxu0 %v5151
          %6594 = vmatpush1.bf16.msra.mxu0 %v5150
          %6595 = vmatprep.subr.bf16.mxu0 %v5175
          %6596 = vmatpush1.bf16.msra.mxu0 %v5174
          %6597 = vmatprep.subr.bf16.mxu0 %v5199
          %6598 = vmatpush1.bf16.msra.mxu0 %v5198
          %6599 = vmatprep.subr.bf16.mxu0 %v5223
          %6600 = vmatpush1.bf16.msra.mxu0 %v5222
          %6601 = vmatprep.subr.bf16.mxu0 %v5247
          %6602 = vmatpush1.bf16.msra.mxu0 %v5246
          %6603 = vmatprep.subr.bf16.mxu0 %v5271
          %6604 = vmatpush1.bf16.msra.mxu0 %v5270
          %6605 = vmatprep.subr.bf16.mxu0 %v5295
          %6606 = vmatpush1.bf16.msra.mxu0 %v5294
          %6607 = vmatprep.subr.bf16.mxu0 %v5319
          %6608 = vmatpush1.bf16.msra.mxu0 %v5318
          %6609 = vmatprep.subr.bf16.mxu0 %v5343
          %6610 = vmatpush1.bf16.msra.mxu0 %v5342
          %6611 = vmatprep.subr.bf16.mxu0 %v5367
          %6612 = vmatpush1.bf16.msra.mxu0 %v5366
          %6613 = vmatprep.subr.bf16.mxu0 %v5391
          %6614 = vmatpush1.bf16.msra.mxu0 %v5390
          %6615 = vmatprep.subr.bf16.mxu0 %v5415
          %6616 = vmatpush1.bf16.msra.mxu0 %v5414
          %6617 = vmatprep.subr.bf16.mxu0 %v5439
          %6618 = vmatpush1.bf16.msra.mxu0 %v5438
          %6619 = vmatprep.subr.bf16.mxu0 %v5463
          %6620 = vmatpush1.bf16.msra.mxu0 %v5462
          %6621 = vmatprep.subr.bf16.mxu0 %v5487
          %6622 = vmatpush1.bf16.msra.mxu0 %v5486
          %6623 = vmatprep.subr.bf16.mxu0 %v5511
          %6624 = vmatpush1.bf16.msra.mxu0 %v5510
          %6625 = vmatprep.mubr.bf16.mxu0 %v3987
          %6626 = vmatmul.mubr.bf16.gmra.mrb[0].mxu0 %v3986
          %v6627 = vpop.f32.mrb[0].mxu0
          %v6628 = vadd.f32 %v6587, %v6627
          %v6629 = vpop.f32.mrb[0].mxu0
          %v6630 = vadd.f32 %v6589, %v6629
          %v6631 = vpop.f32.mrb[0].mxu0
          %v6632 = vpop.f32.mrb[0].mxu0
          %6633 = vdwg.mxu0
          %6634 = vmatprep.subr.bf16.mxu0 %v4001
          %6635 = vmatpush1.bf16.msra.mxu0 %v4000
          %6636 = vmatprep.subr.bf16.mxu0 %v4025
          %6637 = vmatpush1.bf16.msra.mxu0 %v4024
          %6638 = vmatprep.subr.bf16.mxu0 %v4049
          %6639 = vmatpush1.bf16.msra.mxu0 %v4048
          %6640 = vmatprep.subr.bf16.mxu0 %v4073
          %6641 = vmatpush1.bf16.msra.mxu0 %v4072
          %6642 = vmatprep.subr.bf16.mxu0 %v4097
          %6643 = vmatpush1.bf16.msra.mxu0 %v4096
          %6644 = vmatprep.subr.bf16.mxu0 %v4121
          %6645 = vmatpush1.bf16.msra.mxu0 %v4120
          %6646 = vmatprep.subr.bf16.mxu0 %v4145
          %6647 = vmatpush1.bf16.msra.mxu0 %v4144
          %6648 = vmatprep.subr.bf16.mxu0 %v4169
          %6649 = vmatpush1.bf16.msra.mxu0 %v4168
          %6650 = vmatprep.subr.bf16.mxu0 %v4193
          %6651 = vmatpush1.bf16.msra.mxu0 %v4192
          %6652 = vmatprep.subr.bf16.mxu0 %v4217
          %6653 = vmatpush1.bf16.msra.mxu0 %v4216
          %6654 = vmatprep.subr.bf16.mxu0 %v4241
          %6655 = vmatpush1.bf16.msra.mxu0 %v4240
          %6656 = vmatprep.subr.bf16.mxu0 %v4265
          %6657 = vmatpush1.bf16.msra.mxu0 %v4264
          %6658 = vmatprep.subr.bf16.mxu0 %v4289
          %6659 = vmatpush1.bf16.msra.mxu0 %v4288
          %6660 = vmatprep.subr.bf16.mxu0 %v4313
          %6661 = vmatpush1.bf16.msra.mxu0 %v4312
          %6662 = vmatprep.subr.bf16.mxu0 %v4337
          %6663 = vmatpush1.bf16.msra.mxu0 %v4336
          %6664 = vmatprep.subr.bf16.mxu0 %v4361
          %6665 = vmatpush1.bf16.msra.mxu0 %v4360
          %6666 = vmatprep.mubr.bf16.mxu0 %v3981
          %6667 = vmatmul.mubr.bf16.gmra.mrb[0].mxu0 %v3980
          %v6668 = vpop.f32.mrb[0].mxu0
          %v6669 = vadd.f32 %v5581, %v6668
          %v6670 = vpop.f32.mrb[0].mxu0
          %v6671 = vadd.f32 %v5585, %v6670
          %v6672 = vpop.f32.mrb[0].mxu0
          %v6673 = vpop.f32.mrb[0].mxu0
          %6674 = vdwg.mxu0
          %6675 = vmatprep.subr.bf16.mxu0 %v4385
          %6676 = vmatpush1.bf16.msra.mxu0 %v4384
          %6677 = vmatprep.subr.bf16.mxu0 %v4409
          %6678 = vmatpush1.bf16.msra.mxu0 %v4408
          %6679 = vmatprep.subr.bf16.mxu0 %v4433
          %6680 = vmatpush1.bf16.msra.mxu0 %v4432
          %6681 = vmatprep.subr.bf16.mxu0 %v4457
          %6682 = vmatpush1.bf16.msra.mxu0 %v4456
          %6683 = vmatprep.subr.bf16.mxu0 %v4481
          %6684 = vmatpush1.bf16.msra.mxu0 %v4480
          %6685 = vmatprep.subr.bf16.mxu0 %v4505
          %6686 = vmatpush1.bf16.msra.mxu0 %v4504
          %6687 = vmatprep.subr.bf16.mxu0 %v4529
          %6688 = vmatpush1.bf16.msra.mxu0 %v4528
          %6689 = vmatprep.subr.bf16.mxu0 %v4553
          %6690 = vmatpush1.bf16.msra.mxu0 %v4552
          %6691 = vmatprep.subr.bf16.mxu0 %v4577
          %6692 = vmatpush1.bf16.msra.mxu0 %v4576
          %6693 = vmatprep.subr.bf16.mxu0 %v4601
          %6694 = vmatpush1.bf16.msra.mxu0 %v4600
          %6695 = vmatprep.subr.bf16.mxu0 %v4625
          %6696 = vmatpush1.bf16.msra.mxu0 %v4624
          %6697 = vmatprep.subr.bf16.mxu0 %v4649
          %6698 = vmatpush1.bf16.msra.mxu0 %v4648
          %6699 = vmatprep.subr.bf16.mxu0 %v4673
          %6700 = vmatpush1.bf16.msra.mxu0 %v4672
          %6701 = vmatprep.subr.bf16.mxu0 %v4697
          %6702 = vmatpush1.bf16.msra.mxu0 %v4696
          %6703 = vmatprep.subr.bf16.mxu0 %v4721
          %6704 = vmatpush1.bf16.msra.mxu0 %v4720
          %6705 = vmatprep.subr.bf16.mxu0 %v4745
          %6706 = vmatpush1.bf16.msra.mxu0 %v4744
          %6707 = vmatprep.mubr.bf16.mxu0 %v3983
          %6708 = vmatmul.mubr.bf16.gmra.mrb[0].mxu0 %v3982
          %v6709 = vpop.f32.mrb[0].mxu0
          %v6710 = vadd.f32 %v6669, %v6709
          %v6711 = vpop.f32.mrb[0].mxu0
          %v6712 = vadd.f32 %v6671, %v6711
          %v6713 = vpop.f32.mrb[0].mxu0
          %v6714 = vpop.f32.mrb[0].mxu0
          %6715 = vdwg.mxu0
          %6716 = vmatprep.subr.bf16.mxu0 %v4769
          %6717 = vmatpush1.bf16.msra.mxu0 %v4768
          %6718 = vmatprep.subr.bf16.mxu0 %v4793
          %6719 = vmatpush1.bf16.msra.mxu0 %v4792
          %6720 = vmatprep.subr.bf16.mxu0 %v4817
          %6721 = vmatpush1.bf16.msra.mxu0 %v4816
          %6722 = vmatprep.subr.bf16.mxu0 %v4841
          %6723 = vmatpush1.bf16.msra.mxu0 %v4840
          %6724 = vmatprep.subr.bf16.mxu0 %v4865
          %6725 = vmatpush1.bf16.msra.mxu0 %v4864
          %6726 = vmatprep.subr.bf16.mxu0 %v4889
          %6727 = vmatpush1.bf16.msra.mxu0 %v4888
          %6728 = vmatprep.subr.bf16.mxu0 %v4913
          %6729 = vmatpush1.bf16.msra.mxu0 %v4912
          %6730 = vmatprep.subr.bf16.mxu0 %v4937
          %6731 = vmatpush1.bf16.msra.mxu0 %v4936
          %6732 = vmatprep.subr.bf16.mxu0 %v4961
          %6733 = vmatpush1.bf16.msra.mxu0 %v4960
          %6734 = vmatprep.subr.bf16.mxu0 %v4985
          %6735 = vmatpush1.bf16.msra.mxu0 %v4984
          %6736 = vmatprep.subr.bf16.mxu0 %v5009
          %6737 = vmatpush1.bf16.msra.mxu0 %v5008
          %6738 = vmatprep.subr.bf16.mxu0 %v5033
          %6739 = vmatpush1.bf16.msra.mxu0 %v5032
          %6740 = vmatprep.subr.bf16.mxu0 %v5057
          %6741 = vmatpush1.bf16.msra.mxu0 %v5056
          %6742 = vmatprep.subr.bf16.mxu0 %v5081
          %6743 = vmatpush1.bf16.msra.mxu0 %v5080
          %6744 = vmatprep.subr.bf16.mxu0 %v5105
          %6745 = vmatpush1.bf16.msra.mxu0 %v5104
          %6746 = vmatprep.subr.bf16.mxu0 %v5129
          %6747 = vmatpush1.bf16.msra.mxu0 %v5128
          %6748 = vmatprep.mubr.bf16.mxu0 %v3985
          %6749 = vmatmul.mubr.bf16.gmra.mrb[0].mxu0 %v3984
          %v6750 = vpop.f32.mrb[0].mxu0
          %v6751 = vadd.f32 %v6710, %v6750
          %v6752 = vpop.f32.mrb[0].mxu0
          %v6753 = vadd.f32 %v6712, %v6752
          %v6754 = vpop.f32.mrb[0].mxu0
          %v6755 = vpop.f32.mrb[0].mxu0
          %6756 = vdwg.mxu0
          %6757 = vmatprep.subr.bf16.mxu0 %v5153
          %6758 = vmatpush1.bf16.msra.mxu0 %v5152
          %6759 = vmatprep.subr.bf16.mxu0 %v5177
          %6760 = vmatpush1.bf16.msra.mxu0 %v5176
          %6761 = vmatprep.subr.bf16.mxu0 %v5201
          %6762 = vmatpush1.bf16.msra.mxu0 %v5200
          %6763 = vmatprep.subr.bf16.mxu0 %v5225
          %6764 = vmatpush1.bf16.msra.mxu0 %v5224
          %6765 = vmatprep.subr.bf16.mxu0 %v5249
          %6766 = vmatpush1.bf16.msra.mxu0 %v5248
          %6767 = vmatprep.subr.bf16.mxu0 %v5273
          %6768 = vmatpush1.bf16.msra.mxu0 %v5272
          %6769 = vmatprep.subr.bf16.mxu0 %v5297
          %6770 = vmatpush1.bf16.msra.mxu0 %v5296
          %6771 = vmatprep.subr.bf16.mxu0 %v5321
          %6772 = vmatpush1.bf16.msra.mxu0 %v5320
          %6773 = vmatprep.subr.bf16.mxu0 %v5345
          %6774 = vmatpush1.bf16.msra.mxu0 %v5344
          %6775 = vmatprep.subr.bf16.mxu0 %v5369
          %6776 = vmatpush1.bf16.msra.mxu0 %v5368
          %6777 = vmatprep.subr.bf16.mxu0 %v5393
          %6778 = vmatpush1.bf16.msra.mxu0 %v5392
          %6779 = vmatprep.subr.bf16.mxu0 %v5417
          %6780 = vmatpush1.bf16.msra.mxu0 %v5416
          %6781 = vmatprep.subr.bf16.mxu0 %v5441
          %6782 = vmatpush1.bf16.msra.mxu0 %v5440
          %6783 = vmatprep.subr.bf16.mxu0 %v5465
          %6784 = vmatpush1.bf16.msra.mxu0 %v5464
          %6785 = vmatprep.subr.bf16.mxu0 %v5489
          %6786 = vmatpush1.bf16.msra.mxu0 %v5488
          %6787 = vmatprep.subr.bf16.mxu0 %v5513
          %6788 = vmatpush1.bf16.msra.mxu0 %v5512
          %6789 = vmatprep.mubr.bf16.mxu0 %v3987
          %6790 = vmatmul.mubr.bf16.gmra.mrb[0].mxu0 %v3986
          %v6791 = vpop.f32.mrb[0].mxu0
          %v6792 = vadd.f32 %v6751, %v6791
          %v6793 = vpop.f32.mrb[0].mxu0
          %v6794 = vadd.f32 %v6753, %v6793
          %v6795 = vpop.f32.mrb[0].mxu0
          %v6796 = vpop.f32.mrb[0].mxu0
          %6797 = vdwg.mxu0
          %6798 = vmatprep.subr.bf16.mxu0 %v4003
          %6799 = vmatpush1.bf16.msra.mxu0 %v4002
          %6800 = vmatprep.subr.bf16.mxu0 %v4027
          %6801 = vmatpush1.bf16.msra.mxu0 %v4026
          %6802 = vmatprep.subr.bf16.mxu0 %v4051
          %6803 = vmatpush1.bf16.msra.mxu0 %v4050
          %6804 = vmatprep.subr.bf16.mxu0 %v4075
          %6805 = vmatpush1.bf16.msra.mxu0 %v4074
          %6806 = vmatprep.subr.bf16.mxu0 %v4099
          %6807 = vmatpush1.bf16.msra.mxu0 %v4098
          %6808 = vmatprep.subr.bf16.mxu0 %v4123
          %6809 = vmatpush1.bf16.msra.mxu0 %v4122
          %6810 = vmatprep.subr.bf16.mxu0 %v4147
          %6811 = vmatpush1.bf16.msra.mxu0 %v4146
          %6812 = vmatprep.subr.bf16.mxu0 %v4171
          %6813 = vmatpush1.bf16.msra.mxu0 %v4170
          %6814 = vmatprep.subr.bf16.mxu0 %v4195
          %6815 = vmatpush1.bf16.msra.mxu0 %v4194
          %6816 = vmatprep.subr.bf16.mxu0 %v4219
          %6817 = vmatpush1.bf16.msra.mxu0 %v4218
          %6818 = vmatprep.subr.bf16.mxu0 %v4243
          %6819 = vmatpush1.bf16.msra.mxu0 %v4242
          %6820 = vmatprep.subr.bf16.mxu0 %v4267
          %6821 = vmatpush1.bf16.msra.mxu0 %v4266
          %6822 = vmatprep.subr.bf16.mxu0 %v4291
          %6823 = vmatpush1.bf16.msra.mxu0 %v4290
          %6824 = vmatprep.subr.bf16.mxu0 %v4315
          %6825 = vmatpush1.bf16.msra.mxu0 %v4314
          %6826 = vmatprep.subr.bf16.mxu0 %v4339
          %6827 = vmatpush1.bf16.msra.mxu0 %v4338
          %6828 = vmatprep.subr.bf16.mxu0 %v4363
          %6829 = vmatpush1.bf16.msra.mxu0 %v4362
          %6830 = vmatprep.mubr.bf16.mxu0 %v3981
          %6831 = vmatmul.mubr.bf16.gmra.mrb[0].mxu0 %v3980
          %v6832 = vpop.f32.mrb[0].mxu0
          %v6833 = vadd.f32 %v5589, %v6832
          %v6834 = vpop.f32.mrb[0].mxu0
          %v6835 = vadd.f32 %v5593, %v6834
          %v6836 = vpop.f32.mrb[0].mxu0
          %v6837 = vpop.f32.mrb[0].mxu0
          %6838 = vdwg.mxu0
          %6839 = vmatprep.subr.bf16.mxu0 %v4387
          %6840 = vmatpush1.bf16.msra.mxu0 %v4386
          %6841 = vmatprep.subr.bf16.mxu0 %v4411
          %6842 = vmatpush1.bf16.msra.mxu0 %v4410
          %6843 = vmatprep.subr.bf16.mxu0 %v4435
          %6844 = vmatpush1.bf16.msra.mxu0 %v4434
          %6845 = vmatprep.subr.bf16.mxu0 %v4459
          %6846 = vmatpush1.bf16.msra.mxu0 %v4458
          %6847 = vmatprep.subr.bf16.mxu0 %v4483
          %6848 = vmatpush1.bf16.msra.mxu0 %v4482
          %6849 = vmatprep.subr.bf16.mxu0 %v4507
          %6850 = vmatpush1.bf16.msra.mxu0 %v4506
          %6851 = vmatprep.subr.bf16.mxu0 %v4531
          %6852 = vmatpush1.bf16.msra.mxu0 %v4530
          %6853 = vmatprep.subr.bf16.mxu0 %v4555
          %6854 = vmatpush1.bf16.msra.mxu0 %v4554
          %6855 = vmatprep.subr.bf16.mxu0 %v4579
          %6856 = vmatpush1.bf16.msra.mxu0 %v4578
          %6857 = vmatprep.subr.bf16.mxu0 %v4603
          %6858 = vmatpush1.bf16.msra.mxu0 %v4602
          %6859 = vmatprep.subr.bf16.mxu0 %v4627
          %6860 = vmatpush1.bf16.msra.mxu0 %v4626
          %6861 = vmatprep.subr.bf16.mxu0 %v4651
          %6862 = vmatpush1.bf16.msra.mxu0 %v4650
          %6863 = vmatprep.subr.bf16.mxu0 %v4675
          %6864 = vmatpush1.bf16.msra.mxu0 %v4674
          %6865 = vmatprep.subr.bf16.mxu0 %v4699
          %6866 = vmatpush1.bf16.msra.mxu0 %v4698
          %6867 = vmatprep.subr.bf16.mxu0 %v4723
          %6868 = vmatpush1.bf16.msra.mxu0 %v4722
          %6869 = vmatprep.subr.bf16.mxu0 %v4747
          %6870 = vmatpush1.bf16.msra.mxu0 %v4746
          %6871 = vmatprep.mubr.bf16.mxu0 %v3983
          %6872 = vmatmul.mubr.bf16.gmra.mrb[0].mxu0 %v3982
          %v6873 = vpop.f32.mrb[0].mxu0
          %v6874 = vadd.f32 %v6833, %v6873
          %v6875 = vpop.f32.mrb[0].mxu0
          %v6876 = vadd.f32 %v6835, %v6875
          %v6877 = vpop.f32.mrb[0].mxu0
          %v6878 = vpop.f32.mrb[0].mxu0
          %6879 = vdwg.mxu0
          %6880 = vmatprep.subr.bf16.mxu0 %v4771
          %6881 = vmatpush1.bf16.msra.mxu0 %v4770
          %6882 = vmatprep.subr.bf16.mxu0 %v4795
          %6883 = vmatpush1.bf16.msra.mxu0 %v4794
          %6884 = vmatprep.subr.bf16.mxu0 %v4819
          %6885 = vmatpush1.bf16.msra.mxu0 %v4818
          %6886 = vmatprep.subr.bf16.mxu0 %v4843
          %6887 = vmatpush1.bf16.msra.mxu0 %v4842
          %6888 = vmatprep.subr.bf16.mxu0 %v4867
          %6889 = vmatpush1.bf16.msra.mxu0 %v4866
          %6890 = vmatprep.subr.bf16.mxu0 %v4891
          %6891 = vmatpush1.bf16.msra.mxu0 %v4890
          %6892 = vmatprep.subr.bf16.mxu0 %v4915
          %6893 = vmatpush1.bf16.msra.mxu0 %v4914
          %6894 = vmatprep.subr.bf16.mxu0 %v4939
          %6895 = vmatpush1.bf16.msra.mxu0 %v4938
          %6896 = vmatprep.subr.bf16.mxu0 %v4963
          %6897 = vmatpush1.bf16.msra.mxu0 %v4962
          %6898 = vmatprep.subr.bf16.mxu0 %v4987
          %6899 = vmatpush1.bf16.msra.mxu0 %v4986
          %6900 = vmatprep.subr.bf16.mxu0 %v5011
          %6901 = vmatpush1.bf16.msra.mxu0 %v5010
          %6902 = vmatprep.subr.bf16.mxu0 %v5035
          %6903 = vmatpush1.bf16.msra.mxu0 %v5034
          %6904 = vmatprep.subr.bf16.mxu0 %v5059
          %6905 = vmatpush1.bf16.msra.mxu0 %v5058
          %6906 = vmatprep.subr.bf16.mxu0 %v5083
          %6907 = vmatpush1.bf16.msra.mxu0 %v5082
          %6908 = vmatprep.subr.bf16.mxu0 %v5107
          %6909 = vmatpush1.bf16.msra.mxu0 %v5106
          %6910 = vmatprep.subr.bf16.mxu0 %v5131
          %6911 = vmatpush1.bf16.msra.mxu0 %v5130
          %6912 = vmatprep.mubr.bf16.mxu0 %v3985
          %6913 = vmatmul.mubr.bf16.gmra.mrb[0].mxu0 %v3984
          %v6914 = vpop.f32.mrb[0].mxu0
          %v6915 = vadd.f32 %v6874, %v6914
          %v6916 = vpop.f32.mrb[0].mxu0
          %v6917 = vadd.f32 %v6876, %v6916
          %v6918 = vpop.f32.mrb[0].mxu0
          %v6919 = vpop.f32.mrb[0].mxu0
          %6920 = vdwg.mxu0
          %6921 = vmatprep.subr.bf16.mxu0 %v5155
          %6922 = vmatpush1.bf16.msra.mxu0 %v5154
          %6923 = vmatprep.subr.bf16.mxu0 %v5179
          %6924 = vmatpush1.bf16.msra.mxu0 %v5178
          %6925 = vmatprep.subr.bf16.mxu0 %v5203
          %6926 = vmatpush1.bf16.msra.mxu0 %v5202
          %6927 = vmatprep.subr.bf16.mxu0 %v5227
          %6928 = vmatpush1.bf16.msra.mxu0 %v5226
          %6929 = vmatprep.subr.bf16.mxu0 %v5251
          %6930 = vmatpush1.bf16.msra.mxu0 %v5250
          %6931 = vmatprep.subr.bf16.mxu0 %v5275
          %6932 = vmatpush1.bf16.msra.mxu0 %v5274
          %6933 = vmatprep.subr.bf16.mxu0 %v5299
          %6934 = vmatpush1.bf16.msra.mxu0 %v5298
          %6935 = vmatprep.subr.bf16.mxu0 %v5323
          %6936 = vmatpush1.bf16.msra.mxu0 %v5322
          %6937 = vmatprep.subr.bf16.mxu0 %v5347
          %6938 = vmatpush1.bf16.msra.mxu0 %v5346
          %6939 = vmatprep.subr.bf16.mxu0 %v5371
          %6940 = vmatpush1.bf16.msra.mxu0 %v5370
          %6941 = vmatprep.subr.bf16.mxu0 %v5395
          %6942 = vmatpush1.bf16.msra.mxu0 %v5394
          %6943 = vmatprep.subr.bf16.mxu0 %v5419
          %6944 = vmatpush1.bf16.msra.mxu0 %v5418
          %6945 = vmatprep.subr.bf16.mxu0 %v5443
          %6946 = vmatpush1.bf16.msra.mxu0 %v5442
          %6947 = vmatprep.subr.bf16.mxu0 %v5467
          %6948 = vmatpush1.bf16.msra.mxu0 %v5466
          %6949 = vmatprep.subr.bf16.mxu0 %v5491
          %6950 = vmatpush1.bf16.msra.mxu0 %v5490
          %6951 = vmatprep.subr.bf16.mxu0 %v5515
          %6952 = vmatpush1.bf16.msra.mxu0 %v5514
          %6953 = vmatprep.mubr.bf16.mxu0 %v3987
          %6954 = vmatmul.mubr.bf16.gmra.mrb[0].mxu0 %v3986
          %v6955 = vpop.f32.mrb[0].mxu0
          %v6956 = vadd.f32 %v6915, %v6955
          %v6957 = vpop.f32.mrb[0].mxu0
          %v6958 = vadd.f32 %v6917, %v6957
          %v6959 = vpop.f32.mrb[0].mxu0
          %v6960 = vpop.f32.mrb[0].mxu0
          %6961 = vdwg.mxu0
          %6962 = vmatprep.subr.bf16.mxu0 %v4005
          %6963 = vmatpush1.bf16.msra.mxu0 %v4004
          %6964 = vmatprep.subr.bf16.mxu0 %v4029
          %6965 = vmatpush1.bf16.msra.mxu0 %v4028
          %6966 = vmatprep.subr.bf16.mxu0 %v4053
          %6967 = vmatpush1.bf16.msra.mxu0 %v4052
          %6968 = vmatprep.subr.bf16.mxu0 %v4077
          %6969 = vmatpush1.bf16.msra.mxu0 %v4076
          %6970 = vmatprep.subr.bf16.mxu0 %v4101
          %6971 = vmatpush1.bf16.msra.mxu0 %v4100
          %6972 = vmatprep.subr.bf16.mxu0 %v4125
          %6973 = vmatpush1.bf16.msra.mxu0 %v4124
          %6974 = vmatprep.subr.bf16.mxu0 %v4149
          %6975 = vmatpush1.bf16.msra.mxu0 %v4148
          %6976 = vmatprep.subr.bf16.mxu0 %v4173
          %6977 = vmatpush1.bf16.msra.mxu0 %v4172
          %6978 = vmatprep.subr.bf16.mxu0 %v4197
          %6979 = vmatpush1.bf16.msra.mxu0 %v4196
          %6980 = vmatprep.subr.bf16.mxu0 %v4221
          %6981 = vmatpush1.bf16.msra.mxu0 %v4220
          %6982 = vmatprep.subr.bf16.mxu0 %v4245
          %6983 = vmatpush1.bf16.msra.mxu0 %v4244
          %6984 = vmatprep.subr.bf16.mxu0 %v4269
          %6985 = vmatpush1.bf16.msra.mxu0 %v4268
          %6986 = vmatprep.subr.bf16.mxu0 %v4293
          %6987 = vmatpush1.bf16.msra.mxu0 %v4292
          %6988 = vmatprep.subr.bf16.mxu0 %v4317
          %6989 = vmatpush1.bf16.msra.mxu0 %v4316
          %6990 = vmatprep.subr.bf16.mxu0 %v4341
          %6991 = vmatpush1.bf16.msra.mxu0 %v4340
          %6992 = vmatprep.subr.bf16.mxu0 %v4365
          %6993 = vmatpush1.bf16.msra.mxu0 %v4364
          %6994 = vmatprep.mubr.bf16.mxu0 %v3981
          %6995 = vmatmul.mubr.bf16.gmra.mrb[0].mxu0 %v3980
          %v6996 = vpop.f32.mrb[0].mxu0
          %v6997 = vadd.f32 %v5597, %v6996
          %v6998 = vpop.f32.mrb[0].mxu0
          %v6999 = vadd.f32 %v5601, %v6998
          %v7000 = vpop.f32.mrb[0].mxu0
          %v7001 = vpop.f32.mrb[0].mxu0
          %7002 = vdwg.mxu0
          %7003 = vmatprep.subr.bf16.mxu0 %v4389
          %7004 = vmatpush1.bf16.msra.mxu0 %v4388
          %7005 = vmatprep.subr.bf16.mxu0 %v4413
          %7006 = vmatpush1.bf16.msra.mxu0 %v4412
          %7007 = vmatprep.subr.bf16.mxu0 %v4437
          %7008 = vmatpush1.bf16.msra.mxu0 %v4436
          %7009 = vmatprep.subr.bf16.mxu0 %v4461
          %7010 = vmatpush1.bf16.msra.mxu0 %v4460
          %7011 = vmatprep.subr.bf16.mxu0 %v4485
          %7012 = vmatpush1.bf16.msra.mxu0 %v4484
          %7013 = vmatprep.subr.bf16.mxu0 %v4509
          %7014 = vmatpush1.bf16.msra.mxu0 %v4508
          %7015 = vmatprep.subr.bf16.mxu0 %v4533
          %7016 = vmatpush1.bf16.msra.mxu0 %v4532
          %7017 = vmatprep.subr.bf16.mxu0 %v4557
          %7018 = vmatpush1.bf16.msra.mxu0 %v4556
          %7019 = vmatprep.subr.bf16.mxu0 %v4581
          %7020 = vmatpush1.bf16.msra.mxu0 %v4580
          %7021 = vmatprep.subr.bf16.mxu0 %v4605
          %7022 = vmatpush1.bf16.msra.mxu0 %v4604
          %7023 = vmatprep.subr.bf16.mxu0 %v4629
          %7024 = vmatpush1.bf16.msra.mxu0 %v4628
          %7025 = vmatprep.subr.bf16.mxu0 %v4653
          %7026 = vmatpush1.bf16.msra.mxu0 %v4652
          %7027 = vmatprep.subr.bf16.mxu0 %v4677
          %7028 = vmatpush1.bf16.msra.mxu0 %v4676
          %7029 = vmatprep.subr.bf16.mxu0 %v4701
          %7030 = vmatpush1.bf16.msra.mxu0 %v4700
          %7031 = vmatprep.subr.bf16.mxu0 %v4725
          %7032 = vmatpush1.bf16.msra.mxu0 %v4724
          %7033 = vmatprep.subr.bf16.mxu0 %v4749
          %7034 = vmatpush1.bf16.msra.mxu0 %v4748
          %7035 = vmatprep.mubr.bf16.mxu0 %v3983
          %7036 = vmatmul.mubr.bf16.gmra.mrb[0].mxu0 %v3982
          %v7037 = vpop.f32.mrb[0].mxu0
          %v7038 = vadd.f32 %v6997, %v7037
          %v7039 = vpop.f32.mrb[0].mxu0
          %v7040 = vadd.f32 %v6999, %v7039
          %v7041 = vpop.f32.mrb[0].mxu0
          %v7042 = vpop.f32.mrb[0].mxu0
          %7043 = vdwg.mxu0
          %7044 = vmatprep.subr.bf16.mxu0 %v4773
          %7045 = vmatpush1.bf16.msra.mxu0 %v4772
          %7046 = vmatprep.subr.bf16.mxu0 %v4797
          %7047 = vmatpush1.bf16.msra.mxu0 %v4796
          %7048 = vmatprep.subr.bf16.mxu0 %v4821
          %7049 = vmatpush1.bf16.msra.mxu0 %v4820
          %7050 = vmatprep.subr.bf16.mxu0 %v4845
          %7051 = vmatpush1.bf16.msra.mxu0 %v4844
          %7052 = vmatprep.subr.bf16.mxu0 %v4869
          %7053 = vmatpush1.bf16.msra.mxu0 %v4868
          %7054 = vmatprep.subr.bf16.mxu0 %v4893
          %7055 = vmatpush1.bf16.msra.mxu0 %v4892
          %7056 = vmatprep.subr.bf16.mxu0 %v4917
          %7057 = vmatpush1.bf16.msra.mxu0 %v4916
          %7058 = vmatprep.subr.bf16.mxu0 %v4941
          %7059 = vmatpush1.bf16.msra.mxu0 %v4940
          %7060 = vmatprep.subr.bf16.mxu0 %v4965
          %7061 = vmatpush1.bf16.msra.mxu0 %v4964
          %7062 = vmatprep.subr.bf16.mxu0 %v4989
          %7063 = vmatpush1.bf16.msra.mxu0 %v4988
          %7064 = vmatprep.subr.bf16.mxu0 %v5013
          %7065 = vmatpush1.bf16.msra.mxu0 %v5012
          %7066 = vmatprep.subr.bf16.mxu0 %v5037
          %7067 = vmatpush1.bf16.msra.mxu0 %v5036
          %7068 = vmatprep.subr.bf16.mxu0 %v5061
          %7069 = vmatpush1.bf16.msra.mxu0 %v5060
          %7070 = vmatprep.subr.bf16.mxu0 %v5085
          %7071 = vmatpush1.bf16.msra.mxu0 %v5084
          %7072 = vmatprep.subr.bf16.mxu0 %v5109
          %7073 = vmatpush1.bf16.msra.mxu0 %v5108
          %7074 = vmatprep.subr.bf16.mxu0 %v5133
          %7075 = vmatpush1.bf16.msra.mxu0 %v5132
          %7076 = vmatprep.mubr.bf16.mxu0 %v3985
          %7077 = vmatmul.mubr.bf16.gmra.mrb[0].mxu0 %v3984
          %v7078 = vpop.f32.mrb[0].mxu0
          %v7079 = vadd.f32 %v7038, %v7078
          %v7080 = vpop.f32.mrb[0].mxu0
          %v7081 = vadd.f32 %v7040, %v7080
          %v7082 = vpop.f32.mrb[0].mxu0
          %v7083 = vpop.f32.mrb[0].mxu0
          %7084 = vdwg.mxu0
          %7085 = vmatprep.subr.bf16.mxu0 %v5157
          %7086 = vmatpush1.bf16.msra.mxu0 %v5156
          %7087 = vmatprep.subr.bf16.mxu0 %v5181
          %7088 = vmatpush1.bf16.msra.mxu0 %v5180
          %7089 = vmatprep.subr.bf16.mxu0 %v5205
          %7090 = vmatpush1.bf16.msra.mxu0 %v5204
          %7091 = vmatprep.subr.bf16.mxu0 %v5229
          %7092 = vmatpush1.bf16.msra.mxu0 %v5228
          %7093 = vmatprep.subr.bf16.mxu0 %v5253
          %7094 = vmatpush1.bf16.msra.mxu0 %v5252
          %7095 = vmatprep.subr.bf16.mxu0 %v5277
          %7096 = vmatpush1.bf16.msra.mxu0 %v5276
          %7097 = vmatprep.subr.bf16.mxu0 %v5301
          %7098 = vmatpush1.bf16.msra.mxu0 %v5300
          %7099 = vmatprep.subr.bf16.mxu0 %v5325
          %7100 = vmatpush1.bf16.msra.mxu0 %v5324
          %7101 = vmatprep.subr.bf16.mxu0 %v5349
          %7102 = vmatpush1.bf16.msra.mxu0 %v5348
          %7103 = vmatprep.subr.bf16.mxu0 %v5373
          %7104 = vmatpush1.bf16.msra.mxu0 %v5372
          %7105 = vmatprep.subr.bf16.mxu0 %v5397
          %7106 = vmatpush1.bf16.msra.mxu0 %v5396
          %7107 = vmatprep.subr.bf16.mxu0 %v5421
          %7108 = vmatpush1.bf16.msra.mxu0 %v5420
          %7109 = vmatprep.subr.bf16.mxu0 %v5445
          %7110 = vmatpush1.bf16.msra.mxu0 %v5444
          %7111 = vmatprep.subr.bf16.mxu0 %v5469
          %7112 = vmatpush1.bf16.msra.mxu0 %v5468
          %7113 = vmatprep.subr.bf16.mxu0 %v5493
          %7114 = vmatpush1.bf16.msra.mxu0 %v5492
          %7115 = vmatprep.subr.bf16.mxu0 %v5517
          %7116 = vmatpush1.bf16.msra.mxu0 %v5516
          %7117 = vmatprep.mubr.bf16.mxu0 %v3987
          %7118 = vmatmul.mubr.bf16.gmra.mrb[0].mxu0 %v3986
          %v7119 = vpop.f32.mrb[0].mxu0
          %v7120 = vadd.f32 %v7079, %v7119
          %v7121 = vpop.f32.mrb[0].mxu0
          %v7122 = vadd.f32 %v7081, %v7121
          %v7123 = vpop.f32.mrb[0].mxu0
          %v7124 = vpop.f32.mrb[0].mxu0
          %7125 = vdwg.mxu0
          %7126 = vmatprep.subr.bf16.mxu0 %v4007
          %7127 = vmatpush1.bf16.msra.mxu0 %v4006
          %7128 = vmatprep.subr.bf16.mxu0 %v4031
          %7129 = vmatpush1.bf16.msra.mxu0 %v4030
          %7130 = vmatprep.subr.bf16.mxu0 %v4055
          %7131 = vmatpush1.bf16.msra.mxu0 %v4054
          %7132 = vmatprep.subr.bf16.mxu0 %v4079
          %7133 = vmatpush1.bf16.msra.mxu0 %v4078
          %7134 = vmatprep.subr.bf16.mxu0 %v4103
          %7135 = vmatpush1.bf16.msra.mxu0 %v4102
          %7136 = vmatprep.subr.bf16.mxu0 %v4127
          %7137 = vmatpush1.bf16.msra.mxu0 %v4126
          %7138 = vmatprep.subr.bf16.mxu0 %v4151
          %7139 = vmatpush1.bf16.msra.mxu0 %v4150
          %7140 = vmatprep.subr.bf16.mxu0 %v4175
          %7141 = vmatpush1.bf16.msra.mxu0 %v4174
          %7142 = vmatprep.subr.bf16.mxu0 %v4199
          %7143 = vmatpush1.bf16.msra.mxu0 %v4198
          %7144 = vmatprep.subr.bf16.mxu0 %v4223
          %7145 = vmatpush1.bf16.msra.mxu0 %v4222
          %7146 = vmatprep.subr.bf16.mxu0 %v4247
          %7147 = vmatpush1.bf16.msra.mxu0 %v4246
          %7148 = vmatprep.subr.bf16.mxu0 %v4271
          %7149 = vmatpush1.bf16.msra.mxu0 %v4270
          %7150 = vmatprep.subr.bf16.mxu0 %v4295
          %7151 = vmatpush1.bf16.msra.mxu0 %v4294
          %7152 = vmatprep.subr.bf16.mxu0 %v4319
          %7153 = vmatpush1.bf16.msra.mxu0 %v4318
          %7154 = vmatprep.subr.bf16.mxu0 %v4343
          %7155 = vmatpush1.bf16.msra.mxu0 %v4342
          %7156 = vmatprep.subr.bf16.mxu0 %v4367
          %7157 = vmatpush1.bf16.msra.mxu0 %v4366
          %7158 = vmatprep.mubr.bf16.mxu0 %v3981
          %7159 = vmatmul.mubr.bf16.gmra.mrb[0].mxu0 %v3980
          %v7160 = vpop.f32.mrb[0].mxu0
          %v7161 = vadd.f32 %v5605, %v7160
          %v7162 = vpop.f32.mrb[0].mxu0
          %v7163 = vadd.f32 %v5609, %v7162
          %v7164 = vpop.f32.mrb[0].mxu0
          %v7165 = vpop.f32.mrb[0].mxu0
          %7166 = vdwg.mxu0
          %7167 = vmatprep.subr.bf16.mxu0 %v4391
          %7168 = vmatpush1.bf16.msra.mxu0 %v4390
          %7169 = vmatprep.subr.bf16.mxu0 %v4415
          %7170 = vmatpush1.bf16.msra.mxu0 %v4414
          %7171 = vmatprep.subr.bf16.mxu0 %v4439
          %7172 = vmatpush1.bf16.msra.mxu0 %v4438
          %7173 = vmatprep.subr.bf16.mxu0 %v4463
          %7174 = vmatpush1.bf16.msra.mxu0 %v4462
          %7175 = vmatprep.subr.bf16.mxu0 %v4487
          %7176 = vmatpush1.bf16.msra.mxu0 %v4486
          %7177 = vmatprep.subr.bf16.mxu0 %v4511
          %7178 = vmatpush1.bf16.msra.mxu0 %v4510
          %7179 = vmatprep.subr.bf16.mxu0 %v4535
          %7180 = vmatpush1.bf16.msra.mxu0 %v4534
          %7181 = vmatprep.subr.bf16.mxu0 %v4559
          %7182 = vmatpush1.bf16.msra.mxu0 %v4558
          %7183 = vmatprep.subr.bf16.mxu0 %v4583
          %7184 = vmatpush1.bf16.msra.mxu0 %v4582
          %7185 = vmatprep.subr.bf16.mxu0 %v4607
          %7186 = vmatpush1.bf16.msra.mxu0 %v4606
          %7187 = vmatprep.subr.bf16.mxu0 %v4631
          %7188 = vmatpush1.bf16.msra.mxu0 %v4630
          %7189 = vmatprep.subr.bf16.mxu0 %v4655
          %7190 = vmatpush1.bf16.msra.mxu0 %v4654
          %7191 = vmatprep.subr.bf16.mxu0 %v4679
          %7192 = vmatpush1.bf16.msra.mxu0 %v4678
          %7193 = vmatprep.subr.bf16.mxu0 %v4703
          %7194 = vmatpush1.bf16.msra.mxu0 %v4702
          %7195 = vmatprep.subr.bf16.mxu0 %v4727
          %7196 = vmatpush1.bf16.msra.mxu0 %v4726
          %7197 = vmatprep.subr.bf16.mxu0 %v4751
          %7198 = vmatpush1.bf16.msra.mxu0 %v4750
          %7199 = vmatprep.mubr.bf16.mxu0 %v3983
          %7200 = vmatmul.mubr.bf16.gmra.mrb[0].mxu0 %v3982
          %v7201 = vpop.f32.mrb[0].mxu0
          %v7202 = vadd.f32 %v7161, %v7201
          %v7203 = vpop.f32.mrb[0].mxu0
          %v7204 = vadd.f32 %v7163, %v7203
          %v7205 = vpop.f32.mrb[0].mxu0
          %v7206 = vpop.f32.mrb[0].mxu0
          %7207 = vdwg.mxu0
          %7208 = vmatprep.subr.bf16.mxu0 %v4775
          %7209 = vmatpush1.bf16.msra.mxu0 %v4774
          %7210 = vmatprep.subr.bf16.mxu0 %v4799
          %7211 = vmatpush1.bf16.msra.mxu0 %v4798
          %7212 = vmatprep.subr.bf16.mxu0 %v4823
          %7213 = vmatpush1.bf16.msra.mxu0 %v4822
          %7214 = vmatprep.subr.bf16.mxu0 %v4847
          %7215 = vmatpush1.bf16.msra.mxu0 %v4846
          %7216 = vmatprep.subr.bf16.mxu0 %v4871
          %7217 = vmatpush1.bf16.msra.mxu0 %v4870
          %7218 = vmatprep.subr.bf16.mxu0 %v4895
          %7219 = vmatpush1.bf16.msra.mxu0 %v4894
          %7220 = vmatprep.subr.bf16.mxu0 %v4919
          %7221 = vmatpush1.bf16.msra.mxu0 %v4918
          %7222 = vmatprep.subr.bf16.mxu0 %v4943
          %7223 = vmatpush1.bf16.msra.mxu0 %v4942
          %7224 = vmatprep.subr.bf16.mxu0 %v4967
          %7225 = vmatpush1.bf16.msra.mxu0 %v4966
          %7226 = vmatprep.subr.bf16.mxu0 %v4991
          %7227 = vmatpush1.bf16.msra.mxu0 %v4990
          %7228 = vmatprep.subr.bf16.mxu0 %v5015
          %7229 = vmatpush1.bf16.msra.mxu0 %v5014
          %7230 = vmatprep.subr.bf16.mxu0 %v5039
          %7231 = vmatpush1.bf16.msra.mxu0 %v5038
          %7232 = vmatprep.subr.bf16.mxu0 %v5063
          %7233 = vmatpush1.bf16.msra.mxu0 %v5062
          %7234 = vmatprep.subr.bf16.mxu0 %v5087
          %7235 = vmatpush1.bf16.msra.mxu0 %v5086
          %7236 = vmatprep.subr.bf16.mxu0 %v5111
          %7237 = vmatpush1.bf16.msra.mxu0 %v5110
          %7238 = vmatprep.subr.bf16.mxu0 %v5135
          %7239 = vmatpush1.bf16.msra.mxu0 %v5134
          %7240 = vmatprep.mubr.bf16.mxu0 %v3985
          %7241 = vmatmul.mubr.bf16.gmra.mrb[0].mxu0 %v3984
          %v7242 = vpop.f32.mrb[0].mxu0
          %v7243 = vadd.f32 %v7202, %v7242
          %v7244 = vpop.f32.mrb[0].mxu0
          %v7245 = vadd.f32 %v7204, %v7244
          %v7246 = vpop.f32.mrb[0].mxu0
          %v7247 = vpop.f32.mrb[0].mxu0
          %7248 = vdwg.mxu0
          %7249 = vmatprep.subr.bf16.mxu0 %v5159
          %7250 = vmatpush1.bf16.msra.mxu0 %v5158
          %7251 = vmatprep.subr.bf16.mxu0 %v5183
          %7252 = vmatpush1.bf16.msra.mxu0 %v5182
          %7253 = vmatprep.subr.bf16.mxu0 %v5207
          %7254 = vmatpush1.bf16.msra.mxu0 %v5206
          %7255 = vmatprep.subr.bf16.mxu0 %v5231
          %7256 = vmatpush1.bf16.msra.mxu0 %v5230
          %7257 = vmatprep.subr.bf16.mxu0 %v5255
          %7258 = vmatpush1.bf16.msra.mxu0 %v5254
          %7259 = vmatprep.subr.bf16.mxu0 %v5279
          %7260 = vmatpush1.bf16.msra.mxu0 %v5278
          %7261 = vmatprep.subr.bf16.mxu0 %v5303
          %7262 = vmatpush1.bf16.msra.mxu0 %v5302
          %7263 = vmatprep.subr.bf16.mxu0 %v5327
          %7264 = vmatpush1.bf16.msra.mxu0 %v5326
          %7265 = vmatprep.subr.bf16.mxu0 %v5351
          %7266 = vmatpush1.bf16.msra.mxu0 %v5350
          %7267 = vmatprep.subr.bf16.mxu0 %v5375
          %7268 = vmatpush1.bf16.msra.mxu0 %v5374
          %7269 = vmatprep.subr.bf16.mxu0 %v5399
          %7270 = vmatpush1.bf16.msra.mxu0 %v5398
          %7271 = vmatprep.subr.bf16.mxu0 %v5423
          %7272 = vmatpush1.bf16.msra.mxu0 %v5422
          %7273 = vmatprep.subr.bf16.mxu0 %v5447
          %7274 = vmatpush1.bf16.msra.mxu0 %v5446
          %7275 = vmatprep.subr.bf16.mxu0 %v5471
          %7276 = vmatpush1.bf16.msra.mxu0 %v5470
          %7277 = vmatprep.subr.bf16.mxu0 %v5495
          %7278 = vmatpush1.bf16.msra.mxu0 %v5494
          %7279 = vmatprep.subr.bf16.mxu0 %v5519
          %7280 = vmatpush1.bf16.msra.mxu0 %v5518
          %7281 = vmatprep.mubr.bf16.mxu0 %v3987
          %7282 = vmatmul.mubr.bf16.gmra.mrb[0].mxu0 %v3986
          %v7283 = vpop.f32.mrb[0].mxu0
          %v7284 = vadd.f32 %v7243, %v7283
          %v7285 = vpop.f32.mrb[0].mxu0
          %v7286 = vadd.f32 %v7245, %v7285
          %v7287 = vpop.f32.mrb[0].mxu0
          %v7288 = vpop.f32.mrb[0].mxu0
          %7289 = vdwg.mxu0
          %7290 = vmatprep.subr.bf16.mxu0 %v4009
          %7291 = vmatpush1.bf16.msra.mxu0 %v4008
          %7292 = vmatprep.subr.bf16.mxu0 %v4033
          %7293 = vmatpush1.bf16.msra.mxu0 %v4032
          %7294 = vmatprep.subr.bf16.mxu0 %v4057
          %7295 = vmatpush1.bf16.msra.mxu0 %v4056
          %7296 = vmatprep.subr.bf16.mxu0 %v4081
          %7297 = vmatpush1.bf16.msra.mxu0 %v4080
          %7298 = vmatprep.subr.bf16.mxu0 %v4105
          %7299 = vmatpush1.bf16.msra.mxu0 %v4104
          %7300 = vmatprep.subr.bf16.mxu0 %v4129
          %7301 = vmatpush1.bf16.msra.mxu0 %v4128
          %7302 = vmatprep.subr.bf16.mxu0 %v4153
          %7303 = vmatpush1.bf16.msra.mxu0 %v4152
          %7304 = vmatprep.subr.bf16.mxu0 %v4177
          %7305 = vmatpush1.bf16.msra.mxu0 %v4176
          %7306 = vmatprep.subr.bf16.mxu0 %v4201
          %7307 = vmatpush1.bf16.msra.mxu0 %v4200
          %7308 = vmatprep.subr.bf16.mxu0 %v4225
          %7309 = vmatpush1.bf16.msra.mxu0 %v4224
          %7310 = vmatprep.subr.bf16.mxu0 %v4249
          %7311 = vmatpush1.bf16.msra.mxu0 %v4248
          %7312 = vmatprep.subr.bf16.mxu0 %v4273
          %7313 = vmatpush1.bf16.msra.mxu0 %v4272
          %7314 = vmatprep.subr.bf16.mxu0 %v4297
          %7315 = vmatpush1.bf16.msra.mxu0 %v4296
          %7316 = vmatprep.subr.bf16.mxu0 %v4321
          %7317 = vmatpush1.bf16.msra.mxu0 %v4320
          %7318 = vmatprep.subr.bf16.mxu0 %v4345
          %7319 = vmatpush1.bf16.msra.mxu0 %v4344
          %7320 = vmatprep.subr.bf16.mxu0 %v4369
          %7321 = vmatpush1.bf16.msra.mxu0 %v4368
          %7322 = vmatprep.mubr.bf16.mxu0 %v3981
          %7323 = vmatmul.mubr.bf16.gmra.mrb[0].mxu0 %v3980
          %v7324 = vpop.f32.mrb[0].mxu0
          %v7325 = vadd.f32 %v5613, %v7324
          %v7326 = vpop.f32.mrb[0].mxu0
          %v7327 = vadd.f32 %v5617, %v7326
          %v7328 = vpop.f32.mrb[0].mxu0
          %v7329 = vpop.f32.mrb[0].mxu0
          %7330 = vdwg.mxu0
          %7331 = vmatprep.subr.bf16.mxu0 %v4393
          %7332 = vmatpush1.bf16.msra.mxu0 %v4392
          %7333 = vmatprep.subr.bf16.mxu0 %v4417
          %7334 = vmatpush1.bf16.msra.mxu0 %v4416
          %7335 = vmatprep.subr.bf16.mxu0 %v4441
          %7336 = vmatpush1.bf16.msra.mxu0 %v4440
          %7337 = vmatprep.subr.bf16.mxu0 %v4465
          %7338 = vmatpush1.bf16.msra.mxu0 %v4464
          %7339 = vmatprep.subr.bf16.mxu0 %v4489
          %7340 = vmatpush1.bf16.msra.mxu0 %v4488
          %7341 = vmatprep.subr.bf16.mxu0 %v4513
          %7342 = vmatpush1.bf16.msra.mxu0 %v4512
          %7343 = vmatprep.subr.bf16.mxu0 %v4537
          %7344 = vmatpush1.bf16.msra.mxu0 %v4536
          %7345 = vmatprep.subr.bf16.mxu0 %v4561
          %7346 = vmatpush1.bf16.msra.mxu0 %v4560
          %7347 = vmatprep.subr.bf16.mxu0 %v4585
          %7348 = vmatpush1.bf16.msra.mxu0 %v4584
          %7349 = vmatprep.subr.bf16.mxu0 %v4609
          %7350 = vmatpush1.bf16.msra.mxu0 %v4608
          %7351 = vmatprep.subr.bf16.mxu0 %v4633
          %7352 = vmatpush1.bf16.msra.mxu0 %v4632
          %7353 = vmatprep.subr.bf16.mxu0 %v4657
          %7354 = vmatpush1.bf16.msra.mxu0 %v4656
          %7355 = vmatprep.subr.bf16.mxu0 %v4681
          %7356 = vmatpush1.bf16.msra.mxu0 %v4680
          %7357 = vmatprep.subr.bf16.mxu0 %v4705
          %7358 = vmatpush1.bf16.msra.mxu0 %v4704
          %7359 = vmatprep.subr.bf16.mxu0 %v4729
          %7360 = vmatpush1.bf16.msra.mxu0 %v4728
          %7361 = vmatprep.subr.bf16.mxu0 %v4753
          %7362 = vmatpush1.bf16.msra.mxu0 %v4752
          %7363 = vmatprep.mubr.bf16.mxu0 %v3983
          %7364 = vmatmul.mubr.bf16.gmra.mrb[0].mxu0 %v3982
          %v7365 = vpop.f32.mrb[0].mxu0
          %v7366 = vadd.f32 %v7325, %v7365
          %v7367 = vpop.f32.mrb[0].mxu0
          %v7368 = vadd.f32 %v7327, %v7367
          %v7369 = vpop.f32.mrb[0].mxu0
          %v7370 = vpop.f32.mrb[0].mxu0
          %7371 = vdwg.mxu0
          %7372 = vmatprep.subr.bf16.mxu0 %v4777
          %7373 = vmatpush1.bf16.msra.mxu0 %v4776
          %7374 = vmatprep.subr.bf16.mxu0 %v4801
          %7375 = vmatpush1.bf16.msra.mxu0 %v4800
          %7376 = vmatprep.subr.bf16.mxu0 %v4825
          %7377 = vmatpush1.bf16.msra.mxu0 %v4824
          %7378 = vmatprep.subr.bf16.mxu0 %v4849
          %7379 = vmatpush1.bf16.msra.mxu0 %v4848
          %7380 = vmatprep.subr.bf16.mxu0 %v4873
          %7381 = vmatpush1.bf16.msra.mxu0 %v4872
          %7382 = vmatprep.subr.bf16.mxu0 %v4897
          %7383 = vmatpush1.bf16.msra.mxu0 %v4896
          %7384 = vmatprep.subr.bf16.mxu0 %v4921
          %7385 = vmatpush1.bf16.msra.mxu0 %v4920
          %7386 = vmatprep.subr.bf16.mxu0 %v4945
          %7387 = vmatpush1.bf16.msra.mxu0 %v4944
          %7388 = vmatprep.subr.bf16.mxu0 %v4969
          %7389 = vmatpush1.bf16.msra.mxu0 %v4968
          %7390 = vmatprep.subr.bf16.mxu0 %v4993
          %7391 = vmatpush1.bf16.msra.mxu0 %v4992
          %7392 = vmatprep.subr.bf16.mxu0 %v5017
          %7393 = vmatpush1.bf16.msra.mxu0 %v5016
          %7394 = vmatprep.subr.bf16.mxu0 %v5041
          %7395 = vmatpush1.bf16.msra.mxu0 %v5040
          %7396 = vmatprep.subr.bf16.mxu0 %v5065
          %7397 = vmatpush1.bf16.msra.mxu0 %v5064
          %7398 = vmatprep.subr.bf16.mxu0 %v5089
          %7399 = vmatpush1.bf16.msra.mxu0 %v5088
          %7400 = vmatprep.subr.bf16.mxu0 %v5113
          %7401 = vmatpush1.bf16.msra.mxu0 %v5112
          %7402 = vmatprep.subr.bf16.mxu0 %v5137
          %7403 = vmatpush1.bf16.msra.mxu0 %v5136
          %7404 = vmatprep.mubr.bf16.mxu0 %v3985
          %7405 = vmatmul.mubr.bf16.gmra.mrb[0].mxu0 %v3984
          %v7406 = vpop.f32.mrb[0].mxu0
          %v7407 = vadd.f32 %v7366, %v7406
          %v7408 = vpop.f32.mrb[0].mxu0
          %v7409 = vadd.f32 %v7368, %v7408
          %v7410 = vpop.f32.mrb[0].mxu0
          %v7411 = vpop.f32.mrb[0].mxu0
          %7412 = vdwg.mxu0
          %7413 = vmatprep.subr.bf16.mxu0 %v5161
          %7414 = vmatpush1.bf16.msra.mxu0 %v5160
          %7415 = vmatprep.subr.bf16.mxu0 %v5185
          %7416 = vmatpush1.bf16.msra.mxu0 %v5184
          %7417 = vmatprep.subr.bf16.mxu0 %v5209
          %7418 = vmatpush1.bf16.msra.mxu0 %v5208
          %7419 = vmatprep.subr.bf16.mxu0 %v5233
          %7420 = vmatpush1.bf16.msra.mxu0 %v5232
          %7421 = vmatprep.subr.bf16.mxu0 %v5257
          %7422 = vmatpush1.bf16.msra.mxu0 %v5256
          %7423 = vmatprep.subr.bf16.mxu0 %v5281
          %7424 = vmatpush1.bf16.msra.mxu0 %v5280
          %7425 = vmatprep.subr.bf16.mxu0 %v5305
          %7426 = vmatpush1.bf16.msra.mxu0 %v5304
          %7427 = vmatprep.subr.bf16.mxu0 %v5329
          %7428 = vmatpush1.bf16.msra.mxu0 %v5328
          %7429 = vmatprep.subr.bf16.mxu0 %v5353
          %7430 = vmatpush1.bf16.msra.mxu0 %v5352
          %7431 = vmatprep.subr.bf16.mxu0 %v5377
          %7432 = vmatpush1.bf16.msra.mxu0 %v5376
          %7433 = vmatprep.subr.bf16.mxu0 %v5401
          %7434 = vmatpush1.bf16.msra.mxu0 %v5400
          %7435 = vmatprep.subr.bf16.mxu0 %v5425
          %7436 = vmatpush1.bf16.msra.mxu0 %v5424
          %7437 = vmatprep.subr.bf16.mxu0 %v5449
          %7438 = vmatpush1.bf16.msra.mxu0 %v5448
          %7439 = vmatprep.subr.bf16.mxu0 %v5473
          %7440 = vmatpush1.bf16.msra.mxu0 %v5472
          %7441 = vmatprep.subr.bf16.mxu0 %v5497
          %7442 = vmatpush1.bf16.msra.mxu0 %v5496
          %7443 = vmatprep.subr.bf16.mxu0 %v5521
          %7444 = vmatpush1.bf16.msra.mxu0 %v5520
          %7445 = vmatprep.mubr.bf16.mxu0 %v3987
          %7446 = vmatmul.mubr.bf16.gmra.mrb[0].mxu0 %v3986
          %v7447 = vpop.f32.mrb[0].mxu0
          %v7448 = vadd.f32 %v7407, %v7447
          %v7449 = vpop.f32.mrb[0].mxu0
          %v7450 = vadd.f32 %v7409, %v7449
          %v7451 = vpop.f32.mrb[0].mxu0
          %v7452 = vpop.f32.mrb[0].mxu0
          %7453 = vdwg.mxu0
          %7454 = vmatprep.subr.bf16.mxu0 %v4011
          %7455 = vmatpush1.bf16.msra.mxu0 %v4010
          %7456 = vmatprep.subr.bf16.mxu0 %v4035
          %7457 = vmatpush1.bf16.msra.mxu0 %v4034
          %7458 = vmatprep.subr.bf16.mxu0 %v4059
          %7459 = vmatpush1.bf16.msra.mxu0 %v4058
          %7460 = vmatprep.subr.bf16.mxu0 %v4083
          %7461 = vmatpush1.bf16.msra.mxu0 %v4082
          %7462 = vmatprep.subr.bf16.mxu0 %v4107
          %7463 = vmatpush1.bf16.msra.mxu0 %v4106
          %7464 = vmatprep.subr.bf16.mxu0 %v4131
          %7465 = vmatpush1.bf16.msra.mxu0 %v4130
          %7466 = vmatprep.subr.bf16.mxu0 %v4155
          %7467 = vmatpush1.bf16.msra.mxu0 %v4154
          %7468 = vmatprep.subr.bf16.mxu0 %v4179
          %7469 = vmatpush1.bf16.msra.mxu0 %v4178
          %7470 = vmatprep.subr.bf16.mxu0 %v4203
          %7471 = vmatpush1.bf16.msra.mxu0 %v4202
          %7472 = vmatprep.subr.bf16.mxu0 %v4227
          %7473 = vmatpush1.bf16.msra.mxu0 %v4226
          %7474 = vmatprep.subr.bf16.mxu0 %v4251
          %7475 = vmatpush1.bf16.msra.mxu0 %v4250
          %7476 = vmatprep.subr.bf16.mxu0 %v4275
          %7477 = vmatpush1.bf16.msra.mxu0 %v4274
          %7478 = vmatprep.subr.bf16.mxu0 %v4299
          %7479 = vmatpush1.bf16.msra.mxu0 %v4298
          %7480 = vmatprep.subr.bf16.mxu0 %v4323
          %7481 = vmatpush1.bf16.msra.mxu0 %v4322
          %7482 = vmatprep.subr.bf16.mxu0 %v4347
          %7483 = vmatpush1.bf16.msra.mxu0 %v4346
          %7484 = vmatprep.subr.bf16.mxu0 %v4371
          %7485 = vmatpush1.bf16.msra.mxu0 %v4370
          %7486 = vmatprep.mubr.bf16.mxu0 %v3981
          %7487 = vmatmul.mubr.bf16.gmra.mrb[0].mxu0 %v3980
          %v7488 = vpop.f32.mrb[0].mxu0
          %v7489 = vadd.f32 %v5621, %v7488
          %v7490 = vpop.f32.mrb[0].mxu0
          %v7491 = vadd.f32 %v5625, %v7490
          %v7492 = vpop.f32.mrb[0].mxu0
          %v7493 = vpop.f32.mrb[0].mxu0
          %7494 = vdwg.mxu0
          %7495 = vmatprep.subr.bf16.mxu0 %v4395
          %7496 = vmatpush1.bf16.msra.mxu0 %v4394
          %7497 = vmatprep.subr.bf16.mxu0 %v4419
          %7498 = vmatpush1.bf16.msra.mxu0 %v4418
          %7499 = vmatprep.subr.bf16.mxu0 %v4443
          %7500 = vmatpush1.bf16.msra.mxu0 %v4442
          %7501 = vmatprep.subr.bf16.mxu0 %v4467
          %7502 = vmatpush1.bf16.msra.mxu0 %v4466
          %7503 = vmatprep.subr.bf16.mxu0 %v4491
          %7504 = vmatpush1.bf16.msra.mxu0 %v4490
          %7505 = vmatprep.subr.bf16.mxu0 %v4515
          %7506 = vmatpush1.bf16.msra.mxu0 %v4514
          %7507 = vmatprep.subr.bf16.mxu0 %v4539
          %7508 = vmatpush1.bf16.msra.mxu0 %v4538
          %7509 = vmatprep.subr.bf16.mxu0 %v4563
          %7510 = vmatpush1.bf16.msra.mxu0 %v4562
          %7511 = vmatprep.subr.bf16.mxu0 %v4587
          %7512 = vmatpush1.bf16.msra.mxu0 %v4586
          %7513 = vmatprep.subr.bf16.mxu0 %v4611
          %7514 = vmatpush1.bf16.msra.mxu0 %v4610
          %7515 = vmatprep.subr.bf16.mxu0 %v4635
          %7516 = vmatpush1.bf16.msra.mxu0 %v4634
          %7517 = vmatprep.subr.bf16.mxu0 %v4659
          %7518 = vmatpush1.bf16.msra.mxu0 %v4658
          %7519 = vmatprep.subr.bf16.mxu0 %v4683
          %7520 = vmatpush1.bf16.msra.mxu0 %v4682
          %7521 = vmatprep.subr.bf16.mxu0 %v4707
          %7522 = vmatpush1.bf16.msra.mxu0 %v4706
          %7523 = vmatprep.subr.bf16.mxu0 %v4731
          %7524 = vmatpush1.bf16.msra.mxu0 %v4730
          %7525 = vmatprep.subr.bf16.mxu0 %v4755
          %7526 = vmatpush1.bf16.msra.mxu0 %v4754
          %7527 = vmatprep.mubr.bf16.mxu0 %v3983
          %7528 = vmatmul.mubr.bf16.gmra.mrb[0].mxu0 %v3982
          %v7529 = vpop.f32.mrb[0].mxu0
          %v7530 = vadd.f32 %v7489, %v7529
          %v7531 = vpop.f32.mrb[0].mxu0
          %v7532 = vadd.f32 %v7491, %v7531
          %v7533 = vpop.f32.mrb[0].mxu0
          %v7534 = vpop.f32.mrb[0].mxu0
          %7535 = vdwg.mxu0
          %7536 = vmatprep.subr.bf16.mxu0 %v4779
          %7537 = vmatpush1.bf16.msra.mxu0 %v4778
          %7538 = vmatprep.subr.bf16.mxu0 %v4803
          %7539 = vmatpush1.bf16.msra.mxu0 %v4802
          %7540 = vmatprep.subr.bf16.mxu0 %v4827
          %7541 = vmatpush1.bf16.msra.mxu0 %v4826
          %7542 = vmatprep.subr.bf16.mxu0 %v4851
          %7543 = vmatpush1.bf16.msra.mxu0 %v4850
          %7544 = vmatprep.subr.bf16.mxu0 %v4875
          %7545 = vmatpush1.bf16.msra.mxu0 %v4874
          %7546 = vmatprep.subr.bf16.mxu0 %v4899
          %7547 = vmatpush1.bf16.msra.mxu0 %v4898
          %7548 = vmatprep.subr.bf16.mxu0 %v4923
          %7549 = vmatpush1.bf16.msra.mxu0 %v4922
          %7550 = vmatprep.subr.bf16.mxu0 %v4947
          %7551 = vmatpush1.bf16.msra.mxu0 %v4946
          %7552 = vmatprep.subr.bf16.mxu0 %v4971
          %7553 = vmatpush1.bf16.msra.mxu0 %v4970
          %7554 = vmatprep.subr.bf16.mxu0 %v4995
          %7555 = vmatpush1.bf16.msra.mxu0 %v4994
          %7556 = vmatprep.subr.bf16.mxu0 %v5019
          %7557 = vmatpush1.bf16.msra.mxu0 %v5018
          %7558 = vmatprep.subr.bf16.mxu0 %v5043
          %7559 = vmatpush1.bf16.msra.mxu0 %v5042
          %7560 = vmatprep.subr.bf16.mxu0 %v5067
          %7561 = vmatpush1.bf16.msra.mxu0 %v5066
          %7562 = vmatprep.subr.bf16.mxu0 %v5091
          %7563 = vmatpush1.bf16.msra.mxu0 %v5090
          %7564 = vmatprep.subr.bf16.mxu0 %v5115
          %7565 = vmatpush1.bf16.msra.mxu0 %v5114
          %7566 = vmatprep.subr.bf16.mxu0 %v5139
          %7567 = vmatpush1.bf16.msra.mxu0 %v5138
          %7568 = vmatprep.mubr.bf16.mxu0 %v3985
          %7569 = vmatmul.mubr.bf16.gmra.mrb[0].mxu0 %v3984
          %v7570 = vpop.f32.mrb[0].mxu0
          %v7571 = vadd.f32 %v7530, %v7570
          %v7572 = vpop.f32.mrb[0].mxu0
          %v7573 = vadd.f32 %v7532, %v7572
          %v7574 = vpop.f32.mrb[0].mxu0
          %v7575 = vpop.f32.mrb[0].mxu0
          %7576 = vdwg.mxu0
          %7577 = vmatprep.subr.bf16.mxu0 %v5163
          %7578 = vmatpush1.bf16.msra.mxu0 %v5162
          %7579 = vmatprep.subr.bf16.mxu0 %v5187
          %7580 = vmatpush1.bf16.msra.mxu0 %v5186
          %7581 = vmatprep.subr.bf16.mxu0 %v5211
          %7582 = vmatpush1.bf16.msra.mxu0 %v5210
          %7583 = vmatprep.subr.bf16.mxu0 %v5235
          %7584 = vmatpush1.bf16.msra.mxu0 %v5234
          %7585 = vmatprep.subr.bf16.mxu0 %v5259
          %7586 = vmatpush1.bf16.msra.mxu0 %v5258
          %7587 = vmatprep.subr.bf16.mxu0 %v5283
          %7588 = vmatpush1.bf16.msra.mxu0 %v5282
          %7589 = vmatprep.subr.bf16.mxu0 %v5307
          %7590 = vmatpush1.bf16.msra.mxu0 %v5306
          %7591 = vmatprep.subr.bf16.mxu0 %v5331
          %7592 = vmatpush1.bf16.msra.mxu0 %v5330
          %7593 = vmatprep.subr.bf16.mxu0 %v5355
          %7594 = vmatpush1.bf16.msra.mxu0 %v5354
          %7595 = vmatprep.subr.bf16.mxu0 %v5379
          %7596 = vmatpush1.bf16.msra.mxu0 %v5378
          %7597 = vmatprep.subr.bf16.mxu0 %v5403
          %7598 = vmatpush1.bf16.msra.mxu0 %v5402
          %7599 = vmatprep.subr.bf16.mxu0 %v5427
          %7600 = vmatpush1.bf16.msra.mxu0 %v5426
          %7601 = vmatprep.subr.bf16.mxu0 %v5451
          %7602 = vmatpush1.bf16.msra.mxu0 %v5450
          %7603 = vmatprep.subr.bf16.mxu0 %v5475
          %7604 = vmatpush1.bf16.msra.mxu0 %v5474
          %7605 = vmatprep.subr.bf16.mxu0 %v5499
          %7606 = vmatpush1.bf16.msra.mxu0 %v5498
          %7607 = vmatprep.subr.bf16.mxu0 %v5523
          %7608 = vmatpush1.bf16.msra.mxu0 %v5522
          %7609 = vmatprep.mubr.bf16.mxu0 %v3987
          %7610 = vmatmul.mubr.bf16.gmra.mrb[0].mxu0 %v3986
          %v7611 = vpop.f32.mrb[0].mxu0
          %v7612 = vadd.f32 %v7571, %v7611
          %v7613 = vpop.f32.mrb[0].mxu0
          %v7614 = vadd.f32 %v7573, %v7613
          %v7615 = vpop.f32.mrb[0].mxu0
          %v7616 = vpop.f32.mrb[0].mxu0
          %7617 = vdwg.mxu0
          %v7642 = vcombine.low %v5808, %v5810
          %v7643 = vcombine.low %v5972, %v5974
          %v7644 = vcombine.low %v6136, %v6138
          %v7645 = vcombine.low %v6300, %v6302
          %v7647 = vunpack.c.l.s4 1966171168
          %v7648 = vunpack.c.0.s8 %v7647
          %v7649 = vlaneseq
          %v7650 = vshrl.u32 %v7649, 7
          %v7651 = vsub.s32 %v7648, %v7650
          %v7652 = vrot.slane %v7642, %v7651
          %v7654 = vunpack.c.l.s4 1966171168
          %v7655 = vunpack.c.0.s8 %v7654
          %v7656 = vlaneseq
          %v7657 = vshrl.u32 %v7656, 7
          %v7658 = vsub.s32 %v7655, %v7657
          %v7659 = vrot.slane %v7643, %v7658
          %v7661 = vunpack.c.l.s4 1966171168
          %v7662 = vunpack.c.0.s8 %v7661
          %v7663 = vlaneseq
          %v7664 = vshrl.u32 %v7663, 7
          %v7665 = vsub.s32 %v7662, %v7664
          %v7666 = vrot.slane %v7644, %v7665
          %v7668 = vunpack.c.l.s4 1966171168
          %v7669 = vunpack.c.0.s8 %v7668
          %v7670 = vlaneseq
          %v7671 = vshrl.u32 %v7670, 7
          %v7672 = vsub.s32 %v7669, %v7671
          %v7673 = vrot.slane %v7645, %v7672
          %v7674 = vcombine.low %v7652, %v7659
          %v7675 = vcombine.low %v7666, %v7673
          %v7677 = vunpack.c.l.s4 1966171168
          %v7678 = vunpack.c.0.s8 %v7677
          %v7679 = vlaneseq
          %v7680 = vshrl.u32 %v7679, 7
          %v7681 = vsub.s32 %v7678, %v7680
          %v7682 = vrot.slane %v7674, %v7681
          %v7684 = vunpack.c.l.s4 1966171168
          %v7685 = vunpack.c.0.s8 %v7684
          %v7686 = vlaneseq
          %v7687 = vshrl.u32 %v7686, 7
          %v7688 = vsub.s32 %v7685, %v7687
          %v7689 = vrot.slane %v7675, %v7688
          %v7690 = vcombine.low %v7682, %v7689
          %v7691 = vcombine.low %v6464, %v6466
          %v7692 = vcombine.low %v6628, %v6630
          %v7693 = vcombine.low %v6792, %v6794
          %v7694 = vcombine.low %v6956, %v6958
          %v7696 = vunpack.c.l.s4 1966171168
          %v7697 = vunpack.c.0.s8 %v7696
          %v7698 = vlaneseq
          %v7699 = vshrl.u32 %v7698, 7
          %v7700 = vsub.s32 %v7697, %v7699
          %v7701 = vrot.slane %v7691, %v7700
          %v7703 = vunpack.c.l.s4 1966171168
          %v7704 = vunpack.c.0.s8 %v7703
          %v7705 = vlaneseq
          %v7706 = vshrl.u32 %v7705, 7
          %v7707 = vsub.s32 %v7704, %v7706
          %v7708 = vrot.slane %v7692, %v7707
          %v7710 = vunpack.c.l.s4 1966171168
          %v7711 = vunpack.c.0.s8 %v7710
          %v7712 = vlaneseq
          %v7713 = vshrl.u32 %v7712, 7
          %v7714 = vsub.s32 %v7711, %v7713
          %v7715 = vrot.slane %v7693, %v7714
          %v7717 = vunpack.c.l.s4 1966171168
          %v7718 = vunpack.c.0.s8 %v7717
          %v7719 = vlaneseq
          %v7720 = vshrl.u32 %v7719, 7
          %v7721 = vsub.s32 %v7718, %v7720
          %v7722 = vrot.slane %v7694, %v7721
          %v7723 = vcombine.low %v7701, %v7708
          %v7724 = vcombine.low %v7715, %v7722
          %v7726 = vunpack.c.l.s4 1966171168
          %v7727 = vunpack.c.0.s8 %v7726
          %v7728 = vlaneseq
          %v7729 = vshrl.u32 %v7728, 7
          %v7730 = vsub.s32 %v7727, %v7729
          %v7731 = vrot.slane %v7723, %v7730
          %v7733 = vunpack.c.l.s4 1966171168
          %v7734 = vunpack.c.0.s8 %v7733
          %v7735 = vlaneseq
          %v7736 = vshrl.u32 %v7735, 7
          %v7737 = vsub.s32 %v7734, %v7736
          %v7738 = vrot.slane %v7724, %v7737
          %v7739 = vcombine.low %v7731, %v7738
          %v7740 = vcombine.low %v7120, %v7122
          %v7741 = vcombine.low %v7284, %v7286
          %v7742 = vcombine.low %v7448, %v7450
          %v7743 = vcombine.low %v7612, %v7614
          %v7745 = vunpack.c.l.s4 1966171168
          %v7746 = vunpack.c.0.s8 %v7745
          %v7747 = vlaneseq
          %v7748 = vshrl.u32 %v7747, 7
          %v7749 = vsub.s32 %v7746, %v7748
          %v7750 = vrot.slane %v7740, %v7749
          %v7752 = vunpack.c.l.s4 1966171168
          %v7753 = vunpack.c.0.s8 %v7752
          %v7754 = vlaneseq
          %v7755 = vshrl.u32 %v7754, 7
          %v7756 = vsub.s32 %v7753, %v7755
          %v7757 = vrot.slane %v7741, %v7756
          %v7759 = vunpack.c.l.s4 1966171168
          %v7760 = vunpack.c.0.s8 %v7759
          %v7761 = vlaneseq
          %v7762 = vshrl.u32 %v7761, 7
          %v7763 = vsub.s32 %v7760, %v7762
          %v7764 = vrot.slane %v7742, %v7763
          %v7766 = vunpack.c.l.s4 1966171168
          %v7767 = vunpack.c.0.s8 %v7766
          %v7768 = vlaneseq
          %v7769 = vshrl.u32 %v7768, 7
          %v7770 = vsub.s32 %v7767, %v7769
          %v7771 = vrot.slane %v7743, %v7770
          %v7772 = vcombine.low %v7750, %v7757
          %v7773 = vcombine.low %v7764, %v7771
          %v7775 = vunpack.c.l.s4 1966171168
          %v7776 = vunpack.c.0.s8 %v7775
          %v7777 = vlaneseq
          %v7778 = vshrl.u32 %v7777, 7
          %v7779 = vsub.s32 %v7776, %v7778
          %v7780 = vrot.slane %v7772, %v7779
          %v7782 = vunpack.c.l.s4 1966171168
          %v7783 = vunpack.c.0.s8 %v7782
          %v7784 = vlaneseq
          %v7785 = vshrl.u32 %v7784, 7
          %v7786 = vsub.s32 %v7783, %v7785
          %v7787 = vrot.slane %v7773, %v7786
          %v7788 = vcombine.low %v7780, %v7787
          %7792 = vst [vmem:[%s624] sm:$0xff] %v7690
          %7793 = vst [vmem:[%s624 + $0x8] sm:$0xff] %v7739
          %7794 = vst [vmem:[%s624 + $0x10] sm:$0xff] %v7788
        $region124: #{pointcloud_autoencoder.1} parent=67 // pred_fallthru
          _
        %p7795 = scmp.lt.s32.totalorder %s36, 1
        %s7796 = scalar_select %p7795, %s36, 1
        %s7797 = smul.addr %s7796, 2
        %s7798 = scalar_lea.vmem %s13, %s7797
        %p7799 = scmp.lt.s32.totalorder %s36, 1
        %s7800 = scalar_select %p7799, %s36, 1
        %s7801 = smul.addr %s7800, 24
        %s7802 = scalar_lea.vmem %s14, %s7801
        // Predicated region
        $region129: #{pointcloud_autoencoder.1} parent=67 // pred_check
          %p7803 = pneg %p321
        $region130: #{pointcloud_autoencoder.1} parent=67 // pred_check_branch
          %7805 = sbr.rel (%p7803) target = $region132
        $region131: #{pointcloud_autoencoder.1} parent=67 // pred_region
          _
        $region132: #{pointcloud_autoencoder.1} parent=67 // pred_fallthru
          _
        // Predicated region
        $region133: #{pointcloud_autoencoder.1} parent=67 // pred_check
          %p7806 = pneg %p347
        $region134: #{pointcloud_autoencoder.1} parent=67 // pred_check_branch
          %7808 = sbr.rel (%p7806) target = $region136
        $region135: #{pointcloud_autoencoder.1} parent=67 // pred_region
          _
        $region136: #{pointcloud_autoencoder.1} parent=67 // pred_fallthru
          _
      $region68: #{pointcloud_autoencoder.1} parent=5 // pred_fallthru
        _
      %p7809 = scmp.le.s32.totalorder 2, %s27
      // Predicated region
      $region137: #{pointcloud_autoencoder.1} parent=5 // pred_check
        %p7810 = pneg %p7809
      $region138: #{pointcloud_autoencoder.1} parent=5 // pred_check_branch
        %7812 = sbr.rel (%p7810) target = $region140
      $region139: #{pointcloud_autoencoder.1} parent=5 // pred_region
        %s7813 = ssub.s32 %s27, 2
        // Predicated region
        $region141: #{pointcloud_autoencoder.1} parent=139 // pred_check
          %p7814 = pneg %p327
        $region142: #{pointcloud_autoencoder.1} parent=139 // pred_check_branch
          %7816 = sbr.rel (%p7814) target = $region144
        $region143: #{pointcloud_autoencoder.1} parent=139 // pred_region
          %p7817 = scmp.lt.s32.totalorder %s38, 1
          %s7818 = scalar_select %p7817, %s38, 1
          %s7819 = smul.addr %s7818, 2
          %s7820 = scalar_lea.vmem %s13, %s7819
        $region144: #{pointcloud_autoencoder.1} parent=139 // pred_fallthru
          _
        // Predicated region
        $region145: #{pointcloud_autoencoder.1} parent=139 // pred_check
          %p7821 = pneg %p353
        $region146: #{pointcloud_autoencoder.1} parent=139 // pred_check_branch
          %7823 = sbr.rel (%p7821) target = $region148
        $region147: #{pointcloud_autoencoder.1} parent=139 // pred_region
          %p7824 = scmp.lt.s32.totalorder %s38, 1
          %s7825 = scalar_select %p7824, %s38, 1
          %s7826 = smul.addr %s7825, 24
          %s7827 = scalar_lea.vmem %s14, %s7826
        $region148: #{pointcloud_autoencoder.1} parent=139 // pred_fallthru
          _
      $region140: #{pointcloud_autoencoder.1} parent=5 // pred_fallthru
        _
    $region6: #{pointcloud_autoencoder.1} parent=1 // loop_footer
      %s31 = sadd.s32 1, %s27
    $region7: #{pointcloud_autoencoder.1} parent=1 // loop_footer_branch
      %26 = sbr.rel target = $region3
    $region8: #{pointcloud_autoencoder.1} parent=1 // loop_exit
      _
    %7828 = vsyncpa [#allocation6], 1
    %s7829 = scalar_lea.sflag [#allocation6], 1
    %7830 = vsyncpa %s7829, 1
    %7831 = vsyncpa [#allocation8], 1
    %7832 = vsyncpa [#allocation11], 1
    %7833 = vsyncpa [#allocation14], 1
    %7834 = vsyncpa [#allocation17], 1
    %7835 = vsyncpa [#allocation20], 1
  %7836 = vsyncmov [#allocation4]
  %s7837 = vpop.sfrf %7836
  %p7838 = scmp.eq.s32.totalorder %s7837, 0
  %p7839 = pneg %p7838
  %7841 = shalt.err (%p7839)

</llo_original>
